<compile_context>
chip_gen: v7x
topology: tpu7x:2x2x1
jax: 0.10.0
libtpu: 0.0.40
codegen_flags: <defaults>
</compile_context>

<pallas_src>
import functools

import numpy as np
import jax
import jax.numpy as jnp
from jax import lax
from jax.experimental import pallas as pl
from jax.experimental.pallas import tpu as pltpu

K = 3        # Conv3d kernel size == MaxPool3d window == MaxPool3d stride
EPS = 1e-5   # BatchNorm eps


def _round_up(x, m):
    return (x + m - 1) // m * m


# ---------------------------------------------------------------------------
# The single fused kernel: conv1+bn+relu+pool1 -> conv2+bn+relu+pool2 -> head.
# One grid step per batch element; everything lives in VMEM.
# ---------------------------------------------------------------------------
def _fused_forward_kernel(p1_ref, w1_ref, b1_ref, s_ref, w2_ref, b2_ref,
                          fc1w_ref, fc1b_ref, s3_ref, t3_ref,
                          fc2w_ref, fc2b_ref,
                          feat_ref, out_ref, *, n_res, n_tap, v2, v2pad):
    w1 = w1_ref[...]                                   # (Kpad, C1)
    b1 = b1_ref[...]                                   # (1, C1)

    # conv1 (+folded BN, bias, ReLU) fused with maxpool1: residue r of the
    # patch tensor holds the im2col rows of every pooled cell for one position
    # inside the 3x3x3 pooling window, so pooling == elementwise max over r.
    pooled = None
    for r in range(n_res):
        h = jnp.dot(p1_ref[0, r], w1, preferred_element_type=jnp.float32)
        h = jnp.maximum(h + b1, 0.0)                   # (CELLpad, C1)
        pooled = h if pooled is None else jnp.maximum(pooled, h)

    # conv2 (+folded BN, bias, ReLU) fused with maxpool2.  s_ref is a constant
    # 0/1 gather matrix: row t*v2pad+v selects the pooled cell feeding tap t of
    # conv2 output voxel v (im2col expressed as an MXU matmul; padded rows and
    # columns of s_ref are zero).
    z = jnp.dot(s_ref[...], pooled, preferred_element_type=jnp.float32)
    acc = jnp.zeros((v2pad, b2_ref.shape[-1]), jnp.float32)
    for t in range(n_tap):
        acc = acc + jnp.dot(z[t * v2pad:(t + 1) * v2pad], w2_ref[t],
                            preferred_element_type=jnp.float32)
    h2 = jnp.maximum(acc + b2_ref[...], 0.0)           # (v2pad, C2)
    feats = jnp.max(h2[:v2, :], axis=0, keepdims=True)  # pool2 -> (1, C2)
    feat_ref[0] = feats

    # head: fc_1 -> ReLU -> bn3 (eval affine) -> fc_2
    y = jnp.dot(feats, fc1w_ref[...], preferred_element_type=jnp.float32)
    y = jnp.maximum(y + fc1b_ref[...], 0.0)
    y = y * s3_ref[...] + t3_ref[...]
    o = jnp.dot(y, fc2w_ref[...], preferred_element_type=jnp.float32) + fc2b_ref[...]
    out_ref[0] = o.astype(out_ref.dtype)


# ---------------------------------------------------------------------------
# Wrapper-side layout plumbing (no FLOPs): im2col in pooling-friendly order
# and the constant conv2 gather matrix.
# ---------------------------------------------------------------------------
def _im2col_pool_order(x, Do, P1, cellpad, kcpad):
    """x: (B, D, H, W, C) -> (B, 27, cellpad, kcpad) patch tensor.

    Row ordering: axis 1 is the residue (rd, rh, rw) inside the 3x3x3 pooling
    window; axis 2 is the pooled cell (pd, ph, pw); axis 3 is (tap, channel).
    """
    B, D, H, W, C = x.shape
    parts = []
    for kd in range(K):
        for kh in range(K):
            for kw in range(K):
                parts.append(x[:, kd:kd + Do, kh:kh + Do, kw:kw + Do, :])
    pat = jnp.stack(parts, axis=4)                     # (B, Do, Do, Do, 27, C)
    pat = pat.reshape(B, Do, Do, Do, K ** 3 * C)
    s = P1 * K
    pat = pat[:, :s, :s, :s, :]                        # floor-mode pooling crop
    pat = pat.reshape(B, P1, K, P1, K, P1, K, K ** 3 * C)
    pat = jnp.transpose(pat, (0, 2, 4, 6, 1, 3, 5, 7))  # (B, rd,rh,rw, pd,ph,pw, KC)
    pat = pat.reshape(B, K ** 3, P1 ** 3, K ** 3 * C)
    return jnp.pad(pat, ((0, 0), (0, 0),
                         (0, cellpad - P1 ** 3),
                         (0, kcpad - K ** 3 * C)))


def _conv2_gather_matrix(P1, O2, v2pad, cellpad):
    s = np.zeros((K ** 3 * v2pad, cellpad), np.float32)
    for kd in range(K):
        for kh in range(K):
            for kw in range(K):
                t = (kd * K + kh) * K + kw
                for od in range(O2):
                    for oh in range(O2):
                        for ow in range(O2):
                            v = (od * O2 + oh) * O2 + ow
                            cell = ((od + kd) * P1 + (oh + kh)) * P1 + (ow + kw)
                            s[t * v2pad + v, cell] = 1.0
    return jnp.asarray(s)


# ---------------------------------------------------------------------------
# Forward pass.
# ---------------------------------------------------------------------------
def cnn_forward(x_ncdhw, p):
    x = jnp.transpose(x_ncdhw, (0, 2, 3, 4, 1)).astype(jnp.float32)  # NCDHW->NDHWC
    B, D, H, W, Cin = x.shape
    Do = D - (K - 1)            # conv1 output spatial
    P1 = Do // K                # pool1 output spatial
    O2 = P1 - (K - 1)           # conv2 output spatial
    assert O2 // K == 1, "head assumes the second pool collapses to 1x1x1"
    ncell, v2 = P1 ** 3, O2 ** 3
    cellpad = _round_up(ncell, 8)
    v2pad = _round_up(v2, 8)
    kc = K ** 3 * Cin
    kcpad = _round_up(kc, 128)

    patches = _im2col_pool_order(x, Do, P1, cellpad, kcpad)   # (B,27,cellpad,kcpad)
    s_mat = _conv2_gather_matrix(P1, O2, v2pad, cellpad)      # (27*v2pad, cellpad)
    w1p = jnp.pad(p["w1"], ((0, kcpad - kc), (0, 0)))         # (kcpad, 6)

    c1 = p["b1"].shape[-1]
    n_out = p["fc2_b"].shape[-1]
    kernel = functools.partial(_fused_forward_kernel,
                               n_res=K ** 3, n_tap=K ** 3, v2=v2, v2pad=v2pad)

    feats, out = pl.pallas_call(
        kernel,
        out_shape=(jax.ShapeDtypeStruct((B, 1, c1), jnp.float32),
                   jax.ShapeDtypeStruct((B, 1, n_out), jnp.float32)),
        grid_spec=pltpu.PrefetchScalarGridSpec(
            num_scalar_prefetch=0,
            grid=(B,),
            in_specs=[
                pl.BlockSpec((1, K ** 3, cellpad, kcpad), lambda b: (b, 0, 0, 0)),
                pl.BlockSpec((kcpad, c1), lambda b: (0, 0)),
                pl.BlockSpec((1, c1), lambda b: (0, 0)),
                pl.BlockSpec((K ** 3 * v2pad, cellpad), lambda b: (0, 0)),
                pl.BlockSpec((K ** 3, c1, c1), lambda b: (0, 0, 0)),
                pl.BlockSpec((1, c1), lambda b: (0, 0)),
                pl.BlockSpec((c1, c1), lambda b: (0, 0)),
                pl.BlockSpec((1, c1), lambda b: (0, 0)),
                pl.BlockSpec((1, c1), lambda b: (0, 0)),
                pl.BlockSpec((1, c1), lambda b: (0, 0)),
                pl.BlockSpec((c1, n_out), lambda b: (0, 0)),
                pl.BlockSpec((1, n_out), lambda b: (0, 0)),
            ],
            out_specs=[
                pl.BlockSpec((1, 1, c1), lambda b: (b, 0, 0)),
                pl.BlockSpec((1, 1, n_out), lambda b: (b, 0, 0)),
            ],
        ),
        compiler_params=pltpu.CompilerParams(
            dimension_semantics=("parallel",)),
    )(patches, w1p, p["b1"], s_mat, p["w2"], p["b2"],
      p["fc1_w"], p["fc1_b"], p["s3"], p["t3"], p["fc2_w"], p["fc2_b"])

    return feats[:, 0, :], out[:, 0, :]


# ---------------------------------------------------------------------------
# Parameter setup (deterministic) + BatchNorm folding (glue).
# ---------------------------------------------------------------------------
def init_params(key, in_channels):
    keys = jax.random.split(key, 20)
    kit = iter(keys)

    def bn_affine(n):
        gamma = jax.random.uniform(next(kit), (n,), jnp.float32, 0.5, 1.5)
        beta = 0.1 * jax.random.normal(next(kit), (n,), jnp.float32)
        running_mean = jnp.zeros((n,), jnp.float32)
        running_var = jnp.ones((n,), jnp.float32)
        scale = gamma / jnp.sqrt(running_var + EPS)
        shift = beta - running_mean * scale
        return scale, shift

    s0, t0 = bn_affine(in_channels)                                       # bn0
    w1_t = 0.1 * jax.random.normal(next(kit), (6, in_channels, K, K, K), jnp.float32)
    cb1 = 0.1 * jax.random.normal(next(kit), (6,), jnp.float32)
    s1, t1 = bn_affine(6)                                                 # bn1
    w2_t = 0.1 * jax.random.normal(next(kit), (6, 6, K, K, K), jnp.float32)
    cb2 = 0.1 * jax.random.normal(next(kit), (6,), jnp.float32)
    s2, t2 = bn_affine(6)                                                 # bn2
    fc1_wt = 0.3 * jax.random.normal(next(kit), (6, 6), jnp.float32)      # (out, in)
    fc1_b = 0.1 * jax.random.normal(next(kit), (6,), jnp.float32)
    s3, t3 = bn_affine(6)                                                 # bn3
    fc2_wt = 0.3 * jax.random.normal(next(kit), (2, 6), jnp.float32)
    fc2_b = 0.1 * jax.random.normal(next(kit), (2,), jnp.float32)

    # fold bn0 (input affine) and bn1 (output affine) into conv1, bn2 into conv2
    w1 = jnp.transpose(w1_t, (2, 3, 4, 1, 0))                             # OIDHW -> DHWIO
    b1 = (cb1 + jnp.einsum("dhwio,i->o", w1, t0)) * s1 + t1
    w1 = w1 * s0[None, None, None, :, None] * s1[None, None, None, None, :]

    w2 = jnp.transpose(w2_t, (2, 3, 4, 1, 0))
    b2 = cb2 * s2 + t2
    w2 = w2 * s2[None, None, None, None, :]

    return dict(
        w1=w1.reshape(K * K * K * in_channels, 6), b1=b1.reshape(1, 6),
        w2=w2.reshape(K * K * K, 6, 6), b2=b2.reshape(1, 6),
        fc1_w=fc1_wt.T, fc1_b=fc1_b.reshape(1, 6),
        s3=s3.reshape(1, 6), t3=t3.reshape(1, 6),
        fc2_w=fc2_wt.T, fc2_b=fc2_b.reshape(1, 2),
    )


# Pure-JAX reference (for an in-script correctness check only).
def reference_forward(x_ncdhw, p):
    x = jnp.transpose(x_ncdhw, (0, 2, 3, 4, 1)).astype(jnp.float32)

    def conv_block(h, wflat, b):
        cin, cout = h.shape[-1], wflat.shape[-1]
        w = wflat.reshape(K, K, K, cin, cout)
        h = lax.conv_general_dilated(
            h, w, window_strides=(1, 1, 1), padding="VALID",
            dimension_numbers=("NDHWC", "DHWIO", "NDHWC"),
            precision=lax.Precision.HIGHEST)
        h = jnp.maximum(h + b[0], 0.0)
        return lax.reduce_window(h, -jnp.inf, lax.max,
                                 (1, K, K, K, 1), (1, K, K, K, 1), "VALID")

    h = conv_block(x, p["w1"], p["b1"])
    h = conv_block(h, p["w2"], p["b2"])
    feats = h.reshape(h.shape[0], -1)
    z = jnp.maximum(feats @ p["fc1_w"] + p["fc1_b"][0], 0.0)
    z = z * p["s3"][0] + p["t3"][0]
    return feats, z @ p["fc2_w"] + p["fc2_b"][0]


if __name__ == "__main__":
    key = jax.random.PRNGKey(0)
    kx, kp = jax.random.split(key)
    # Smallest spatial size that survives two (conv k=3, pool 3/3) stages: 17.
    B, C, D, H, W = 2, 4, 17, 17, 17
    x = jax.random.normal(kx, (B, C, D, H, W), jnp.float32)
    params = init_params(kp, C)

    fwd = jax.jit(cnn_forward)
    feats, out = jax.block_until_ready(fwd(x, params))
    assert out.shape == (B, 2)
    assert feats.shape == (B, 6)

    ref_feats, ref_out = reference_forward(x, params)
    # Tolerances allow for MXU f32 pass accuracy on the conv contractions.
    assert jnp.allclose(feats, ref_feats, atol=2e-2, rtol=2e-2)
    assert jnp.allclose(out, ref_out, atol=5e-2, rtol=5e-2)
    print("KERNEL_OK")
</pallas_src>

<mosaic_0001>
module attributes {stable_mosaic.version = 11 : i64} {
  func.func @_fused_forward_kernel(%arg0: i32, %arg1: memref<1x27x128x128xf32, #tpu.memory_space<vmem>>, %arg2: memref<128x6xf32, #tpu.memory_space<vmem>>, %arg3: memref<1x6xf32, #tpu.memory_space<vmem>>, %arg4: memref<864x128xf32, #tpu.memory_space<vmem>>, %arg5: memref<27x6x6xf32, #tpu.memory_space<vmem>>, %arg6: memref<1x6xf32, #tpu.memory_space<vmem>>, %arg7: memref<6x6xf32, #tpu.memory_space<vmem>>, %arg8: memref<1x6xf32, #tpu.memory_space<vmem>>, %arg9: memref<1x6xf32, #tpu.memory_space<vmem>>, %arg10: memref<1x6xf32, #tpu.memory_space<vmem>>, %arg11: memref<6x2xf32, #tpu.memory_space<vmem>>, %arg12: memref<1x2xf32, #tpu.memory_space<vmem>>, %arg13: memref<1x1x6xf32, #tpu.memory_space<vmem>>, %arg14: memref<1x1x2xf32, #tpu.memory_space<vmem>>) attributes {dimension_semantics = [#tpu.dimension_semantics<parallel>], iteration_bounds = array<i64: 2>, scalar_prefetch = 0 : i64, scratch_operands = 0 : i64, tpu.core_type = #tpu.core_type<tc>, window_params = [{transform_indices = @transform_0, window_bounds = array<i64: 1, 27, 128, 128>}, {pipeline_mode = #tpu.pipeline_mode<synchronous>, transform_indices = @transform_1, window_bounds = array<i64: 128, 6>}, {pipeline_mode = #tpu.pipeline_mode<synchronous>, transform_indices = @transform_2, window_bounds = array<i64: 1, 6>}, {pipeline_mode = #tpu.pipeline_mode<synchronous>, transform_indices = @transform_3, window_bounds = array<i64: 864, 128>}, {pipeline_mode = #tpu.pipeline_mode<synchronous>, transform_indices = @transform_4, window_bounds = array<i64: 27, 6, 6>}, {pipeline_mode = #tpu.pipeline_mode<synchronous>, transform_indices = @transform_5, window_bounds = array<i64: 1, 6>}, {pipeline_mode = #tpu.pipeline_mode<synchronous>, transform_indices = @transform_6, window_bounds = array<i64: 6, 6>}, {pipeline_mode = #tpu.pipeline_mode<synchronous>, transform_indices = @transform_7, window_bounds = array<i64: 1, 6>}, {pipeline_mode = #tpu.pipeline_mode<synchronous>, transform_indices = @transform_8, window_bounds = array<i64: 1, 6>}, {pipeline_mode = #tpu.pipeline_mode<synchronous>, transform_indices = @transform_9, window_bounds = array<i64: 1, 6>}, {pipeline_mode = #tpu.pipeline_mode<synchronous>, transform_indices = @transform_10, window_bounds = array<i64: 6, 2>}, {pipeline_mode = #tpu.pipeline_mode<synchronous>, transform_indices = @transform_11, window_bounds = array<i64: 1, 2>}, {transform_indices = @transform_12, window_bounds = array<i64: 1, 1, 6>}, {transform_indices = @transform_13, window_bounds = array<i64: 1, 1, 2>}]} {
    %c0 = arith.constant 0 : index
    %c0_0 = arith.constant 0 : index
    %0 = vector.load %arg2[%c0, %c0_0] : memref<128x6xf32, #tpu.memory_space<vmem>>, vector<128x6xf32>
    %c0_1 = arith.constant 0 : index
    %c0_2 = arith.constant 0 : index
    %1 = vector.load %arg3[%c0_1, %c0_2] : memref<1x6xf32, #tpu.memory_space<vmem>>, vector<1x6xf32>
    %c0_3 = arith.constant 0 : index
    %c0_4 = arith.constant 0 : index
    %c0_5 = arith.constant 0 : index
    %c0_6 = arith.constant 0 : index
    %2 = vector.load %arg1[%c0_3, %c0_4, %c0_5, %c0_6] : memref<1x27x128x128xf32, #tpu.memory_space<vmem>>, vector<1x1x128x128xf32>
    %3 = vector.shape_cast %2 : vector<1x1x128x128xf32> to vector<128x128xf32>
    %cst = arith.constant dense<0.000000e+00> : vector<128x6xf32>
    %4 = tpu.matmul %3, %0, %cst {dimension_numbers = #tpu.dot_dimension_numbers<[1], [0], [0], [1], [0, 0, 1, 1], [], []>} : vector<128x128xf32>, vector<128x6xf32>, vector<128x6xf32> -> vector<128x6xf32>
    %5 = vector.broadcast %1 : vector<1x6xf32> to vector<128x6xf32>
    %6 = arith.addf %4, %5 : vector<128x6xf32>
    %cst_7 = arith.constant 0.000000e+00 : f32
    %7 = vector.broadcast %cst_7 : f32 to vector<128x6xf32>
    %8 = arith.maximumf %6, %7 : vector<128x6xf32>
    %c0_8 = arith.constant 0 : index
    %c1 = arith.constant 1 : index
    %c0_9 = arith.constant 0 : index
    %c0_10 = arith.constant 0 : index
    %9 = vector.load %arg1[%c0_8, %c1, %c0_9, %c0_10] : memref<1x27x128x128xf32, #tpu.memory_space<vmem>>, vector<1x1x128x128xf32>
    %10 = vector.shape_cast %9 : vector<1x1x128x128xf32> to vector<128x128xf32>
    %cst_11 = arith.constant dense<0.000000e+00> : vector<128x6xf32>
    %11 = tpu.matmul %10, %0, %cst_11 {dimension_numbers = #tpu.dot_dimension_numbers<[1], [0], [0], [1], [0, 0, 1, 1], [], []>} : vector<128x128xf32>, vector<128x6xf32>, vector<128x6xf32> -> vector<128x6xf32>
    %12 = vector.broadcast %1 : vector<1x6xf32> to vector<128x6xf32>
    %13 = arith.addf %11, %12 : vector<128x6xf32>
    %cst_12 = arith.constant 0.000000e+00 : f32
    %14 = vector.broadcast %cst_12 : f32 to vector<128x6xf32>
    %15 = arith.maximumf %13, %14 : vector<128x6xf32>
    %16 = arith.maximumf %8, %15 : vector<128x6xf32>
    %c0_13 = arith.constant 0 : index
    %c2 = arith.constant 2 : index
    %c0_14 = arith.constant 0 : index
    %c0_15 = arith.constant 0 : index
    %17 = vector.load %arg1[%c0_13, %c2, %c0_14, %c0_15] : memref<1x27x128x128xf32, #tpu.memory_space<vmem>>, vector<1x1x128x128xf32>
    %18 = vector.shape_cast %17 : vector<1x1x128x128xf32> to vector<128x128xf32>
    %cst_16 = arith.constant dense<0.000000e+00> : vector<128x6xf32>
    %19 = tpu.matmul %18, %0, %cst_16 {dimension_numbers = #tpu.dot_dimension_numbers<[1], [0], [0], [1], [0, 0, 1, 1], [], []>} : vector<128x128xf32>, vector<128x6xf32>, vector<128x6xf32> -> vector<128x6xf32>
    %20 = vector.broadcast %1 : vector<1x6xf32> to vector<128x6xf32>
    %21 = arith.addf %19, %20 : vector<128x6xf32>
    %cst_17 = arith.constant 0.000000e+00 : f32
    %22 = vector.broadcast %cst_17 : f32 to vector<128x6xf32>
    %23 = arith.maximumf %21, %22 : vector<128x6xf32>
    %24 = arith.maximumf %16, %23 : vector<128x6xf32>
    %c0_18 = arith.constant 0 : index
    %c3 = arith.constant 3 : index
    %c0_19 = arith.constant 0 : index
    %c0_20 = arith.constant 0 : index
    %25 = vector.load %arg1[%c0_18, %c3, %c0_19, %c0_20] : memref<1x27x128x128xf32, #tpu.memory_space<vmem>>, vector<1x1x128x128xf32>
    %26 = vector.shape_cast %25 : vector<1x1x128x128xf32> to vector<128x128xf32>
    %cst_21 = arith.constant dense<0.000000e+00> : vector<128x6xf32>
    %27 = tpu.matmul %26, %0, %cst_21 {dimension_numbers = #tpu.dot_dimension_numbers<[1], [0], [0], [1], [0, 0, 1, 1], [], []>} : vector<128x128xf32>, vector<128x6xf32>, vector<128x6xf32> -> vector<128x6xf32>
    %28 = vector.broadcast %1 : vector<1x6xf32> to vector<128x6xf32>
    %29 = arith.addf %27, %28 : vector<128x6xf32>
    %cst_22 = arith.constant 0.000000e+00 : f32
    %30 = vector.broadcast %cst_22 : f32 to vector<128x6xf32>
    %31 = arith.maximumf %29, %30 : vector<128x6xf32>
    %32 = arith.maximumf %24, %31 : vector<128x6xf32>
    %c0_23 = arith.constant 0 : index
    %c4 = arith.constant 4 : index
    %c0_24 = arith.constant 0 : index
    %c0_25 = arith.constant 0 : index
    %33 = vector.load %arg1[%c0_23, %c4, %c0_24, %c0_25] : memref<1x27x128x128xf32, #tpu.memory_space<vmem>>, vector<1x1x128x128xf32>
    %34 = vector.shape_cast %33 : vector<1x1x128x128xf32> to vector<128x128xf32>
    %cst_26 = arith.constant dense<0.000000e+00> : vector<128x6xf32>
    %35 = tpu.matmul %34, %0, %cst_26 {dimension_numbers = #tpu.dot_dimension_numbers<[1], [0], [0], [1], [0, 0, 1, 1], [], []>} : vector<128x128xf32>, vector<128x6xf32>, vector<128x6xf32> -> vector<128x6xf32>
    %36 = vector.broadcast %1 : vector<1x6xf32> to vector<128x6xf32>
    %37 = arith.addf %35, %36 : vector<128x6xf32>
    %cst_27 = arith.constant 0.000000e+00 : f32
    %38 = vector.broadcast %cst_27 : f32 to vector<128x6xf32>
    %39 = arith.maximumf %37, %38 : vector<128x6xf32>
    %40 = arith.maximumf %32, %39 : vector<128x6xf32>
    %c0_28 = arith.constant 0 : index
    %c5 = arith.constant 5 : index
    %c0_29 = arith.constant 0 : index
    %c0_30 = arith.constant 0 : index
    %41 = vector.load %arg1[%c0_28, %c5, %c0_29, %c0_30] : memref<1x27x128x128xf32, #tpu.memory_space<vmem>>, vector<1x1x128x128xf32>
    %42 = vector.shape_cast %41 : vector<1x1x128x128xf32> to vector<128x128xf32>
    %cst_31 = arith.constant dense<0.000000e+00> : vector<128x6xf32>
    %43 = tpu.matmul %42, %0, %cst_31 {dimension_numbers = #tpu.dot_dimension_numbers<[1], [0], [0], [1], [0, 0, 1, 1], [], []>} : vector<128x128xf32>, vector<128x6xf32>, vector<128x6xf32> -> vector<128x6xf32>
    %44 = vector.broadcast %1 : vector<1x6xf32> to vector<128x6xf32>
    %45 = arith.addf %43, %44 : vector<128x6xf32>
    %cst_32 = arith.constant 0.000000e+00 : f32
    %46 = vector.broadcast %cst_32 : f32 to vector<128x6xf32>
    %47 = arith.maximumf %45, %46 : vector<128x6xf32>
    %48 = arith.maximumf %40, %47 : vector<128x6xf32>
    %c0_33 = arith.constant 0 : index
    %c6 = arith.constant 6 : index
    %c0_34 = arith.constant 0 : index
    %c0_35 = arith.constant 0 : index
    %49 = vector.load %arg1[%c0_33, %c6, %c0_34, %c0_35] : memref<1x27x128x128xf32, #tpu.memory_space<vmem>>, vector<1x1x128x128xf32>
    %50 = vector.shape_cast %49 : vector<1x1x128x128xf32> to vector<128x128xf32>
    %cst_36 = arith.constant dense<0.000000e+00> : vector<128x6xf32>
    %51 = tpu.matmul %50, %0, %cst_36 {dimension_numbers = #tpu.dot_dimension_numbers<[1], [0], [0], [1], [0, 0, 1, 1], [], []>} : vector<128x128xf32>, vector<128x6xf32>, vector<128x6xf32> -> vector<128x6xf32>
    %52 = vector.broadcast %1 : vector<1x6xf32> to vector<128x6xf32>
    %53 = arith.addf %51, %52 : vector<128x6xf32>
    %cst_37 = arith.constant 0.000000e+00 : f32
    %54 = vector.broadcast %cst_37 : f32 to vector<128x6xf32>
    %55 = arith.maximumf %53, %54 : vector<128x6xf32>
    %56 = arith.maximumf %48, %55 : vector<128x6xf32>
    %c0_38 = arith.constant 0 : index
    %c7 = arith.constant 7 : index
    %c0_39 = arith.constant 0 : index
    %c0_40 = arith.constant 0 : index
    %57 = vector.load %arg1[%c0_38, %c7, %c0_39, %c0_40] : memref<1x27x128x128xf32, #tpu.memory_space<vmem>>, vector<1x1x128x128xf32>
    %58 = vector.shape_cast %57 : vector<1x1x128x128xf32> to vector<128x128xf32>
    %cst_41 = arith.constant dense<0.000000e+00> : vector<128x6xf32>
    %59 = tpu.matmul %58, %0, %cst_41 {dimension_numbers = #tpu.dot_dimension_numbers<[1], [0], [0], [1], [0, 0, 1, 1], [], []>} : vector<128x128xf32>, vector<128x6xf32>, vector<128x6xf32> -> vector<128x6xf32>
    %60 = vector.broadcast %1 : vector<1x6xf32> to vector<128x6xf32>
    %61 = arith.addf %59, %60 : vector<128x6xf32>
    %cst_42 = arith.constant 0.000000e+00 : f32
    %62 = vector.broadcast %cst_42 : f32 to vector<128x6xf32>
    %63 = arith.maximumf %61, %62 : vector<128x6xf32>
    %64 = arith.maximumf %56, %63 : vector<128x6xf32>
    %c0_43 = arith.constant 0 : index
    %c8 = arith.constant 8 : index
    %c0_44 = arith.constant 0 : index
    %c0_45 = arith.constant 0 : index
    %65 = vector.load %arg1[%c0_43, %c8, %c0_44, %c0_45] : memref<1x27x128x128xf32, #tpu.memory_space<vmem>>, vector<1x1x128x128xf32>
    %66 = vector.shape_cast %65 : vector<1x1x128x128xf32> to vector<128x128xf32>
    %cst_46 = arith.constant dense<0.000000e+00> : vector<128x6xf32>
    %67 = tpu.matmul %66, %0, %cst_46 {dimension_numbers = #tpu.dot_dimension_numbers<[1], [0], [0], [1], [0, 0, 1, 1], [], []>} : vector<128x128xf32>, vector<128x6xf32>, vector<128x6xf32> -> vector<128x6xf32>
    %68 = vector.broadcast %1 : vector<1x6xf32> to vector<128x6xf32>
    %69 = arith.addf %67, %68 : vector<128x6xf32>
    %cst_47 = arith.constant 0.000000e+00 : f32
    %70 = vector.broadcast %cst_47 : f32 to vector<128x6xf32>
    %71 = arith.maximumf %69, %70 : vector<128x6xf32>
    %72 = arith.maximumf %64, %71 : vector<128x6xf32>
    %c0_48 = arith.constant 0 : index
    %c9 = arith.constant 9 : index
    %c0_49 = arith.constant 0 : index
    %c0_50 = arith.constant 0 : index
    %73 = vector.load %arg1[%c0_48, %c9, %c0_49, %c0_50] : memref<1x27x128x128xf32, #tpu.memory_space<vmem>>, vector<1x1x128x128xf32>
    %74 = vector.shape_cast %73 : vector<1x1x128x128xf32> to vector<128x128xf32>
    %cst_51 = arith.constant dense<0.000000e+00> : vector<128x6xf32>
    %75 = tpu.matmul %74, %0, %cst_51 {dimension_numbers = #tpu.dot_dimension_numbers<[1], [0], [0], [1], [0, 0, 1, 1], [], []>} : vector<128x128xf32>, vector<128x6xf32>, vector<128x6xf32> -> vector<128x6xf32>
    %76 = vector.broadcast %1 : vector<1x6xf32> to vector<128x6xf32>
    %77 = arith.addf %75, %76 : vector<128x6xf32>
    %cst_52 = arith.constant 0.000000e+00 : f32
    %78 = vector.broadcast %cst_52 : f32 to vector<128x6xf32>
    %79 = arith.maximumf %77, %78 : vector<128x6xf32>
    %80 = arith.maximumf %72, %79 : vector<128x6xf32>
    %c0_53 = arith.constant 0 : index
    %c10 = arith.constant 10 : index
    %c0_54 = arith.constant 0 : index
    %c0_55 = arith.constant 0 : index
    %81 = vector.load %arg1[%c0_53, %c10, %c0_54, %c0_55] : memref<1x27x128x128xf32, #tpu.memory_space<vmem>>, vector<1x1x128x128xf32>
    %82 = vector.shape_cast %81 : vector<1x1x128x128xf32> to vector<128x128xf32>
    %cst_56 = arith.constant dense<0.000000e+00> : vector<128x6xf32>
    %83 = tpu.matmul %82, %0, %cst_56 {dimension_numbers = #tpu.dot_dimension_numbers<[1], [0], [0], [1], [0, 0, 1, 1], [], []>} : vector<128x128xf32>, vector<128x6xf32>, vector<128x6xf32> -> vector<128x6xf32>
    %84 = vector.broadcast %1 : vector<1x6xf32> to vector<128x6xf32>
    %85 = arith.addf %83, %84 : vector<128x6xf32>
    %cst_57 = arith.constant 0.000000e+00 : f32
    %86 = vector.broadcast %cst_57 : f32 to vector<128x6xf32>
    %87 = arith.maximumf %85, %86 : vector<128x6xf32>
    %88 = arith.maximumf %80, %87 : vector<128x6xf32>
    %c0_58 = arith.constant 0 : index
    %c11 = arith.constant 11 : index
    %c0_59 = arith.constant 0 : index
    %c0_60 = arith.constant 0 : index
    %89 = vector.load %arg1[%c0_58, %c11, %c0_59, %c0_60] : memref<1x27x128x128xf32, #tpu.memory_space<vmem>>, vector<1x1x128x128xf32>
    %90 = vector.shape_cast %89 : vector<1x1x128x128xf32> to vector<128x128xf32>
    %cst_61 = arith.constant dense<0.000000e+00> : vector<128x6xf32>
    %91 = tpu.matmul %90, %0, %cst_61 {dimension_numbers = #tpu.dot_dimension_numbers<[1], [0], [0], [1], [0, 0, 1, 1], [], []>} : vector<128x128xf32>, vector<128x6xf32>, vector<128x6xf32> -> vector<128x6xf32>
    %92 = vector.broadcast %1 : vector<1x6xf32> to vector<128x6xf32>
    %93 = arith.addf %91, %92 : vector<128x6xf32>
    %cst_62 = arith.constant 0.000000e+00 : f32
    %94 = vector.broadcast %cst_62 : f32 to vector<128x6xf32>
    %95 = arith.maximumf %93, %94 : vector<128x6xf32>
    %96 = arith.maximumf %88, %95 : vector<128x6xf32>
    %c0_63 = arith.constant 0 : index
    %c12 = arith.constant 12 : index
    %c0_64 = arith.constant 0 : index
    %c0_65 = arith.constant 0 : index
    %97 = vector.load %arg1[%c0_63, %c12, %c0_64, %c0_65] : memref<1x27x128x128xf32, #tpu.memory_space<vmem>>, vector<1x1x128x128xf32>
    %98 = vector.shape_cast %97 : vector<1x1x128x128xf32> to vector<128x128xf32>
    %cst_66 = arith.constant dense<0.000000e+00> : vector<128x6xf32>
    %99 = tpu.matmul %98, %0, %cst_66 {dimension_numbers = #tpu.dot_dimension_numbers<[1], [0], [0], [1], [0, 0, 1, 1], [], []>} : vector<128x128xf32>, vector<128x6xf32>, vector<128x6xf32> -> vector<128x6xf32>
    %100 = vector.broadcast %1 : vector<1x6xf32> to vector<128x6xf32>
    %101 = arith.addf %99, %100 : vector<128x6xf32>
    %cst_67 = arith.constant 0.000000e+00 : f32
    %102 = vector.broadcast %cst_67 : f32 to vector<128x6xf32>
    %103 = arith.maximumf %101, %102 : vector<128x6xf32>
    %104 = arith.maximumf %96, %103 : vector<128x6xf32>
    %c0_68 = arith.constant 0 : index
    %c13 = arith.constant 13 : index
    %c0_69 = arith.constant 0 : index
    %c0_70 = arith.constant 0 : index
    %105 = vector.load %arg1[%c0_68, %c13, %c0_69, %c0_70] : memref<1x27x128x128xf32, #tpu.memory_space<vmem>>, vector<1x1x128x128xf32>
    %106 = vector.shape_cast %105 : vector<1x1x128x128xf32> to vector<128x128xf32>
    %cst_71 = arith.constant dense<0.000000e+00> : vector<128x6xf32>
    %107 = tpu.matmul %106, %0, %cst_71 {dimension_numbers = #tpu.dot_dimension_numbers<[1], [0], [0], [1], [0, 0, 1, 1], [], []>} : vector<128x128xf32>, vector<128x6xf32>, vector<128x6xf32> -> vector<128x6xf32>
    %108 = vector.broadcast %1 : vector<1x6xf32> to vector<128x6xf32>
    %109 = arith.addf %107, %108 : vector<128x6xf32>
    %cst_72 = arith.constant 0.000000e+00 : f32
    %110 = vector.broadcast %cst_72 : f32 to vector<128x6xf32>
    %111 = arith.maximumf %109, %110 : vector<128x6xf32>
    %112 = arith.maximumf %104, %111 : vector<128x6xf32>
    %c0_73 = arith.constant 0 : index
    %c14 = arith.constant 14 : index
    %c0_74 = arith.constant 0 : index
    %c0_75 = arith.constant 0 : index
    %113 = vector.load %arg1[%c0_73, %c14, %c0_74, %c0_75] : memref<1x27x128x128xf32, #tpu.memory_space<vmem>>, vector<1x1x128x128xf32>
    %114 = vector.shape_cast %113 : vector<1x1x128x128xf32> to vector<128x128xf32>
    %cst_76 = arith.constant dense<0.000000e+00> : vector<128x6xf32>
    %115 = tpu.matmul %114, %0, %cst_76 {dimension_numbers = #tpu.dot_dimension_numbers<[1], [0], [0], [1], [0, 0, 1, 1], [], []>} : vector<128x128xf32>, vector<128x6xf32>, vector<128x6xf32> -> vector<128x6xf32>
    %116 = vector.broadcast %1 : vector<1x6xf32> to vector<128x6xf32>
    %117 = arith.addf %115, %116 : vector<128x6xf32>
    %cst_77 = arith.constant 0.000000e+00 : f32
    %118 = vector.broadcast %cst_77 : f32 to vector<128x6xf32>
    %119 = arith.maximumf %117, %118 : vector<128x6xf32>
    %120 = arith.maximumf %112, %119 : vector<128x6xf32>
    %c0_78 = arith.constant 0 : index
    %c15 = arith.constant 15 : index
    %c0_79 = arith.constant 0 : index
    %c0_80 = arith.constant 0 : index
    %121 = vector.load %arg1[%c0_78, %c15, %c0_79, %c0_80] : memref<1x27x128x128xf32, #tpu.memory_space<vmem>>, vector<1x1x128x128xf32>
    %122 = vector.shape_cast %121 : vector<1x1x128x128xf32> to vector<128x128xf32>
    %cst_81 = arith.constant dense<0.000000e+00> : vector<128x6xf32>
    %123 = tpu.matmul %122, %0, %cst_81 {dimension_numbers = #tpu.dot_dimension_numbers<[1], [0], [0], [1], [0, 0, 1, 1], [], []>} : vector<128x128xf32>, vector<128x6xf32>, vector<128x6xf32> -> vector<128x6xf32>
    %124 = vector.broadcast %1 : vector<1x6xf32> to vector<128x6xf32>
    %125 = arith.addf %123, %124 : vector<128x6xf32>
    %cst_82 = arith.constant 0.000000e+00 : f32
    %126 = vector.broadcast %cst_82 : f32 to vector<128x6xf32>
    %127 = arith.maximumf %125, %126 : vector<128x6xf32>
    %128 = arith.maximumf %120, %127 : vector<128x6xf32>
    %c0_83 = arith.constant 0 : index
    %c16 = arith.constant 16 : index
    %c0_84 = arith.constant 0 : index
    %c0_85 = arith.constant 0 : index
    %129 = vector.load %arg1[%c0_83, %c16, %c0_84, %c0_85] : memref<1x27x128x128xf32, #tpu.memory_space<vmem>>, vector<1x1x128x128xf32>
    %130 = vector.shape_cast %129 : vector<1x1x128x128xf32> to vector<128x128xf32>
    %cst_86 = arith.constant dense<0.000000e+00> : vector<128x6xf32>
    %131 = tpu.matmul %130, %0, %cst_86 {dimension_numbers = #tpu.dot_dimension_numbers<[1], [0], [0], [1], [0, 0, 1, 1], [], []>} : vector<128x128xf32>, vector<128x6xf32>, vector<128x6xf32> -> vector<128x6xf32>
    %132 = vector.broadcast %1 : vector<1x6xf32> to vector<128x6xf32>
    %133 = arith.addf %131, %132 : vector<128x6xf32>
    %cst_87 = arith.constant 0.000000e+00 : f32
    %134 = vector.broadcast %cst_87 : f32 to vector<128x6xf32>
    %135 = arith.maximumf %133, %134 : vector<128x6xf32>
    %136 = arith.maximumf %128, %135 : vector<128x6xf32>
    %c0_88 = arith.constant 0 : index
    %c17 = arith.constant 17 : index
    %c0_89 = arith.constant 0 : index
    %c0_90 = arith.constant 0 : index
    %137 = vector.load %arg1[%c0_88, %c17, %c0_89, %c0_90] : memref<1x27x128x128xf32, #tpu.memory_space<vmem>>, vector<1x1x128x128xf32>
    %138 = vector.shape_cast %137 : vector<1x1x128x128xf32> to vector<128x128xf32>
    %cst_91 = arith.constant dense<0.000000e+00> : vector<128x6xf32>
    %139 = tpu.matmul %138, %0, %cst_91 {dimension_numbers = #tpu.dot_dimension_numbers<[1], [0], [0], [1], [0, 0, 1, 1], [], []>} : vector<128x128xf32>, vector<128x6xf32>, vector<128x6xf32> -> vector<128x6xf32>
    %140 = vector.broadcast %1 : vector<1x6xf32> to vector<128x6xf32>
    %141 = arith.addf %139, %140 : vector<128x6xf32>
    %cst_92 = arith.constant 0.000000e+00 : f32
    %142 = vector.broadcast %cst_92 : f32 to vector<128x6xf32>
    %143 = arith.maximumf %141, %142 : vector<128x6xf32>
    %144 = arith.maximumf %136, %143 : vector<128x6xf32>
    %c0_93 = arith.constant 0 : index
    %c18 = arith.constant 18 : index
    %c0_94 = arith.constant 0 : index
    %c0_95 = arith.constant 0 : index
    %145 = vector.load %arg1[%c0_93, %c18, %c0_94, %c0_95] : memref<1x27x128x128xf32, #tpu.memory_space<vmem>>, vector<1x1x128x128xf32>
    %146 = vector.shape_cast %145 : vector<1x1x128x128xf32> to vector<128x128xf32>
    %cst_96 = arith.constant dense<0.000000e+00> : vector<128x6xf32>
    %147 = tpu.matmul %146, %0, %cst_96 {dimension_numbers = #tpu.dot_dimension_numbers<[1], [0], [0], [1], [0, 0, 1, 1], [], []>} : vector<128x128xf32>, vector<128x6xf32>, vector<128x6xf32> -> vector<128x6xf32>
    %148 = vector.broadcast %1 : vector<1x6xf32> to vector<128x6xf32>
    %149 = arith.addf %147, %148 : vector<128x6xf32>
    %cst_97 = arith.constant 0.000000e+00 : f32
    %150 = vector.broadcast %cst_97 : f32 to vector<128x6xf32>
    %151 = arith.maximumf %149, %150 : vector<128x6xf32>
    %152 = arith.maximumf %144, %151 : vector<128x6xf32>
    %c0_98 = arith.constant 0 : index
    %c19 = arith.constant 19 : index
    %c0_99 = arith.constant 0 : index
    %c0_100 = arith.constant 0 : index
    %153 = vector.load %arg1[%c0_98, %c19, %c0_99, %c0_100] : memref<1x27x128x128xf32, #tpu.memory_space<vmem>>, vector<1x1x128x128xf32>
    %154 = vector.shape_cast %153 : vector<1x1x128x128xf32> to vector<128x128xf32>
    %cst_101 = arith.constant dense<0.000000e+00> : vector<128x6xf32>
    %155 = tpu.matmul %154, %0, %cst_101 {dimension_numbers = #tpu.dot_dimension_numbers<[1], [0], [0], [1], [0, 0, 1, 1], [], []>} : vector<128x128xf32>, vector<128x6xf32>, vector<128x6xf32> -> vector<128x6xf32>
    %156 = vector.broadcast %1 : vector<1x6xf32> to vector<128x6xf32>
    %157 = arith.addf %155, %156 : vector<128x6xf32>
    %cst_102 = arith.constant 0.000000e+00 : f32
    %158 = vector.broadcast %cst_102 : f32 to vector<128x6xf32>
    %159 = arith.maximumf %157, %158 : vector<128x6xf32>
    %160 = arith.maximumf %152, %159 : vector<128x6xf32>
    %c0_103 = arith.constant 0 : index
    %c20 = arith.constant 20 : index
    %c0_104 = arith.constant 0 : index
    %c0_105 = arith.constant 0 : index
    %161 = vector.load %arg1[%c0_103, %c20, %c0_104, %c0_105] : memref<1x27x128x128xf32, #tpu.memory_space<vmem>>, vector<1x1x128x128xf32>
    %162 = vector.shape_cast %161 : vector<1x1x128x128xf32> to vector<128x128xf32>
    %cst_106 = arith.constant dense<0.000000e+00> : vector<128x6xf32>
    %163 = tpu.matmul %162, %0, %cst_106 {dimension_numbers = #tpu.dot_dimension_numbers<[1], [0], [0], [1], [0, 0, 1, 1], [], []>} : vector<128x128xf32>, vector<128x6xf32>, vector<128x6xf32> -> vector<128x6xf32>
    %164 = vector.broadcast %1 : vector<1x6xf32> to vector<128x6xf32>
    %165 = arith.addf %163, %164 : vector<128x6xf32>
    %cst_107 = arith.constant 0.000000e+00 : f32
    %166 = vector.broadcast %cst_107 : f32 to vector<128x6xf32>
    %167 = arith.maximumf %165, %166 : vector<128x6xf32>
    %168 = arith.maximumf %160, %167 : vector<128x6xf32>
    %c0_108 = arith.constant 0 : index
    %c21 = arith.constant 21 : index
    %c0_109 = arith.constant 0 : index
    %c0_110 = arith.constant 0 : index
    %169 = vector.load %arg1[%c0_108, %c21, %c0_109, %c0_110] : memref<1x27x128x128xf32, #tpu.memory_space<vmem>>, vector<1x1x128x128xf32>
    %170 = vector.shape_cast %169 : vector<1x1x128x128xf32> to vector<128x128xf32>
    %cst_111 = arith.constant dense<0.000000e+00> : vector<128x6xf32>
    %171 = tpu.matmul %170, %0, %cst_111 {dimension_numbers = #tpu.dot_dimension_numbers<[1], [0], [0], [1], [0, 0, 1, 1], [], []>} : vector<128x128xf32>, vector<128x6xf32>, vector<128x6xf32> -> vector<128x6xf32>
    %172 = vector.broadcast %1 : vector<1x6xf32> to vector<128x6xf32>
    %173 = arith.addf %171, %172 : vector<128x6xf32>
    %cst_112 = arith.constant 0.000000e+00 : f32
    %174 = vector.broadcast %cst_112 : f32 to vector<128x6xf32>
    %175 = arith.maximumf %173, %174 : vector<128x6xf32>
    %176 = arith.maximumf %168, %175 : vector<128x6xf32>
    %c0_113 = arith.constant 0 : index
    %c22 = arith.constant 22 : index
    %c0_114 = arith.constant 0 : index
    %c0_115 = arith.constant 0 : index
    %177 = vector.load %arg1[%c0_113, %c22, %c0_114, %c0_115] : memref<1x27x128x128xf32, #tpu.memory_space<vmem>>, vector<1x1x128x128xf32>
    %178 = vector.shape_cast %177 : vector<1x1x128x128xf32> to vector<128x128xf32>
    %cst_116 = arith.constant dense<0.000000e+00> : vector<128x6xf32>
    %179 = tpu.matmul %178, %0, %cst_116 {dimension_numbers = #tpu.dot_dimension_numbers<[1], [0], [0], [1], [0, 0, 1, 1], [], []>} : vector<128x128xf32>, vector<128x6xf32>, vector<128x6xf32> -> vector<128x6xf32>
    %180 = vector.broadcast %1 : vector<1x6xf32> to vector<128x6xf32>
    %181 = arith.addf %179, %180 : vector<128x6xf32>
    %cst_117 = arith.constant 0.000000e+00 : f32
    %182 = vector.broadcast %cst_117 : f32 to vector<128x6xf32>
    %183 = arith.maximumf %181, %182 : vector<128x6xf32>
    %184 = arith.maximumf %176, %183 : vector<128x6xf32>
    %c0_118 = arith.constant 0 : index
    %c23 = arith.constant 23 : index
    %c0_119 = arith.constant 0 : index
    %c0_120 = arith.constant 0 : index
    %185 = vector.load %arg1[%c0_118, %c23, %c0_119, %c0_120] : memref<1x27x128x128xf32, #tpu.memory_space<vmem>>, vector<1x1x128x128xf32>
    %186 = vector.shape_cast %185 : vector<1x1x128x128xf32> to vector<128x128xf32>
    %cst_121 = arith.constant dense<0.000000e+00> : vector<128x6xf32>
    %187 = tpu.matmul %186, %0, %cst_121 {dimension_numbers = #tpu.dot_dimension_numbers<[1], [0], [0], [1], [0, 0, 1, 1], [], []>} : vector<128x128xf32>, vector<128x6xf32>, vector<128x6xf32> -> vector<128x6xf32>
    %188 = vector.broadcast %1 : vector<1x6xf32> to vector<128x6xf32>
    %189 = arith.addf %187, %188 : vector<128x6xf32>
    %cst_122 = arith.constant 0.000000e+00 : f32
    %190 = vector.broadcast %cst_122 : f32 to vector<128x6xf32>
    %191 = arith.maximumf %189, %190 : vector<128x6xf32>
    %192 = arith.maximumf %184, %191 : vector<128x6xf32>
    %c0_123 = arith.constant 0 : index
    %c24 = arith.constant 24 : index
    %c0_124 = arith.constant 0 : index
    %c0_125 = arith.constant 0 : index
    %193 = vector.load %arg1[%c0_123, %c24, %c0_124, %c0_125] : memref<1x27x128x128xf32, #tpu.memory_space<vmem>>, vector<1x1x128x128xf32>
    %194 = vector.shape_cast %193 : vector<1x1x128x128xf32> to vector<128x128xf32>
    %cst_126 = arith.constant dense<0.000000e+00> : vector<128x6xf32>
    %195 = tpu.matmul %194, %0, %cst_126 {dimension_numbers = #tpu.dot_dimension_numbers<[1], [0], [0], [1], [0, 0, 1, 1], [], []>} : vector<128x128xf32>, vector<128x6xf32>, vector<128x6xf32> -> vector<128x6xf32>
    %196 = vector.broadcast %1 : vector<1x6xf32> to vector<128x6xf32>
    %197 = arith.addf %195, %196 : vector<128x6xf32>
    %cst_127 = arith.constant 0.000000e+00 : f32
    %198 = vector.broadcast %cst_127 : f32 to vector<128x6xf32>
    %199 = arith.maximumf %197, %198 : vector<128x6xf32>
    %200 = arith.maximumf %192, %199 : vector<128x6xf32>
    %c0_128 = arith.constant 0 : index
    %c25 = arith.constant 25 : index
    %c0_129 = arith.constant 0 : index
    %c0_130 = arith.constant 0 : index
    %201 = vector.load %arg1[%c0_128, %c25, %c0_129, %c0_130] : memref<1x27x128x128xf32, #tpu.memory_space<vmem>>, vector<1x1x128x128xf32>
    %202 = vector.shape_cast %201 : vector<1x1x128x128xf32> to vector<128x128xf32>
    %cst_131 = arith.constant dense<0.000000e+00> : vector<128x6xf32>
    %203 = tpu.matmul %202, %0, %cst_131 {dimension_numbers = #tpu.dot_dimension_numbers<[1], [0], [0], [1], [0, 0, 1, 1], [], []>} : vector<128x128xf32>, vector<128x6xf32>, vector<128x6xf32> -> vector<128x6xf32>
    %204 = vector.broadcast %1 : vector<1x6xf32> to vector<128x6xf32>
    %205 = arith.addf %203, %204 : vector<128x6xf32>
    %cst_132 = arith.constant 0.000000e+00 : f32
    %206 = vector.broadcast %cst_132 : f32 to vector<128x6xf32>
    %207 = arith.maximumf %205, %206 : vector<128x6xf32>
    %208 = arith.maximumf %200, %207 : vector<128x6xf32>
    %c0_133 = arith.constant 0 : index
    %c26 = arith.constant 26 : index
    %c0_134 = arith.constant 0 : index
    %c0_135 = arith.constant 0 : index
    %209 = vector.load %arg1[%c0_133, %c26, %c0_134, %c0_135] : memref<1x27x128x128xf32, #tpu.memory_space<vmem>>, vector<1x1x128x128xf32>
    %210 = vector.shape_cast %209 : vector<1x1x128x128xf32> to vector<128x128xf32>
    %cst_136 = arith.constant dense<0.000000e+00> : vector<128x6xf32>
    %211 = tpu.matmul %210, %0, %cst_136 {dimension_numbers = #tpu.dot_dimension_numbers<[1], [0], [0], [1], [0, 0, 1, 1], [], []>} : vector<128x128xf32>, vector<128x6xf32>, vector<128x6xf32> -> vector<128x6xf32>
    %212 = vector.broadcast %1 : vector<1x6xf32> to vector<128x6xf32>
    %213 = arith.addf %211, %212 : vector<128x6xf32>
    %cst_137 = arith.constant 0.000000e+00 : f32
    %214 = vector.broadcast %cst_137 : f32 to vector<128x6xf32>
    %215 = arith.maximumf %213, %214 : vector<128x6xf32>
    %216 = arith.maximumf %208, %215 : vector<128x6xf32>
    %c0_138 = arith.constant 0 : index
    %c0_139 = arith.constant 0 : index
    %217 = vector.load %arg4[%c0_138, %c0_139] : memref<864x128xf32, #tpu.memory_space<vmem>>, vector<864x128xf32>
    %cst_140 = arith.constant dense<0.000000e+00> : vector<864x6xf32>
    %218 = tpu.matmul %217, %216, %cst_140 {dimension_numbers = #tpu.dot_dimension_numbers<[1], [0], [0], [1], [0, 0, 1, 1], [], []>} : vector<864x128xf32>, vector<128x6xf32>, vector<864x6xf32> -> vector<864x6xf32>
    %cst_141 = arith.constant 0.000000e+00 : f32
    %219 = vector.broadcast %cst_141 : f32 to vector<32x6xf32>
    %220 = vector.extract_strided_slice %218 {offsets = [0, 0], sizes = [32, 6], strides = [1, 1]} : vector<864x6xf32> to vector<32x6xf32>
    %c0_142 = arith.constant 0 : index
    %c0_143 = arith.constant 0 : index
    %c0_144 = arith.constant 0 : index
    %221 = vector.load %arg5[%c0_142, %c0_143, %c0_144] : memref<27x6x6xf32, #tpu.memory_space<vmem>>, vector<1x6x6xf32>
    %222 = vector.shape_cast %221 : vector<1x6x6xf32> to vector<6x6xf32>
    %cst_145 = arith.constant dense<0.000000e+00> : vector<32x6xf32>
    %223 = tpu.matmul %220, %222, %cst_145 {dimension_numbers = #tpu.dot_dimension_numbers<[1], [0], [0], [1], [0, 0, 1, 1], [], []>} : vector<32x6xf32>, vector<6x6xf32>, vector<32x6xf32> -> vector<32x6xf32>
    %224 = arith.addf %219, %223 : vector<32x6xf32>
    %225 = vector.extract_strided_slice %218 {offsets = [32, 0], sizes = [32, 6], strides = [1, 1]} : vector<864x6xf32> to vector<32x6xf32>
    %c1_146 = arith.constant 1 : index
    %c0_147 = arith.constant 0 : index
    %c0_148 = arith.constant 0 : index
    %226 = vector.load %arg5[%c1_146, %c0_147, %c0_148] : memref<27x6x6xf32, #tpu.memory_space<vmem>>, vector<1x6x6xf32>
    %227 = vector.shape_cast %226 : vector<1x6x6xf32> to vector<6x6xf32>
    %cst_149 = arith.constant dense<0.000000e+00> : vector<32x6xf32>
    %228 = tpu.matmul %225, %227, %cst_149 {dimension_numbers = #tpu.dot_dimension_numbers<[1], [0], [0], [1], [0, 0, 1, 1], [], []>} : vector<32x6xf32>, vector<6x6xf32>, vector<32x6xf32> -> vector<32x6xf32>
    %229 = arith.addf %224, %228 : vector<32x6xf32>
    %230 = vector.extract_strided_slice %218 {offsets = [64, 0], sizes = [32, 6], strides = [1, 1]} : vector<864x6xf32> to vector<32x6xf32>
    %c2_150 = arith.constant 2 : index
    %c0_151 = arith.constant 0 : index
    %c0_152 = arith.constant 0 : index
    %231 = vector.load %arg5[%c2_150, %c0_151, %c0_152] : memref<27x6x6xf32, #tpu.memory_space<vmem>>, vector<1x6x6xf32>
    %232 = vector.shape_cast %231 : vector<1x6x6xf32> to vector<6x6xf32>
    %cst_153 = arith.constant dense<0.000000e+00> : vector<32x6xf32>
    %233 = tpu.matmul %230, %232, %cst_153 {dimension_numbers = #tpu.dot_dimension_numbers<[1], [0], [0], [1], [0, 0, 1, 1], [], []>} : vector<32x6xf32>, vector<6x6xf32>, vector<32x6xf32> -> vector<32x6xf32>
    %234 = arith.addf %229, %233 : vector<32x6xf32>
    %235 = vector.extract_strided_slice %218 {offsets = [96, 0], sizes = [32, 6], strides = [1, 1]} : vector<864x6xf32> to vector<32x6xf32>
    %c3_154 = arith.constant 3 : index
    %c0_155 = arith.constant 0 : index
    %c0_156 = arith.constant 0 : index
    %236 = vector.load %arg5[%c3_154, %c0_155, %c0_156] : memref<27x6x6xf32, #tpu.memory_space<vmem>>, vector<1x6x6xf32>
    %237 = vector.shape_cast %236 : vector<1x6x6xf32> to vector<6x6xf32>
    %cst_157 = arith.constant dense<0.000000e+00> : vector<32x6xf32>
    %238 = tpu.matmul %235, %237, %cst_157 {dimension_numbers = #tpu.dot_dimension_numbers<[1], [0], [0], [1], [0, 0, 1, 1], [], []>} : vector<32x6xf32>, vector<6x6xf32>, vector<32x6xf32> -> vector<32x6xf32>
    %239 = arith.addf %234, %238 : vector<32x6xf32>
    %240 = vector.extract_strided_slice %218 {offsets = [128, 0], sizes = [32, 6], strides = [1, 1]} : vector<864x6xf32> to vector<32x6xf32>
    %c4_158 = arith.constant 4 : index
    %c0_159 = arith.constant 0 : index
    %c0_160 = arith.constant 0 : index
    %241 = vector.load %arg5[%c4_158, %c0_159, %c0_160] : memref<27x6x6xf32, #tpu.memory_space<vmem>>, vector<1x6x6xf32>
    %242 = vector.shape_cast %241 : vector<1x6x6xf32> to vector<6x6xf32>
    %cst_161 = arith.constant dense<0.000000e+00> : vector<32x6xf32>
    %243 = tpu.matmul %240, %242, %cst_161 {dimension_numbers = #tpu.dot_dimension_numbers<[1], [0], [0], [1], [0, 0, 1, 1], [], []>} : vector<32x6xf32>, vector<6x6xf32>, vector<32x6xf32> -> vector<32x6xf32>
    %244 = arith.addf %239, %243 : vector<32x6xf32>
    %245 = vector.extract_strided_slice %218 {offsets = [160, 0], sizes = [32, 6], strides = [1, 1]} : vector<864x6xf32> to vector<32x6xf32>
    %c5_162 = arith.constant 5 : index
    %c0_163 = arith.constant 0 : index
    %c0_164 = arith.constant 0 : index
    %246 = vector.load %arg5[%c5_162, %c0_163, %c0_164] : memref<27x6x6xf32, #tpu.memory_space<vmem>>, vector<1x6x6xf32>
    %247 = vector.shape_cast %246 : vector<1x6x6xf32> to vector<6x6xf32>
    %cst_165 = arith.constant dense<0.000000e+00> : vector<32x6xf32>
    %248 = tpu.matmul %245, %247, %cst_165 {dimension_numbers = #tpu.dot_dimension_numbers<[1], [0], [0], [1], [0, 0, 1, 1], [], []>} : vector<32x6xf32>, vector<6x6xf32>, vector<32x6xf32> -> vector<32x6xf32>
    %249 = arith.addf %244, %248 : vector<32x6xf32>
    %250 = vector.extract_strided_slice %218 {offsets = [192, 0], sizes = [32, 6], strides = [1, 1]} : vector<864x6xf32> to vector<32x6xf32>
    %c6_166 = arith.constant 6 : index
    %c0_167 = arith.constant 0 : index
    %c0_168 = arith.constant 0 : index
    %251 = vector.load %arg5[%c6_166, %c0_167, %c0_168] : memref<27x6x6xf32, #tpu.memory_space<vmem>>, vector<1x6x6xf32>
    %252 = vector.shape_cast %251 : vector<1x6x6xf32> to vector<6x6xf32>
    %cst_169 = arith.constant dense<0.000000e+00> : vector<32x6xf32>
    %253 = tpu.matmul %250, %252, %cst_169 {dimension_numbers = #tpu.dot_dimension_numbers<[1], [0], [0], [1], [0, 0, 1, 1], [], []>} : vector<32x6xf32>, vector<6x6xf32>, vector<32x6xf32> -> vector<32x6xf32>
    %254 = arith.addf %249, %253 : vector<32x6xf32>
    %255 = vector.extract_strided_slice %218 {offsets = [224, 0], sizes = [32, 6], strides = [1, 1]} : vector<864x6xf32> to vector<32x6xf32>
    %c7_170 = arith.constant 7 : index
    %c0_171 = arith.constant 0 : index
    %c0_172 = arith.constant 0 : index
    %256 = vector.load %arg5[%c7_170, %c0_171, %c0_172] : memref<27x6x6xf32, #tpu.memory_space<vmem>>, vector<1x6x6xf32>
    %257 = vector.shape_cast %256 : vector<1x6x6xf32> to vector<6x6xf32>
    %cst_173 = arith.constant dense<0.000000e+00> : vector<32x6xf32>
    %258 = tpu.matmul %255, %257, %cst_173 {dimension_numbers = #tpu.dot_dimension_numbers<[1], [0], [0], [1], [0, 0, 1, 1], [], []>} : vector<32x6xf32>, vector<6x6xf32>, vector<32x6xf32> -> vector<32x6xf32>
    %259 = arith.addf %254, %258 : vector<32x6xf32>
    %260 = vector.extract_strided_slice %218 {offsets = [256, 0], sizes = [32, 6], strides = [1, 1]} : vector<864x6xf32> to vector<32x6xf32>
    %c8_174 = arith.constant 8 : index
    %c0_175 = arith.constant 0 : index
    %c0_176 = arith.constant 0 : index
    %261 = vector.load %arg5[%c8_174, %c0_175, %c0_176] : memref<27x6x6xf32, #tpu.memory_space<vmem>>, vector<1x6x6xf32>
    %262 = vector.shape_cast %261 : vector<1x6x6xf32> to vector<6x6xf32>
    %cst_177 = arith.constant dense<0.000000e+00> : vector<32x6xf32>
    %263 = tpu.matmul %260, %262, %cst_177 {dimension_numbers = #tpu.dot_dimension_numbers<[1], [0], [0], [1], [0, 0, 1, 1], [], []>} : vector<32x6xf32>, vector<6x6xf32>, vector<32x6xf32> -> vector<32x6xf32>
    %264 = arith.addf %259, %263 : vector<32x6xf32>
    %265 = vector.extract_strided_slice %218 {offsets = [288, 0], sizes = [32, 6], strides = [1, 1]} : vector<864x6xf32> to vector<32x6xf32>
    %c9_178 = arith.constant 9 : index
    %c0_179 = arith.constant 0 : index
    %c0_180 = arith.constant 0 : index
    %266 = vector.load %arg5[%c9_178, %c0_179, %c0_180] : memref<27x6x6xf32, #tpu.memory_space<vmem>>, vector<1x6x6xf32>
    %267 = vector.shape_cast %266 : vector<1x6x6xf32> to vector<6x6xf32>
    %cst_181 = arith.constant dense<0.000000e+00> : vector<32x6xf32>
    %268 = tpu.matmul %265, %267, %cst_181 {dimension_numbers = #tpu.dot_dimension_numbers<[1], [0], [0], [1], [0, 0, 1, 1], [], []>} : vector<32x6xf32>, vector<6x6xf32>, vector<32x6xf32> -> vector<32x6xf32>
    %269 = arith.addf %264, %268 : vector<32x6xf32>
    %270 = vector.extract_strided_slice %218 {offsets = [320, 0], sizes = [32, 6], strides = [1, 1]} : vector<864x6xf32> to vector<32x6xf32>
    %c10_182 = arith.constant 10 : index
    %c0_183 = arith.constant 0 : index
    %c0_184 = arith.constant 0 : index
    %271 = vector.load %arg5[%c10_182, %c0_183, %c0_184] : memref<27x6x6xf32, #tpu.memory_space<vmem>>, vector<1x6x6xf32>
    %272 = vector.shape_cast %271 : vector<1x6x6xf32> to vector<6x6xf32>
    %cst_185 = arith.constant dense<0.000000e+00> : vector<32x6xf32>
    %273 = tpu.matmul %270, %272, %cst_185 {dimension_numbers = #tpu.dot_dimension_numbers<[1], [0], [0], [1], [0, 0, 1, 1], [], []>} : vector<32x6xf32>, vector<6x6xf32>, vector<32x6xf32> -> vector<32x6xf32>
    %274 = arith.addf %269, %273 : vector<32x6xf32>
    %275 = vector.extract_strided_slice %218 {offsets = [352, 0], sizes = [32, 6], strides = [1, 1]} : vector<864x6xf32> to vector<32x6xf32>
    %c11_186 = arith.constant 11 : index
    %c0_187 = arith.constant 0 : index
    %c0_188 = arith.constant 0 : index
    %276 = vector.load %arg5[%c11_186, %c0_187, %c0_188] : memref<27x6x6xf32, #tpu.memory_space<vmem>>, vector<1x6x6xf32>
    %277 = vector.shape_cast %276 : vector<1x6x6xf32> to vector<6x6xf32>
    %cst_189 = arith.constant dense<0.000000e+00> : vector<32x6xf32>
    %278 = tpu.matmul %275, %277, %cst_189 {dimension_numbers = #tpu.dot_dimension_numbers<[1], [0], [0], [1], [0, 0, 1, 1], [], []>} : vector<32x6xf32>, vector<6x6xf32>, vector<32x6xf32> -> vector<32x6xf32>
    %279 = arith.addf %274, %278 : vector<32x6xf32>
    %280 = vector.extract_strided_slice %218 {offsets = [384, 0], sizes = [32, 6], strides = [1, 1]} : vector<864x6xf32> to vector<32x6xf32>
    %c12_190 = arith.constant 12 : index
    %c0_191 = arith.constant 0 : index
    %c0_192 = arith.constant 0 : index
    %281 = vector.load %arg5[%c12_190, %c0_191, %c0_192] : memref<27x6x6xf32, #tpu.memory_space<vmem>>, vector<1x6x6xf32>
    %282 = vector.shape_cast %281 : vector<1x6x6xf32> to vector<6x6xf32>
    %cst_193 = arith.constant dense<0.000000e+00> : vector<32x6xf32>
    %283 = tpu.matmul %280, %282, %cst_193 {dimension_numbers = #tpu.dot_dimension_numbers<[1], [0], [0], [1], [0, 0, 1, 1], [], []>} : vector<32x6xf32>, vector<6x6xf32>, vector<32x6xf32> -> vector<32x6xf32>
    %284 = arith.addf %279, %283 : vector<32x6xf32>
    %285 = vector.extract_strided_slice %218 {offsets = [416, 0], sizes = [32, 6], strides = [1, 1]} : vector<864x6xf32> to vector<32x6xf32>
    %c13_194 = arith.constant 13 : index
    %c0_195 = arith.constant 0 : index
    %c0_196 = arith.constant 0 : index
    %286 = vector.load %arg5[%c13_194, %c0_195, %c0_196] : memref<27x6x6xf32, #tpu.memory_space<vmem>>, vector<1x6x6xf32>
    %287 = vector.shape_cast %286 : vector<1x6x6xf32> to vector<6x6xf32>
    %cst_197 = arith.constant dense<0.000000e+00> : vector<32x6xf32>
    %288 = tpu.matmul %285, %287, %cst_197 {dimension_numbers = #tpu.dot_dimension_numbers<[1], [0], [0], [1], [0, 0, 1, 1], [], []>} : vector<32x6xf32>, vector<6x6xf32>, vector<32x6xf32> -> vector<32x6xf32>
    %289 = arith.addf %284, %288 : vector<32x6xf32>
    %290 = vector.extract_strided_slice %218 {offsets = [448, 0], sizes = [32, 6], strides = [1, 1]} : vector<864x6xf32> to vector<32x6xf32>
    %c14_198 = arith.constant 14 : index
    %c0_199 = arith.constant 0 : index
    %c0_200 = arith.constant 0 : index
    %291 = vector.load %arg5[%c14_198, %c0_199, %c0_200] : memref<27x6x6xf32, #tpu.memory_space<vmem>>, vector<1x6x6xf32>
    %292 = vector.shape_cast %291 : vector<1x6x6xf32> to vector<6x6xf32>
    %cst_201 = arith.constant dense<0.000000e+00> : vector<32x6xf32>
    %293 = tpu.matmul %290, %292, %cst_201 {dimension_numbers = #tpu.dot_dimension_numbers<[1], [0], [0], [1], [0, 0, 1, 1], [], []>} : vector<32x6xf32>, vector<6x6xf32>, vector<32x6xf32> -> vector<32x6xf32>
    %294 = arith.addf %289, %293 : vector<32x6xf32>
    %295 = vector.extract_strided_slice %218 {offsets = [480, 0], sizes = [32, 6], strides = [1, 1]} : vector<864x6xf32> to vector<32x6xf32>
    %c15_202 = arith.constant 15 : index
    %c0_203 = arith.constant 0 : index
    %c0_204 = arith.constant 0 : index
    %296 = vector.load %arg5[%c15_202, %c0_203, %c0_204] : memref<27x6x6xf32, #tpu.memory_space<vmem>>, vector<1x6x6xf32>
    %297 = vector.shape_cast %296 : vector<1x6x6xf32> to vector<6x6xf32>
    %cst_205 = arith.constant dense<0.000000e+00> : vector<32x6xf32>
    %298 = tpu.matmul %295, %297, %cst_205 {dimension_numbers = #tpu.dot_dimension_numbers<[1], [0], [0], [1], [0, 0, 1, 1], [], []>} : vector<32x6xf32>, vector<6x6xf32>, vector<32x6xf32> -> vector<32x6xf32>
    %299 = arith.addf %294, %298 : vector<32x6xf32>
    %300 = vector.extract_strided_slice %218 {offsets = [512, 0], sizes = [32, 6], strides = [1, 1]} : vector<864x6xf32> to vector<32x6xf32>
    %c16_206 = arith.constant 16 : index
    %c0_207 = arith.constant 0 : index
    %c0_208 = arith.constant 0 : index
    %301 = vector.load %arg5[%c16_206, %c0_207, %c0_208] : memref<27x6x6xf32, #tpu.memory_space<vmem>>, vector<1x6x6xf32>
    %302 = vector.shape_cast %301 : vector<1x6x6xf32> to vector<6x6xf32>
    %cst_209 = arith.constant dense<0.000000e+00> : vector<32x6xf32>
    %303 = tpu.matmul %300, %302, %cst_209 {dimension_numbers = #tpu.dot_dimension_numbers<[1], [0], [0], [1], [0, 0, 1, 1], [], []>} : vector<32x6xf32>, vector<6x6xf32>, vector<32x6xf32> -> vector<32x6xf32>
    %304 = arith.addf %299, %303 : vector<32x6xf32>
    %305 = vector.extract_strided_slice %218 {offsets = [544, 0], sizes = [32, 6], strides = [1, 1]} : vector<864x6xf32> to vector<32x6xf32>
    %c17_210 = arith.constant 17 : index
    %c0_211 = arith.constant 0 : index
    %c0_212 = arith.constant 0 : index
    %306 = vector.load %arg5[%c17_210, %c0_211, %c0_212] : memref<27x6x6xf32, #tpu.memory_space<vmem>>, vector<1x6x6xf32>
    %307 = vector.shape_cast %306 : vector<1x6x6xf32> to vector<6x6xf32>
    %cst_213 = arith.constant dense<0.000000e+00> : vector<32x6xf32>
    %308 = tpu.matmul %305, %307, %cst_213 {dimension_numbers = #tpu.dot_dimension_numbers<[1], [0], [0], [1], [0, 0, 1, 1], [], []>} : vector<32x6xf32>, vector<6x6xf32>, vector<32x6xf32> -> vector<32x6xf32>
    %309 = arith.addf %304, %308 : vector<32x6xf32>
    %310 = vector.extract_strided_slice %218 {offsets = [576, 0], sizes = [32, 6], strides = [1, 1]} : vector<864x6xf32> to vector<32x6xf32>
    %c18_214 = arith.constant 18 : index
    %c0_215 = arith.constant 0 : index
    %c0_216 = arith.constant 0 : index
    %311 = vector.load %arg5[%c18_214, %c0_215, %c0_216] : memref<27x6x6xf32, #tpu.memory_space<vmem>>, vector<1x6x6xf32>
    %312 = vector.shape_cast %311 : vector<1x6x6xf32> to vector<6x6xf32>
    %cst_217 = arith.constant dense<0.000000e+00> : vector<32x6xf32>
    %313 = tpu.matmul %310, %312, %cst_217 {dimension_numbers = #tpu.dot_dimension_numbers<[1], [0], [0], [1], [0, 0, 1, 1], [], []>} : vector<32x6xf32>, vector<6x6xf32>, vector<32x6xf32> -> vector<32x6xf32>
    %314 = arith.addf %309, %313 : vector<32x6xf32>
    %315 = vector.extract_strided_slice %218 {offsets = [608, 0], sizes = [32, 6], strides = [1, 1]} : vector<864x6xf32> to vector<32x6xf32>
    %c19_218 = arith.constant 19 : index
    %c0_219 = arith.constant 0 : index
    %c0_220 = arith.constant 0 : index
    %316 = vector.load %arg5[%c19_218, %c0_219, %c0_220] : memref<27x6x6xf32, #tpu.memory_space<vmem>>, vector<1x6x6xf32>
    %317 = vector.shape_cast %316 : vector<1x6x6xf32> to vector<6x6xf32>
    %cst_221 = arith.constant dense<0.000000e+00> : vector<32x6xf32>
    %318 = tpu.matmul %315, %317, %cst_221 {dimension_numbers = #tpu.dot_dimension_numbers<[1], [0], [0], [1], [0, 0, 1, 1], [], []>} : vector<32x6xf32>, vector<6x6xf32>, vector<32x6xf32> -> vector<32x6xf32>
    %319 = arith.addf %314, %318 : vector<32x6xf32>
    %320 = vector.extract_strided_slice %218 {offsets = [640, 0], sizes = [32, 6], strides = [1, 1]} : vector<864x6xf32> to vector<32x6xf32>
    %c20_222 = arith.constant 20 : index
    %c0_223 = arith.constant 0 : index
    %c0_224 = arith.constant 0 : index
    %321 = vector.load %arg5[%c20_222, %c0_223, %c0_224] : memref<27x6x6xf32, #tpu.memory_space<vmem>>, vector<1x6x6xf32>
    %322 = vector.shape_cast %321 : vector<1x6x6xf32> to vector<6x6xf32>
    %cst_225 = arith.constant dense<0.000000e+00> : vector<32x6xf32>
    %323 = tpu.matmul %320, %322, %cst_225 {dimension_numbers = #tpu.dot_dimension_numbers<[1], [0], [0], [1], [0, 0, 1, 1], [], []>} : vector<32x6xf32>, vector<6x6xf32>, vector<32x6xf32> -> vector<32x6xf32>
    %324 = arith.addf %319, %323 : vector<32x6xf32>
    %325 = vector.extract_strided_slice %218 {offsets = [672, 0], sizes = [32, 6], strides = [1, 1]} : vector<864x6xf32> to vector<32x6xf32>
    %c21_226 = arith.constant 21 : index
    %c0_227 = arith.constant 0 : index
    %c0_228 = arith.constant 0 : index
    %326 = vector.load %arg5[%c21_226, %c0_227, %c0_228] : memref<27x6x6xf32, #tpu.memory_space<vmem>>, vector<1x6x6xf32>
    %327 = vector.shape_cast %326 : vector<1x6x6xf32> to vector<6x6xf32>
    %cst_229 = arith.constant dense<0.000000e+00> : vector<32x6xf32>
    %328 = tpu.matmul %325, %327, %cst_229 {dimension_numbers = #tpu.dot_dimension_numbers<[1], [0], [0], [1], [0, 0, 1, 1], [], []>} : vector<32x6xf32>, vector<6x6xf32>, vector<32x6xf32> -> vector<32x6xf32>
    %329 = arith.addf %324, %328 : vector<32x6xf32>
    %330 = vector.extract_strided_slice %218 {offsets = [704, 0], sizes = [32, 6], strides = [1, 1]} : vector<864x6xf32> to vector<32x6xf32>
    %c22_230 = arith.constant 22 : index
    %c0_231 = arith.constant 0 : index
    %c0_232 = arith.constant 0 : index
    %331 = vector.load %arg5[%c22_230, %c0_231, %c0_232] : memref<27x6x6xf32, #tpu.memory_space<vmem>>, vector<1x6x6xf32>
    %332 = vector.shape_cast %331 : vector<1x6x6xf32> to vector<6x6xf32>
    %cst_233 = arith.constant dense<0.000000e+00> : vector<32x6xf32>
    %333 = tpu.matmul %330, %332, %cst_233 {dimension_numbers = #tpu.dot_dimension_numbers<[1], [0], [0], [1], [0, 0, 1, 1], [], []>} : vector<32x6xf32>, vector<6x6xf32>, vector<32x6xf32> -> vector<32x6xf32>
    %334 = arith.addf %329, %333 : vector<32x6xf32>
    %335 = vector.extract_strided_slice %218 {offsets = [736, 0], sizes = [32, 6], strides = [1, 1]} : vector<864x6xf32> to vector<32x6xf32>
    %c23_234 = arith.constant 23 : index
    %c0_235 = arith.constant 0 : index
    %c0_236 = arith.constant 0 : index
    %336 = vector.load %arg5[%c23_234, %c0_235, %c0_236] : memref<27x6x6xf32, #tpu.memory_space<vmem>>, vector<1x6x6xf32>
    %337 = vector.shape_cast %336 : vector<1x6x6xf32> to vector<6x6xf32>
    %cst_237 = arith.constant dense<0.000000e+00> : vector<32x6xf32>
    %338 = tpu.matmul %335, %337, %cst_237 {dimension_numbers = #tpu.dot_dimension_numbers<[1], [0], [0], [1], [0, 0, 1, 1], [], []>} : vector<32x6xf32>, vector<6x6xf32>, vector<32x6xf32> -> vector<32x6xf32>
    %339 = arith.addf %334, %338 : vector<32x6xf32>
    %340 = vector.extract_strided_slice %218 {offsets = [768, 0], sizes = [32, 6], strides = [1, 1]} : vector<864x6xf32> to vector<32x6xf32>
    %c24_238 = arith.constant 24 : index
    %c0_239 = arith.constant 0 : index
    %c0_240 = arith.constant 0 : index
    %341 = vector.load %arg5[%c24_238, %c0_239, %c0_240] : memref<27x6x6xf32, #tpu.memory_space<vmem>>, vector<1x6x6xf32>
    %342 = vector.shape_cast %341 : vector<1x6x6xf32> to vector<6x6xf32>
    %cst_241 = arith.constant dense<0.000000e+00> : vector<32x6xf32>
    %343 = tpu.matmul %340, %342, %cst_241 {dimension_numbers = #tpu.dot_dimension_numbers<[1], [0], [0], [1], [0, 0, 1, 1], [], []>} : vector<32x6xf32>, vector<6x6xf32>, vector<32x6xf32> -> vector<32x6xf32>
    %344 = arith.addf %339, %343 : vector<32x6xf32>
    %345 = vector.extract_strided_slice %218 {offsets = [800, 0], sizes = [32, 6], strides = [1, 1]} : vector<864x6xf32> to vector<32x6xf32>
    %c25_242 = arith.constant 25 : index
    %c0_243 = arith.constant 0 : index
    %c0_244 = arith.constant 0 : index
    %346 = vector.load %arg5[%c25_242, %c0_243, %c0_244] : memref<27x6x6xf32, #tpu.memory_space<vmem>>, vector<1x6x6xf32>
    %347 = vector.shape_cast %346 : vector<1x6x6xf32> to vector<6x6xf32>
    %cst_245 = arith.constant dense<0.000000e+00> : vector<32x6xf32>
    %348 = tpu.matmul %345, %347, %cst_245 {dimension_numbers = #tpu.dot_dimension_numbers<[1], [0], [0], [1], [0, 0, 1, 1], [], []>} : vector<32x6xf32>, vector<6x6xf32>, vector<32x6xf32> -> vector<32x6xf32>
    %349 = arith.addf %344, %348 : vector<32x6xf32>
    %350 = vector.extract_strided_slice %218 {offsets = [832, 0], sizes = [32, 6], strides = [1, 1]} : vector<864x6xf32> to vector<32x6xf32>
    %c26_246 = arith.constant 26 : index
    %c0_247 = arith.constant 0 : index
    %c0_248 = arith.constant 0 : index
    %351 = vector.load %arg5[%c26_246, %c0_247, %c0_248] : memref<27x6x6xf32, #tpu.memory_space<vmem>>, vector<1x6x6xf32>
    %352 = vector.shape_cast %351 : vector<1x6x6xf32> to vector<6x6xf32>
    %cst_249 = arith.constant dense<0.000000e+00> : vector<32x6xf32>
    %353 = tpu.matmul %350, %352, %cst_249 {dimension_numbers = #tpu.dot_dimension_numbers<[1], [0], [0], [1], [0, 0, 1, 1], [], []>} : vector<32x6xf32>, vector<6x6xf32>, vector<32x6xf32> -> vector<32x6xf32>
    %354 = arith.addf %349, %353 : vector<32x6xf32>
    %c0_250 = arith.constant 0 : index
    %c0_251 = arith.constant 0 : index
    %355 = vector.load %arg6[%c0_250, %c0_251] : memref<1x6xf32, #tpu.memory_space<vmem>>, vector<1x6xf32>
    %356 = vector.broadcast %355 : vector<1x6xf32> to vector<32x6xf32>
    %357 = arith.addf %354, %356 : vector<32x6xf32>
    %cst_252 = arith.constant 0.000000e+00 : f32
    %358 = vector.broadcast %cst_252 : f32 to vector<32x6xf32>
    %359 = arith.maximumf %357, %358 : vector<32x6xf32>
    %360 = vector.extract_strided_slice %359 {offsets = [0, 0], sizes = [27, 6], strides = [1, 1]} : vector<32x6xf32> to vector<27x6xf32>
    %cst_253 = arith.constant dense<0xFF800000> : vector<6xf32>
    %361 = vector.multi_reduction <maximumf>, %360, %cst_253 [0] : vector<27x6xf32> to vector<6xf32>
    %362 = vector.shape_cast %361 : vector<6xf32> to vector<1x6xf32>
    %c0_254 = arith.constant 0 : index
    %c0_255 = arith.constant 0 : index
    %c0_256 = arith.constant 0 : index
    %363 = vector.load %arg13[%c0_254, %c0_255, %c0_256] : memref<1x1x6xf32, #tpu.memory_space<vmem>>, vector<1x1x6xf32>
    %364 = vector.shape_cast %363 : vector<1x1x6xf32> to vector<1x6xf32>
    %365 = vector.shape_cast %362 : vector<1x6xf32> to vector<1x1x6xf32>
    tpu.vector_store %arg13[%c0_254, %c0_255, %c0_256], %365 {strides = array<i32>} : memref<1x1x6xf32, #tpu.memory_space<vmem>>, vector<1x1x6xf32>,
    %c0_257 = arith.constant 0 : index
    %c0_258 = arith.constant 0 : index
    %366 = vector.load %arg7[%c0_257, %c0_258] : memref<6x6xf32, #tpu.memory_space<vmem>>, vector<6x6xf32>
    %cst_259 = arith.constant dense<0.000000e+00> : vector<1x6xf32>
    %367 = tpu.matmul %362, %366, %cst_259 {dimension_numbers = #tpu.dot_dimension_numbers<[1], [0], [0], [1], [0, 0, 1, 1], [], []>} : vector<1x6xf32>, vector<6x6xf32>, vector<1x6xf32> -> vector<1x6xf32>
    %c0_260 = arith.constant 0 : index
    %c0_261 = arith.constant 0 : index
    %368 = vector.load %arg8[%c0_260, %c0_261] : memref<1x6xf32, #tpu.memory_space<vmem>>, vector<1x6xf32>
    %369 = arith.addf %367, %368 : vector<1x6xf32>
    %cst_262 = arith.constant 0.000000e+00 : f32
    %370 = vector.broadcast %cst_262 : f32 to vector<1x6xf32>
    %371 = arith.maximumf %369, %370 : vector<1x6xf32>
    %c0_263 = arith.constant 0 : index
    %c0_264 = arith.constant 0 : index
    %372 = vector.load %arg9[%c0_263, %c0_264] : memref<1x6xf32, #tpu.memory_space<vmem>>, vector<1x6xf32>
    %373 = arith.mulf %371, %372 : vector<1x6xf32>
    %c0_265 = arith.constant 0 : index
    %c0_266 = arith.constant 0 : index
    %374 = vector.load %arg10[%c0_265, %c0_266] : memref<1x6xf32, #tpu.memory_space<vmem>>, vector<1x6xf32>
    %375 = arith.addf %373, %374 : vector<1x6xf32>
    %c0_267 = arith.constant 0 : index
    %c0_268 = arith.constant 0 : index
    %376 = vector.load %arg11[%c0_267, %c0_268] : memref<6x2xf32, #tpu.memory_space<vmem>>, vector<6x2xf32>
    %cst_269 = arith.constant dense<0.000000e+00> : vector<1x2xf32>
    %377 = tpu.matmul %375, %376, %cst_269 {dimension_numbers = #tpu.dot_dimension_numbers<[1], [0], [0], [1], [0, 0, 1, 1], [], []>} : vector<1x6xf32>, vector<6x2xf32>, vector<1x2xf32> -> vector<1x2xf32>
    %c0_270 = arith.constant 0 : index
    %c0_271 = arith.constant 0 : index
    %378 = vector.load %arg12[%c0_270, %c0_271] : memref<1x2xf32, #tpu.memory_space<vmem>>, vector<1x2xf32>
    %379 = arith.addf %377, %378 : vector<1x2xf32>
    %c0_272 = arith.constant 0 : index
    %c0_273 = arith.constant 0 : index
    %c0_274 = arith.constant 0 : index
    %380 = vector.load %arg14[%c0_272, %c0_273, %c0_274] : memref<1x1x2xf32, #tpu.memory_space<vmem>>, vector<1x1x2xf32>
    %381 = vector.shape_cast %380 : vector<1x1x2xf32> to vector<1x2xf32>
    %382 = vector.shape_cast %379 : vector<1x2xf32> to vector<1x1x2xf32>
    tpu.vector_store %arg14[%c0_272, %c0_273, %c0_274], %382 {strides = array<i32>} : memref<1x1x2xf32, #tpu.memory_space<vmem>>, vector<1x1x2xf32>,
    return
  }
  func.func @transform_0(%arg0: i32) -> (i32, i32, i32, i32) {
    %c0_i32 = arith.constant 0 : i32
    %c0_i32_0 = arith.constant 0 : i32
    %c0_i32_1 = arith.constant 0 : i32
    %c0_i32_2 = arith.constant 0 : i32
    return %arg0, %c0_i32, %c0_i32_0, %c0_i32_1 : i32, i32, i32, i32
  }
  func.func @transform_1(%arg0: i32) -> (i32, i32) {
    %c0_i32 = arith.constant 0 : i32
    %c0_i32_0 = arith.constant 0 : i32
    %c0_i32_1 = arith.constant 0 : i32
    return %c0_i32, %c0_i32_0 : i32, i32
  }
  func.func @transform_2(%arg0: i32) -> (i32, i32) {
    %c0_i32 = arith.constant 0 : i32
    %c0_i32_0 = arith.constant 0 : i32
    %c0_i32_1 = arith.constant 0 : i32
    return %c0_i32, %c0_i32_0 : i32, i32
  }
  func.func @transform_3(%arg0: i32) -> (i32, i32) {
    %c0_i32 = arith.constant 0 : i32
    %c0_i32_0 = arith.constant 0 : i32
    %c0_i32_1 = arith.constant 0 : i32
    return %c0_i32, %c0_i32_0 : i32, i32
  }
  func.func @transform_4(%arg0: i32) -> (i32, i32, i32) {
    %c0_i32 = arith.constant 0 : i32
    %c0_i32_0 = arith.constant 0 : i32
    %c0_i32_1 = arith.constant 0 : i32
    %c0_i32_2 = arith.constant 0 : i32
    return %c0_i32, %c0_i32_0, %c0_i32_1 : i32, i32, i32
  }
  func.func @transform_5(%arg0: i32) -> (i32, i32) {
    %c0_i32 = arith.constant 0 : i32
    %c0_i32_0 = arith.constant 0 : i32
    %c0_i32_1 = arith.constant 0 : i32
    return %c0_i32, %c0_i32_0 : i32, i32
  }
  func.func @transform_6(%arg0: i32) -> (i32, i32) {
    %c0_i32 = arith.constant 0 : i32
    %c0_i32_0 = arith.constant 0 : i32
    %c0_i32_1 = arith.constant 0 : i32
    return %c0_i32, %c0_i32_0 : i32, i32
  }
  func.func @transform_7(%arg0: i32) -> (i32, i32) {
    %c0_i32 = arith.constant 0 : i32
    %c0_i32_0 = arith.constant 0 : i32
    %c0_i32_1 = arith.constant 0 : i32
    return %c0_i32, %c0_i32_0 : i32, i32
  }
  func.func @transform_8(%arg0: i32) -> (i32, i32) {
    %c0_i32 = arith.constant 0 : i32
    %c0_i32_0 = arith.constant 0 : i32
    %c0_i32_1 = arith.constant 0 : i32
    return %c0_i32, %c0_i32_0 : i32, i32
  }
  func.func @transform_9(%arg0: i32) -> (i32, i32) {
    %c0_i32 = arith.constant 0 : i32
    %c0_i32_0 = arith.constant 0 : i32
    %c0_i32_1 = arith.constant 0 : i32
    return %c0_i32, %c0_i32_0 : i32, i32
  }
  func.func @transform_10(%arg0: i32) -> (i32, i32) {
    %c0_i32 = arith.constant 0 : i32
    %c0_i32_0 = arith.constant 0 : i32
    %c0_i32_1 = arith.constant 0 : i32
    return %c0_i32, %c0_i32_0 : i32, i32
  }
  func.func @transform_11(%arg0: i32) -> (i32, i32) {
    %c0_i32 = arith.constant 0 : i32
    %c0_i32_0 = arith.constant 0 : i32
    %c0_i32_1 = arith.constant 0 : i32
    return %c0_i32, %c0_i32_0 : i32, i32
  }
  func.func @transform_12(%arg0: i32) -> (i32, i32, i32) {
    %c0_i32 = arith.constant 0 : i32
    %c0_i32_0 = arith.constant 0 : i32
    %c0_i32_1 = arith.constant 0 : i32
    return %arg0, %c0_i32, %c0_i32_0 : i32, i32, i32
  }
  func.func @transform_13(%arg0: i32) -> (i32, i32, i32) {
    %c0_i32 = arith.constant 0 : i32
    %c0_i32_0 = arith.constant 0 : i32
    %c0_i32_1 = arith.constant 0 : i32
    return %arg0, %c0_i32, %c0_i32_0 : i32, i32, i32
  }
}

</mosaic_0001>

<llo_original>
// kernel: cnn_forward.1
$region0: #{cnn_forward.1}
  #allocation0 [shape = 'u32[]', space=smem, size = 0x4, offset = 0x4, fixed_abs, tag = 'smem constant byte address 0x4 - core index']
  #allocation1 [shape = 'u32[144,128]{1,0:T(1,128)}', space=vmem, size = 0x12000, scoped, tag = 'internal scratch']
  %s0 = inlined_call_operand.vmem [shape: f32[2,27,128,128], index: 0, kind: input, shape index: {}]
  %s1 = inlined_call_operand.vmem [shape: f32[128,6], index: 1, kind: input, shape index: {}]
  %s2 = inlined_call_operand.vmem [shape: f32[1,6], index: 2, kind: input, shape index: {}]
  %s3 = inlined_call_operand.vmem [shape: f32[864,128], index: 3, kind: input, shape index: {}]
  %s4 = inlined_call_operand.vmem [shape: f32[27,6,6], index: 4, kind: input, shape index: {}]
  %s5 = inlined_call_operand.vmem [shape: f32[1,6], index: 5, kind: input, shape index: {}]
  %s6 = inlined_call_operand.vmem [shape: f32[6,6], index: 6, kind: input, shape index: {}]
  %s7 = inlined_call_operand.vmem [shape: f32[1,6], index: 7, kind: input, shape index: {}]
  %s8 = inlined_call_operand.vmem [shape: f32[1,6], index: 8, kind: input, shape index: {}]
  %s9 = inlined_call_operand.vmem [shape: f32[1,6], index: 9, kind: input, shape index: {}]
  %s10 = inlined_call_operand.vmem [shape: f32[6,2], index: 10, kind: input, shape index: {}]
  %s11 = inlined_call_operand.vmem [shape: f32[1,2], index: 11, kind: input, shape index: {}]
  %s12 = inlined_call_operand.hbm [shape: f32[2,1,6], index: 12, kind: output, shape index: {0}]
  %s13 = inlined_call_operand.hbm [shape: f32[2,1,2], index: 13, kind: output, shape index: {1}]
  %14 = xla_tuple %s12, %s13
  %s15 = sld [smem:[#allocation0]]
  $region89: #{cnn_forward.1} parent=0
    _
  %s17 = ssub.s32 1, %s15
  %s18 = scalar_select 0, %s17, %s15
  $region1: #{cnn_forward.1} parent=0
    #allocation2 [shape = 'u8[1024]{0}', space=vmem, size = 0x400, scoped, tag = 'output window, operand 0']
    #allocation3 [shape = 's32[2]{0}', space=sflag, size = 0x8, scoped, tag = 'scoped memory for cnn_forward.1']
    #allocation4 [shape = 'u8[1024]{0}', space=vmem, size = 0x400, scoped, tag = 'output window, operand 1']
    #allocation5 [shape = 's32[2]{0}', space=sflag, size = 0x8, scoped, tag = 'scoped memory for cnn_forward.1']
    %19 = vsyncpa [#allocation3], 0
    %s20 = scalar_lea.sflag [#allocation3], 1
    %21 = vsyncpa %s20, 0
    %22 = vsyncpa [#allocation5], 0
    %s23 = scalar_lea.sflag [#allocation5], 1
    %24 = vsyncpa %s23, 0
    loop: start=0, step=1, limit=4
    $region2: #{cnn_forward.1} parent=1 // loop_pre_header
      _
    $region3: #{cnn_forward.1} parent=1 // loop_header
      %s26 = sphi 0, %s30
      %p27 = scmp.ge.s32.totalorder %s26, 4
      %s36 = sphi 0, %s38
      %s39 = sphi 0, %s36
      %s40 = sphi 0, %s39
      %s56 = sphi 0, %s40
      %s60 = sphi 0, %s60
      %s62 = sphi 0, %s60
      %s63 = sphi 0, %s62
      %s77 = sphi 0, %s63
      %s81 = sphi 0, %s81
      %s83 = sphi 0, %s81
      %s84 = sphi 0, %s83
      %s98 = sphi 0, %s84
      %s102 = sphi 0, %s102
      %s104 = sphi 0, %s102
      %s105 = sphi 0, %s104
      %s119 = sphi 0, %s105
      %s123 = sphi 0, %s123
      %s125 = sphi 0, %s123
      %s126 = sphi 0, %s125
      %s140 = sphi 0, %s126
      %s144 = sphi 0, %s144
      %s146 = sphi 0, %s144
      %s147 = sphi 0, %s146
      %s161 = sphi 0, %s147
      %s165 = sphi 0, %s165
      %s167 = sphi 0, %s165
      %s168 = sphi 0, %s167
      %s182 = sphi 0, %s168
      %s186 = sphi 0, %s186
      %s188 = sphi 0, %s186
      %s189 = sphi 0, %s188
      %s203 = sphi 0, %s189
      %s207 = sphi 0, %s207
      %s209 = sphi 0, %s207
      %s210 = sphi 0, %s209
      %s224 = sphi 0, %s210
      %s228 = sphi 0, %s228
      %s230 = sphi 0, %s228
      %s231 = sphi 0, %s230
      %s245 = sphi 0, %s231
      %s249 = sphi 0, %s249
      %s251 = sphi 0, %s249
      %s252 = sphi 0, %s251
      %s266 = sphi 0, %s252
      %s270 = sphi 0, %s270
      %s272 = sphi 0, %s270
      %s273 = sphi 0, %s272
      %s287 = sphi 0, %s273
      %s293 = sphi 0, %s295
      %s296 = sphi 0, %s293
      %s297 = sphi 0, %s296
      %s313 = sphi 0, %s297
      %s319 = sphi 0, %s321
      %s322 = sphi 0, %s319
      %s323 = sphi 0, %s322
      %s339 = sphi 0, %s323
    $region4: #{cnn_forward.1} parent=1 // loop_header_branch
      %29 = sbr.rel (%p27) target = $region8
    $region5: #{cnn_forward.1} parent=1 // loop_body
      %s31 = ssub.s32 %s26, 1
      %s32 = ssub.s32 %s26, 2
      %s33 = sadd.s32 %s26, 1
      %s34 = ssub.s32 %s26, %s33
      %p35 = scmp.eq.s32.totalorder %s34, 0
      %s37 = sadd.s32 %s36, 1
      %s38 = scalar_select %p35, %s36, %s37
      %p41 = pneg %p35
      %p42 = scmp.eq.s32.totalorder %s26, 1
      %p43 = por %p41, %p42
      %p44 = scmp.ne.s32.totalorder %s36, %s39
      %p45 = scmp.eq.s32.totalorder %s26, 0
      %p46 = por %p44, %p45
      %p47 = scmp.ne.s32.totalorder %s36, %s39
      %p48 = scmp.eq.s32.totalorder %s31, 1
      %p49 = por %p47, %p48
      %p50 = scmp.ne.s32.totalorder %s39, %s40
      %p51 = scmp.eq.s32.totalorder %s31, 0
      %p52 = por %p50, %p51
      %p53 = scmp.ne.s32.totalorder %s39, %s40
      %p54 = scmp.eq.s32.totalorder %s32, 1
      %p55 = por %p53, %p54
      %p57 = scmp.ne.s32.totalorder %s40, %s56
      %p58 = scmp.eq.s32.totalorder %s32, 0
      %p59 = por %p57, %p58
      %s61 = sadd.s32 %s60, 1
      %p64 = scmp.eq.s32.totalorder %s26, 1
      %p65 = scmp.ne.s32.totalorder %s60, %s62
      %p66 = scmp.eq.s32.totalorder %s26, 0
      %p67 = por %p65, %p66
      %p68 = scmp.ne.s32.totalorder %s60, %s62
      %p69 = scmp.eq.s32.totalorder %s31, 1
      %p70 = por %p68, %p69
      %p71 = scmp.ne.s32.totalorder %s62, %s63
      %p72 = scmp.eq.s32.totalorder %s31, 0
      %p73 = por %p71, %p72
      %p74 = scmp.ne.s32.totalorder %s62, %s63
      %p75 = scmp.eq.s32.totalorder %s32, 1
      %p76 = por %p74, %p75
      %p78 = scmp.ne.s32.totalorder %s63, %s77
      %p79 = scmp.eq.s32.totalorder %s32, 0
      %p80 = por %p78, %p79
      %s82 = sadd.s32 %s81, 1
      %p85 = scmp.eq.s32.totalorder %s26, 1
      %p86 = scmp.ne.s32.totalorder %s81, %s83
      %p87 = scmp.eq.s32.totalorder %s26, 0
      %p88 = por %p86, %p87
      %p89 = scmp.ne.s32.totalorder %s81, %s83
      %p90 = scmp.eq.s32.totalorder %s31, 1
      %p91 = por %p89, %p90
      %p92 = scmp.ne.s32.totalorder %s83, %s84
      %p93 = scmp.eq.s32.totalorder %s31, 0
      %p94 = por %p92, %p93
      %p95 = scmp.ne.s32.totalorder %s83, %s84
      %p96 = scmp.eq.s32.totalorder %s32, 1
      %p97 = por %p95, %p96
      %p99 = scmp.ne.s32.totalorder %s84, %s98
      %p100 = scmp.eq.s32.totalorder %s32, 0
      %p101 = por %p99, %p100
      %s103 = sadd.s32 %s102, 1
      %p106 = scmp.eq.s32.totalorder %s26, 1
      %p107 = scmp.ne.s32.totalorder %s102, %s104
      %p108 = scmp.eq.s32.totalorder %s26, 0
      %p109 = por %p107, %p108
      %p110 = scmp.ne.s32.totalorder %s102, %s104
      %p111 = scmp.eq.s32.totalorder %s31, 1
      %p112 = por %p110, %p111
      %p113 = scmp.ne.s32.totalorder %s104, %s105
      %p114 = scmp.eq.s32.totalorder %s31, 0
      %p115 = por %p113, %p114
      %p116 = scmp.ne.s32.totalorder %s104, %s105
      %p117 = scmp.eq.s32.totalorder %s32, 1
      %p118 = por %p116, %p117
      %p120 = scmp.ne.s32.totalorder %s105, %s119
      %p121 = scmp.eq.s32.totalorder %s32, 0
      %p122 = por %p120, %p121
      %s124 = sadd.s32 %s123, 1
      %p127 = scmp.eq.s32.totalorder %s26, 1
      %p128 = scmp.ne.s32.totalorder %s123, %s125
      %p129 = scmp.eq.s32.totalorder %s26, 0
      %p130 = por %p128, %p129
      %p131 = scmp.ne.s32.totalorder %s123, %s125
      %p132 = scmp.eq.s32.totalorder %s31, 1
      %p133 = por %p131, %p132
      %p134 = scmp.ne.s32.totalorder %s125, %s126
      %p135 = scmp.eq.s32.totalorder %s31, 0
      %p136 = por %p134, %p135
      %p137 = scmp.ne.s32.totalorder %s125, %s126
      %p138 = scmp.eq.s32.totalorder %s32, 1
      %p139 = por %p137, %p138
      %p141 = scmp.ne.s32.totalorder %s126, %s140
      %p142 = scmp.eq.s32.totalorder %s32, 0
      %p143 = por %p141, %p142
      %s145 = sadd.s32 %s144, 1
      %p148 = scmp.eq.s32.totalorder %s26, 1
      %p149 = scmp.ne.s32.totalorder %s144, %s146
      %p150 = scmp.eq.s32.totalorder %s26, 0
      %p151 = por %p149, %p150
      %p152 = scmp.ne.s32.totalorder %s144, %s146
      %p153 = scmp.eq.s32.totalorder %s31, 1
      %p154 = por %p152, %p153
      %p155 = scmp.ne.s32.totalorder %s146, %s147
      %p156 = scmp.eq.s32.totalorder %s31, 0
      %p157 = por %p155, %p156
      %p158 = scmp.ne.s32.totalorder %s146, %s147
      %p159 = scmp.eq.s32.totalorder %s32, 1
      %p160 = por %p158, %p159
      %p162 = scmp.ne.s32.totalorder %s147, %s161
      %p163 = scmp.eq.s32.totalorder %s32, 0
      %p164 = por %p162, %p163
      %s166 = sadd.s32 %s165, 1
      %p169 = scmp.eq.s32.totalorder %s26, 1
      %p170 = scmp.ne.s32.totalorder %s165, %s167
      %p171 = scmp.eq.s32.totalorder %s26, 0
      %p172 = por %p170, %p171
      %p173 = scmp.ne.s32.totalorder %s165, %s167
      %p174 = scmp.eq.s32.totalorder %s31, 1
      %p175 = por %p173, %p174
      %p176 = scmp.ne.s32.totalorder %s167, %s168
      %p177 = scmp.eq.s32.totalorder %s31, 0
      %p178 = por %p176, %p177
      %p179 = scmp.ne.s32.totalorder %s167, %s168
      %p180 = scmp.eq.s32.totalorder %s32, 1
      %p181 = por %p179, %p180
      %p183 = scmp.ne.s32.totalorder %s168, %s182
      %p184 = scmp.eq.s32.totalorder %s32, 0
      %p185 = por %p183, %p184
      %s187 = sadd.s32 %s186, 1
      %p190 = scmp.eq.s32.totalorder %s26, 1
      %p191 = scmp.ne.s32.totalorder %s186, %s188
      %p192 = scmp.eq.s32.totalorder %s26, 0
      %p193 = por %p191, %p192
      %p194 = scmp.ne.s32.totalorder %s186, %s188
      %p195 = scmp.eq.s32.totalorder %s31, 1
      %p196 = por %p194, %p195
      %p197 = scmp.ne.s32.totalorder %s188, %s189
      %p198 = scmp.eq.s32.totalorder %s31, 0
      %p199 = por %p197, %p198
      %p200 = scmp.ne.s32.totalorder %s188, %s189
      %p201 = scmp.eq.s32.totalorder %s32, 1
      %p202 = por %p200, %p201
      %p204 = scmp.ne.s32.totalorder %s189, %s203
      %p205 = scmp.eq.s32.totalorder %s32, 0
      %p206 = por %p204, %p205
      %s208 = sadd.s32 %s207, 1
      %p211 = scmp.eq.s32.totalorder %s26, 1
      %p212 = scmp.ne.s32.totalorder %s207, %s209
      %p213 = scmp.eq.s32.totalorder %s26, 0
      %p214 = por %p212, %p213
      %p215 = scmp.ne.s32.totalorder %s207, %s209
      %p216 = scmp.eq.s32.totalorder %s31, 1
      %p217 = por %p215, %p216
      %p218 = scmp.ne.s32.totalorder %s209, %s210
      %p219 = scmp.eq.s32.totalorder %s31, 0
      %p220 = por %p218, %p219
      %p221 = scmp.ne.s32.totalorder %s209, %s210
      %p222 = scmp.eq.s32.totalorder %s32, 1
      %p223 = por %p221, %p222
      %p225 = scmp.ne.s32.totalorder %s210, %s224
      %p226 = scmp.eq.s32.totalorder %s32, 0
      %p227 = por %p225, %p226
      %s229 = sadd.s32 %s228, 1
      %p232 = scmp.eq.s32.totalorder %s26, 1
      %p233 = scmp.ne.s32.totalorder %s228, %s230
      %p234 = scmp.eq.s32.totalorder %s26, 0
      %p235 = por %p233, %p234
      %p236 = scmp.ne.s32.totalorder %s228, %s230
      %p237 = scmp.eq.s32.totalorder %s31, 1
      %p238 = por %p236, %p237
      %p239 = scmp.ne.s32.totalorder %s230, %s231
      %p240 = scmp.eq.s32.totalorder %s31, 0
      %p241 = por %p239, %p240
      %p242 = scmp.ne.s32.totalorder %s230, %s231
      %p243 = scmp.eq.s32.totalorder %s32, 1
      %p244 = por %p242, %p243
      %p246 = scmp.ne.s32.totalorder %s231, %s245
      %p247 = scmp.eq.s32.totalorder %s32, 0
      %p248 = por %p246, %p247
      %s250 = sadd.s32 %s249, 1
      %p253 = scmp.eq.s32.totalorder %s26, 1
      %p254 = scmp.ne.s32.totalorder %s249, %s251
      %p255 = scmp.eq.s32.totalorder %s26, 0
      %p256 = por %p254, %p255
      %p257 = scmp.ne.s32.totalorder %s249, %s251
      %p258 = scmp.eq.s32.totalorder %s31, 1
      %p259 = por %p257, %p258
      %p260 = scmp.ne.s32.totalorder %s251, %s252
      %p261 = scmp.eq.s32.totalorder %s31, 0
      %p262 = por %p260, %p261
      %p263 = scmp.ne.s32.totalorder %s251, %s252
      %p264 = scmp.eq.s32.totalorder %s32, 1
      %p265 = por %p263, %p264
      %p267 = scmp.ne.s32.totalorder %s252, %s266
      %p268 = scmp.eq.s32.totalorder %s32, 0
      %p269 = por %p267, %p268
      %s271 = sadd.s32 %s270, 1
      %p274 = scmp.eq.s32.totalorder %s26, 1
      %p275 = scmp.ne.s32.totalorder %s270, %s272
      %p276 = scmp.eq.s32.totalorder %s26, 0
      %p277 = por %p275, %p276
      %p278 = scmp.ne.s32.totalorder %s270, %s272
      %p279 = scmp.eq.s32.totalorder %s31, 1
      %p280 = por %p278, %p279
      %p281 = scmp.ne.s32.totalorder %s272, %s273
      %p282 = scmp.eq.s32.totalorder %s31, 0
      %p283 = por %p281, %p282
      %p284 = scmp.ne.s32.totalorder %s272, %s273
      %p285 = scmp.eq.s32.totalorder %s32, 1
      %p286 = por %p284, %p285
      %p288 = scmp.ne.s32.totalorder %s273, %s287
      %p289 = scmp.eq.s32.totalorder %s32, 0
      %p290 = por %p288, %p289
      %s291 = ssub.s32 %s26, %s33
      %p292 = scmp.eq.s32.totalorder %s291, 0
      %s294 = sadd.s32 %s293, 1
      %s295 = scalar_select %p292, %s293, %s294
      %p298 = pneg %p292
      %p299 = scmp.eq.s32.totalorder %s26, 1
      %p300 = por %p298, %p299
      %p301 = scmp.ne.s32.totalorder %s293, %s296
      %p302 = scmp.eq.s32.totalorder %s26, 0
      %p303 = por %p301, %p302
      %p304 = scmp.ne.s32.totalorder %s293, %s296
      %p305 = scmp.eq.s32.totalorder %s31, 1
      %p306 = por %p304, %p305
      %p307 = scmp.ne.s32.totalorder %s296, %s297
      %p308 = scmp.eq.s32.totalorder %s31, 0
      %p309 = por %p307, %p308
      %p310 = scmp.ne.s32.totalorder %s296, %s297
      %p311 = scmp.eq.s32.totalorder %s32, 1
      %p312 = por %p310, %p311
      %p314 = scmp.ne.s32.totalorder %s297, %s313
      %p315 = scmp.eq.s32.totalorder %s32, 0
      %p316 = por %p314, %p315
      %s317 = ssub.s32 %s26, %s33
      %p318 = scmp.eq.s32.totalorder %s317, 0
      %s320 = sadd.s32 %s319, 1
      %s321 = scalar_select %p318, %s319, %s320
      %p324 = pneg %p318
      %p325 = scmp.eq.s32.totalorder %s26, 1
      %p326 = por %p324, %p325
      %p327 = scmp.ne.s32.totalorder %s319, %s322
      %p328 = scmp.eq.s32.totalorder %s26, 0
      %p329 = por %p327, %p328
      %p330 = scmp.ne.s32.totalorder %s319, %s322
      %p331 = scmp.eq.s32.totalorder %s31, 1
      %p332 = por %p330, %p331
      %p333 = scmp.ne.s32.totalorder %s322, %s323
      %p334 = scmp.eq.s32.totalorder %s31, 0
      %p335 = por %p333, %p334
      %p336 = scmp.ne.s32.totalorder %s322, %s323
      %p337 = scmp.eq.s32.totalorder %s32, 1
      %p338 = por %p336, %p337
      %p340 = scmp.ne.s32.totalorder %s323, %s339
      %p341 = scmp.eq.s32.totalorder %s32, 0
      %p342 = por %p340, %p341
      %p343 = scmp.le.s32.totalorder 1, %s26
      %p344 = scmp.lt.s32.totalorder %s26, 3
      %p345 = pnand %p343, %p344
      %p346 = pneg %p345
      // Predicated region
      $region9: #{cnn_forward.1} parent=5 // pred_check
        _
      $region10: #{cnn_forward.1} parent=5 // pred_check_branch
        %348 = sbr.rel (%p345) target = $region12
      $region11: #{cnn_forward.1} parent=5 // pred_region
        %s349 = ssub.s32 %s26, 1
        // Predicated region
        $region13: #{cnn_forward.1} parent=11 // pred_check
          %p350 = pneg %p73
        $region14: #{cnn_forward.1} parent=11 // pred_check_branch
          %352 = sbr.rel (%p350) target = $region16
        $region15: #{cnn_forward.1} parent=11 // pred_region
          _
        $region16: #{cnn_forward.1} parent=11 // pred_fallthru
          _
        // Predicated region
        $region17: #{cnn_forward.1} parent=11 // pred_check
          %p353 = pneg %p94
        $region18: #{cnn_forward.1} parent=11 // pred_check_branch
          %355 = sbr.rel (%p353) target = $region20
        $region19: #{cnn_forward.1} parent=11 // pred_region
          _
        $region20: #{cnn_forward.1} parent=11 // pred_fallthru
          _
        // Predicated region
        $region21: #{cnn_forward.1} parent=11 // pred_check
          %p356 = pneg %p115
        $region22: #{cnn_forward.1} parent=11 // pred_check_branch
          %358 = sbr.rel (%p356) target = $region24
        $region23: #{cnn_forward.1} parent=11 // pred_region
          _
        $region24: #{cnn_forward.1} parent=11 // pred_fallthru
          _
        // Predicated region
        $region25: #{cnn_forward.1} parent=11 // pred_check
          %p359 = pneg %p136
        $region26: #{cnn_forward.1} parent=11 // pred_check_branch
          %361 = sbr.rel (%p359) target = $region28
        $region27: #{cnn_forward.1} parent=11 // pred_region
          _
        $region28: #{cnn_forward.1} parent=11 // pred_fallthru
          _
        // Predicated region
        $region29: #{cnn_forward.1} parent=11 // pred_check
          %p362 = pneg %p157
        $region30: #{cnn_forward.1} parent=11 // pred_check_branch
          %364 = sbr.rel (%p362) target = $region32
        $region31: #{cnn_forward.1} parent=11 // pred_region
          _
        $region32: #{cnn_forward.1} parent=11 // pred_fallthru
          _
        // Predicated region
        $region33: #{cnn_forward.1} parent=11 // pred_check
          %p365 = pneg %p178
        $region34: #{cnn_forward.1} parent=11 // pred_check_branch
          %367 = sbr.rel (%p365) target = $region36
        $region35: #{cnn_forward.1} parent=11 // pred_region
          _
        $region36: #{cnn_forward.1} parent=11 // pred_fallthru
          _
        // Predicated region
        $region37: #{cnn_forward.1} parent=11 // pred_check
          %p368 = pneg %p199
        $region38: #{cnn_forward.1} parent=11 // pred_check_branch
          %370 = sbr.rel (%p368) target = $region40
        $region39: #{cnn_forward.1} parent=11 // pred_region
          _
        $region40: #{cnn_forward.1} parent=11 // pred_fallthru
          _
        // Predicated region
        $region41: #{cnn_forward.1} parent=11 // pred_check
          %p371 = pneg %p220
        $region42: #{cnn_forward.1} parent=11 // pred_check_branch
          %373 = sbr.rel (%p371) target = $region44
        $region43: #{cnn_forward.1} parent=11 // pred_region
          _
        $region44: #{cnn_forward.1} parent=11 // pred_fallthru
          _
        // Predicated region
        $region45: #{cnn_forward.1} parent=11 // pred_check
          %p374 = pneg %p241
        $region46: #{cnn_forward.1} parent=11 // pred_check_branch
          %376 = sbr.rel (%p374) target = $region48
        $region47: #{cnn_forward.1} parent=11 // pred_region
          _
        $region48: #{cnn_forward.1} parent=11 // pred_fallthru
          _
        // Predicated region
        $region49: #{cnn_forward.1} parent=11 // pred_check
          %p377 = pneg %p262
        $region50: #{cnn_forward.1} parent=11 // pred_check_branch
          %379 = sbr.rel (%p377) target = $region52
        $region51: #{cnn_forward.1} parent=11 // pred_region
          _
        $region52: #{cnn_forward.1} parent=11 // pred_fallthru
          _
        // Predicated region
        $region53: #{cnn_forward.1} parent=11 // pred_check
          %p380 = pneg %p283
        $region54: #{cnn_forward.1} parent=11 // pred_check_branch
          %382 = sbr.rel (%p380) target = $region56
        $region55: #{cnn_forward.1} parent=11 // pred_region
          _
        $region56: #{cnn_forward.1} parent=11 // pred_fallthru
          _
      $region12: #{cnn_forward.1} parent=5 // pred_fallthru
        _
      %p383 = scmp.lt.s32.totalorder %s26, 2
      // Predicated region
      $region57: #{cnn_forward.1} parent=5 // pred_check
        %p384 = pneg %p383
      $region58: #{cnn_forward.1} parent=5 // pred_check_branch
        %386 = sbr.rel (%p384) target = $region60
      $region59: #{cnn_forward.1} parent=5 // pred_region
        // Predicated region
        $region61: #{cnn_forward.1} parent=59 // pred_check
          %p387 = pneg %p46
        $region62: #{cnn_forward.1} parent=59 // pred_check_branch
          %389 = sbr.rel (%p387) target = $region64
        $region63: #{cnn_forward.1} parent=59 // pred_region
          %p390 = scmp.lt.s32.totalorder %s26, 1
          %s391 = scalar_select %p390, %s26, 1
          %s392 = smul.addr %s391, 432
          %s393 = smul.addr %s392, 8
          %s394 = scalar_lea.vmem %s0, %s393
        $region64: #{cnn_forward.1} parent=59 // pred_fallthru
          _
      $region60: #{cnn_forward.1} parent=5 // pred_fallthru
        _
      %p395 = scmp.le.s32.totalorder 1, %s26
      %p396 = scmp.lt.s32.totalorder %s26, 3
      %p397 = pnand %p395, %p396
      %p398 = pneg %p397
      // Predicated region
      $region65: #{cnn_forward.1} parent=5 // pred_check
        _
      $region66: #{cnn_forward.1} parent=5 // pred_check_branch
        %400 = sbr.rel (%p397) target = $region68
      $region67: #{cnn_forward.1} parent=5 // pred_region
        %s401 = ssub.s32 %s26, 1
        %p402 = scmp.lt.s32.totalorder %s31, 1
        %s403 = scalar_select %p402, %s31, 1
        %s404 = smul.addr %s403, 432
        %s405 = smul.addr %s404, 8
        %s406 = scalar_lea.vmem %s0, %s405
        %p407 = pneg %p52
        %p408 = pneg %p49
        %p409 = pneg %p73
        %p410 = pneg %p70
        %p411 = pneg %p94
        %p412 = pneg %p91
        %p413 = pneg %p115
        %p414 = pneg %p112
        %p415 = pneg %p136
        %p416 = pneg %p133
        %p417 = pneg %p157
        %p418 = pneg %p154
        %p419 = pneg %p178
        %p420 = pneg %p175
        %p421 = pneg %p199
        %p422 = pneg %p196
        %p423 = pneg %p220
        %p424 = pneg %p217
        %p425 = pneg %p241
        %p426 = pneg %p238
        %p427 = pneg %p262
        %p428 = pneg %p259
        %p429 = pneg %p283
        %p430 = pneg %p280
        %p431 = pneg %p309
        %p432 = pneg %p306
        %s433 = sand.u32 %s296, 1
        %s434 = scalar_lea.sflag [#allocation3], %s433
        %s435 = sand.u32 %s296, 1
        %s436 = scalar_lea.vmem [#allocation2], %s435
        %p437 = pneg %p335
        %p438 = pneg %p332
        %s439 = sand.u32 %s322, 1
        %s440 = scalar_lea.sflag [#allocation5], %s439
        %s441 = sand.u32 %s322, 1
        %s442 = scalar_lea.vmem [#allocation4], %s441
        %p443 = scmp.lt.s32.totalorder %s31, 1
        %s444 = scalar_select %p443, %s31, 1
        %s445 = smul.addr %s444, 432
        %s446 = smul.addr %s445, 8
        %s447 = scalar_lea.vmem %s0, %s446
        %v448 = vld [vmem:[%s1] sm:$0xff]
        %v449 = vld [vmem:[%s1 + $0x8] sm:$0xff]
        %v450 = vld [vmem:[%s1 + $0x10] sm:$0xff]
        %v451 = vld [vmem:[%s1 + $0x18] sm:$0xff]
        %v452 = vld [vmem:[%s1 + $0x20] sm:$0xff]
        %v453 = vld [vmem:[%s1 + $0x28] sm:$0xff]
        %v454 = vld [vmem:[%s1 + $0x30] sm:$0xff]
        %v455 = vld [vmem:[%s1 + $0x38] sm:$0xff]
        %v456 = vld [vmem:[%s1 + $0x40] sm:$0xff]
        %v457 = vld [vmem:[%s1 + $0x48] sm:$0xff]
        %v458 = vld [vmem:[%s1 + $0x50] sm:$0xff]
        %v459 = vld [vmem:[%s1 + $0x58] sm:$0xff]
        %v460 = vld [vmem:[%s1 + $0x60] sm:$0xff]
        %v461 = vld [vmem:[%s1 + $0x68] sm:$0xff]
        %v462 = vld [vmem:[%s1 + $0x70] sm:$0xff]
        %v463 = vld [vmem:[%s1 + $0x78] sm:$0xff]
        %v464 = vld [vmem:[%s2] sm:$0x1]
        %v465 = vld [vmem:[%s447] sm:$0xff]
        %v466 = vld [vmem:[%s447 + $0x8] sm:$0xff]
        %v467 = vld [vmem:[%s447 + $0x10] sm:$0xff]
        %v468 = vld [vmem:[%s447 + $0x18] sm:$0xff]
        %v469 = vld [vmem:[%s447 + $0x20] sm:$0xff]
        %v470 = vld [vmem:[%s447 + $0x28] sm:$0xff]
        %v471 = vld [vmem:[%s447 + $0x30] sm:$0xff]
        %v472 = vld [vmem:[%s447 + $0x38] sm:$0xff]
        %v473 = vld [vmem:[%s447 + $0x40] sm:$0xff]
        %v474 = vld [vmem:[%s447 + $0x48] sm:$0xff]
        %v475 = vld [vmem:[%s447 + $0x50] sm:$0xff]
        %v476 = vld [vmem:[%s447 + $0x58] sm:$0xff]
        %v477 = vld [vmem:[%s447 + $0x60] sm:$0xff]
        %v478 = vld [vmem:[%s447 + $0x68] sm:$0xff]
        %v479 = vld [vmem:[%s447 + $0x70] sm:$0xff]
        %v480 = vld [vmem:[%s447 + $0x78] sm:$0xff]
        %v482 = vlaneseq
        %v483 = vshrl.u32 %v482, 7
        %v484 = vsub.s32 0, %v483
        %v485 = vrot.slane %v464, %v484
        %487 = vmatprep.subr.mxu0 0.0
        %488 = vmatpush1.msra.mxu0 %v448
        %489 = vmatprep.subr.mxu0 0.0
        %490 = vmatpush1.msra.mxu0 %v449
        %491 = vmatprep.subr.mxu0 0.0
        %492 = vmatpush1.msra.mxu0 %v450
        %493 = vmatprep.subr.mxu0 0.0
        %494 = vmatpush1.msra.mxu0 %v451
        %495 = vmatprep.subr.mxu0 0.0
        %496 = vmatpush1.msra.mxu0 %v452
        %497 = vmatprep.subr.mxu0 0.0
        %498 = vmatpush1.msra.mxu0 %v453
        %499 = vmatprep.subr.mxu0 0.0
        %500 = vmatpush1.msra.mxu0 %v454
        %501 = vmatprep.subr.mxu0 0.0
        %502 = vmatpush1.msra.mxu0 %v455
        %503 = vmatprep.subr.mxu0 0.0
        %504 = vmatpush1.msra.mxu0 %v456
        %505 = vmatprep.subr.mxu0 0.0
        %506 = vmatpush1.msra.mxu0 %v457
        %507 = vmatprep.subr.mxu0 0.0
        %508 = vmatpush1.msra.mxu0 %v458
        %509 = vmatprep.subr.mxu0 0.0
        %510 = vmatpush1.msra.mxu0 %v459
        %511 = vmatprep.subr.mxu0 0.0
        %512 = vmatpush1.msra.mxu0 %v460
        %513 = vmatprep.subr.mxu0 0.0
        %514 = vmatpush1.msra.mxu0 %v461
        %515 = vmatprep.subr.mxu0 0.0
        %516 = vmatpush1.msra.mxu0 %v462
        %517 = vmatprep.subr.mxu0 0.0
        %518 = vmatpush1.msra.mxu0 %v463
        %519 = vmatprep.subr.mxu0 0.0
        %520 = vmatpush1.msra.mxu0 0.0
        %521 = vmatprep.subr.mxu0 0.0
        %522 = vmatpush1.msra.mxu0 0.0
        %523 = vmatprep.subr.mxu0 0.0
        %524 = vmatpush1.msra.mxu0 0.0
        %525 = vmatprep.subr.mxu0 0.0
        %526 = vmatpush1.msra.mxu0 0.0
        %527 = vmatprep.subr.mxu0 0.0
        %528 = vmatpush1.msra.mxu0 0.0
        %529 = vmatprep.subr.mxu0 0.0
        %530 = vmatpush1.msra.mxu0 0.0
        %531 = vmatprep.subr.mxu0 0.0
        %532 = vmatpush1.msra.mxu0 0.0
        %533 = vmatprep.subr.mxu0 0.0
        %534 = vmatpush1.msra.mxu0 0.0
        %535 = vmatprep.subr.mxu0 0.0
        %536 = vmatpush1.msra.mxu0 0.0
        %537 = vmatprep.subr.mxu0 0.0
        %538 = vmatpush1.msra.mxu0 0.0
        %539 = vmatprep.subr.mxu0 0.0
        %540 = vmatpush1.msra.mxu0 0.0
        %541 = vmatprep.subr.mxu0 0.0
        %542 = vmatpush1.msra.mxu0 0.0
        %543 = vmatprep.subr.mxu0 0.0
        %544 = vmatpush1.msra.mxu0 0.0
        %545 = vmatprep.subr.mxu0 0.0
        %546 = vmatpush1.msra.mxu0 0.0
        %547 = vmatprep.subr.mxu0 0.0
        %548 = vmatpush1.msra.mxu0 0.0
        %549 = vmatprep.subr.mxu0 0.0
        %550 = vmatpush1.msra.mxu0 0.0
        %551 = vmatprep.mubr.f32.mxu0 0.0
        %552 = vmatmul.mubr.f32.gmra.mrb[0].mxu0 %v465
        %v553 = vpop.f32.mrb[0].mxu0
        %v554 = vadd.f32 %v485, %v553
        %v555 = vpop.f32.mrb[0].mxu0
        %556 = vmatprep.mubr.f32.mxu0 0.0
        %557 = vmatmul.mubr.f32.gmra.mrb[0].mxu0 %v466
        %v558 = vpop.f32.mrb[0].mxu0
        %v559 = vadd.f32 %v485, %v558
        %v560 = vpop.f32.mrb[0].mxu0
        %561 = vmatprep.mubr.f32.mxu0 0.0
        %562 = vmatmul.mubr.f32.gmra.mrb[0].mxu0 %v467
        %v563 = vpop.f32.mrb[0].mxu0
        %v564 = vadd.f32 %v485, %v563
        %v565 = vpop.f32.mrb[0].mxu0
        %566 = vmatprep.mubr.f32.mxu0 0.0
        %567 = vmatmul.mubr.f32.gmra.mrb[0].mxu0 %v468
        %v568 = vpop.f32.mrb[0].mxu0
        %v569 = vadd.f32 %v485, %v568
        %v570 = vpop.f32.mrb[0].mxu0
        %571 = vmatprep.mubr.f32.mxu0 0.0
        %572 = vmatmul.mubr.f32.gmra.mrb[0].mxu0 %v469
        %v573 = vpop.f32.mrb[0].mxu0
        %v574 = vadd.f32 %v485, %v573
        %v575 = vpop.f32.mrb[0].mxu0
        %576 = vmatprep.mubr.f32.mxu0 0.0
        %577 = vmatmul.mubr.f32.gmra.mrb[0].mxu0 %v470
        %v578 = vpop.f32.mrb[0].mxu0
        %v579 = vadd.f32 %v485, %v578
        %v580 = vpop.f32.mrb[0].mxu0
        %581 = vmatprep.mubr.f32.mxu0 0.0
        %582 = vmatmul.mubr.f32.gmra.mrb[0].mxu0 %v471
        %v583 = vpop.f32.mrb[0].mxu0
        %v584 = vadd.f32 %v485, %v583
        %v585 = vpop.f32.mrb[0].mxu0
        %586 = vmatprep.mubr.f32.mxu0 0.0
        %587 = vmatmul.mubr.f32.gmra.mrb[0].mxu0 %v472
        %v588 = vpop.f32.mrb[0].mxu0
        %v589 = vadd.f32 %v485, %v588
        %v590 = vpop.f32.mrb[0].mxu0
        %591 = vmatprep.mubr.f32.mxu0 0.0
        %592 = vmatmul.mubr.f32.gmra.mrb[0].mxu0 %v473
        %v593 = vpop.f32.mrb[0].mxu0
        %v594 = vadd.f32 %v485, %v593
        %v595 = vpop.f32.mrb[0].mxu0
        %596 = vmatprep.mubr.f32.mxu0 0.0
        %597 = vmatmul.mubr.f32.gmra.mrb[0].mxu0 %v474
        %v598 = vpop.f32.mrb[0].mxu0
        %v599 = vadd.f32 %v485, %v598
        %v600 = vpop.f32.mrb[0].mxu0
        %601 = vmatprep.mubr.f32.mxu0 0.0
        %602 = vmatmul.mubr.f32.gmra.mrb[0].mxu0 %v475
        %v603 = vpop.f32.mrb[0].mxu0
        %v604 = vadd.f32 %v485, %v603
        %v605 = vpop.f32.mrb[0].mxu0
        %606 = vmatprep.mubr.f32.mxu0 0.0
        %607 = vmatmul.mubr.f32.gmra.mrb[0].mxu0 %v476
        %v608 = vpop.f32.mrb[0].mxu0
        %v609 = vadd.f32 %v485, %v608
        %v610 = vpop.f32.mrb[0].mxu0
        %611 = vmatprep.mubr.f32.mxu0 0.0
        %612 = vmatmul.mubr.f32.gmra.mrb[0].mxu0 %v477
        %v613 = vpop.f32.mrb[0].mxu0
        %v614 = vadd.f32 %v485, %v613
        %v615 = vpop.f32.mrb[0].mxu0
        %616 = vmatprep.mubr.f32.mxu0 0.0
        %617 = vmatmul.mubr.f32.gmra.mrb[0].mxu0 %v478
        %v618 = vpop.f32.mrb[0].mxu0
        %v619 = vadd.f32 %v485, %v618
        %v620 = vpop.f32.mrb[0].mxu0
        %621 = vmatprep.mubr.f32.mxu0 0.0
        %622 = vmatmul.mubr.f32.gmra.mrb[0].mxu0 %v479
        %v623 = vpop.f32.mrb[0].mxu0
        %v624 = vadd.f32 %v485, %v623
        %v625 = vpop.f32.mrb[0].mxu0
        %626 = vmatprep.mubr.f32.mxu0 0.0
        %627 = vmatmul.mubr.f32.gmra.mrb[0].mxu0 %v480
        %v628 = vpop.f32.mrb[0].mxu0
        %v629 = vadd.f32 %v485, %v628
        %v630 = vpop.f32.mrb[0].mxu0
        %631 = vdwg.mxu0
        %v632 = vmax.f32 %v554, 0.0
        %v633 = vmax.f32 %v559, 0.0
        %v634 = vmax.f32 %v564, 0.0
        %v635 = vmax.f32 %v569, 0.0
        %v636 = vmax.f32 %v574, 0.0
        %v637 = vmax.f32 %v579, 0.0
        %v638 = vmax.f32 %v584, 0.0
        %v639 = vmax.f32 %v589, 0.0
        %v640 = vmax.f32 %v594, 0.0
        %v641 = vmax.f32 %v599, 0.0
        %v642 = vmax.f32 %v604, 0.0
        %v643 = vmax.f32 %v609, 0.0
        %v644 = vmax.f32 %v614, 0.0
        %v645 = vmax.f32 %v619, 0.0
        %v646 = vmax.f32 %v624, 0.0
        %v647 = vmax.f32 %v629, 0.0
        %s648 = scalar_lea.vmem %s447, 128
        %v649 = vld [vmem:[%s648] sm:$0xff]
        %v650 = vld [vmem:[%s648 + $0x8] sm:$0xff]
        %v651 = vld [vmem:[%s648 + $0x10] sm:$0xff]
        %v652 = vld [vmem:[%s648 + $0x18] sm:$0xff]
        %v653 = vld [vmem:[%s648 + $0x20] sm:$0xff]
        %v654 = vld [vmem:[%s648 + $0x28] sm:$0xff]
        %v655 = vld [vmem:[%s648 + $0x30] sm:$0xff]
        %v656 = vld [vmem:[%s648 + $0x38] sm:$0xff]
        %v657 = vld [vmem:[%s648 + $0x40] sm:$0xff]
        %v658 = vld [vmem:[%s648 + $0x48] sm:$0xff]
        %v659 = vld [vmem:[%s648 + $0x50] sm:$0xff]
        %v660 = vld [vmem:[%s648 + $0x58] sm:$0xff]
        %v661 = vld [vmem:[%s648 + $0x60] sm:$0xff]
        %v662 = vld [vmem:[%s648 + $0x68] sm:$0xff]
        %v663 = vld [vmem:[%s648 + $0x70] sm:$0xff]
        %v664 = vld [vmem:[%s648 + $0x78] sm:$0xff]
        %665 = vmatprep.subr.mxu0 0.0
        %666 = vmatpush1.msra.mxu0 %v448
        %667 = vmatprep.subr.mxu0 0.0
        %668 = vmatpush1.msra.mxu0 %v449
        %669 = vmatprep.subr.mxu0 0.0
        %670 = vmatpush1.msra.mxu0 %v450
        %671 = vmatprep.subr.mxu0 0.0
        %672 = vmatpush1.msra.mxu0 %v451
        %673 = vmatprep.subr.mxu0 0.0
        %674 = vmatpush1.msra.mxu0 %v452
        %675 = vmatprep.subr.mxu0 0.0
        %676 = vmatpush1.msra.mxu0 %v453
        %677 = vmatprep.subr.mxu0 0.0
        %678 = vmatpush1.msra.mxu0 %v454
        %679 = vmatprep.subr.mxu0 0.0
        %680 = vmatpush1.msra.mxu0 %v455
        %681 = vmatprep.subr.mxu0 0.0
        %682 = vmatpush1.msra.mxu0 %v456
        %683 = vmatprep.subr.mxu0 0.0
        %684 = vmatpush1.msra.mxu0 %v457
        %685 = vmatprep.subr.mxu0 0.0
        %686 = vmatpush1.msra.mxu0 %v458
        %687 = vmatprep.subr.mxu0 0.0
        %688 = vmatpush1.msra.mxu0 %v459
        %689 = vmatprep.subr.mxu0 0.0
        %690 = vmatpush1.msra.mxu0 %v460
        %691 = vmatprep.subr.mxu0 0.0
        %692 = vmatpush1.msra.mxu0 %v461
        %693 = vmatprep.subr.mxu0 0.0
        %694 = vmatpush1.msra.mxu0 %v462
        %695 = vmatprep.subr.mxu0 0.0
        %696 = vmatpush1.msra.mxu0 %v463
        %697 = vmatprep.subr.mxu0 0.0
        %698 = vmatpush1.msra.mxu0 0.0
        %699 = vmatprep.subr.mxu0 0.0
        %700 = vmatpush1.msra.mxu0 0.0
        %701 = vmatprep.subr.mxu0 0.0
        %702 = vmatpush1.msra.mxu0 0.0
        %703 = vmatprep.subr.mxu0 0.0
        %704 = vmatpush1.msra.mxu0 0.0
        %705 = vmatprep.subr.mxu0 0.0
        %706 = vmatpush1.msra.mxu0 0.0
        %707 = vmatprep.subr.mxu0 0.0
        %708 = vmatpush1.msra.mxu0 0.0
        %709 = vmatprep.subr.mxu0 0.0
        %710 = vmatpush1.msra.mxu0 0.0
        %711 = vmatprep.subr.mxu0 0.0
        %712 = vmatpush1.msra.mxu0 0.0
        %713 = vmatprep.subr.mxu0 0.0
        %714 = vmatpush1.msra.mxu0 0.0
        %715 = vmatprep.subr.mxu0 0.0
        %716 = vmatpush1.msra.mxu0 0.0
        %717 = vmatprep.subr.mxu0 0.0
        %718 = vmatpush1.msra.mxu0 0.0
        %719 = vmatprep.subr.mxu0 0.0
        %720 = vmatpush1.msra.mxu0 0.0
        %721 = vmatprep.subr.mxu0 0.0
        %722 = vmatpush1.msra.mxu0 0.0
        %723 = vmatprep.subr.mxu0 0.0
        %724 = vmatpush1.msra.mxu0 0.0
        %725 = vmatprep.subr.mxu0 0.0
        %726 = vmatpush1.msra.mxu0 0.0
        %727 = vmatprep.subr.mxu0 0.0
        %728 = vmatpush1.msra.mxu0 0.0
        %729 = vmatprep.mubr.f32.mxu0 0.0
        %730 = vmatmul.mubr.f32.gmra.mrb[0].mxu0 %v649
        %v731 = vpop.f32.mrb[0].mxu0
        %v732 = vadd.f32 %v485, %v731
        %v733 = vpop.f32.mrb[0].mxu0
        %734 = vmatprep.mubr.f32.mxu0 0.0
        %735 = vmatmul.mubr.f32.gmra.mrb[0].mxu0 %v650
        %v736 = vpop.f32.mrb[0].mxu0
        %v737 = vadd.f32 %v485, %v736
        %v738 = vpop.f32.mrb[0].mxu0
        %739 = vmatprep.mubr.f32.mxu0 0.0
        %740 = vmatmul.mubr.f32.gmra.mrb[0].mxu0 %v651
        %v741 = vpop.f32.mrb[0].mxu0
        %v742 = vadd.f32 %v485, %v741
        %v743 = vpop.f32.mrb[0].mxu0
        %744 = vmatprep.mubr.f32.mxu0 0.0
        %745 = vmatmul.mubr.f32.gmra.mrb[0].mxu0 %v652
        %v746 = vpop.f32.mrb[0].mxu0
        %v747 = vadd.f32 %v485, %v746
        %v748 = vpop.f32.mrb[0].mxu0
        %749 = vmatprep.mubr.f32.mxu0 0.0
        %750 = vmatmul.mubr.f32.gmra.mrb[0].mxu0 %v653
        %v751 = vpop.f32.mrb[0].mxu0
        %v752 = vadd.f32 %v485, %v751
        %v753 = vpop.f32.mrb[0].mxu0
        %754 = vmatprep.mubr.f32.mxu0 0.0
        %755 = vmatmul.mubr.f32.gmra.mrb[0].mxu0 %v654
        %v756 = vpop.f32.mrb[0].mxu0
        %v757 = vadd.f32 %v485, %v756
        %v758 = vpop.f32.mrb[0].mxu0
        %759 = vmatprep.mubr.f32.mxu0 0.0
        %760 = vmatmul.mubr.f32.gmra.mrb[0].mxu0 %v655
        %v761 = vpop.f32.mrb[0].mxu0
        %v762 = vadd.f32 %v485, %v761
        %v763 = vpop.f32.mrb[0].mxu0
        %764 = vmatprep.mubr.f32.mxu0 0.0
        %765 = vmatmul.mubr.f32.gmra.mrb[0].mxu0 %v656
        %v766 = vpop.f32.mrb[0].mxu0
        %v767 = vadd.f32 %v485, %v766
        %v768 = vpop.f32.mrb[0].mxu0
        %769 = vmatprep.mubr.f32.mxu0 0.0
        %770 = vmatmul.mubr.f32.gmra.mrb[0].mxu0 %v657
        %v771 = vpop.f32.mrb[0].mxu0
        %v772 = vadd.f32 %v485, %v771
        %v773 = vpop.f32.mrb[0].mxu0
        %774 = vmatprep.mubr.f32.mxu0 0.0
        %775 = vmatmul.mubr.f32.gmra.mrb[0].mxu0 %v658
        %v776 = vpop.f32.mrb[0].mxu0
        %v777 = vadd.f32 %v485, %v776
        %v778 = vpop.f32.mrb[0].mxu0
        %779 = vmatprep.mubr.f32.mxu0 0.0
        %780 = vmatmul.mubr.f32.gmra.mrb[0].mxu0 %v659
        %v781 = vpop.f32.mrb[0].mxu0
        %v782 = vadd.f32 %v485, %v781
        %v783 = vpop.f32.mrb[0].mxu0
        %784 = vmatprep.mubr.f32.mxu0 0.0
        %785 = vmatmul.mubr.f32.gmra.mrb[0].mxu0 %v660
        %v786 = vpop.f32.mrb[0].mxu0
        %v787 = vadd.f32 %v485, %v786
        %v788 = vpop.f32.mrb[0].mxu0
        %789 = vmatprep.mubr.f32.mxu0 0.0
        %790 = vmatmul.mubr.f32.gmra.mrb[0].mxu0 %v661
        %v791 = vpop.f32.mrb[0].mxu0
        %v792 = vadd.f32 %v485, %v791
        %v793 = vpop.f32.mrb[0].mxu0
        %794 = vmatprep.mubr.f32.mxu0 0.0
        %795 = vmatmul.mubr.f32.gmra.mrb[0].mxu0 %v662
        %v796 = vpop.f32.mrb[0].mxu0
        %v797 = vadd.f32 %v485, %v796
        %v798 = vpop.f32.mrb[0].mxu0
        %799 = vmatprep.mubr.f32.mxu0 0.0
        %800 = vmatmul.mubr.f32.gmra.mrb[0].mxu0 %v663
        %v801 = vpop.f32.mrb[0].mxu0
        %v802 = vadd.f32 %v485, %v801
        %v803 = vpop.f32.mrb[0].mxu0
        %804 = vmatprep.mubr.f32.mxu0 0.0
        %805 = vmatmul.mubr.f32.gmra.mrb[0].mxu0 %v664
        %v806 = vpop.f32.mrb[0].mxu0
        %v807 = vadd.f32 %v485, %v806
        %v808 = vpop.f32.mrb[0].mxu0
        %809 = vdwg.mxu0
        %v810 = vmax.f32 %v732, 0.0
        %v811 = vmax.f32 %v737, 0.0
        %v812 = vmax.f32 %v742, 0.0
        %v813 = vmax.f32 %v747, 0.0
        %v814 = vmax.f32 %v752, 0.0
        %v815 = vmax.f32 %v757, 0.0
        %v816 = vmax.f32 %v762, 0.0
        %v817 = vmax.f32 %v767, 0.0
        %v818 = vmax.f32 %v772, 0.0
        %v819 = vmax.f32 %v777, 0.0
        %v820 = vmax.f32 %v782, 0.0
        %v821 = vmax.f32 %v787, 0.0
        %v822 = vmax.f32 %v792, 0.0
        %v823 = vmax.f32 %v797, 0.0
        %v824 = vmax.f32 %v802, 0.0
        %v825 = vmax.f32 %v807, 0.0
        %v826 = vmax.f32 %v632, %v810
        %v827 = vmax.f32 %v633, %v811
        %v828 = vmax.f32 %v634, %v812
        %v829 = vmax.f32 %v635, %v813
        %v830 = vmax.f32 %v636, %v814
        %v831 = vmax.f32 %v637, %v815
        %v832 = vmax.f32 %v638, %v816
        %v833 = vmax.f32 %v639, %v817
        %v834 = vmax.f32 %v640, %v818
        %v835 = vmax.f32 %v641, %v819
        %v836 = vmax.f32 %v642, %v820
        %v837 = vmax.f32 %v643, %v821
        %v838 = vmax.f32 %v644, %v822
        %v839 = vmax.f32 %v645, %v823
        %v840 = vmax.f32 %v646, %v824
        %v841 = vmax.f32 %v647, %v825
        %s842 = scalar_lea.vmem %s447, 256
        %v843 = vld [vmem:[%s842] sm:$0xff]
        %v844 = vld [vmem:[%s842 + $0x8] sm:$0xff]
        %v845 = vld [vmem:[%s842 + $0x10] sm:$0xff]
        %v846 = vld [vmem:[%s842 + $0x18] sm:$0xff]
        %v847 = vld [vmem:[%s842 + $0x20] sm:$0xff]
        %v848 = vld [vmem:[%s842 + $0x28] sm:$0xff]
        %v849 = vld [vmem:[%s842 + $0x30] sm:$0xff]
        %v850 = vld [vmem:[%s842 + $0x38] sm:$0xff]
        %v851 = vld [vmem:[%s842 + $0x40] sm:$0xff]
        %v852 = vld [vmem:[%s842 + $0x48] sm:$0xff]
        %v853 = vld [vmem:[%s842 + $0x50] sm:$0xff]
        %v854 = vld [vmem:[%s842 + $0x58] sm:$0xff]
        %v855 = vld [vmem:[%s842 + $0x60] sm:$0xff]
        %v856 = vld [vmem:[%s842 + $0x68] sm:$0xff]
        %v857 = vld [vmem:[%s842 + $0x70] sm:$0xff]
        %v858 = vld [vmem:[%s842 + $0x78] sm:$0xff]
        %859 = vmatprep.subr.mxu0 0.0
        %860 = vmatpush1.msra.mxu0 %v448
        %861 = vmatprep.subr.mxu0 0.0
        %862 = vmatpush1.msra.mxu0 %v449
        %863 = vmatprep.subr.mxu0 0.0
        %864 = vmatpush1.msra.mxu0 %v450
        %865 = vmatprep.subr.mxu0 0.0
        %866 = vmatpush1.msra.mxu0 %v451
        %867 = vmatprep.subr.mxu0 0.0
        %868 = vmatpush1.msra.mxu0 %v452
        %869 = vmatprep.subr.mxu0 0.0
        %870 = vmatpush1.msra.mxu0 %v453
        %871 = vmatprep.subr.mxu0 0.0
        %872 = vmatpush1.msra.mxu0 %v454
        %873 = vmatprep.subr.mxu0 0.0
        %874 = vmatpush1.msra.mxu0 %v455
        %875 = vmatprep.subr.mxu0 0.0
        %876 = vmatpush1.msra.mxu0 %v456
        %877 = vmatprep.subr.mxu0 0.0
        %878 = vmatpush1.msra.mxu0 %v457
        %879 = vmatprep.subr.mxu0 0.0
        %880 = vmatpush1.msra.mxu0 %v458
        %881 = vmatprep.subr.mxu0 0.0
        %882 = vmatpush1.msra.mxu0 %v459
        %883 = vmatprep.subr.mxu0 0.0
        %884 = vmatpush1.msra.mxu0 %v460
        %885 = vmatprep.subr.mxu0 0.0
        %886 = vmatpush1.msra.mxu0 %v461
        %887 = vmatprep.subr.mxu0 0.0
        %888 = vmatpush1.msra.mxu0 %v462
        %889 = vmatprep.subr.mxu0 0.0
        %890 = vmatpush1.msra.mxu0 %v463
        %891 = vmatprep.subr.mxu0 0.0
        %892 = vmatpush1.msra.mxu0 0.0
        %893 = vmatprep.subr.mxu0 0.0
        %894 = vmatpush1.msra.mxu0 0.0
        %895 = vmatprep.subr.mxu0 0.0
        %896 = vmatpush1.msra.mxu0 0.0
        %897 = vmatprep.subr.mxu0 0.0
        %898 = vmatpush1.msra.mxu0 0.0
        %899 = vmatprep.subr.mxu0 0.0
        %900 = vmatpush1.msra.mxu0 0.0
        %901 = vmatprep.subr.mxu0 0.0
        %902 = vmatpush1.msra.mxu0 0.0
        %903 = vmatprep.subr.mxu0 0.0
        %904 = vmatpush1.msra.mxu0 0.0
        %905 = vmatprep.subr.mxu0 0.0
        %906 = vmatpush1.msra.mxu0 0.0
        %907 = vmatprep.subr.mxu0 0.0
        %908 = vmatpush1.msra.mxu0 0.0
        %909 = vmatprep.subr.mxu0 0.0
        %910 = vmatpush1.msra.mxu0 0.0
        %911 = vmatprep.subr.mxu0 0.0
        %912 = vmatpush1.msra.mxu0 0.0
        %913 = vmatprep.subr.mxu0 0.0
        %914 = vmatpush1.msra.mxu0 0.0
        %915 = vmatprep.subr.mxu0 0.0
        %916 = vmatpush1.msra.mxu0 0.0
        %917 = vmatprep.subr.mxu0 0.0
        %918 = vmatpush1.msra.mxu0 0.0
        %919 = vmatprep.subr.mxu0 0.0
        %920 = vmatpush1.msra.mxu0 0.0
        %921 = vmatprep.subr.mxu0 0.0
        %922 = vmatpush1.msra.mxu0 0.0
        %923 = vmatprep.mubr.f32.mxu0 0.0
        %924 = vmatmul.mubr.f32.gmra.mrb[0].mxu0 %v843
        %v925 = vpop.f32.mrb[0].mxu0
        %v926 = vadd.f32 %v485, %v925
        %v927 = vpop.f32.mrb[0].mxu0
        %928 = vmatprep.mubr.f32.mxu0 0.0
        %929 = vmatmul.mubr.f32.gmra.mrb[0].mxu0 %v844
        %v930 = vpop.f32.mrb[0].mxu0
        %v931 = vadd.f32 %v485, %v930
        %v932 = vpop.f32.mrb[0].mxu0
        %933 = vmatprep.mubr.f32.mxu0 0.0
        %934 = vmatmul.mubr.f32.gmra.mrb[0].mxu0 %v845
        %v935 = vpop.f32.mrb[0].mxu0
        %v936 = vadd.f32 %v485, %v935
        %v937 = vpop.f32.mrb[0].mxu0
        %938 = vmatprep.mubr.f32.mxu0 0.0
        %939 = vmatmul.mubr.f32.gmra.mrb[0].mxu0 %v846
        %v940 = vpop.f32.mrb[0].mxu0
        %v941 = vadd.f32 %v485, %v940
        %v942 = vpop.f32.mrb[0].mxu0
        %943 = vmatprep.mubr.f32.mxu0 0.0
        %944 = vmatmul.mubr.f32.gmra.mrb[0].mxu0 %v847
        %v945 = vpop.f32.mrb[0].mxu0
        %v946 = vadd.f32 %v485, %v945
        %v947 = vpop.f32.mrb[0].mxu0
        %948 = vmatprep.mubr.f32.mxu0 0.0
        %949 = vmatmul.mubr.f32.gmra.mrb[0].mxu0 %v848
        %v950 = vpop.f32.mrb[0].mxu0
        %v951 = vadd.f32 %v485, %v950
        %v952 = vpop.f32.mrb[0].mxu0
        %953 = vmatprep.mubr.f32.mxu0 0.0
        %954 = vmatmul.mubr.f32.gmra.mrb[0].mxu0 %v849
        %v955 = vpop.f32.mrb[0].mxu0
        %v956 = vadd.f32 %v485, %v955
        %v957 = vpop.f32.mrb[0].mxu0
        %958 = vmatprep.mubr.f32.mxu0 0.0
        %959 = vmatmul.mubr.f32.gmra.mrb[0].mxu0 %v850
        %v960 = vpop.f32.mrb[0].mxu0
        %v961 = vadd.f32 %v485, %v960
        %v962 = vpop.f32.mrb[0].mxu0
        %963 = vmatprep.mubr.f32.mxu0 0.0
        %964 = vmatmul.mubr.f32.gmra.mrb[0].mxu0 %v851
        %v965 = vpop.f32.mrb[0].mxu0
        %v966 = vadd.f32 %v485, %v965
        %v967 = vpop.f32.mrb[0].mxu0
        %968 = vmatprep.mubr.f32.mxu0 0.0
        %969 = vmatmul.mubr.f32.gmra.mrb[0].mxu0 %v852
        %v970 = vpop.f32.mrb[0].mxu0
        %v971 = vadd.f32 %v485, %v970
        %v972 = vpop.f32.mrb[0].mxu0
        %973 = vmatprep.mubr.f32.mxu0 0.0
        %974 = vmatmul.mubr.f32.gmra.mrb[0].mxu0 %v853
        %v975 = vpop.f32.mrb[0].mxu0
        %v976 = vadd.f32 %v485, %v975
        %v977 = vpop.f32.mrb[0].mxu0
        %978 = vmatprep.mubr.f32.mxu0 0.0
        %979 = vmatmul.mubr.f32.gmra.mrb[0].mxu0 %v854
        %v980 = vpop.f32.mrb[0].mxu0
        %v981 = vadd.f32 %v485, %v980
        %v982 = vpop.f32.mrb[0].mxu0
        %983 = vmatprep.mubr.f32.mxu0 0.0
        %984 = vmatmul.mubr.f32.gmra.mrb[0].mxu0 %v855
        %v985 = vpop.f32.mrb[0].mxu0
        %v986 = vadd.f32 %v485, %v985
        %v987 = vpop.f32.mrb[0].mxu0
        %988 = vmatprep.mubr.f32.mxu0 0.0
        %989 = vmatmul.mubr.f32.gmra.mrb[0].mxu0 %v856
        %v990 = vpop.f32.mrb[0].mxu0
        %v991 = vadd.f32 %v485, %v990
        %v992 = vpop.f32.mrb[0].mxu0
        %993 = vmatprep.mubr.f32.mxu0 0.0
        %994 = vmatmul.mubr.f32.gmra.mrb[0].mxu0 %v857
        %v995 = vpop.f32.mrb[0].mxu0
        %v996 = vadd.f32 %v485, %v995
        %v997 = vpop.f32.mrb[0].mxu0
        %998 = vmatprep.mubr.f32.mxu0 0.0
        %999 = vmatmul.mubr.f32.gmra.mrb[0].mxu0 %v858
        %v1000 = vpop.f32.mrb[0].mxu0
        %v1001 = vadd.f32 %v485, %v1000
        %v1002 = vpop.f32.mrb[0].mxu0
        %1003 = vdwg.mxu0
        %v1004 = vmax.f32 %v926, 0.0
        %v1005 = vmax.f32 %v931, 0.0
        %v1006 = vmax.f32 %v936, 0.0
        %v1007 = vmax.f32 %v941, 0.0
        %v1008 = vmax.f32 %v946, 0.0
        %v1009 = vmax.f32 %v951, 0.0
        %v1010 = vmax.f32 %v956, 0.0
        %v1011 = vmax.f32 %v961, 0.0
        %v1012 = vmax.f32 %v966, 0.0
        %v1013 = vmax.f32 %v971, 0.0
        %v1014 = vmax.f32 %v976, 0.0
        %v1015 = vmax.f32 %v981, 0.0
        %v1016 = vmax.f32 %v986, 0.0
        %v1017 = vmax.f32 %v991, 0.0
        %v1018 = vmax.f32 %v996, 0.0
        %v1019 = vmax.f32 %v1001, 0.0
        %v1020 = vmax.f32 %v826, %v1004
        %v1021 = vmax.f32 %v827, %v1005
        %v1022 = vmax.f32 %v828, %v1006
        %v1023 = vmax.f32 %v829, %v1007
        %v1024 = vmax.f32 %v830, %v1008
        %v1025 = vmax.f32 %v831, %v1009
        %v1026 = vmax.f32 %v832, %v1010
        %v1027 = vmax.f32 %v833, %v1011
        %v1028 = vmax.f32 %v834, %v1012
        %v1029 = vmax.f32 %v835, %v1013
        %v1030 = vmax.f32 %v836, %v1014
        %v1031 = vmax.f32 %v837, %v1015
        %v1032 = vmax.f32 %v838, %v1016
        %v1033 = vmax.f32 %v839, %v1017
        %v1034 = vmax.f32 %v840, %v1018
        %v1035 = vmax.f32 %v841, %v1019
        %s1036 = scalar_lea.vmem %s447, 384
        %v1037 = vld [vmem:[%s1036] sm:$0xff]
        %v1038 = vld [vmem:[%s1036 + $0x8] sm:$0xff]
        %v1039 = vld [vmem:[%s1036 + $0x10] sm:$0xff]
        %v1040 = vld [vmem:[%s1036 + $0x18] sm:$0xff]
        %v1041 = vld [vmem:[%s1036 + $0x20] sm:$0xff]
        %v1042 = vld [vmem:[%s1036 + $0x28] sm:$0xff]
        %v1043 = vld [vmem:[%s1036 + $0x30] sm:$0xff]
        %v1044 = vld [vmem:[%s1036 + $0x38] sm:$0xff]
        %v1045 = vld [vmem:[%s1036 + $0x40] sm:$0xff]
        %v1046 = vld [vmem:[%s1036 + $0x48] sm:$0xff]
        %v1047 = vld [vmem:[%s1036 + $0x50] sm:$0xff]
        %v1048 = vld [vmem:[%s1036 + $0x58] sm:$0xff]
        %v1049 = vld [vmem:[%s1036 + $0x60] sm:$0xff]
        %v1050 = vld [vmem:[%s1036 + $0x68] sm:$0xff]
        %v1051 = vld [vmem:[%s1036 + $0x70] sm:$0xff]
        %v1052 = vld [vmem:[%s1036 + $0x78] sm:$0xff]
        %1053 = vmatprep.subr.mxu0 0.0
        %1054 = vmatpush1.msra.mxu0 %v448
        %1055 = vmatprep.subr.mxu0 0.0
        %1056 = vmatpush1.msra.mxu0 %v449
        %1057 = vmatprep.subr.mxu0 0.0
        %1058 = vmatpush1.msra.mxu0 %v450
        %1059 = vmatprep.subr.mxu0 0.0
        %1060 = vmatpush1.msra.mxu0 %v451
        %1061 = vmatprep.subr.mxu0 0.0
        %1062 = vmatpush1.msra.mxu0 %v452
        %1063 = vmatprep.subr.mxu0 0.0
        %1064 = vmatpush1.msra.mxu0 %v453
        %1065 = vmatprep.subr.mxu0 0.0
        %1066 = vmatpush1.msra.mxu0 %v454
        %1067 = vmatprep.subr.mxu0 0.0
        %1068 = vmatpush1.msra.mxu0 %v455
        %1069 = vmatprep.subr.mxu0 0.0
        %1070 = vmatpush1.msra.mxu0 %v456
        %1071 = vmatprep.subr.mxu0 0.0
        %1072 = vmatpush1.msra.mxu0 %v457
        %1073 = vmatprep.subr.mxu0 0.0
        %1074 = vmatpush1.msra.mxu0 %v458
        %1075 = vmatprep.subr.mxu0 0.0
        %1076 = vmatpush1.msra.mxu0 %v459
        %1077 = vmatprep.subr.mxu0 0.0
        %1078 = vmatpush1.msra.mxu0 %v460
        %1079 = vmatprep.subr.mxu0 0.0
        %1080 = vmatpush1.msra.mxu0 %v461
        %1081 = vmatprep.subr.mxu0 0.0
        %1082 = vmatpush1.msra.mxu0 %v462
        %1083 = vmatprep.subr.mxu0 0.0
        %1084 = vmatpush1.msra.mxu0 %v463
        %1085 = vmatprep.subr.mxu0 0.0
        %1086 = vmatpush1.msra.mxu0 0.0
        %1087 = vmatprep.subr.mxu0 0.0
        %1088 = vmatpush1.msra.mxu0 0.0
        %1089 = vmatprep.subr.mxu0 0.0
        %1090 = vmatpush1.msra.mxu0 0.0
        %1091 = vmatprep.subr.mxu0 0.0
        %1092 = vmatpush1.msra.mxu0 0.0
        %1093 = vmatprep.subr.mxu0 0.0
        %1094 = vmatpush1.msra.mxu0 0.0
        %1095 = vmatprep.subr.mxu0 0.0
        %1096 = vmatpush1.msra.mxu0 0.0
        %1097 = vmatprep.subr.mxu0 0.0
        %1098 = vmatpush1.msra.mxu0 0.0
        %1099 = vmatprep.subr.mxu0 0.0
        %1100 = vmatpush1.msra.mxu0 0.0
        %1101 = vmatprep.subr.mxu0 0.0
        %1102 = vmatpush1.msra.mxu0 0.0
        %1103 = vmatprep.subr.mxu0 0.0
        %1104 = vmatpush1.msra.mxu0 0.0
        %1105 = vmatprep.subr.mxu0 0.0
        %1106 = vmatpush1.msra.mxu0 0.0
        %1107 = vmatprep.subr.mxu0 0.0
        %1108 = vmatpush1.msra.mxu0 0.0
        %1109 = vmatprep.subr.mxu0 0.0
        %1110 = vmatpush1.msra.mxu0 0.0
        %1111 = vmatprep.subr.mxu0 0.0
        %1112 = vmatpush1.msra.mxu0 0.0
        %1113 = vmatprep.subr.mxu0 0.0
        %1114 = vmatpush1.msra.mxu0 0.0
        %1115 = vmatprep.subr.mxu0 0.0
        %1116 = vmatpush1.msra.mxu0 0.0
        %1117 = vmatprep.mubr.f32.mxu0 0.0
        %1118 = vmatmul.mubr.f32.gmra.mrb[0].mxu0 %v1037
        %v1119 = vpop.f32.mrb[0].mxu0
        %v1120 = vadd.f32 %v485, %v1119
        %v1121 = vpop.f32.mrb[0].mxu0
        %1122 = vmatprep.mubr.f32.mxu0 0.0
        %1123 = vmatmul.mubr.f32.gmra.mrb[0].mxu0 %v1038
        %v1124 = vpop.f32.mrb[0].mxu0
        %v1125 = vadd.f32 %v485, %v1124
        %v1126 = vpop.f32.mrb[0].mxu0
        %1127 = vmatprep.mubr.f32.mxu0 0.0
        %1128 = vmatmul.mubr.f32.gmra.mrb[0].mxu0 %v1039
        %v1129 = vpop.f32.mrb[0].mxu0
        %v1130 = vadd.f32 %v485, %v1129
        %v1131 = vpop.f32.mrb[0].mxu0
        %1132 = vmatprep.mubr.f32.mxu0 0.0
        %1133 = vmatmul.mubr.f32.gmra.mrb[0].mxu0 %v1040
        %v1134 = vpop.f32.mrb[0].mxu0
        %v1135 = vadd.f32 %v485, %v1134
        %v1136 = vpop.f32.mrb[0].mxu0
        %1137 = vmatprep.mubr.f32.mxu0 0.0
        %1138 = vmatmul.mubr.f32.gmra.mrb[0].mxu0 %v1041
        %v1139 = vpop.f32.mrb[0].mxu0
        %v1140 = vadd.f32 %v485, %v1139
        %v1141 = vpop.f32.mrb[0].mxu0
        %1142 = vmatprep.mubr.f32.mxu0 0.0
        %1143 = vmatmul.mubr.f32.gmra.mrb[0].mxu0 %v1042
        %v1144 = vpop.f32.mrb[0].mxu0
        %v1145 = vadd.f32 %v485, %v1144
        %v1146 = vpop.f32.mrb[0].mxu0
        %1147 = vmatprep.mubr.f32.mxu0 0.0
        %1148 = vmatmul.mubr.f32.gmra.mrb[0].mxu0 %v1043
        %v1149 = vpop.f32.mrb[0].mxu0
        %v1150 = vadd.f32 %v485, %v1149
        %v1151 = vpop.f32.mrb[0].mxu0
        %1152 = vmatprep.mubr.f32.mxu0 0.0
        %1153 = vmatmul.mubr.f32.gmra.mrb[0].mxu0 %v1044
        %v1154 = vpop.f32.mrb[0].mxu0
        %v1155 = vadd.f32 %v485, %v1154
        %v1156 = vpop.f32.mrb[0].mxu0
        %1157 = vmatprep.mubr.f32.mxu0 0.0
        %1158 = vmatmul.mubr.f32.gmra.mrb[0].mxu0 %v1045
        %v1159 = vpop.f32.mrb[0].mxu0
        %v1160 = vadd.f32 %v485, %v1159
        %v1161 = vpop.f32.mrb[0].mxu0
        %1162 = vmatprep.mubr.f32.mxu0 0.0
        %1163 = vmatmul.mubr.f32.gmra.mrb[0].mxu0 %v1046
        %v1164 = vpop.f32.mrb[0].mxu0
        %v1165 = vadd.f32 %v485, %v1164
        %v1166 = vpop.f32.mrb[0].mxu0
        %1167 = vmatprep.mubr.f32.mxu0 0.0
        %1168 = vmatmul.mubr.f32.gmra.mrb[0].mxu0 %v1047
        %v1169 = vpop.f32.mrb[0].mxu0
        %v1170 = vadd.f32 %v485, %v1169
        %v1171 = vpop.f32.mrb[0].mxu0
        %1172 = vmatprep.mubr.f32.mxu0 0.0
        %1173 = vmatmul.mubr.f32.gmra.mrb[0].mxu0 %v1048
        %v1174 = vpop.f32.mrb[0].mxu0
        %v1175 = vadd.f32 %v485, %v1174
        %v1176 = vpop.f32.mrb[0].mxu0
        %1177 = vmatprep.mubr.f32.mxu0 0.0
        %1178 = vmatmul.mubr.f32.gmra.mrb[0].mxu0 %v1049
        %v1179 = vpop.f32.mrb[0].mxu0
        %v1180 = vadd.f32 %v485, %v1179
        %v1181 = vpop.f32.mrb[0].mxu0
        %1182 = vmatprep.mubr.f32.mxu0 0.0
        %1183 = vmatmul.mubr.f32.gmra.mrb[0].mxu0 %v1050
        %v1184 = vpop.f32.mrb[0].mxu0
        %v1185 = vadd.f32 %v485, %v1184
        %v1186 = vpop.f32.mrb[0].mxu0
        %1187 = vmatprep.mubr.f32.mxu0 0.0
        %1188 = vmatmul.mubr.f32.gmra.mrb[0].mxu0 %v1051
        %v1189 = vpop.f32.mrb[0].mxu0
        %v1190 = vadd.f32 %v485, %v1189
        %v1191 = vpop.f32.mrb[0].mxu0
        %1192 = vmatprep.mubr.f32.mxu0 0.0
        %1193 = vmatmul.mubr.f32.gmra.mrb[0].mxu0 %v1052
        %v1194 = vpop.f32.mrb[0].mxu0
        %v1195 = vadd.f32 %v485, %v1194
        %v1196 = vpop.f32.mrb[0].mxu0
        %1197 = vdwg.mxu0
        %v1198 = vmax.f32 %v1120, 0.0
        %v1199 = vmax.f32 %v1125, 0.0
        %v1200 = vmax.f32 %v1130, 0.0
        %v1201 = vmax.f32 %v1135, 0.0
        %v1202 = vmax.f32 %v1140, 0.0
        %v1203 = vmax.f32 %v1145, 0.0
        %v1204 = vmax.f32 %v1150, 0.0
        %v1205 = vmax.f32 %v1155, 0.0
        %v1206 = vmax.f32 %v1160, 0.0
        %v1207 = vmax.f32 %v1165, 0.0
        %v1208 = vmax.f32 %v1170, 0.0
        %v1209 = vmax.f32 %v1175, 0.0
        %v1210 = vmax.f32 %v1180, 0.0
        %v1211 = vmax.f32 %v1185, 0.0
        %v1212 = vmax.f32 %v1190, 0.0
        %v1213 = vmax.f32 %v1195, 0.0
        %v1214 = vmax.f32 %v1020, %v1198
        %v1215 = vmax.f32 %v1021, %v1199
        %v1216 = vmax.f32 %v1022, %v1200
        %v1217 = vmax.f32 %v1023, %v1201
        %v1218 = vmax.f32 %v1024, %v1202
        %v1219 = vmax.f32 %v1025, %v1203
        %v1220 = vmax.f32 %v1026, %v1204
        %v1221 = vmax.f32 %v1027, %v1205
        %v1222 = vmax.f32 %v1028, %v1206
        %v1223 = vmax.f32 %v1029, %v1207
        %v1224 = vmax.f32 %v1030, %v1208
        %v1225 = vmax.f32 %v1031, %v1209
        %v1226 = vmax.f32 %v1032, %v1210
        %v1227 = vmax.f32 %v1033, %v1211
        %v1228 = vmax.f32 %v1034, %v1212
        %v1229 = vmax.f32 %v1035, %v1213
        %s1230 = scalar_lea.vmem %s447, 512
        %v1231 = vld [vmem:[%s1230] sm:$0xff]
        %v1232 = vld [vmem:[%s1230 + $0x8] sm:$0xff]
        %v1233 = vld [vmem:[%s1230 + $0x10] sm:$0xff]
        %v1234 = vld [vmem:[%s1230 + $0x18] sm:$0xff]
        %v1235 = vld [vmem:[%s1230 + $0x20] sm:$0xff]
        %v1236 = vld [vmem:[%s1230 + $0x28] sm:$0xff]
        %v1237 = vld [vmem:[%s1230 + $0x30] sm:$0xff]
        %v1238 = vld [vmem:[%s1230 + $0x38] sm:$0xff]
        %v1239 = vld [vmem:[%s1230 + $0x40] sm:$0xff]
        %v1240 = vld [vmem:[%s1230 + $0x48] sm:$0xff]
        %v1241 = vld [vmem:[%s1230 + $0x50] sm:$0xff]
        %v1242 = vld [vmem:[%s1230 + $0x58] sm:$0xff]
        %v1243 = vld [vmem:[%s1230 + $0x60] sm:$0xff]
        %v1244 = vld [vmem:[%s1230 + $0x68] sm:$0xff]
        %v1245 = vld [vmem:[%s1230 + $0x70] sm:$0xff]
        %v1246 = vld [vmem:[%s1230 + $0x78] sm:$0xff]
        %1247 = vmatprep.subr.mxu0 0.0
        %1248 = vmatpush1.msra.mxu0 %v448
        %1249 = vmatprep.subr.mxu0 0.0
        %1250 = vmatpush1.msra.mxu0 %v449
        %1251 = vmatprep.subr.mxu0 0.0
        %1252 = vmatpush1.msra.mxu0 %v450
        %1253 = vmatprep.subr.mxu0 0.0
        %1254 = vmatpush1.msra.mxu0 %v451
        %1255 = vmatprep.subr.mxu0 0.0
        %1256 = vmatpush1.msra.mxu0 %v452
        %1257 = vmatprep.subr.mxu0 0.0
        %1258 = vmatpush1.msra.mxu0 %v453
        %1259 = vmatprep.subr.mxu0 0.0
        %1260 = vmatpush1.msra.mxu0 %v454
        %1261 = vmatprep.subr.mxu0 0.0
        %1262 = vmatpush1.msra.mxu0 %v455
        %1263 = vmatprep.subr.mxu0 0.0
        %1264 = vmatpush1.msra.mxu0 %v456
        %1265 = vmatprep.subr.mxu0 0.0
        %1266 = vmatpush1.msra.mxu0 %v457
        %1267 = vmatprep.subr.mxu0 0.0
        %1268 = vmatpush1.msra.mxu0 %v458
        %1269 = vmatprep.subr.mxu0 0.0
        %1270 = vmatpush1.msra.mxu0 %v459
        %1271 = vmatprep.subr.mxu0 0.0
        %1272 = vmatpush1.msra.mxu0 %v460
        %1273 = vmatprep.subr.mxu0 0.0
        %1274 = vmatpush1.msra.mxu0 %v461
        %1275 = vmatprep.subr.mxu0 0.0
        %1276 = vmatpush1.msra.mxu0 %v462
        %1277 = vmatprep.subr.mxu0 0.0
        %1278 = vmatpush1.msra.mxu0 %v463
        %1279 = vmatprep.subr.mxu0 0.0
        %1280 = vmatpush1.msra.mxu0 0.0
        %1281 = vmatprep.subr.mxu0 0.0
        %1282 = vmatpush1.msra.mxu0 0.0
        %1283 = vmatprep.subr.mxu0 0.0
        %1284 = vmatpush1.msra.mxu0 0.0
        %1285 = vmatprep.subr.mxu0 0.0
        %1286 = vmatpush1.msra.mxu0 0.0
        %1287 = vmatprep.subr.mxu0 0.0
        %1288 = vmatpush1.msra.mxu0 0.0
        %1289 = vmatprep.subr.mxu0 0.0
        %1290 = vmatpush1.msra.mxu0 0.0
        %1291 = vmatprep.subr.mxu0 0.0
        %1292 = vmatpush1.msra.mxu0 0.0
        %1293 = vmatprep.subr.mxu0 0.0
        %1294 = vmatpush1.msra.mxu0 0.0
        %1295 = vmatprep.subr.mxu0 0.0
        %1296 = vmatpush1.msra.mxu0 0.0
        %1297 = vmatprep.subr.mxu0 0.0
        %1298 = vmatpush1.msra.mxu0 0.0
        %1299 = vmatprep.subr.mxu0 0.0
        %1300 = vmatpush1.msra.mxu0 0.0
        %1301 = vmatprep.subr.mxu0 0.0
        %1302 = vmatpush1.msra.mxu0 0.0
        %1303 = vmatprep.subr.mxu0 0.0
        %1304 = vmatpush1.msra.mxu0 0.0
        %1305 = vmatprep.subr.mxu0 0.0
        %1306 = vmatpush1.msra.mxu0 0.0
        %1307 = vmatprep.subr.mxu0 0.0
        %1308 = vmatpush1.msra.mxu0 0.0
        %1309 = vmatprep.subr.mxu0 0.0
        %1310 = vmatpush1.msra.mxu0 0.0
        %1311 = vmatprep.mubr.f32.mxu0 0.0
        %1312 = vmatmul.mubr.f32.gmra.mrb[0].mxu0 %v1231
        %v1313 = vpop.f32.mrb[0].mxu0
        %v1314 = vadd.f32 %v485, %v1313
        %v1315 = vpop.f32.mrb[0].mxu0
        %1316 = vmatprep.mubr.f32.mxu0 0.0
        %1317 = vmatmul.mubr.f32.gmra.mrb[0].mxu0 %v1232
        %v1318 = vpop.f32.mrb[0].mxu0
        %v1319 = vadd.f32 %v485, %v1318
        %v1320 = vpop.f32.mrb[0].mxu0
        %1321 = vmatprep.mubr.f32.mxu0 0.0
        %1322 = vmatmul.mubr.f32.gmra.mrb[0].mxu0 %v1233
        %v1323 = vpop.f32.mrb[0].mxu0
        %v1324 = vadd.f32 %v485, %v1323
        %v1325 = vpop.f32.mrb[0].mxu0
        %1326 = vmatprep.mubr.f32.mxu0 0.0
        %1327 = vmatmul.mubr.f32.gmra.mrb[0].mxu0 %v1234
        %v1328 = vpop.f32.mrb[0].mxu0
        %v1329 = vadd.f32 %v485, %v1328
        %v1330 = vpop.f32.mrb[0].mxu0
        %1331 = vmatprep.mubr.f32.mxu0 0.0
        %1332 = vmatmul.mubr.f32.gmra.mrb[0].mxu0 %v1235
        %v1333 = vpop.f32.mrb[0].mxu0
        %v1334 = vadd.f32 %v485, %v1333
        %v1335 = vpop.f32.mrb[0].mxu0
        %1336 = vmatprep.mubr.f32.mxu0 0.0
        %1337 = vmatmul.mubr.f32.gmra.mrb[0].mxu0 %v1236
        %v1338 = vpop.f32.mrb[0].mxu0
        %v1339 = vadd.f32 %v485, %v1338
        %v1340 = vpop.f32.mrb[0].mxu0
        %1341 = vmatprep.mubr.f32.mxu0 0.0
        %1342 = vmatmul.mubr.f32.gmra.mrb[0].mxu0 %v1237
        %v1343 = vpop.f32.mrb[0].mxu0
        %v1344 = vadd.f32 %v485, %v1343
        %v1345 = vpop.f32.mrb[0].mxu0
        %1346 = vmatprep.mubr.f32.mxu0 0.0
        %1347 = vmatmul.mubr.f32.gmra.mrb[0].mxu0 %v1238
        %v1348 = vpop.f32.mrb[0].mxu0
        %v1349 = vadd.f32 %v485, %v1348
        %v1350 = vpop.f32.mrb[0].mxu0
        %1351 = vmatprep.mubr.f32.mxu0 0.0
        %1352 = vmatmul.mubr.f32.gmra.mrb[0].mxu0 %v1239
        %v1353 = vpop.f32.mrb[0].mxu0
        %v1354 = vadd.f32 %v485, %v1353
        %v1355 = vpop.f32.mrb[0].mxu0
        %1356 = vmatprep.mubr.f32.mxu0 0.0
        %1357 = vmatmul.mubr.f32.gmra.mrb[0].mxu0 %v1240
        %v1358 = vpop.f32.mrb[0].mxu0
        %v1359 = vadd.f32 %v485, %v1358
        %v1360 = vpop.f32.mrb[0].mxu0
        %1361 = vmatprep.mubr.f32.mxu0 0.0
        %1362 = vmatmul.mubr.f32.gmra.mrb[0].mxu0 %v1241
        %v1363 = vpop.f32.mrb[0].mxu0
        %v1364 = vadd.f32 %v485, %v1363
        %v1365 = vpop.f32.mrb[0].mxu0
        %1366 = vmatprep.mubr.f32.mxu0 0.0
        %1367 = vmatmul.mubr.f32.gmra.mrb[0].mxu0 %v1242
        %v1368 = vpop.f32.mrb[0].mxu0
        %v1369 = vadd.f32 %v485, %v1368
        %v1370 = vpop.f32.mrb[0].mxu0
        %1371 = vmatprep.mubr.f32.mxu0 0.0
        %1372 = vmatmul.mubr.f32.gmra.mrb[0].mxu0 %v1243
        %v1373 = vpop.f32.mrb[0].mxu0
        %v1374 = vadd.f32 %v485, %v1373
        %v1375 = vpop.f32.mrb[0].mxu0
        %1376 = vmatprep.mubr.f32.mxu0 0.0
        %1377 = vmatmul.mubr.f32.gmra.mrb[0].mxu0 %v1244
        %v1378 = vpop.f32.mrb[0].mxu0
        %v1379 = vadd.f32 %v485, %v1378
        %v1380 = vpop.f32.mrb[0].mxu0
        %1381 = vmatprep.mubr.f32.mxu0 0.0
        %1382 = vmatmul.mubr.f32.gmra.mrb[0].mxu0 %v1245
        %v1383 = vpop.f32.mrb[0].mxu0
        %v1384 = vadd.f32 %v485, %v1383
        %v1385 = vpop.f32.mrb[0].mxu0
        %1386 = vmatprep.mubr.f32.mxu0 0.0
        %1387 = vmatmul.mubr.f32.gmra.mrb[0].mxu0 %v1246
        %v1388 = vpop.f32.mrb[0].mxu0
        %v1389 = vadd.f32 %v485, %v1388
        %v1390 = vpop.f32.mrb[0].mxu0
        %1391 = vdwg.mxu0
        %v1392 = vmax.f32 %v1314, 0.0
        %v1393 = vmax.f32 %v1319, 0.0
        %v1394 = vmax.f32 %v1324, 0.0
        %v1395 = vmax.f32 %v1329, 0.0
        %v1396 = vmax.f32 %v1334, 0.0
        %v1397 = vmax.f32 %v1339, 0.0
        %v1398 = vmax.f32 %v1344, 0.0
        %v1399 = vmax.f32 %v1349, 0.0
        %v1400 = vmax.f32 %v1354, 0.0
        %v1401 = vmax.f32 %v1359, 0.0
        %v1402 = vmax.f32 %v1364, 0.0
        %v1403 = vmax.f32 %v1369, 0.0
        %v1404 = vmax.f32 %v1374, 0.0
        %v1405 = vmax.f32 %v1379, 0.0
        %v1406 = vmax.f32 %v1384, 0.0
        %v1407 = vmax.f32 %v1389, 0.0
        %v1408 = vmax.f32 %v1214, %v1392
        %v1409 = vmax.f32 %v1215, %v1393
        %v1410 = vmax.f32 %v1216, %v1394
        %v1411 = vmax.f32 %v1217, %v1395
        %v1412 = vmax.f32 %v1218, %v1396
        %v1413 = vmax.f32 %v1219, %v1397
        %v1414 = vmax.f32 %v1220, %v1398
        %v1415 = vmax.f32 %v1221, %v1399
        %v1416 = vmax.f32 %v1222, %v1400
        %v1417 = vmax.f32 %v1223, %v1401
        %v1418 = vmax.f32 %v1224, %v1402
        %v1419 = vmax.f32 %v1225, %v1403
        %v1420 = vmax.f32 %v1226, %v1404
        %v1421 = vmax.f32 %v1227, %v1405
        %v1422 = vmax.f32 %v1228, %v1406
        %v1423 = vmax.f32 %v1229, %v1407
        %s1424 = scalar_lea.vmem %s447, 640
        %v1425 = vld [vmem:[%s1424] sm:$0xff]
        %v1426 = vld [vmem:[%s1424 + $0x8] sm:$0xff]
        %v1427 = vld [vmem:[%s1424 + $0x10] sm:$0xff]
        %v1428 = vld [vmem:[%s1424 + $0x18] sm:$0xff]
        %v1429 = vld [vmem:[%s1424 + $0x20] sm:$0xff]
        %v1430 = vld [vmem:[%s1424 + $0x28] sm:$0xff]
        %v1431 = vld [vmem:[%s1424 + $0x30] sm:$0xff]
        %v1432 = vld [vmem:[%s1424 + $0x38] sm:$0xff]
        %v1433 = vld [vmem:[%s1424 + $0x40] sm:$0xff]
        %v1434 = vld [vmem:[%s1424 + $0x48] sm:$0xff]
        %v1435 = vld [vmem:[%s1424 + $0x50] sm:$0xff]
        %v1436 = vld [vmem:[%s1424 + $0x58] sm:$0xff]
        %v1437 = vld [vmem:[%s1424 + $0x60] sm:$0xff]
        %v1438 = vld [vmem:[%s1424 + $0x68] sm:$0xff]
        %v1439 = vld [vmem:[%s1424 + $0x70] sm:$0xff]
        %v1440 = vld [vmem:[%s1424 + $0x78] sm:$0xff]
        %1441 = vmatprep.subr.mxu0 0.0
        %1442 = vmatpush1.msra.mxu0 %v448
        %1443 = vmatprep.subr.mxu0 0.0
        %1444 = vmatpush1.msra.mxu0 %v449
        %1445 = vmatprep.subr.mxu0 0.0
        %1446 = vmatpush1.msra.mxu0 %v450
        %1447 = vmatprep.subr.mxu0 0.0
        %1448 = vmatpush1.msra.mxu0 %v451
        %1449 = vmatprep.subr.mxu0 0.0
        %1450 = vmatpush1.msra.mxu0 %v452
        %1451 = vmatprep.subr.mxu0 0.0
        %1452 = vmatpush1.msra.mxu0 %v453
        %1453 = vmatprep.subr.mxu0 0.0
        %1454 = vmatpush1.msra.mxu0 %v454
        %1455 = vmatprep.subr.mxu0 0.0
        %1456 = vmatpush1.msra.mxu0 %v455
        %1457 = vmatprep.subr.mxu0 0.0
        %1458 = vmatpush1.msra.mxu0 %v456
        %1459 = vmatprep.subr.mxu0 0.0
        %1460 = vmatpush1.msra.mxu0 %v457
        %1461 = vmatprep.subr.mxu0 0.0
        %1462 = vmatpush1.msra.mxu0 %v458
        %1463 = vmatprep.subr.mxu0 0.0
        %1464 = vmatpush1.msra.mxu0 %v459
        %1465 = vmatprep.subr.mxu0 0.0
        %1466 = vmatpush1.msra.mxu0 %v460
        %1467 = vmatprep.subr.mxu0 0.0
        %1468 = vmatpush1.msra.mxu0 %v461
        %1469 = vmatprep.subr.mxu0 0.0
        %1470 = vmatpush1.msra.mxu0 %v462
        %1471 = vmatprep.subr.mxu0 0.0
        %1472 = vmatpush1.msra.mxu0 %v463
        %1473 = vmatprep.subr.mxu0 0.0
        %1474 = vmatpush1.msra.mxu0 0.0
        %1475 = vmatprep.subr.mxu0 0.0
        %1476 = vmatpush1.msra.mxu0 0.0
        %1477 = vmatprep.subr.mxu0 0.0
        %1478 = vmatpush1.msra.mxu0 0.0
        %1479 = vmatprep.subr.mxu0 0.0
        %1480 = vmatpush1.msra.mxu0 0.0
        %1481 = vmatprep.subr.mxu0 0.0
        %1482 = vmatpush1.msra.mxu0 0.0
        %1483 = vmatprep.subr.mxu0 0.0
        %1484 = vmatpush1.msra.mxu0 0.0
        %1485 = vmatprep.subr.mxu0 0.0
        %1486 = vmatpush1.msra.mxu0 0.0
        %1487 = vmatprep.subr.mxu0 0.0
        %1488 = vmatpush1.msra.mxu0 0.0
        %1489 = vmatprep.subr.mxu0 0.0
        %1490 = vmatpush1.msra.mxu0 0.0
        %1491 = vmatprep.subr.mxu0 0.0
        %1492 = vmatpush1.msra.mxu0 0.0
        %1493 = vmatprep.subr.mxu0 0.0
        %1494 = vmatpush1.msra.mxu0 0.0
        %1495 = vmatprep.subr.mxu0 0.0
        %1496 = vmatpush1.msra.mxu0 0.0
        %1497 = vmatprep.subr.mxu0 0.0
        %1498 = vmatpush1.msra.mxu0 0.0
        %1499 = vmatprep.subr.mxu0 0.0
        %1500 = vmatpush1.msra.mxu0 0.0
        %1501 = vmatprep.subr.mxu0 0.0
        %1502 = vmatpush1.msra.mxu0 0.0
        %1503 = vmatprep.subr.mxu0 0.0
        %1504 = vmatpush1.msra.mxu0 0.0
        %1505 = vmatprep.mubr.f32.mxu0 0.0
        %1506 = vmatmul.mubr.f32.gmra.mrb[0].mxu0 %v1425
        %v1507 = vpop.f32.mrb[0].mxu0
        %v1508 = vadd.f32 %v485, %v1507
        %v1509 = vpop.f32.mrb[0].mxu0
        %1510 = vmatprep.mubr.f32.mxu0 0.0
        %1511 = vmatmul.mubr.f32.gmra.mrb[0].mxu0 %v1426
        %v1512 = vpop.f32.mrb[0].mxu0
        %v1513 = vadd.f32 %v485, %v1512
        %v1514 = vpop.f32.mrb[0].mxu0
        %1515 = vmatprep.mubr.f32.mxu0 0.0
        %1516 = vmatmul.mubr.f32.gmra.mrb[0].mxu0 %v1427
        %v1517 = vpop.f32.mrb[0].mxu0
        %v1518 = vadd.f32 %v485, %v1517
        %v1519 = vpop.f32.mrb[0].mxu0
        %1520 = vmatprep.mubr.f32.mxu0 0.0
        %1521 = vmatmul.mubr.f32.gmra.mrb[0].mxu0 %v1428
        %v1522 = vpop.f32.mrb[0].mxu0
        %v1523 = vadd.f32 %v485, %v1522
        %v1524 = vpop.f32.mrb[0].mxu0
        %1525 = vmatprep.mubr.f32.mxu0 0.0
        %1526 = vmatmul.mubr.f32.gmra.mrb[0].mxu0 %v1429
        %v1527 = vpop.f32.mrb[0].mxu0
        %v1528 = vadd.f32 %v485, %v1527
        %v1529 = vpop.f32.mrb[0].mxu0
        %1530 = vmatprep.mubr.f32.mxu0 0.0
        %1531 = vmatmul.mubr.f32.gmra.mrb[0].mxu0 %v1430
        %v1532 = vpop.f32.mrb[0].mxu0
        %v1533 = vadd.f32 %v485, %v1532
        %v1534 = vpop.f32.mrb[0].mxu0
        %1535 = vmatprep.mubr.f32.mxu0 0.0
        %1536 = vmatmul.mubr.f32.gmra.mrb[0].mxu0 %v1431
        %v1537 = vpop.f32.mrb[0].mxu0
        %v1538 = vadd.f32 %v485, %v1537
        %v1539 = vpop.f32.mrb[0].mxu0
        %1540 = vmatprep.mubr.f32.mxu0 0.0
        %1541 = vmatmul.mubr.f32.gmra.mrb[0].mxu0 %v1432
        %v1542 = vpop.f32.mrb[0].mxu0
        %v1543 = vadd.f32 %v485, %v1542
        %v1544 = vpop.f32.mrb[0].mxu0
        %1545 = vmatprep.mubr.f32.mxu0 0.0
        %1546 = vmatmul.mubr.f32.gmra.mrb[0].mxu0 %v1433
        %v1547 = vpop.f32.mrb[0].mxu0
        %v1548 = vadd.f32 %v485, %v1547
        %v1549 = vpop.f32.mrb[0].mxu0
        %1550 = vmatprep.mubr.f32.mxu0 0.0
        %1551 = vmatmul.mubr.f32.gmra.mrb[0].mxu0 %v1434
        %v1552 = vpop.f32.mrb[0].mxu0
        %v1553 = vadd.f32 %v485, %v1552
        %v1554 = vpop.f32.mrb[0].mxu0
        %1555 = vmatprep.mubr.f32.mxu0 0.0
        %1556 = vmatmul.mubr.f32.gmra.mrb[0].mxu0 %v1435
        %v1557 = vpop.f32.mrb[0].mxu0
        %v1558 = vadd.f32 %v485, %v1557
        %v1559 = vpop.f32.mrb[0].mxu0
        %1560 = vmatprep.mubr.f32.mxu0 0.0
        %1561 = vmatmul.mubr.f32.gmra.mrb[0].mxu0 %v1436
        %v1562 = vpop.f32.mrb[0].mxu0
        %v1563 = vadd.f32 %v485, %v1562
        %v1564 = vpop.f32.mrb[0].mxu0
        %1565 = vmatprep.mubr.f32.mxu0 0.0
        %1566 = vmatmul.mubr.f32.gmra.mrb[0].mxu0 %v1437
        %v1567 = vpop.f32.mrb[0].mxu0
        %v1568 = vadd.f32 %v485, %v1567
        %v1569 = vpop.f32.mrb[0].mxu0
        %1570 = vmatprep.mubr.f32.mxu0 0.0
        %1571 = vmatmul.mubr.f32.gmra.mrb[0].mxu0 %v1438
        %v1572 = vpop.f32.mrb[0].mxu0
        %v1573 = vadd.f32 %v485, %v1572
        %v1574 = vpop.f32.mrb[0].mxu0
        %1575 = vmatprep.mubr.f32.mxu0 0.0
        %1576 = vmatmul.mubr.f32.gmra.mrb[0].mxu0 %v1439
        %v1577 = vpop.f32.mrb[0].mxu0
        %v1578 = vadd.f32 %v485, %v1577
        %v1579 = vpop.f32.mrb[0].mxu0
        %1580 = vmatprep.mubr.f32.mxu0 0.0
        %1581 = vmatmul.mubr.f32.gmra.mrb[0].mxu0 %v1440
        %v1582 = vpop.f32.mrb[0].mxu0
        %v1583 = vadd.f32 %v485, %v1582
        %v1584 = vpop.f32.mrb[0].mxu0
        %1585 = vdwg.mxu0
        %v1586 = vmax.f32 %v1508, 0.0
        %v1587 = vmax.f32 %v1513, 0.0
        %v1588 = vmax.f32 %v1518, 0.0
        %v1589 = vmax.f32 %v1523, 0.0
        %v1590 = vmax.f32 %v1528, 0.0
        %v1591 = vmax.f32 %v1533, 0.0
        %v1592 = vmax.f32 %v1538, 0.0
        %v1593 = vmax.f32 %v1543, 0.0
        %v1594 = vmax.f32 %v1548, 0.0
        %v1595 = vmax.f32 %v1553, 0.0
        %v1596 = vmax.f32 %v1558, 0.0
        %v1597 = vmax.f32 %v1563, 0.0
        %v1598 = vmax.f32 %v1568, 0.0
        %v1599 = vmax.f32 %v1573, 0.0
        %v1600 = vmax.f32 %v1578, 0.0
        %v1601 = vmax.f32 %v1583, 0.0
        %v1602 = vmax.f32 %v1408, %v1586
        %v1603 = vmax.f32 %v1409, %v1587
        %v1604 = vmax.f32 %v1410, %v1588
        %v1605 = vmax.f32 %v1411, %v1589
        %v1606 = vmax.f32 %v1412, %v1590
        %v1607 = vmax.f32 %v1413, %v1591
        %v1608 = vmax.f32 %v1414, %v1592
        %v1609 = vmax.f32 %v1415, %v1593
        %v1610 = vmax.f32 %v1416, %v1594
        %v1611 = vmax.f32 %v1417, %v1595
        %v1612 = vmax.f32 %v1418, %v1596
        %v1613 = vmax.f32 %v1419, %v1597
        %v1614 = vmax.f32 %v1420, %v1598
        %v1615 = vmax.f32 %v1421, %v1599
        %v1616 = vmax.f32 %v1422, %v1600
        %v1617 = vmax.f32 %v1423, %v1601
        %s1618 = scalar_lea.vmem %s447, 768
        %v1619 = vld [vmem:[%s1618] sm:$0xff]
        %v1620 = vld [vmem:[%s1618 + $0x8] sm:$0xff]
        %v1621 = vld [vmem:[%s1618 + $0x10] sm:$0xff]
        %v1622 = vld [vmem:[%s1618 + $0x18] sm:$0xff]
        %v1623 = vld [vmem:[%s1618 + $0x20] sm:$0xff]
        %v1624 = vld [vmem:[%s1618 + $0x28] sm:$0xff]
        %v1625 = vld [vmem:[%s1618 + $0x30] sm:$0xff]
        %v1626 = vld [vmem:[%s1618 + $0x38] sm:$0xff]
        %v1627 = vld [vmem:[%s1618 + $0x40] sm:$0xff]
        %v1628 = vld [vmem:[%s1618 + $0x48] sm:$0xff]
        %v1629 = vld [vmem:[%s1618 + $0x50] sm:$0xff]
        %v1630 = vld [vmem:[%s1618 + $0x58] sm:$0xff]
        %v1631 = vld [vmem:[%s1618 + $0x60] sm:$0xff]
        %v1632 = vld [vmem:[%s1618 + $0x68] sm:$0xff]
        %v1633 = vld [vmem:[%s1618 + $0x70] sm:$0xff]
        %v1634 = vld [vmem:[%s1618 + $0x78] sm:$0xff]
        %1635 = vmatprep.subr.mxu0 0.0
        %1636 = vmatpush1.msra.mxu0 %v448
        %1637 = vmatprep.subr.mxu0 0.0
        %1638 = vmatpush1.msra.mxu0 %v449
        %1639 = vmatprep.subr.mxu0 0.0
        %1640 = vmatpush1.msra.mxu0 %v450
        %1641 = vmatprep.subr.mxu0 0.0
        %1642 = vmatpush1.msra.mxu0 %v451
        %1643 = vmatprep.subr.mxu0 0.0
        %1644 = vmatpush1.msra.mxu0 %v452
        %1645 = vmatprep.subr.mxu0 0.0
        %1646 = vmatpush1.msra.mxu0 %v453
        %1647 = vmatprep.subr.mxu0 0.0
        %1648 = vmatpush1.msra.mxu0 %v454
        %1649 = vmatprep.subr.mxu0 0.0
        %1650 = vmatpush1.msra.mxu0 %v455
        %1651 = vmatprep.subr.mxu0 0.0
        %1652 = vmatpush1.msra.mxu0 %v456
        %1653 = vmatprep.subr.mxu0 0.0
        %1654 = vmatpush1.msra.mxu0 %v457
        %1655 = vmatprep.subr.mxu0 0.0
        %1656 = vmatpush1.msra.mxu0 %v458
        %1657 = vmatprep.subr.mxu0 0.0
        %1658 = vmatpush1.msra.mxu0 %v459
        %1659 = vmatprep.subr.mxu0 0.0
        %1660 = vmatpush1.msra.mxu0 %v460
        %1661 = vmatprep.subr.mxu0 0.0
        %1662 = vmatpush1.msra.mxu0 %v461
        %1663 = vmatprep.subr.mxu0 0.0
        %1664 = vmatpush1.msra.mxu0 %v462
        %1665 = vmatprep.subr.mxu0 0.0
        %1666 = vmatpush1.msra.mxu0 %v463
        %1667 = vmatprep.subr.mxu0 0.0
        %1668 = vmatpush1.msra.mxu0 0.0
        %1669 = vmatprep.subr.mxu0 0.0
        %1670 = vmatpush1.msra.mxu0 0.0
        %1671 = vmatprep.subr.mxu0 0.0
        %1672 = vmatpush1.msra.mxu0 0.0
        %1673 = vmatprep.subr.mxu0 0.0
        %1674 = vmatpush1.msra.mxu0 0.0
        %1675 = vmatprep.subr.mxu0 0.0
        %1676 = vmatpush1.msra.mxu0 0.0
        %1677 = vmatprep.subr.mxu0 0.0
        %1678 = vmatpush1.msra.mxu0 0.0
        %1679 = vmatprep.subr.mxu0 0.0
        %1680 = vmatpush1.msra.mxu0 0.0
        %1681 = vmatprep.subr.mxu0 0.0
        %1682 = vmatpush1.msra.mxu0 0.0
        %1683 = vmatprep.subr.mxu0 0.0
        %1684 = vmatpush1.msra.mxu0 0.0
        %1685 = vmatprep.subr.mxu0 0.0
        %1686 = vmatpush1.msra.mxu0 0.0
        %1687 = vmatprep.subr.mxu0 0.0
        %1688 = vmatpush1.msra.mxu0 0.0
        %1689 = vmatprep.subr.mxu0 0.0
        %1690 = vmatpush1.msra.mxu0 0.0
        %1691 = vmatprep.subr.mxu0 0.0
        %1692 = vmatpush1.msra.mxu0 0.0
        %1693 = vmatprep.subr.mxu0 0.0
        %1694 = vmatpush1.msra.mxu0 0.0
        %1695 = vmatprep.subr.mxu0 0.0
        %1696 = vmatpush1.msra.mxu0 0.0
        %1697 = vmatprep.subr.mxu0 0.0
        %1698 = vmatpush1.msra.mxu0 0.0
        %1699 = vmatprep.mubr.f32.mxu0 0.0
        %1700 = vmatmul.mubr.f32.gmra.mrb[0].mxu0 %v1619
        %v1701 = vpop.f32.mrb[0].mxu0
        %v1702 = vadd.f32 %v485, %v1701
        %v1703 = vpop.f32.mrb[0].mxu0
        %1704 = vmatprep.mubr.f32.mxu0 0.0
        %1705 = vmatmul.mubr.f32.gmra.mrb[0].mxu0 %v1620
        %v1706 = vpop.f32.mrb[0].mxu0
        %v1707 = vadd.f32 %v485, %v1706
        %v1708 = vpop.f32.mrb[0].mxu0
        %1709 = vmatprep.mubr.f32.mxu0 0.0
        %1710 = vmatmul.mubr.f32.gmra.mrb[0].mxu0 %v1621
        %v1711 = vpop.f32.mrb[0].mxu0
        %v1712 = vadd.f32 %v485, %v1711
        %v1713 = vpop.f32.mrb[0].mxu0
        %1714 = vmatprep.mubr.f32.mxu0 0.0
        %1715 = vmatmul.mubr.f32.gmra.mrb[0].mxu0 %v1622
        %v1716 = vpop.f32.mrb[0].mxu0
        %v1717 = vadd.f32 %v485, %v1716
        %v1718 = vpop.f32.mrb[0].mxu0
        %1719 = vmatprep.mubr.f32.mxu0 0.0
        %1720 = vmatmul.mubr.f32.gmra.mrb[0].mxu0 %v1623
        %v1721 = vpop.f32.mrb[0].mxu0
        %v1722 = vadd.f32 %v485, %v1721
        %v1723 = vpop.f32.mrb[0].mxu0
        %1724 = vmatprep.mubr.f32.mxu0 0.0
        %1725 = vmatmul.mubr.f32.gmra.mrb[0].mxu0 %v1624
        %v1726 = vpop.f32.mrb[0].mxu0
        %v1727 = vadd.f32 %v485, %v1726
        %v1728 = vpop.f32.mrb[0].mxu0
        %1729 = vmatprep.mubr.f32.mxu0 0.0
        %1730 = vmatmul.mubr.f32.gmra.mrb[0].mxu0 %v1625
        %v1731 = vpop.f32.mrb[0].mxu0
        %v1732 = vadd.f32 %v485, %v1731
        %v1733 = vpop.f32.mrb[0].mxu0
        %1734 = vmatprep.mubr.f32.mxu0 0.0
        %1735 = vmatmul.mubr.f32.gmra.mrb[0].mxu0 %v1626
        %v1736 = vpop.f32.mrb[0].mxu0
        %v1737 = vadd.f32 %v485, %v1736
        %v1738 = vpop.f32.mrb[0].mxu0
        %1739 = vmatprep.mubr.f32.mxu0 0.0
        %1740 = vmatmul.mubr.f32.gmra.mrb[0].mxu0 %v1627
        %v1741 = vpop.f32.mrb[0].mxu0
        %v1742 = vadd.f32 %v485, %v1741
        %v1743 = vpop.f32.mrb[0].mxu0
        %1744 = vmatprep.mubr.f32.mxu0 0.0
        %1745 = vmatmul.mubr.f32.gmra.mrb[0].mxu0 %v1628
        %v1746 = vpop.f32.mrb[0].mxu0
        %v1747 = vadd.f32 %v485, %v1746
        %v1748 = vpop.f32.mrb[0].mxu0
        %1749 = vmatprep.mubr.f32.mxu0 0.0
        %1750 = vmatmul.mubr.f32.gmra.mrb[0].mxu0 %v1629
        %v1751 = vpop.f32.mrb[0].mxu0
        %v1752 = vadd.f32 %v485, %v1751
        %v1753 = vpop.f32.mrb[0].mxu0
        %1754 = vmatprep.mubr.f32.mxu0 0.0
        %1755 = vmatmul.mubr.f32.gmra.mrb[0].mxu0 %v1630
        %v1756 = vpop.f32.mrb[0].mxu0
        %v1757 = vadd.f32 %v485, %v1756
        %v1758 = vpop.f32.mrb[0].mxu0
        %1759 = vmatprep.mubr.f32.mxu0 0.0
        %1760 = vmatmul.mubr.f32.gmra.mrb[0].mxu0 %v1631
        %v1761 = vpop.f32.mrb[0].mxu0
        %v1762 = vadd.f32 %v485, %v1761
        %v1763 = vpop.f32.mrb[0].mxu0
        %1764 = vmatprep.mubr.f32.mxu0 0.0
        %1765 = vmatmul.mubr.f32.gmra.mrb[0].mxu0 %v1632
        %v1766 = vpop.f32.mrb[0].mxu0
        %v1767 = vadd.f32 %v485, %v1766
        %v1768 = vpop.f32.mrb[0].mxu0
        %1769 = vmatprep.mubr.f32.mxu0 0.0
        %1770 = vmatmul.mubr.f32.gmra.mrb[0].mxu0 %v1633
        %v1771 = vpop.f32.mrb[0].mxu0
        %v1772 = vadd.f32 %v485, %v1771
        %v1773 = vpop.f32.mrb[0].mxu0
        %1774 = vmatprep.mubr.f32.mxu0 0.0
        %1775 = vmatmul.mubr.f32.gmra.mrb[0].mxu0 %v1634
        %v1776 = vpop.f32.mrb[0].mxu0
        %v1777 = vadd.f32 %v485, %v1776
        %v1778 = vpop.f32.mrb[0].mxu0
        %1779 = vdwg.mxu0
        %v1780 = vmax.f32 %v1702, 0.0
        %v1781 = vmax.f32 %v1707, 0.0
        %v1782 = vmax.f32 %v1712, 0.0
        %v1783 = vmax.f32 %v1717, 0.0
        %v1784 = vmax.f32 %v1722, 0.0
        %v1785 = vmax.f32 %v1727, 0.0
        %v1786 = vmax.f32 %v1732, 0.0
        %v1787 = vmax.f32 %v1737, 0.0
        %v1788 = vmax.f32 %v1742, 0.0
        %v1789 = vmax.f32 %v1747, 0.0
        %v1790 = vmax.f32 %v1752, 0.0
        %v1791 = vmax.f32 %v1757, 0.0
        %v1792 = vmax.f32 %v1762, 0.0
        %v1793 = vmax.f32 %v1767, 0.0
        %v1794 = vmax.f32 %v1772, 0.0
        %v1795 = vmax.f32 %v1777, 0.0
        %v1796 = vmax.f32 %v1602, %v1780
        %v1797 = vmax.f32 %v1603, %v1781
        %v1798 = vmax.f32 %v1604, %v1782
        %v1799 = vmax.f32 %v1605, %v1783
        %v1800 = vmax.f32 %v1606, %v1784
        %v1801 = vmax.f32 %v1607, %v1785
        %v1802 = vmax.f32 %v1608, %v1786
        %v1803 = vmax.f32 %v1609, %v1787
        %v1804 = vmax.f32 %v1610, %v1788
        %v1805 = vmax.f32 %v1611, %v1789
        %v1806 = vmax.f32 %v1612, %v1790
        %v1807 = vmax.f32 %v1613, %v1791
        %v1808 = vmax.f32 %v1614, %v1792
        %v1809 = vmax.f32 %v1615, %v1793
        %v1810 = vmax.f32 %v1616, %v1794
        %v1811 = vmax.f32 %v1617, %v1795
        %s1812 = scalar_lea.vmem %s447, 896
        %v1813 = vld [vmem:[%s1812] sm:$0xff]
        %v1814 = vld [vmem:[%s1812 + $0x8] sm:$0xff]
        %v1815 = vld [vmem:[%s1812 + $0x10] sm:$0xff]
        %v1816 = vld [vmem:[%s1812 + $0x18] sm:$0xff]
        %v1817 = vld [vmem:[%s1812 + $0x20] sm:$0xff]
        %v1818 = vld [vmem:[%s1812 + $0x28] sm:$0xff]
        %v1819 = vld [vmem:[%s1812 + $0x30] sm:$0xff]
        %v1820 = vld [vmem:[%s1812 + $0x38] sm:$0xff]
        %v1821 = vld [vmem:[%s1812 + $0x40] sm:$0xff]
        %v1822 = vld [vmem:[%s1812 + $0x48] sm:$0xff]
        %v1823 = vld [vmem:[%s1812 + $0x50] sm:$0xff]
        %v1824 = vld [vmem:[%s1812 + $0x58] sm:$0xff]
        %v1825 = vld [vmem:[%s1812 + $0x60] sm:$0xff]
        %v1826 = vld [vmem:[%s1812 + $0x68] sm:$0xff]
        %v1827 = vld [vmem:[%s1812 + $0x70] sm:$0xff]
        %v1828 = vld [vmem:[%s1812 + $0x78] sm:$0xff]
        %1829 = vmatprep.subr.mxu0 0.0
        %1830 = vmatpush1.msra.mxu0 %v448
        %1831 = vmatprep.subr.mxu0 0.0
        %1832 = vmatpush1.msra.mxu0 %v449
        %1833 = vmatprep.subr.mxu0 0.0
        %1834 = vmatpush1.msra.mxu0 %v450
        %1835 = vmatprep.subr.mxu0 0.0
        %1836 = vmatpush1.msra.mxu0 %v451
        %1837 = vmatprep.subr.mxu0 0.0
        %1838 = vmatpush1.msra.mxu0 %v452
        %1839 = vmatprep.subr.mxu0 0.0
        %1840 = vmatpush1.msra.mxu0 %v453
        %1841 = vmatprep.subr.mxu0 0.0
        %1842 = vmatpush1.msra.mxu0 %v454
        %1843 = vmatprep.subr.mxu0 0.0
        %1844 = vmatpush1.msra.mxu0 %v455
        %1845 = vmatprep.subr.mxu0 0.0
        %1846 = vmatpush1.msra.mxu0 %v456
        %1847 = vmatprep.subr.mxu0 0.0
        %1848 = vmatpush1.msra.mxu0 %v457
        %1849 = vmatprep.subr.mxu0 0.0
        %1850 = vmatpush1.msra.mxu0 %v458
        %1851 = vmatprep.subr.mxu0 0.0
        %1852 = vmatpush1.msra.mxu0 %v459
        %1853 = vmatprep.subr.mxu0 0.0
        %1854 = vmatpush1.msra.mxu0 %v460
        %1855 = vmatprep.subr.mxu0 0.0
        %1856 = vmatpush1.msra.mxu0 %v461
        %1857 = vmatprep.subr.mxu0 0.0
        %1858 = vmatpush1.msra.mxu0 %v462
        %1859 = vmatprep.subr.mxu0 0.0
        %1860 = vmatpush1.msra.mxu0 %v463
        %1861 = vmatprep.subr.mxu0 0.0
        %1862 = vmatpush1.msra.mxu0 0.0
        %1863 = vmatprep.subr.mxu0 0.0
        %1864 = vmatpush1.msra.mxu0 0.0
        %1865 = vmatprep.subr.mxu0 0.0
        %1866 = vmatpush1.msra.mxu0 0.0
        %1867 = vmatprep.subr.mxu0 0.0
        %1868 = vmatpush1.msra.mxu0 0.0
        %1869 = vmatprep.subr.mxu0 0.0
        %1870 = vmatpush1.msra.mxu0 0.0
        %1871 = vmatprep.subr.mxu0 0.0
        %1872 = vmatpush1.msra.mxu0 0.0
        %1873 = vmatprep.subr.mxu0 0.0
        %1874 = vmatpush1.msra.mxu0 0.0
        %1875 = vmatprep.subr.mxu0 0.0
        %1876 = vmatpush1.msra.mxu0 0.0
        %1877 = vmatprep.subr.mxu0 0.0
        %1878 = vmatpush1.msra.mxu0 0.0
        %1879 = vmatprep.subr.mxu0 0.0
        %1880 = vmatpush1.msra.mxu0 0.0
        %1881 = vmatprep.subr.mxu0 0.0
        %1882 = vmatpush1.msra.mxu0 0.0
        %1883 = vmatprep.subr.mxu0 0.0
        %1884 = vmatpush1.msra.mxu0 0.0
        %1885 = vmatprep.subr.mxu0 0.0
        %1886 = vmatpush1.msra.mxu0 0.0
        %1887 = vmatprep.subr.mxu0 0.0
        %1888 = vmatpush1.msra.mxu0 0.0
        %1889 = vmatprep.subr.mxu0 0.0
        %1890 = vmatpush1.msra.mxu0 0.0
        %1891 = vmatprep.subr.mxu0 0.0
        %1892 = vmatpush1.msra.mxu0 0.0
        %1893 = vmatprep.mubr.f32.mxu0 0.0
        %1894 = vmatmul.mubr.f32.gmra.mrb[0].mxu0 %v1813
        %v1895 = vpop.f32.mrb[0].mxu0
        %v1896 = vadd.f32 %v485, %v1895
        %v1897 = vpop.f32.mrb[0].mxu0
        %1898 = vmatprep.mubr.f32.mxu0 0.0
        %1899 = vmatmul.mubr.f32.gmra.mrb[0].mxu0 %v1814
        %v1900 = vpop.f32.mrb[0].mxu0
        %v1901 = vadd.f32 %v485, %v1900
        %v1902 = vpop.f32.mrb[0].mxu0
        %1903 = vmatprep.mubr.f32.mxu0 0.0
        %1904 = vmatmul.mubr.f32.gmra.mrb[0].mxu0 %v1815
        %v1905 = vpop.f32.mrb[0].mxu0
        %v1906 = vadd.f32 %v485, %v1905
        %v1907 = vpop.f32.mrb[0].mxu0
        %1908 = vmatprep.mubr.f32.mxu0 0.0
        %1909 = vmatmul.mubr.f32.gmra.mrb[0].mxu0 %v1816
        %v1910 = vpop.f32.mrb[0].mxu0
        %v1911 = vadd.f32 %v485, %v1910
        %v1912 = vpop.f32.mrb[0].mxu0
        %1913 = vmatprep.mubr.f32.mxu0 0.0
        %1914 = vmatmul.mubr.f32.gmra.mrb[0].mxu0 %v1817
        %v1915 = vpop.f32.mrb[0].mxu0
        %v1916 = vadd.f32 %v485, %v1915
        %v1917 = vpop.f32.mrb[0].mxu0
        %1918 = vmatprep.mubr.f32.mxu0 0.0
        %1919 = vmatmul.mubr.f32.gmra.mrb[0].mxu0 %v1818
        %v1920 = vpop.f32.mrb[0].mxu0
        %v1921 = vadd.f32 %v485, %v1920
        %v1922 = vpop.f32.mrb[0].mxu0
        %1923 = vmatprep.mubr.f32.mxu0 0.0
        %1924 = vmatmul.mubr.f32.gmra.mrb[0].mxu0 %v1819
        %v1925 = vpop.f32.mrb[0].mxu0
        %v1926 = vadd.f32 %v485, %v1925
        %v1927 = vpop.f32.mrb[0].mxu0
        %1928 = vmatprep.mubr.f32.mxu0 0.0
        %1929 = vmatmul.mubr.f32.gmra.mrb[0].mxu0 %v1820
        %v1930 = vpop.f32.mrb[0].mxu0
        %v1931 = vadd.f32 %v485, %v1930
        %v1932 = vpop.f32.mrb[0].mxu0
        %1933 = vmatprep.mubr.f32.mxu0 0.0
        %1934 = vmatmul.mubr.f32.gmra.mrb[0].mxu0 %v1821
        %v1935 = vpop.f32.mrb[0].mxu0
        %v1936 = vadd.f32 %v485, %v1935
        %v1937 = vpop.f32.mrb[0].mxu0
        %1938 = vmatprep.mubr.f32.mxu0 0.0
        %1939 = vmatmul.mubr.f32.gmra.mrb[0].mxu0 %v1822
        %v1940 = vpop.f32.mrb[0].mxu0
        %v1941 = vadd.f32 %v485, %v1940
        %v1942 = vpop.f32.mrb[0].mxu0
        %1943 = vmatprep.mubr.f32.mxu0 0.0
        %1944 = vmatmul.mubr.f32.gmra.mrb[0].mxu0 %v1823
        %v1945 = vpop.f32.mrb[0].mxu0
        %v1946 = vadd.f32 %v485, %v1945
        %v1947 = vpop.f32.mrb[0].mxu0
        %1948 = vmatprep.mubr.f32.mxu0 0.0
        %1949 = vmatmul.mubr.f32.gmra.mrb[0].mxu0 %v1824
        %v1950 = vpop.f32.mrb[0].mxu0
        %v1951 = vadd.f32 %v485, %v1950
        %v1952 = vpop.f32.mrb[0].mxu0
        %1953 = vmatprep.mubr.f32.mxu0 0.0
        %1954 = vmatmul.mubr.f32.gmra.mrb[0].mxu0 %v1825
        %v1955 = vpop.f32.mrb[0].mxu0
        %v1956 = vadd.f32 %v485, %v1955
        %v1957 = vpop.f32.mrb[0].mxu0
        %1958 = vmatprep.mubr.f32.mxu0 0.0
        %1959 = vmatmul.mubr.f32.gmra.mrb[0].mxu0 %v1826
        %v1960 = vpop.f32.mrb[0].mxu0
        %v1961 = vadd.f32 %v485, %v1960
        %v1962 = vpop.f32.mrb[0].mxu0
        %1963 = vmatprep.mubr.f32.mxu0 0.0
        %1964 = vmatmul.mubr.f32.gmra.mrb[0].mxu0 %v1827
        %v1965 = vpop.f32.mrb[0].mxu0
        %v1966 = vadd.f32 %v485, %v1965
        %v1967 = vpop.f32.mrb[0].mxu0
        %1968 = vmatprep.mubr.f32.mxu0 0.0
        %1969 = vmatmul.mubr.f32.gmra.mrb[0].mxu0 %v1828
        %v1970 = vpop.f32.mrb[0].mxu0
        %v1971 = vadd.f32 %v485, %v1970
        %v1972 = vpop.f32.mrb[0].mxu0
        %1973 = vdwg.mxu0
        %v1974 = vmax.f32 %v1896, 0.0
        %v1975 = vmax.f32 %v1901, 0.0
        %v1976 = vmax.f32 %v1906, 0.0
        %v1977 = vmax.f32 %v1911, 0.0
        %v1978 = vmax.f32 %v1916, 0.0
        %v1979 = vmax.f32 %v1921, 0.0
        %v1980 = vmax.f32 %v1926, 0.0
        %v1981 = vmax.f32 %v1931, 0.0
        %v1982 = vmax.f32 %v1936, 0.0
        %v1983 = vmax.f32 %v1941, 0.0
        %v1984 = vmax.f32 %v1946, 0.0
        %v1985 = vmax.f32 %v1951, 0.0
        %v1986 = vmax.f32 %v1956, 0.0
        %v1987 = vmax.f32 %v1961, 0.0
        %v1988 = vmax.f32 %v1966, 0.0
        %v1989 = vmax.f32 %v1971, 0.0
        %v1990 = vmax.f32 %v1796, %v1974
        %v1991 = vmax.f32 %v1797, %v1975
        %v1992 = vmax.f32 %v1798, %v1976
        %v1993 = vmax.f32 %v1799, %v1977
        %v1994 = vmax.f32 %v1800, %v1978
        %v1995 = vmax.f32 %v1801, %v1979
        %v1996 = vmax.f32 %v1802, %v1980
        %v1997 = vmax.f32 %v1803, %v1981
        %v1998 = vmax.f32 %v1804, %v1982
        %v1999 = vmax.f32 %v1805, %v1983
        %v2000 = vmax.f32 %v1806, %v1984
        %v2001 = vmax.f32 %v1807, %v1985
        %v2002 = vmax.f32 %v1808, %v1986
        %v2003 = vmax.f32 %v1809, %v1987
        %v2004 = vmax.f32 %v1810, %v1988
        %v2005 = vmax.f32 %v1811, %v1989
        %s2006 = scalar_lea.vmem %s447, 1024
        %v2007 = vld [vmem:[%s2006] sm:$0xff]
        %v2008 = vld [vmem:[%s2006 + $0x8] sm:$0xff]
        %v2009 = vld [vmem:[%s2006 + $0x10] sm:$0xff]
        %v2010 = vld [vmem:[%s2006 + $0x18] sm:$0xff]
        %v2011 = vld [vmem:[%s2006 + $0x20] sm:$0xff]
        %v2012 = vld [vmem:[%s2006 + $0x28] sm:$0xff]
        %v2013 = vld [vmem:[%s2006 + $0x30] sm:$0xff]
        %v2014 = vld [vmem:[%s2006 + $0x38] sm:$0xff]
        %v2015 = vld [vmem:[%s2006 + $0x40] sm:$0xff]
        %v2016 = vld [vmem:[%s2006 + $0x48] sm:$0xff]
        %v2017 = vld [vmem:[%s2006 + $0x50] sm:$0xff]
        %v2018 = vld [vmem:[%s2006 + $0x58] sm:$0xff]
        %v2019 = vld [vmem:[%s2006 + $0x60] sm:$0xff]
        %v2020 = vld [vmem:[%s2006 + $0x68] sm:$0xff]
        %v2021 = vld [vmem:[%s2006 + $0x70] sm:$0xff]
        %v2022 = vld [vmem:[%s2006 + $0x78] sm:$0xff]
        %2023 = vmatprep.subr.mxu0 0.0
        %2024 = vmatpush1.msra.mxu0 %v448
        %2025 = vmatprep.subr.mxu0 0.0
        %2026 = vmatpush1.msra.mxu0 %v449
        %2027 = vmatprep.subr.mxu0 0.0
        %2028 = vmatpush1.msra.mxu0 %v450
        %2029 = vmatprep.subr.mxu0 0.0
        %2030 = vmatpush1.msra.mxu0 %v451
        %2031 = vmatprep.subr.mxu0 0.0
        %2032 = vmatpush1.msra.mxu0 %v452
        %2033 = vmatprep.subr.mxu0 0.0
        %2034 = vmatpush1.msra.mxu0 %v453
        %2035 = vmatprep.subr.mxu0 0.0
        %2036 = vmatpush1.msra.mxu0 %v454
        %2037 = vmatprep.subr.mxu0 0.0
        %2038 = vmatpush1.msra.mxu0 %v455
        %2039 = vmatprep.subr.mxu0 0.0
        %2040 = vmatpush1.msra.mxu0 %v456
        %2041 = vmatprep.subr.mxu0 0.0
        %2042 = vmatpush1.msra.mxu0 %v457
        %2043 = vmatprep.subr.mxu0 0.0
        %2044 = vmatpush1.msra.mxu0 %v458
        %2045 = vmatprep.subr.mxu0 0.0
        %2046 = vmatpush1.msra.mxu0 %v459
        %2047 = vmatprep.subr.mxu0 0.0
        %2048 = vmatpush1.msra.mxu0 %v460
        %2049 = vmatprep.subr.mxu0 0.0
        %2050 = vmatpush1.msra.mxu0 %v461
        %2051 = vmatprep.subr.mxu0 0.0
        %2052 = vmatpush1.msra.mxu0 %v462
        %2053 = vmatprep.subr.mxu0 0.0
        %2054 = vmatpush1.msra.mxu0 %v463
        %2055 = vmatprep.subr.mxu0 0.0
        %2056 = vmatpush1.msra.mxu0 0.0
        %2057 = vmatprep.subr.mxu0 0.0
        %2058 = vmatpush1.msra.mxu0 0.0
        %2059 = vmatprep.subr.mxu0 0.0
        %2060 = vmatpush1.msra.mxu0 0.0
        %2061 = vmatprep.subr.mxu0 0.0
        %2062 = vmatpush1.msra.mxu0 0.0
        %2063 = vmatprep.subr.mxu0 0.0
        %2064 = vmatpush1.msra.mxu0 0.0
        %2065 = vmatprep.subr.mxu0 0.0
        %2066 = vmatpush1.msra.mxu0 0.0
        %2067 = vmatprep.subr.mxu0 0.0
        %2068 = vmatpush1.msra.mxu0 0.0
        %2069 = vmatprep.subr.mxu0 0.0
        %2070 = vmatpush1.msra.mxu0 0.0
        %2071 = vmatprep.subr.mxu0 0.0
        %2072 = vmatpush1.msra.mxu0 0.0
        %2073 = vmatprep.subr.mxu0 0.0
        %2074 = vmatpush1.msra.mxu0 0.0
        %2075 = vmatprep.subr.mxu0 0.0
        %2076 = vmatpush1.msra.mxu0 0.0
        %2077 = vmatprep.subr.mxu0 0.0
        %2078 = vmatpush1.msra.mxu0 0.0
        %2079 = vmatprep.subr.mxu0 0.0
        %2080 = vmatpush1.msra.mxu0 0.0
        %2081 = vmatprep.subr.mxu0 0.0
        %2082 = vmatpush1.msra.mxu0 0.0
        %2083 = vmatprep.subr.mxu0 0.0
        %2084 = vmatpush1.msra.mxu0 0.0
        %2085 = vmatprep.subr.mxu0 0.0
        %2086 = vmatpush1.msra.mxu0 0.0
        %2087 = vmatprep.mubr.f32.mxu0 0.0
        %2088 = vmatmul.mubr.f32.gmra.mrb[0].mxu0 %v2007
        %v2089 = vpop.f32.mrb[0].mxu0
        %v2090 = vadd.f32 %v485, %v2089
        %v2091 = vpop.f32.mrb[0].mxu0
        %2092 = vmatprep.mubr.f32.mxu0 0.0
        %2093 = vmatmul.mubr.f32.gmra.mrb[0].mxu0 %v2008
        %v2094 = vpop.f32.mrb[0].mxu0
        %v2095 = vadd.f32 %v485, %v2094
        %v2096 = vpop.f32.mrb[0].mxu0
        %2097 = vmatprep.mubr.f32.mxu0 0.0
        %2098 = vmatmul.mubr.f32.gmra.mrb[0].mxu0 %v2009
        %v2099 = vpop.f32.mrb[0].mxu0
        %v2100 = vadd.f32 %v485, %v2099
        %v2101 = vpop.f32.mrb[0].mxu0
        %2102 = vmatprep.mubr.f32.mxu0 0.0
        %2103 = vmatmul.mubr.f32.gmra.mrb[0].mxu0 %v2010
        %v2104 = vpop.f32.mrb[0].mxu0
        %v2105 = vadd.f32 %v485, %v2104
        %v2106 = vpop.f32.mrb[0].mxu0
        %2107 = vmatprep.mubr.f32.mxu0 0.0
        %2108 = vmatmul.mubr.f32.gmra.mrb[0].mxu0 %v2011
        %v2109 = vpop.f32.mrb[0].mxu0
        %v2110 = vadd.f32 %v485, %v2109
        %v2111 = vpop.f32.mrb[0].mxu0
        %2112 = vmatprep.mubr.f32.mxu0 0.0
        %2113 = vmatmul.mubr.f32.gmra.mrb[0].mxu0 %v2012
        %v2114 = vpop.f32.mrb[0].mxu0
        %v2115 = vadd.f32 %v485, %v2114
        %v2116 = vpop.f32.mrb[0].mxu0
        %2117 = vmatprep.mubr.f32.mxu0 0.0
        %2118 = vmatmul.mubr.f32.gmra.mrb[0].mxu0 %v2013
        %v2119 = vpop.f32.mrb[0].mxu0
        %v2120 = vadd.f32 %v485, %v2119
        %v2121 = vpop.f32.mrb[0].mxu0
        %2122 = vmatprep.mubr.f32.mxu0 0.0
        %2123 = vmatmul.mubr.f32.gmra.mrb[0].mxu0 %v2014
        %v2124 = vpop.f32.mrb[0].mxu0
        %v2125 = vadd.f32 %v485, %v2124
        %v2126 = vpop.f32.mrb[0].mxu0
        %2127 = vmatprep.mubr.f32.mxu0 0.0
        %2128 = vmatmul.mubr.f32.gmra.mrb[0].mxu0 %v2015
        %v2129 = vpop.f32.mrb[0].mxu0
        %v2130 = vadd.f32 %v485, %v2129
        %v2131 = vpop.f32.mrb[0].mxu0
        %2132 = vmatprep.mubr.f32.mxu0 0.0
        %2133 = vmatmul.mubr.f32.gmra.mrb[0].mxu0 %v2016
        %v2134 = vpop.f32.mrb[0].mxu0
        %v2135 = vadd.f32 %v485, %v2134
        %v2136 = vpop.f32.mrb[0].mxu0
        %2137 = vmatprep.mubr.f32.mxu0 0.0
        %2138 = vmatmul.mubr.f32.gmra.mrb[0].mxu0 %v2017
        %v2139 = vpop.f32.mrb[0].mxu0
        %v2140 = vadd.f32 %v485, %v2139
        %v2141 = vpop.f32.mrb[0].mxu0
        %2142 = vmatprep.mubr.f32.mxu0 0.0
        %2143 = vmatmul.mubr.f32.gmra.mrb[0].mxu0 %v2018
        %v2144 = vpop.f32.mrb[0].mxu0
        %v2145 = vadd.f32 %v485, %v2144
        %v2146 = vpop.f32.mrb[0].mxu0
        %2147 = vmatprep.mubr.f32.mxu0 0.0
        %2148 = vmatmul.mubr.f32.gmra.mrb[0].mxu0 %v2019
        %v2149 = vpop.f32.mrb[0].mxu0
        %v2150 = vadd.f32 %v485, %v2149
        %v2151 = vpop.f32.mrb[0].mxu0
        %2152 = vmatprep.mubr.f32.mxu0 0.0
        %2153 = vmatmul.mubr.f32.gmra.mrb[0].mxu0 %v2020
        %v2154 = vpop.f32.mrb[0].mxu0
        %v2155 = vadd.f32 %v485, %v2154
        %v2156 = vpop.f32.mrb[0].mxu0
        %2157 = vmatprep.mubr.f32.mxu0 0.0
        %2158 = vmatmul.mubr.f32.gmra.mrb[0].mxu0 %v2021
        %v2159 = vpop.f32.mrb[0].mxu0
        %v2160 = vadd.f32 %v485, %v2159
        %v2161 = vpop.f32.mrb[0].mxu0
        %2162 = vmatprep.mubr.f32.mxu0 0.0
        %2163 = vmatmul.mubr.f32.gmra.mrb[0].mxu0 %v2022
        %v2164 = vpop.f32.mrb[0].mxu0
        %v2165 = vadd.f32 %v485, %v2164
        %v2166 = vpop.f32.mrb[0].mxu0
        %2167 = vdwg.mxu0
        %v2168 = vmax.f32 %v2090, 0.0
        %v2169 = vmax.f32 %v2095, 0.0
        %v2170 = vmax.f32 %v2100, 0.0
        %v2171 = vmax.f32 %v2105, 0.0
        %v2172 = vmax.f32 %v2110, 0.0
        %v2173 = vmax.f32 %v2115, 0.0
        %v2174 = vmax.f32 %v2120, 0.0
        %v2175 = vmax.f32 %v2125, 0.0
        %v2176 = vmax.f32 %v2130, 0.0
        %v2177 = vmax.f32 %v2135, 0.0
        %v2178 = vmax.f32 %v2140, 0.0
        %v2179 = vmax.f32 %v2145, 0.0
        %v2180 = vmax.f32 %v2150, 0.0
        %v2181 = vmax.f32 %v2155, 0.0
        %v2182 = vmax.f32 %v2160, 0.0
        %v2183 = vmax.f32 %v2165, 0.0
        %v2184 = vmax.f32 %v1990, %v2168
        %v2185 = vmax.f32 %v1991, %v2169
        %v2186 = vmax.f32 %v1992, %v2170
        %v2187 = vmax.f32 %v1993, %v2171
        %v2188 = vmax.f32 %v1994, %v2172
        %v2189 = vmax.f32 %v1995, %v2173
        %v2190 = vmax.f32 %v1996, %v2174
        %v2191 = vmax.f32 %v1997, %v2175
        %v2192 = vmax.f32 %v1998, %v2176
        %v2193 = vmax.f32 %v1999, %v2177
        %v2194 = vmax.f32 %v2000, %v2178
        %v2195 = vmax.f32 %v2001, %v2179
        %v2196 = vmax.f32 %v2002, %v2180
        %v2197 = vmax.f32 %v2003, %v2181
        %v2198 = vmax.f32 %v2004, %v2182
        %v2199 = vmax.f32 %v2005, %v2183
        %s2200 = scalar_lea.vmem %s447, 1152
        %v2201 = vld [vmem:[%s2200] sm:$0xff]
        %v2202 = vld [vmem:[%s2200 + $0x8] sm:$0xff]
        %v2203 = vld [vmem:[%s2200 + $0x10] sm:$0xff]
        %v2204 = vld [vmem:[%s2200 + $0x18] sm:$0xff]
        %v2205 = vld [vmem:[%s2200 + $0x20] sm:$0xff]
        %v2206 = vld [vmem:[%s2200 + $0x28] sm:$0xff]
        %v2207 = vld [vmem:[%s2200 + $0x30] sm:$0xff]
        %v2208 = vld [vmem:[%s2200 + $0x38] sm:$0xff]
        %v2209 = vld [vmem:[%s2200 + $0x40] sm:$0xff]
        %v2210 = vld [vmem:[%s2200 + $0x48] sm:$0xff]
        %v2211 = vld [vmem:[%s2200 + $0x50] sm:$0xff]
        %v2212 = vld [vmem:[%s2200 + $0x58] sm:$0xff]
        %v2213 = vld [vmem:[%s2200 + $0x60] sm:$0xff]
        %v2214 = vld [vmem:[%s2200 + $0x68] sm:$0xff]
        %v2215 = vld [vmem:[%s2200 + $0x70] sm:$0xff]
        %v2216 = vld [vmem:[%s2200 + $0x78] sm:$0xff]
        %2217 = vmatprep.subr.mxu0 0.0
        %2218 = vmatpush1.msra.mxu0 %v448
        %2219 = vmatprep.subr.mxu0 0.0
        %2220 = vmatpush1.msra.mxu0 %v449
        %2221 = vmatprep.subr.mxu0 0.0
        %2222 = vmatpush1.msra.mxu0 %v450
        %2223 = vmatprep.subr.mxu0 0.0
        %2224 = vmatpush1.msra.mxu0 %v451
        %2225 = vmatprep.subr.mxu0 0.0
        %2226 = vmatpush1.msra.mxu0 %v452
        %2227 = vmatprep.subr.mxu0 0.0
        %2228 = vmatpush1.msra.mxu0 %v453
        %2229 = vmatprep.subr.mxu0 0.0
        %2230 = vmatpush1.msra.mxu0 %v454
        %2231 = vmatprep.subr.mxu0 0.0
        %2232 = vmatpush1.msra.mxu0 %v455
        %2233 = vmatprep.subr.mxu0 0.0
        %2234 = vmatpush1.msra.mxu0 %v456
        %2235 = vmatprep.subr.mxu0 0.0
        %2236 = vmatpush1.msra.mxu0 %v457
        %2237 = vmatprep.subr.mxu0 0.0
        %2238 = vmatpush1.msra.mxu0 %v458
        %2239 = vmatprep.subr.mxu0 0.0
        %2240 = vmatpush1.msra.mxu0 %v459
        %2241 = vmatprep.subr.mxu0 0.0
        %2242 = vmatpush1.msra.mxu0 %v460
        %2243 = vmatprep.subr.mxu0 0.0
        %2244 = vmatpush1.msra.mxu0 %v461
        %2245 = vmatprep.subr.mxu0 0.0
        %2246 = vmatpush1.msra.mxu0 %v462
        %2247 = vmatprep.subr.mxu0 0.0
        %2248 = vmatpush1.msra.mxu0 %v463
        %2249 = vmatprep.subr.mxu0 0.0
        %2250 = vmatpush1.msra.mxu0 0.0
        %2251 = vmatprep.subr.mxu0 0.0
        %2252 = vmatpush1.msra.mxu0 0.0
        %2253 = vmatprep.subr.mxu0 0.0
        %2254 = vmatpush1.msra.mxu0 0.0
        %2255 = vmatprep.subr.mxu0 0.0
        %2256 = vmatpush1.msra.mxu0 0.0
        %2257 = vmatprep.subr.mxu0 0.0
        %2258 = vmatpush1.msra.mxu0 0.0
        %2259 = vmatprep.subr.mxu0 0.0
        %2260 = vmatpush1.msra.mxu0 0.0
        %2261 = vmatprep.subr.mxu0 0.0
        %2262 = vmatpush1.msra.mxu0 0.0
        %2263 = vmatprep.subr.mxu0 0.0
        %2264 = vmatpush1.msra.mxu0 0.0
        %2265 = vmatprep.subr.mxu0 0.0
        %2266 = vmatpush1.msra.mxu0 0.0
        %2267 = vmatprep.subr.mxu0 0.0
        %2268 = vmatpush1.msra.mxu0 0.0
        %2269 = vmatprep.subr.mxu0 0.0
        %2270 = vmatpush1.msra.mxu0 0.0
        %2271 = vmatprep.subr.mxu0 0.0
        %2272 = vmatpush1.msra.mxu0 0.0
        %2273 = vmatprep.subr.mxu0 0.0
        %2274 = vmatpush1.msra.mxu0 0.0
        %2275 = vmatprep.subr.mxu0 0.0
        %2276 = vmatpush1.msra.mxu0 0.0
        %2277 = vmatprep.subr.mxu0 0.0
        %2278 = vmatpush1.msra.mxu0 0.0
        %2279 = vmatprep.subr.mxu0 0.0
        %2280 = vmatpush1.msra.mxu0 0.0
        %2281 = vmatprep.mubr.f32.mxu0 0.0
        %2282 = vmatmul.mubr.f32.gmra.mrb[0].mxu0 %v2201
        %v2283 = vpop.f32.mrb[0].mxu0
        %v2284 = vadd.f32 %v485, %v2283
        %v2285 = vpop.f32.mrb[0].mxu0
        %2286 = vmatprep.mubr.f32.mxu0 0.0
        %2287 = vmatmul.mubr.f32.gmra.mrb[0].mxu0 %v2202
        %v2288 = vpop.f32.mrb[0].mxu0
        %v2289 = vadd.f32 %v485, %v2288
        %v2290 = vpop.f32.mrb[0].mxu0
        %2291 = vmatprep.mubr.f32.mxu0 0.0
        %2292 = vmatmul.mubr.f32.gmra.mrb[0].mxu0 %v2203
        %v2293 = vpop.f32.mrb[0].mxu0
        %v2294 = vadd.f32 %v485, %v2293
        %v2295 = vpop.f32.mrb[0].mxu0
        %2296 = vmatprep.mubr.f32.mxu0 0.0
        %2297 = vmatmul.mubr.f32.gmra.mrb[0].mxu0 %v2204
        %v2298 = vpop.f32.mrb[0].mxu0
        %v2299 = vadd.f32 %v485, %v2298
        %v2300 = vpop.f32.mrb[0].mxu0
        %2301 = vmatprep.mubr.f32.mxu0 0.0
        %2302 = vmatmul.mubr.f32.gmra.mrb[0].mxu0 %v2205
        %v2303 = vpop.f32.mrb[0].mxu0
        %v2304 = vadd.f32 %v485, %v2303
        %v2305 = vpop.f32.mrb[0].mxu0
        %2306 = vmatprep.mubr.f32.mxu0 0.0
        %2307 = vmatmul.mubr.f32.gmra.mrb[0].mxu0 %v2206
        %v2308 = vpop.f32.mrb[0].mxu0
        %v2309 = vadd.f32 %v485, %v2308
        %v2310 = vpop.f32.mrb[0].mxu0
        %2311 = vmatprep.mubr.f32.mxu0 0.0
        %2312 = vmatmul.mubr.f32.gmra.mrb[0].mxu0 %v2207
        %v2313 = vpop.f32.mrb[0].mxu0
        %v2314 = vadd.f32 %v485, %v2313
        %v2315 = vpop.f32.mrb[0].mxu0
        %2316 = vmatprep.mubr.f32.mxu0 0.0
        %2317 = vmatmul.mubr.f32.gmra.mrb[0].mxu0 %v2208
        %v2318 = vpop.f32.mrb[0].mxu0
        %v2319 = vadd.f32 %v485, %v2318
        %v2320 = vpop.f32.mrb[0].mxu0
        %2321 = vmatprep.mubr.f32.mxu0 0.0
        %2322 = vmatmul.mubr.f32.gmra.mrb[0].mxu0 %v2209
        %v2323 = vpop.f32.mrb[0].mxu0
        %v2324 = vadd.f32 %v485, %v2323
        %v2325 = vpop.f32.mrb[0].mxu0
        %2326 = vmatprep.mubr.f32.mxu0 0.0
        %2327 = vmatmul.mubr.f32.gmra.mrb[0].mxu0 %v2210
        %v2328 = vpop.f32.mrb[0].mxu0
        %v2329 = vadd.f32 %v485, %v2328
        %v2330 = vpop.f32.mrb[0].mxu0
        %2331 = vmatprep.mubr.f32.mxu0 0.0
        %2332 = vmatmul.mubr.f32.gmra.mrb[0].mxu0 %v2211
        %v2333 = vpop.f32.mrb[0].mxu0
        %v2334 = vadd.f32 %v485, %v2333
        %v2335 = vpop.f32.mrb[0].mxu0
        %2336 = vmatprep.mubr.f32.mxu0 0.0
        %2337 = vmatmul.mubr.f32.gmra.mrb[0].mxu0 %v2212
        %v2338 = vpop.f32.mrb[0].mxu0
        %v2339 = vadd.f32 %v485, %v2338
        %v2340 = vpop.f32.mrb[0].mxu0
        %2341 = vmatprep.mubr.f32.mxu0 0.0
        %2342 = vmatmul.mubr.f32.gmra.mrb[0].mxu0 %v2213
        %v2343 = vpop.f32.mrb[0].mxu0
        %v2344 = vadd.f32 %v485, %v2343
        %v2345 = vpop.f32.mrb[0].mxu0
        %2346 = vmatprep.mubr.f32.mxu0 0.0
        %2347 = vmatmul.mubr.f32.gmra.mrb[0].mxu0 %v2214
        %v2348 = vpop.f32.mrb[0].mxu0
        %v2349 = vadd.f32 %v485, %v2348
        %v2350 = vpop.f32.mrb[0].mxu0
        %2351 = vmatprep.mubr.f32.mxu0 0.0
        %2352 = vmatmul.mubr.f32.gmra.mrb[0].mxu0 %v2215
        %v2353 = vpop.f32.mrb[0].mxu0
        %v2354 = vadd.f32 %v485, %v2353
        %v2355 = vpop.f32.mrb[0].mxu0
        %2356 = vmatprep.mubr.f32.mxu0 0.0
        %2357 = vmatmul.mubr.f32.gmra.mrb[0].mxu0 %v2216
        %v2358 = vpop.f32.mrb[0].mxu0
        %v2359 = vadd.f32 %v485, %v2358
        %v2360 = vpop.f32.mrb[0].mxu0
        %2361 = vdwg.mxu0
        %v2362 = vmax.f32 %v2284, 0.0
        %v2363 = vmax.f32 %v2289, 0.0
        %v2364 = vmax.f32 %v2294, 0.0
        %v2365 = vmax.f32 %v2299, 0.0
        %v2366 = vmax.f32 %v2304, 0.0
        %v2367 = vmax.f32 %v2309, 0.0
        %v2368 = vmax.f32 %v2314, 0.0
        %v2369 = vmax.f32 %v2319, 0.0
        %v2370 = vmax.f32 %v2324, 0.0
        %v2371 = vmax.f32 %v2329, 0.0
        %v2372 = vmax.f32 %v2334, 0.0
        %v2373 = vmax.f32 %v2339, 0.0
        %v2374 = vmax.f32 %v2344, 0.0
        %v2375 = vmax.f32 %v2349, 0.0
        %v2376 = vmax.f32 %v2354, 0.0
        %v2377 = vmax.f32 %v2359, 0.0
        %v2378 = vmax.f32 %v2184, %v2362
        %v2379 = vmax.f32 %v2185, %v2363
        %v2380 = vmax.f32 %v2186, %v2364
        %v2381 = vmax.f32 %v2187, %v2365
        %v2382 = vmax.f32 %v2188, %v2366
        %v2383 = vmax.f32 %v2189, %v2367
        %v2384 = vmax.f32 %v2190, %v2368
        %v2385 = vmax.f32 %v2191, %v2369
        %v2386 = vmax.f32 %v2192, %v2370
        %v2387 = vmax.f32 %v2193, %v2371
        %v2388 = vmax.f32 %v2194, %v2372
        %v2389 = vmax.f32 %v2195, %v2373
        %v2390 = vmax.f32 %v2196, %v2374
        %v2391 = vmax.f32 %v2197, %v2375
        %v2392 = vmax.f32 %v2198, %v2376
        %v2393 = vmax.f32 %v2199, %v2377
        %s2394 = scalar_lea.vmem %s447, 1280
        %v2395 = vld [vmem:[%s2394] sm:$0xff]
        %v2396 = vld [vmem:[%s2394 + $0x8] sm:$0xff]
        %v2397 = vld [vmem:[%s2394 + $0x10] sm:$0xff]
        %v2398 = vld [vmem:[%s2394 + $0x18] sm:$0xff]
        %v2399 = vld [vmem:[%s2394 + $0x20] sm:$0xff]
        %v2400 = vld [vmem:[%s2394 + $0x28] sm:$0xff]
        %v2401 = vld [vmem:[%s2394 + $0x30] sm:$0xff]
        %v2402 = vld [vmem:[%s2394 + $0x38] sm:$0xff]
        %v2403 = vld [vmem:[%s2394 + $0x40] sm:$0xff]
        %v2404 = vld [vmem:[%s2394 + $0x48] sm:$0xff]
        %v2405 = vld [vmem:[%s2394 + $0x50] sm:$0xff]
        %v2406 = vld [vmem:[%s2394 + $0x58] sm:$0xff]
        %v2407 = vld [vmem:[%s2394 + $0x60] sm:$0xff]
        %v2408 = vld [vmem:[%s2394 + $0x68] sm:$0xff]
        %v2409 = vld [vmem:[%s2394 + $0x70] sm:$0xff]
        %v2410 = vld [vmem:[%s2394 + $0x78] sm:$0xff]
        %2411 = vmatprep.subr.mxu0 0.0
        %2412 = vmatpush1.msra.mxu0 %v448
        %2413 = vmatprep.subr.mxu0 0.0
        %2414 = vmatpush1.msra.mxu0 %v449
        %2415 = vmatprep.subr.mxu0 0.0
        %2416 = vmatpush1.msra.mxu0 %v450
        %2417 = vmatprep.subr.mxu0 0.0
        %2418 = vmatpush1.msra.mxu0 %v451
        %2419 = vmatprep.subr.mxu0 0.0
        %2420 = vmatpush1.msra.mxu0 %v452
        %2421 = vmatprep.subr.mxu0 0.0
        %2422 = vmatpush1.msra.mxu0 %v453
        %2423 = vmatprep.subr.mxu0 0.0
        %2424 = vmatpush1.msra.mxu0 %v454
        %2425 = vmatprep.subr.mxu0 0.0
        %2426 = vmatpush1.msra.mxu0 %v455
        %2427 = vmatprep.subr.mxu0 0.0
        %2428 = vmatpush1.msra.mxu0 %v456
        %2429 = vmatprep.subr.mxu0 0.0
        %2430 = vmatpush1.msra.mxu0 %v457
        %2431 = vmatprep.subr.mxu0 0.0
        %2432 = vmatpush1.msra.mxu0 %v458
        %2433 = vmatprep.subr.mxu0 0.0
        %2434 = vmatpush1.msra.mxu0 %v459
        %2435 = vmatprep.subr.mxu0 0.0
        %2436 = vmatpush1.msra.mxu0 %v460
        %2437 = vmatprep.subr.mxu0 0.0
        %2438 = vmatpush1.msra.mxu0 %v461
        %2439 = vmatprep.subr.mxu0 0.0
        %2440 = vmatpush1.msra.mxu0 %v462
        %2441 = vmatprep.subr.mxu0 0.0
        %2442 = vmatpush1.msra.mxu0 %v463
        %2443 = vmatprep.subr.mxu0 0.0
        %2444 = vmatpush1.msra.mxu0 0.0
        %2445 = vmatprep.subr.mxu0 0.0
        %2446 = vmatpush1.msra.mxu0 0.0
        %2447 = vmatprep.subr.mxu0 0.0
        %2448 = vmatpush1.msra.mxu0 0.0
        %2449 = vmatprep.subr.mxu0 0.0
        %2450 = vmatpush1.msra.mxu0 0.0
        %2451 = vmatprep.subr.mxu0 0.0
        %2452 = vmatpush1.msra.mxu0 0.0
        %2453 = vmatprep.subr.mxu0 0.0
        %2454 = vmatpush1.msra.mxu0 0.0
        %2455 = vmatprep.subr.mxu0 0.0
        %2456 = vmatpush1.msra.mxu0 0.0
        %2457 = vmatprep.subr.mxu0 0.0
        %2458 = vmatpush1.msra.mxu0 0.0
        %2459 = vmatprep.subr.mxu0 0.0
        %2460 = vmatpush1.msra.mxu0 0.0
        %2461 = vmatprep.subr.mxu0 0.0
        %2462 = vmatpush1.msra.mxu0 0.0
        %2463 = vmatprep.subr.mxu0 0.0
        %2464 = vmatpush1.msra.mxu0 0.0
        %2465 = vmatprep.subr.mxu0 0.0
        %2466 = vmatpush1.msra.mxu0 0.0
        %2467 = vmatprep.subr.mxu0 0.0
        %2468 = vmatpush1.msra.mxu0 0.0
        %2469 = vmatprep.subr.mxu0 0.0
        %2470 = vmatpush1.msra.mxu0 0.0
        %2471 = vmatprep.subr.mxu0 0.0
        %2472 = vmatpush1.msra.mxu0 0.0
        %2473 = vmatprep.subr.mxu0 0.0
        %2474 = vmatpush1.msra.mxu0 0.0
        %2475 = vmatprep.mubr.f32.mxu0 0.0
        %2476 = vmatmul.mubr.f32.gmra.mrb[0].mxu0 %v2395
        %v2477 = vpop.f32.mrb[0].mxu0
        %v2478 = vadd.f32 %v485, %v2477
        %v2479 = vpop.f32.mrb[0].mxu0
        %2480 = vmatprep.mubr.f32.mxu0 0.0
        %2481 = vmatmul.mubr.f32.gmra.mrb[0].mxu0 %v2396
        %v2482 = vpop.f32.mrb[0].mxu0
        %v2483 = vadd.f32 %v485, %v2482
        %v2484 = vpop.f32.mrb[0].mxu0
        %2485 = vmatprep.mubr.f32.mxu0 0.0
        %2486 = vmatmul.mubr.f32.gmra.mrb[0].mxu0 %v2397
        %v2487 = vpop.f32.mrb[0].mxu0
        %v2488 = vadd.f32 %v485, %v2487
        %v2489 = vpop.f32.mrb[0].mxu0
        %2490 = vmatprep.mubr.f32.mxu0 0.0
        %2491 = vmatmul.mubr.f32.gmra.mrb[0].mxu0 %v2398
        %v2492 = vpop.f32.mrb[0].mxu0
        %v2493 = vadd.f32 %v485, %v2492
        %v2494 = vpop.f32.mrb[0].mxu0
        %2495 = vmatprep.mubr.f32.mxu0 0.0
        %2496 = vmatmul.mubr.f32.gmra.mrb[0].mxu0 %v2399
        %v2497 = vpop.f32.mrb[0].mxu0
        %v2498 = vadd.f32 %v485, %v2497
        %v2499 = vpop.f32.mrb[0].mxu0
        %2500 = vmatprep.mubr.f32.mxu0 0.0
        %2501 = vmatmul.mubr.f32.gmra.mrb[0].mxu0 %v2400
        %v2502 = vpop.f32.mrb[0].mxu0
        %v2503 = vadd.f32 %v485, %v2502
        %v2504 = vpop.f32.mrb[0].mxu0
        %2505 = vmatprep.mubr.f32.mxu0 0.0
        %2506 = vmatmul.mubr.f32.gmra.mrb[0].mxu0 %v2401
        %v2507 = vpop.f32.mrb[0].mxu0
        %v2508 = vadd.f32 %v485, %v2507
        %v2509 = vpop.f32.mrb[0].mxu0
        %2510 = vmatprep.mubr.f32.mxu0 0.0
        %2511 = vmatmul.mubr.f32.gmra.mrb[0].mxu0 %v2402
        %v2512 = vpop.f32.mrb[0].mxu0
        %v2513 = vadd.f32 %v485, %v2512
        %v2514 = vpop.f32.mrb[0].mxu0
        %2515 = vmatprep.mubr.f32.mxu0 0.0
        %2516 = vmatmul.mubr.f32.gmra.mrb[0].mxu0 %v2403
        %v2517 = vpop.f32.mrb[0].mxu0
        %v2518 = vadd.f32 %v485, %v2517
        %v2519 = vpop.f32.mrb[0].mxu0
        %2520 = vmatprep.mubr.f32.mxu0 0.0
        %2521 = vmatmul.mubr.f32.gmra.mrb[0].mxu0 %v2404
        %v2522 = vpop.f32.mrb[0].mxu0
        %v2523 = vadd.f32 %v485, %v2522
        %v2524 = vpop.f32.mrb[0].mxu0
        %2525 = vmatprep.mubr.f32.mxu0 0.0
        %2526 = vmatmul.mubr.f32.gmra.mrb[0].mxu0 %v2405
        %v2527 = vpop.f32.mrb[0].mxu0
        %v2528 = vadd.f32 %v485, %v2527
        %v2529 = vpop.f32.mrb[0].mxu0
        %2530 = vmatprep.mubr.f32.mxu0 0.0
        %2531 = vmatmul.mubr.f32.gmra.mrb[0].mxu0 %v2406
        %v2532 = vpop.f32.mrb[0].mxu0
        %v2533 = vadd.f32 %v485, %v2532
        %v2534 = vpop.f32.mrb[0].mxu0
        %2535 = vmatprep.mubr.f32.mxu0 0.0
        %2536 = vmatmul.mubr.f32.gmra.mrb[0].mxu0 %v2407
        %v2537 = vpop.f32.mrb[0].mxu0
        %v2538 = vadd.f32 %v485, %v2537
        %v2539 = vpop.f32.mrb[0].mxu0
        %2540 = vmatprep.mubr.f32.mxu0 0.0
        %2541 = vmatmul.mubr.f32.gmra.mrb[0].mxu0 %v2408
        %v2542 = vpop.f32.mrb[0].mxu0
        %v2543 = vadd.f32 %v485, %v2542
        %v2544 = vpop.f32.mrb[0].mxu0
        %2545 = vmatprep.mubr.f32.mxu0 0.0
        %2546 = vmatmul.mubr.f32.gmra.mrb[0].mxu0 %v2409
        %v2547 = vpop.f32.mrb[0].mxu0
        %v2548 = vadd.f32 %v485, %v2547
        %v2549 = vpop.f32.mrb[0].mxu0
        %2550 = vmatprep.mubr.f32.mxu0 0.0
        %2551 = vmatmul.mubr.f32.gmra.mrb[0].mxu0 %v2410
        %v2552 = vpop.f32.mrb[0].mxu0
        %v2553 = vadd.f32 %v485, %v2552
        %v2554 = vpop.f32.mrb[0].mxu0
        %2555 = vdwg.mxu0
        %v2556 = vmax.f32 %v2478, 0.0
        %v2557 = vmax.f32 %v2483, 0.0
        %v2558 = vmax.f32 %v2488, 0.0
        %v2559 = vmax.f32 %v2493, 0.0
        %v2560 = vmax.f32 %v2498, 0.0
        %v2561 = vmax.f32 %v2503, 0.0
        %v2562 = vmax.f32 %v2508, 0.0
        %v2563 = vmax.f32 %v2513, 0.0
        %v2564 = vmax.f32 %v2518, 0.0
        %v2565 = vmax.f32 %v2523, 0.0
        %v2566 = vmax.f32 %v2528, 0.0
        %v2567 = vmax.f32 %v2533, 0.0
        %v2568 = vmax.f32 %v2538, 0.0
        %v2569 = vmax.f32 %v2543, 0.0
        %v2570 = vmax.f32 %v2548, 0.0
        %v2571 = vmax.f32 %v2553, 0.0
        %v2572 = vmax.f32 %v2378, %v2556
        %v2573 = vmax.f32 %v2379, %v2557
        %v2574 = vmax.f32 %v2380, %v2558
        %v2575 = vmax.f32 %v2381, %v2559
        %v2576 = vmax.f32 %v2382, %v2560
        %v2577 = vmax.f32 %v2383, %v2561
        %v2578 = vmax.f32 %v2384, %v2562
        %v2579 = vmax.f32 %v2385, %v2563
        %v2580 = vmax.f32 %v2386, %v2564
        %v2581 = vmax.f32 %v2387, %v2565
        %v2582 = vmax.f32 %v2388, %v2566
        %v2583 = vmax.f32 %v2389, %v2567
        %v2584 = vmax.f32 %v2390, %v2568
        %v2585 = vmax.f32 %v2391, %v2569
        %v2586 = vmax.f32 %v2392, %v2570
        %v2587 = vmax.f32 %v2393, %v2571
        %s2588 = scalar_lea.vmem %s447, 1408
        %v2589 = vld [vmem:[%s2588] sm:$0xff]
        %v2590 = vld [vmem:[%s2588 + $0x8] sm:$0xff]
        %v2591 = vld [vmem:[%s2588 + $0x10] sm:$0xff]
        %v2592 = vld [vmem:[%s2588 + $0x18] sm:$0xff]
        %v2593 = vld [vmem:[%s2588 + $0x20] sm:$0xff]
        %v2594 = vld [vmem:[%s2588 + $0x28] sm:$0xff]
        %v2595 = vld [vmem:[%s2588 + $0x30] sm:$0xff]
        %v2596 = vld [vmem:[%s2588 + $0x38] sm:$0xff]
        %v2597 = vld [vmem:[%s2588 + $0x40] sm:$0xff]
        %v2598 = vld [vmem:[%s2588 + $0x48] sm:$0xff]
        %v2599 = vld [vmem:[%s2588 + $0x50] sm:$0xff]
        %v2600 = vld [vmem:[%s2588 + $0x58] sm:$0xff]
        %v2601 = vld [vmem:[%s2588 + $0x60] sm:$0xff]
        %v2602 = vld [vmem:[%s2588 + $0x68] sm:$0xff]
        %v2603 = vld [vmem:[%s2588 + $0x70] sm:$0xff]
        %v2604 = vld [vmem:[%s2588 + $0x78] sm:$0xff]
        %2605 = vmatprep.subr.mxu0 0.0
        %2606 = vmatpush1.msra.mxu0 %v448
        %2607 = vmatprep.subr.mxu0 0.0
        %2608 = vmatpush1.msra.mxu0 %v449
        %2609 = vmatprep.subr.mxu0 0.0
        %2610 = vmatpush1.msra.mxu0 %v450
        %2611 = vmatprep.subr.mxu0 0.0
        %2612 = vmatpush1.msra.mxu0 %v451
        %2613 = vmatprep.subr.mxu0 0.0
        %2614 = vmatpush1.msra.mxu0 %v452
        %2615 = vmatprep.subr.mxu0 0.0
        %2616 = vmatpush1.msra.mxu0 %v453
        %2617 = vmatprep.subr.mxu0 0.0
        %2618 = vmatpush1.msra.mxu0 %v454
        %2619 = vmatprep.subr.mxu0 0.0
        %2620 = vmatpush1.msra.mxu0 %v455
        %2621 = vmatprep.subr.mxu0 0.0
        %2622 = vmatpush1.msra.mxu0 %v456
        %2623 = vmatprep.subr.mxu0 0.0
        %2624 = vmatpush1.msra.mxu0 %v457
        %2625 = vmatprep.subr.mxu0 0.0
        %2626 = vmatpush1.msra.mxu0 %v458
        %2627 = vmatprep.subr.mxu0 0.0
        %2628 = vmatpush1.msra.mxu0 %v459
        %2629 = vmatprep.subr.mxu0 0.0
        %2630 = vmatpush1.msra.mxu0 %v460
        %2631 = vmatprep.subr.mxu0 0.0
        %2632 = vmatpush1.msra.mxu0 %v461
        %2633 = vmatprep.subr.mxu0 0.0
        %2634 = vmatpush1.msra.mxu0 %v462
        %2635 = vmatprep.subr.mxu0 0.0
        %2636 = vmatpush1.msra.mxu0 %v463
        %2637 = vmatprep.subr.mxu0 0.0
        %2638 = vmatpush1.msra.mxu0 0.0
        %2639 = vmatprep.subr.mxu0 0.0
        %2640 = vmatpush1.msra.mxu0 0.0
        %2641 = vmatprep.subr.mxu0 0.0
        %2642 = vmatpush1.msra.mxu0 0.0
        %2643 = vmatprep.subr.mxu0 0.0
        %2644 = vmatpush1.msra.mxu0 0.0
        %2645 = vmatprep.subr.mxu0 0.0
        %2646 = vmatpush1.msra.mxu0 0.0
        %2647 = vmatprep.subr.mxu0 0.0
        %2648 = vmatpush1.msra.mxu0 0.0
        %2649 = vmatprep.subr.mxu0 0.0
        %2650 = vmatpush1.msra.mxu0 0.0
        %2651 = vmatprep.subr.mxu0 0.0
        %2652 = vmatpush1.msra.mxu0 0.0
        %2653 = vmatprep.subr.mxu0 0.0
        %2654 = vmatpush1.msra.mxu0 0.0
        %2655 = vmatprep.subr.mxu0 0.0
        %2656 = vmatpush1.msra.mxu0 0.0
        %2657 = vmatprep.subr.mxu0 0.0
        %2658 = vmatpush1.msra.mxu0 0.0
        %2659 = vmatprep.subr.mxu0 0.0
        %2660 = vmatpush1.msra.mxu0 0.0
        %2661 = vmatprep.subr.mxu0 0.0
        %2662 = vmatpush1.msra.mxu0 0.0
        %2663 = vmatprep.subr.mxu0 0.0
        %2664 = vmatpush1.msra.mxu0 0.0
        %2665 = vmatprep.subr.mxu0 0.0
        %2666 = vmatpush1.msra.mxu0 0.0
        %2667 = vmatprep.subr.mxu0 0.0
        %2668 = vmatpush1.msra.mxu0 0.0
        %2669 = vmatprep.mubr.f32.mxu0 0.0
        %2670 = vmatmul.mubr.f32.gmra.mrb[0].mxu0 %v2589
        %v2671 = vpop.f32.mrb[0].mxu0
        %v2672 = vadd.f32 %v485, %v2671
        %v2673 = vpop.f32.mrb[0].mxu0
        %2674 = vmatprep.mubr.f32.mxu0 0.0
        %2675 = vmatmul.mubr.f32.gmra.mrb[0].mxu0 %v2590
        %v2676 = vpop.f32.mrb[0].mxu0
        %v2677 = vadd.f32 %v485, %v2676
        %v2678 = vpop.f32.mrb[0].mxu0
        %2679 = vmatprep.mubr.f32.mxu0 0.0
        %2680 = vmatmul.mubr.f32.gmra.mrb[0].mxu0 %v2591
        %v2681 = vpop.f32.mrb[0].mxu0
        %v2682 = vadd.f32 %v485, %v2681
        %v2683 = vpop.f32.mrb[0].mxu0
        %2684 = vmatprep.mubr.f32.mxu0 0.0
        %2685 = vmatmul.mubr.f32.gmra.mrb[0].mxu0 %v2592
        %v2686 = vpop.f32.mrb[0].mxu0
        %v2687 = vadd.f32 %v485, %v2686
        %v2688 = vpop.f32.mrb[0].mxu0
        %2689 = vmatprep.mubr.f32.mxu0 0.0
        %2690 = vmatmul.mubr.f32.gmra.mrb[0].mxu0 %v2593
        %v2691 = vpop.f32.mrb[0].mxu0
        %v2692 = vadd.f32 %v485, %v2691
        %v2693 = vpop.f32.mrb[0].mxu0
        %2694 = vmatprep.mubr.f32.mxu0 0.0
        %2695 = vmatmul.mubr.f32.gmra.mrb[0].mxu0 %v2594
        %v2696 = vpop.f32.mrb[0].mxu0
        %v2697 = vadd.f32 %v485, %v2696
        %v2698 = vpop.f32.mrb[0].mxu0
        %2699 = vmatprep.mubr.f32.mxu0 0.0
        %2700 = vmatmul.mubr.f32.gmra.mrb[0].mxu0 %v2595
        %v2701 = vpop.f32.mrb[0].mxu0
        %v2702 = vadd.f32 %v485, %v2701
        %v2703 = vpop.f32.mrb[0].mxu0
        %2704 = vmatprep.mubr.f32.mxu0 0.0
        %2705 = vmatmul.mubr.f32.gmra.mrb[0].mxu0 %v2596
        %v2706 = vpop.f32.mrb[0].mxu0
        %v2707 = vadd.f32 %v485, %v2706
        %v2708 = vpop.f32.mrb[0].mxu0
        %2709 = vmatprep.mubr.f32.mxu0 0.0
        %2710 = vmatmul.mubr.f32.gmra.mrb[0].mxu0 %v2597
        %v2711 = vpop.f32.mrb[0].mxu0
        %v2712 = vadd.f32 %v485, %v2711
        %v2713 = vpop.f32.mrb[0].mxu0
        %2714 = vmatprep.mubr.f32.mxu0 0.0
        %2715 = vmatmul.mubr.f32.gmra.mrb[0].mxu0 %v2598
        %v2716 = vpop.f32.mrb[0].mxu0
        %v2717 = vadd.f32 %v485, %v2716
        %v2718 = vpop.f32.mrb[0].mxu0
        %2719 = vmatprep.mubr.f32.mxu0 0.0
        %2720 = vmatmul.mubr.f32.gmra.mrb[0].mxu0 %v2599
        %v2721 = vpop.f32.mrb[0].mxu0
        %v2722 = vadd.f32 %v485, %v2721
        %v2723 = vpop.f32.mrb[0].mxu0
        %2724 = vmatprep.mubr.f32.mxu0 0.0
        %2725 = vmatmul.mubr.f32.gmra.mrb[0].mxu0 %v2600
        %v2726 = vpop.f32.mrb[0].mxu0
        %v2727 = vadd.f32 %v485, %v2726
        %v2728 = vpop.f32.mrb[0].mxu0
        %2729 = vmatprep.mubr.f32.mxu0 0.0
        %2730 = vmatmul.mubr.f32.gmra.mrb[0].mxu0 %v2601
        %v2731 = vpop.f32.mrb[0].mxu0
        %v2732 = vadd.f32 %v485, %v2731
        %v2733 = vpop.f32.mrb[0].mxu0
        %2734 = vmatprep.mubr.f32.mxu0 0.0
        %2735 = vmatmul.mubr.f32.gmra.mrb[0].mxu0 %v2602
        %v2736 = vpop.f32.mrb[0].mxu0
        %v2737 = vadd.f32 %v485, %v2736
        %v2738 = vpop.f32.mrb[0].mxu0
        %2739 = vmatprep.mubr.f32.mxu0 0.0
        %2740 = vmatmul.mubr.f32.gmra.mrb[0].mxu0 %v2603
        %v2741 = vpop.f32.mrb[0].mxu0
        %v2742 = vadd.f32 %v485, %v2741
        %v2743 = vpop.f32.mrb[0].mxu0
        %2744 = vmatprep.mubr.f32.mxu0 0.0
        %2745 = vmatmul.mubr.f32.gmra.mrb[0].mxu0 %v2604
        %v2746 = vpop.f32.mrb[0].mxu0
        %v2747 = vadd.f32 %v485, %v2746
        %v2748 = vpop.f32.mrb[0].mxu0
        %2749 = vdwg.mxu0
        %v2750 = vmax.f32 %v2672, 0.0
        %v2751 = vmax.f32 %v2677, 0.0
        %v2752 = vmax.f32 %v2682, 0.0
        %v2753 = vmax.f32 %v2687, 0.0
        %v2754 = vmax.f32 %v2692, 0.0
        %v2755 = vmax.f32 %v2697, 0.0
        %v2756 = vmax.f32 %v2702, 0.0
        %v2757 = vmax.f32 %v2707, 0.0
        %v2758 = vmax.f32 %v2712, 0.0
        %v2759 = vmax.f32 %v2717, 0.0
        %v2760 = vmax.f32 %v2722, 0.0
        %v2761 = vmax.f32 %v2727, 0.0
        %v2762 = vmax.f32 %v2732, 0.0
        %v2763 = vmax.f32 %v2737, 0.0
        %v2764 = vmax.f32 %v2742, 0.0
        %v2765 = vmax.f32 %v2747, 0.0
        %v2766 = vmax.f32 %v2572, %v2750
        %v2767 = vmax.f32 %v2573, %v2751
        %v2768 = vmax.f32 %v2574, %v2752
        %v2769 = vmax.f32 %v2575, %v2753
        %v2770 = vmax.f32 %v2576, %v2754
        %v2771 = vmax.f32 %v2577, %v2755
        %v2772 = vmax.f32 %v2578, %v2756
        %v2773 = vmax.f32 %v2579, %v2757
        %v2774 = vmax.f32 %v2580, %v2758
        %v2775 = vmax.f32 %v2581, %v2759
        %v2776 = vmax.f32 %v2582, %v2760
        %v2777 = vmax.f32 %v2583, %v2761
        %v2778 = vmax.f32 %v2584, %v2762
        %v2779 = vmax.f32 %v2585, %v2763
        %v2780 = vmax.f32 %v2586, %v2764
        %v2781 = vmax.f32 %v2587, %v2765
        %s2782 = scalar_lea.vmem %s447, 1536
        %v2783 = vld [vmem:[%s2782] sm:$0xff]
        %v2784 = vld [vmem:[%s2782 + $0x8] sm:$0xff]
        %v2785 = vld [vmem:[%s2782 + $0x10] sm:$0xff]
        %v2786 = vld [vmem:[%s2782 + $0x18] sm:$0xff]
        %v2787 = vld [vmem:[%s2782 + $0x20] sm:$0xff]
        %v2788 = vld [vmem:[%s2782 + $0x28] sm:$0xff]
        %v2789 = vld [vmem:[%s2782 + $0x30] sm:$0xff]
        %v2790 = vld [vmem:[%s2782 + $0x38] sm:$0xff]
        %v2791 = vld [vmem:[%s2782 + $0x40] sm:$0xff]
        %v2792 = vld [vmem:[%s2782 + $0x48] sm:$0xff]
        %v2793 = vld [vmem:[%s2782 + $0x50] sm:$0xff]
        %v2794 = vld [vmem:[%s2782 + $0x58] sm:$0xff]
        %v2795 = vld [vmem:[%s2782 + $0x60] sm:$0xff]
        %v2796 = vld [vmem:[%s2782 + $0x68] sm:$0xff]
        %v2797 = vld [vmem:[%s2782 + $0x70] sm:$0xff]
        %v2798 = vld [vmem:[%s2782 + $0x78] sm:$0xff]
        %2799 = vmatprep.subr.mxu0 0.0
        %2800 = vmatpush1.msra.mxu0 %v448
        %2801 = vmatprep.subr.mxu0 0.0
        %2802 = vmatpush1.msra.mxu0 %v449
        %2803 = vmatprep.subr.mxu0 0.0
        %2804 = vmatpush1.msra.mxu0 %v450
        %2805 = vmatprep.subr.mxu0 0.0
        %2806 = vmatpush1.msra.mxu0 %v451
        %2807 = vmatprep.subr.mxu0 0.0
        %2808 = vmatpush1.msra.mxu0 %v452
        %2809 = vmatprep.subr.mxu0 0.0
        %2810 = vmatpush1.msra.mxu0 %v453
        %2811 = vmatprep.subr.mxu0 0.0
        %2812 = vmatpush1.msra.mxu0 %v454
        %2813 = vmatprep.subr.mxu0 0.0
        %2814 = vmatpush1.msra.mxu0 %v455
        %2815 = vmatprep.subr.mxu0 0.0
        %2816 = vmatpush1.msra.mxu0 %v456
        %2817 = vmatprep.subr.mxu0 0.0
        %2818 = vmatpush1.msra.mxu0 %v457
        %2819 = vmatprep.subr.mxu0 0.0
        %2820 = vmatpush1.msra.mxu0 %v458
        %2821 = vmatprep.subr.mxu0 0.0
        %2822 = vmatpush1.msra.mxu0 %v459
        %2823 = vmatprep.subr.mxu0 0.0
        %2824 = vmatpush1.msra.mxu0 %v460
        %2825 = vmatprep.subr.mxu0 0.0
        %2826 = vmatpush1.msra.mxu0 %v461
        %2827 = vmatprep.subr.mxu0 0.0
        %2828 = vmatpush1.msra.mxu0 %v462
        %2829 = vmatprep.subr.mxu0 0.0
        %2830 = vmatpush1.msra.mxu0 %v463
        %2831 = vmatprep.subr.mxu0 0.0
        %2832 = vmatpush1.msra.mxu0 0.0
        %2833 = vmatprep.subr.mxu0 0.0
        %2834 = vmatpush1.msra.mxu0 0.0
        %2835 = vmatprep.subr.mxu0 0.0
        %2836 = vmatpush1.msra.mxu0 0.0
        %2837 = vmatprep.subr.mxu0 0.0
        %2838 = vmatpush1.msra.mxu0 0.0
        %2839 = vmatprep.subr.mxu0 0.0
        %2840 = vmatpush1.msra.mxu0 0.0
        %2841 = vmatprep.subr.mxu0 0.0
        %2842 = vmatpush1.msra.mxu0 0.0
        %2843 = vmatprep.subr.mxu0 0.0
        %2844 = vmatpush1.msra.mxu0 0.0
        %2845 = vmatprep.subr.mxu0 0.0
        %2846 = vmatpush1.msra.mxu0 0.0
        %2847 = vmatprep.subr.mxu0 0.0
        %2848 = vmatpush1.msra.mxu0 0.0
        %2849 = vmatprep.subr.mxu0 0.0
        %2850 = vmatpush1.msra.mxu0 0.0
        %2851 = vmatprep.subr.mxu0 0.0
        %2852 = vmatpush1.msra.mxu0 0.0
        %2853 = vmatprep.subr.mxu0 0.0
        %2854 = vmatpush1.msra.mxu0 0.0
        %2855 = vmatprep.subr.mxu0 0.0
        %2856 = vmatpush1.msra.mxu0 0.0
        %2857 = vmatprep.subr.mxu0 0.0
        %2858 = vmatpush1.msra.mxu0 0.0
        %2859 = vmatprep.subr.mxu0 0.0
        %2860 = vmatpush1.msra.mxu0 0.0
        %2861 = vmatprep.subr.mxu0 0.0
        %2862 = vmatpush1.msra.mxu0 0.0
        %2863 = vmatprep.mubr.f32.mxu0 0.0
        %2864 = vmatmul.mubr.f32.gmra.mrb[0].mxu0 %v2783
        %v2865 = vpop.f32.mrb[0].mxu0
        %v2866 = vadd.f32 %v485, %v2865
        %v2867 = vpop.f32.mrb[0].mxu0
        %2868 = vmatprep.mubr.f32.mxu0 0.0
        %2869 = vmatmul.mubr.f32.gmra.mrb[0].mxu0 %v2784
        %v2870 = vpop.f32.mrb[0].mxu0
        %v2871 = vadd.f32 %v485, %v2870
        %v2872 = vpop.f32.mrb[0].mxu0
        %2873 = vmatprep.mubr.f32.mxu0 0.0
        %2874 = vmatmul.mubr.f32.gmra.mrb[0].mxu0 %v2785
        %v2875 = vpop.f32.mrb[0].mxu0
        %v2876 = vadd.f32 %v485, %v2875
        %v2877 = vpop.f32.mrb[0].mxu0
        %2878 = vmatprep.mubr.f32.mxu0 0.0
        %2879 = vmatmul.mubr.f32.gmra.mrb[0].mxu0 %v2786
        %v2880 = vpop.f32.mrb[0].mxu0
        %v2881 = vadd.f32 %v485, %v2880
        %v2882 = vpop.f32.mrb[0].mxu0
        %2883 = vmatprep.mubr.f32.mxu0 0.0
        %2884 = vmatmul.mubr.f32.gmra.mrb[0].mxu0 %v2787
        %v2885 = vpop.f32.mrb[0].mxu0
        %v2886 = vadd.f32 %v485, %v2885
        %v2887 = vpop.f32.mrb[0].mxu0
        %2888 = vmatprep.mubr.f32.mxu0 0.0
        %2889 = vmatmul.mubr.f32.gmra.mrb[0].mxu0 %v2788
        %v2890 = vpop.f32.mrb[0].mxu0
        %v2891 = vadd.f32 %v485, %v2890
        %v2892 = vpop.f32.mrb[0].mxu0
        %2893 = vmatprep.mubr.f32.mxu0 0.0
        %2894 = vmatmul.mubr.f32.gmra.mrb[0].mxu0 %v2789
        %v2895 = vpop.f32.mrb[0].mxu0
        %v2896 = vadd.f32 %v485, %v2895
        %v2897 = vpop.f32.mrb[0].mxu0
        %2898 = vmatprep.mubr.f32.mxu0 0.0
        %2899 = vmatmul.mubr.f32.gmra.mrb[0].mxu0 %v2790
        %v2900 = vpop.f32.mrb[0].mxu0
        %v2901 = vadd.f32 %v485, %v2900
        %v2902 = vpop.f32.mrb[0].mxu0
        %2903 = vmatprep.mubr.f32.mxu0 0.0
        %2904 = vmatmul.mubr.f32.gmra.mrb[0].mxu0 %v2791
        %v2905 = vpop.f32.mrb[0].mxu0
        %v2906 = vadd.f32 %v485, %v2905
        %v2907 = vpop.f32.mrb[0].mxu0
        %2908 = vmatprep.mubr.f32.mxu0 0.0
        %2909 = vmatmul.mubr.f32.gmra.mrb[0].mxu0 %v2792
        %v2910 = vpop.f32.mrb[0].mxu0
        %v2911 = vadd.f32 %v485, %v2910
        %v2912 = vpop.f32.mrb[0].mxu0
        %2913 = vmatprep.mubr.f32.mxu0 0.0
        %2914 = vmatmul.mubr.f32.gmra.mrb[0].mxu0 %v2793
        %v2915 = vpop.f32.mrb[0].mxu0
        %v2916 = vadd.f32 %v485, %v2915
        %v2917 = vpop.f32.mrb[0].mxu0
        %2918 = vmatprep.mubr.f32.mxu0 0.0
        %2919 = vmatmul.mubr.f32.gmra.mrb[0].mxu0 %v2794
        %v2920 = vpop.f32.mrb[0].mxu0
        %v2921 = vadd.f32 %v485, %v2920
        %v2922 = vpop.f32.mrb[0].mxu0
        %2923 = vmatprep.mubr.f32.mxu0 0.0
        %2924 = vmatmul.mubr.f32.gmra.mrb[0].mxu0 %v2795
        %v2925 = vpop.f32.mrb[0].mxu0
        %v2926 = vadd.f32 %v485, %v2925
        %v2927 = vpop.f32.mrb[0].mxu0
        %2928 = vmatprep.mubr.f32.mxu0 0.0
        %2929 = vmatmul.mubr.f32.gmra.mrb[0].mxu0 %v2796
        %v2930 = vpop.f32.mrb[0].mxu0
        %v2931 = vadd.f32 %v485, %v2930
        %v2932 = vpop.f32.mrb[0].mxu0
        %2933 = vmatprep.mubr.f32.mxu0 0.0
        %2934 = vmatmul.mubr.f32.gmra.mrb[0].mxu0 %v2797
        %v2935 = vpop.f32.mrb[0].mxu0
        %v2936 = vadd.f32 %v485, %v2935
        %v2937 = vpop.f32.mrb[0].mxu0
        %2938 = vmatprep.mubr.f32.mxu0 0.0
        %2939 = vmatmul.mubr.f32.gmra.mrb[0].mxu0 %v2798
        %v2940 = vpop.f32.mrb[0].mxu0
        %v2941 = vadd.f32 %v485, %v2940
        %v2942 = vpop.f32.mrb[0].mxu0
        %2943 = vdwg.mxu0
        %v2944 = vmax.f32 %v2866, 0.0
        %v2945 = vmax.f32 %v2871, 0.0
        %v2946 = vmax.f32 %v2876, 0.0
        %v2947 = vmax.f32 %v2881, 0.0
        %v2948 = vmax.f32 %v2886, 0.0
        %v2949 = vmax.f32 %v2891, 0.0
        %v2950 = vmax.f32 %v2896, 0.0
        %v2951 = vmax.f32 %v2901, 0.0
        %v2952 = vmax.f32 %v2906, 0.0
        %v2953 = vmax.f32 %v2911, 0.0
        %v2954 = vmax.f32 %v2916, 0.0
        %v2955 = vmax.f32 %v2921, 0.0
        %v2956 = vmax.f32 %v2926, 0.0
        %v2957 = vmax.f32 %v2931, 0.0
        %v2958 = vmax.f32 %v2936, 0.0
        %v2959 = vmax.f32 %v2941, 0.0
        %v2960 = vmax.f32 %v2766, %v2944
        %v2961 = vmax.f32 %v2767, %v2945
        %v2962 = vmax.f32 %v2768, %v2946
        %v2963 = vmax.f32 %v2769, %v2947
        %v2964 = vmax.f32 %v2770, %v2948
        %v2965 = vmax.f32 %v2771, %v2949
        %v2966 = vmax.f32 %v2772, %v2950
        %v2967 = vmax.f32 %v2773, %v2951
        %v2968 = vmax.f32 %v2774, %v2952
        %v2969 = vmax.f32 %v2775, %v2953
        %v2970 = vmax.f32 %v2776, %v2954
        %v2971 = vmax.f32 %v2777, %v2955
        %v2972 = vmax.f32 %v2778, %v2956
        %v2973 = vmax.f32 %v2779, %v2957
        %v2974 = vmax.f32 %v2780, %v2958
        %v2975 = vmax.f32 %v2781, %v2959
        %s2976 = scalar_lea.vmem %s447, 1664
        %v2977 = vld [vmem:[%s2976] sm:$0xff]
        %v2978 = vld [vmem:[%s2976 + $0x8] sm:$0xff]
        %v2979 = vld [vmem:[%s2976 + $0x10] sm:$0xff]
        %v2980 = vld [vmem:[%s2976 + $0x18] sm:$0xff]
        %v2981 = vld [vmem:[%s2976 + $0x20] sm:$0xff]
        %v2982 = vld [vmem:[%s2976 + $0x28] sm:$0xff]
        %v2983 = vld [vmem:[%s2976 + $0x30] sm:$0xff]
        %v2984 = vld [vmem:[%s2976 + $0x38] sm:$0xff]
        %v2985 = vld [vmem:[%s2976 + $0x40] sm:$0xff]
        %v2986 = vld [vmem:[%s2976 + $0x48] sm:$0xff]
        %v2987 = vld [vmem:[%s2976 + $0x50] sm:$0xff]
        %v2988 = vld [vmem:[%s2976 + $0x58] sm:$0xff]
        %v2989 = vld [vmem:[%s2976 + $0x60] sm:$0xff]
        %v2990 = vld [vmem:[%s2976 + $0x68] sm:$0xff]
        %v2991 = vld [vmem:[%s2976 + $0x70] sm:$0xff]
        %v2992 = vld [vmem:[%s2976 + $0x78] sm:$0xff]
        %2993 = vmatprep.subr.mxu0 0.0
        %2994 = vmatpush1.msra.mxu0 %v448
        %2995 = vmatprep.subr.mxu0 0.0
        %2996 = vmatpush1.msra.mxu0 %v449
        %2997 = vmatprep.subr.mxu0 0.0
        %2998 = vmatpush1.msra.mxu0 %v450
        %2999 = vmatprep.subr.mxu0 0.0
        %3000 = vmatpush1.msra.mxu0 %v451
        %3001 = vmatprep.subr.mxu0 0.0
        %3002 = vmatpush1.msra.mxu0 %v452
        %3003 = vmatprep.subr.mxu0 0.0
        %3004 = vmatpush1.msra.mxu0 %v453
        %3005 = vmatprep.subr.mxu0 0.0
        %3006 = vmatpush1.msra.mxu0 %v454
        %3007 = vmatprep.subr.mxu0 0.0
        %3008 = vmatpush1.msra.mxu0 %v455
        %3009 = vmatprep.subr.mxu0 0.0
        %3010 = vmatpush1.msra.mxu0 %v456
        %3011 = vmatprep.subr.mxu0 0.0
        %3012 = vmatpush1.msra.mxu0 %v457
        %3013 = vmatprep.subr.mxu0 0.0
        %3014 = vmatpush1.msra.mxu0 %v458
        %3015 = vmatprep.subr.mxu0 0.0
        %3016 = vmatpush1.msra.mxu0 %v459
        %3017 = vmatprep.subr.mxu0 0.0
        %3018 = vmatpush1.msra.mxu0 %v460
        %3019 = vmatprep.subr.mxu0 0.0
        %3020 = vmatpush1.msra.mxu0 %v461
        %3021 = vmatprep.subr.mxu0 0.0
        %3022 = vmatpush1.msra.mxu0 %v462
        %3023 = vmatprep.subr.mxu0 0.0
        %3024 = vmatpush1.msra.mxu0 %v463
        %3025 = vmatprep.subr.mxu0 0.0
        %3026 = vmatpush1.msra.mxu0 0.0
        %3027 = vmatprep.subr.mxu0 0.0
        %3028 = vmatpush1.msra.mxu0 0.0
        %3029 = vmatprep.subr.mxu0 0.0
        %3030 = vmatpush1.msra.mxu0 0.0
        %3031 = vmatprep.subr.mxu0 0.0
        %3032 = vmatpush1.msra.mxu0 0.0
        %3033 = vmatprep.subr.mxu0 0.0
        %3034 = vmatpush1.msra.mxu0 0.0
        %3035 = vmatprep.subr.mxu0 0.0
        %3036 = vmatpush1.msra.mxu0 0.0
        %3037 = vmatprep.subr.mxu0 0.0
        %3038 = vmatpush1.msra.mxu0 0.0
        %3039 = vmatprep.subr.mxu0 0.0
        %3040 = vmatpush1.msra.mxu0 0.0
        %3041 = vmatprep.subr.mxu0 0.0
        %3042 = vmatpush1.msra.mxu0 0.0
        %3043 = vmatprep.subr.mxu0 0.0
        %3044 = vmatpush1.msra.mxu0 0.0
        %3045 = vmatprep.subr.mxu0 0.0
        %3046 = vmatpush1.msra.mxu0 0.0
        %3047 = vmatprep.subr.mxu0 0.0
        %3048 = vmatpush1.msra.mxu0 0.0
        %3049 = vmatprep.subr.mxu0 0.0
        %3050 = vmatpush1.msra.mxu0 0.0
        %3051 = vmatprep.subr.mxu0 0.0
        %3052 = vmatpush1.msra.mxu0 0.0
        %3053 = vmatprep.subr.mxu0 0.0
        %3054 = vmatpush1.msra.mxu0 0.0
        %3055 = vmatprep.subr.mxu0 0.0
        %3056 = vmatpush1.msra.mxu0 0.0
        %3057 = vmatprep.mubr.f32.mxu0 0.0
        %3058 = vmatmul.mubr.f32.gmra.mrb[0].mxu0 %v2977
        %v3059 = vpop.f32.mrb[0].mxu0
        %v3060 = vadd.f32 %v485, %v3059
        %v3061 = vpop.f32.mrb[0].mxu0
        %3062 = vmatprep.mubr.f32.mxu0 0.0
        %3063 = vmatmul.mubr.f32.gmra.mrb[0].mxu0 %v2978
        %v3064 = vpop.f32.mrb[0].mxu0
        %v3065 = vadd.f32 %v485, %v3064
        %v3066 = vpop.f32.mrb[0].mxu0
        %3067 = vmatprep.mubr.f32.mxu0 0.0
        %3068 = vmatmul.mubr.f32.gmra.mrb[0].mxu0 %v2979
        %v3069 = vpop.f32.mrb[0].mxu0
        %v3070 = vadd.f32 %v485, %v3069
        %v3071 = vpop.f32.mrb[0].mxu0
        %3072 = vmatprep.mubr.f32.mxu0 0.0
        %3073 = vmatmul.mubr.f32.gmra.mrb[0].mxu0 %v2980
        %v3074 = vpop.f32.mrb[0].mxu0
        %v3075 = vadd.f32 %v485, %v3074
        %v3076 = vpop.f32.mrb[0].mxu0
        %3077 = vmatprep.mubr.f32.mxu0 0.0
        %3078 = vmatmul.mubr.f32.gmra.mrb[0].mxu0 %v2981
        %v3079 = vpop.f32.mrb[0].mxu0
        %v3080 = vadd.f32 %v485, %v3079
        %v3081 = vpop.f32.mrb[0].mxu0
        %3082 = vmatprep.mubr.f32.mxu0 0.0
        %3083 = vmatmul.mubr.f32.gmra.mrb[0].mxu0 %v2982
        %v3084 = vpop.f32.mrb[0].mxu0
        %v3085 = vadd.f32 %v485, %v3084
        %v3086 = vpop.f32.mrb[0].mxu0
        %3087 = vmatprep.mubr.f32.mxu0 0.0
        %3088 = vmatmul.mubr.f32.gmra.mrb[0].mxu0 %v2983
        %v3089 = vpop.f32.mrb[0].mxu0
        %v3090 = vadd.f32 %v485, %v3089
        %v3091 = vpop.f32.mrb[0].mxu0
        %3092 = vmatprep.mubr.f32.mxu0 0.0
        %3093 = vmatmul.mubr.f32.gmra.mrb[0].mxu0 %v2984
        %v3094 = vpop.f32.mrb[0].mxu0
        %v3095 = vadd.f32 %v485, %v3094
        %v3096 = vpop.f32.mrb[0].mxu0
        %3097 = vmatprep.mubr.f32.mxu0 0.0
        %3098 = vmatmul.mubr.f32.gmra.mrb[0].mxu0 %v2985
        %v3099 = vpop.f32.mrb[0].mxu0
        %v3100 = vadd.f32 %v485, %v3099
        %v3101 = vpop.f32.mrb[0].mxu0
        %3102 = vmatprep.mubr.f32.mxu0 0.0
        %3103 = vmatmul.mubr.f32.gmra.mrb[0].mxu0 %v2986
        %v3104 = vpop.f32.mrb[0].mxu0
        %v3105 = vadd.f32 %v485, %v3104
        %v3106 = vpop.f32.mrb[0].mxu0
        %3107 = vmatprep.mubr.f32.mxu0 0.0
        %3108 = vmatmul.mubr.f32.gmra.mrb[0].mxu0 %v2987
        %v3109 = vpop.f32.mrb[0].mxu0
        %v3110 = vadd.f32 %v485, %v3109
        %v3111 = vpop.f32.mrb[0].mxu0
        %3112 = vmatprep.mubr.f32.mxu0 0.0
        %3113 = vmatmul.mubr.f32.gmra.mrb[0].mxu0 %v2988
        %v3114 = vpop.f32.mrb[0].mxu0
        %v3115 = vadd.f32 %v485, %v3114
        %v3116 = vpop.f32.mrb[0].mxu0
        %3117 = vmatprep.mubr.f32.mxu0 0.0
        %3118 = vmatmul.mubr.f32.gmra.mrb[0].mxu0 %v2989
        %v3119 = vpop.f32.mrb[0].mxu0
        %v3120 = vadd.f32 %v485, %v3119
        %v3121 = vpop.f32.mrb[0].mxu0
        %3122 = vmatprep.mubr.f32.mxu0 0.0
        %3123 = vmatmul.mubr.f32.gmra.mrb[0].mxu0 %v2990
        %v3124 = vpop.f32.mrb[0].mxu0
        %v3125 = vadd.f32 %v485, %v3124
        %v3126 = vpop.f32.mrb[0].mxu0
        %3127 = vmatprep.mubr.f32.mxu0 0.0
        %3128 = vmatmul.mubr.f32.gmra.mrb[0].mxu0 %v2991
        %v3129 = vpop.f32.mrb[0].mxu0
        %v3130 = vadd.f32 %v485, %v3129
        %v3131 = vpop.f32.mrb[0].mxu0
        %3132 = vmatprep.mubr.f32.mxu0 0.0
        %3133 = vmatmul.mubr.f32.gmra.mrb[0].mxu0 %v2992
        %v3134 = vpop.f32.mrb[0].mxu0
        %v3135 = vadd.f32 %v485, %v3134
        %v3136 = vpop.f32.mrb[0].mxu0
        %3137 = vdwg.mxu0
        %v3138 = vmax.f32 %v3060, 0.0
        %v3139 = vmax.f32 %v3065, 0.0
        %v3140 = vmax.f32 %v3070, 0.0
        %v3141 = vmax.f32 %v3075, 0.0
        %v3142 = vmax.f32 %v3080, 0.0
        %v3143 = vmax.f32 %v3085, 0.0
        %v3144 = vmax.f32 %v3090, 0.0
        %v3145 = vmax.f32 %v3095, 0.0
        %v3146 = vmax.f32 %v3100, 0.0
        %v3147 = vmax.f32 %v3105, 0.0
        %v3148 = vmax.f32 %v3110, 0.0
        %v3149 = vmax.f32 %v3115, 0.0
        %v3150 = vmax.f32 %v3120, 0.0
        %v3151 = vmax.f32 %v3125, 0.0
        %v3152 = vmax.f32 %v3130, 0.0
        %v3153 = vmax.f32 %v3135, 0.0
        %v3154 = vmax.f32 %v2960, %v3138
        %v3155 = vmax.f32 %v2961, %v3139
        %v3156 = vmax.f32 %v2962, %v3140
        %v3157 = vmax.f32 %v2963, %v3141
        %v3158 = vmax.f32 %v2964, %v3142
        %v3159 = vmax.f32 %v2965, %v3143
        %v3160 = vmax.f32 %v2966, %v3144
        %v3161 = vmax.f32 %v2967, %v3145
        %v3162 = vmax.f32 %v2968, %v3146
        %v3163 = vmax.f32 %v2969, %v3147
        %v3164 = vmax.f32 %v2970, %v3148
        %v3165 = vmax.f32 %v2971, %v3149
        %v3166 = vmax.f32 %v2972, %v3150
        %v3167 = vmax.f32 %v2973, %v3151
        %v3168 = vmax.f32 %v2974, %v3152
        %v3169 = vmax.f32 %v2975, %v3153
        %s3170 = scalar_lea.vmem %s447, 1792
        %v3171 = vld [vmem:[%s3170] sm:$0xff]
        %v3172 = vld [vmem:[%s3170 + $0x8] sm:$0xff]
        %v3173 = vld [vmem:[%s3170 + $0x10] sm:$0xff]
        %v3174 = vld [vmem:[%s3170 + $0x18] sm:$0xff]
        %v3175 = vld [vmem:[%s3170 + $0x20] sm:$0xff]
        %v3176 = vld [vmem:[%s3170 + $0x28] sm:$0xff]
        %v3177 = vld [vmem:[%s3170 + $0x30] sm:$0xff]
        %v3178 = vld [vmem:[%s3170 + $0x38] sm:$0xff]
        %v3179 = vld [vmem:[%s3170 + $0x40] sm:$0xff]
        %v3180 = vld [vmem:[%s3170 + $0x48] sm:$0xff]
        %v3181 = vld [vmem:[%s3170 + $0x50] sm:$0xff]
        %v3182 = vld [vmem:[%s3170 + $0x58] sm:$0xff]
        %v3183 = vld [vmem:[%s3170 + $0x60] sm:$0xff]
        %v3184 = vld [vmem:[%s3170 + $0x68] sm:$0xff]
        %v3185 = vld [vmem:[%s3170 + $0x70] sm:$0xff]
        %v3186 = vld [vmem:[%s3170 + $0x78] sm:$0xff]
        %3187 = vmatprep.subr.mxu0 0.0
        %3188 = vmatpush1.msra.mxu0 %v448
        %3189 = vmatprep.subr.mxu0 0.0
        %3190 = vmatpush1.msra.mxu0 %v449
        %3191 = vmatprep.subr.mxu0 0.0
        %3192 = vmatpush1.msra.mxu0 %v450
        %3193 = vmatprep.subr.mxu0 0.0
        %3194 = vmatpush1.msra.mxu0 %v451
        %3195 = vmatprep.subr.mxu0 0.0
        %3196 = vmatpush1.msra.mxu0 %v452
        %3197 = vmatprep.subr.mxu0 0.0
        %3198 = vmatpush1.msra.mxu0 %v453
        %3199 = vmatprep.subr.mxu0 0.0
        %3200 = vmatpush1.msra.mxu0 %v454
        %3201 = vmatprep.subr.mxu0 0.0
        %3202 = vmatpush1.msra.mxu0 %v455
        %3203 = vmatprep.subr.mxu0 0.0
        %3204 = vmatpush1.msra.mxu0 %v456
        %3205 = vmatprep.subr.mxu0 0.0
        %3206 = vmatpush1.msra.mxu0 %v457
        %3207 = vmatprep.subr.mxu0 0.0
        %3208 = vmatpush1.msra.mxu0 %v458
        %3209 = vmatprep.subr.mxu0 0.0
        %3210 = vmatpush1.msra.mxu0 %v459
        %3211 = vmatprep.subr.mxu0 0.0
        %3212 = vmatpush1.msra.mxu0 %v460
        %3213 = vmatprep.subr.mxu0 0.0
        %3214 = vmatpush1.msra.mxu0 %v461
        %3215 = vmatprep.subr.mxu0 0.0
        %3216 = vmatpush1.msra.mxu0 %v462
        %3217 = vmatprep.subr.mxu0 0.0
        %3218 = vmatpush1.msra.mxu0 %v463
        %3219 = vmatprep.subr.mxu0 0.0
        %3220 = vmatpush1.msra.mxu0 0.0
        %3221 = vmatprep.subr.mxu0 0.0
        %3222 = vmatpush1.msra.mxu0 0.0
        %3223 = vmatprep.subr.mxu0 0.0
        %3224 = vmatpush1.msra.mxu0 0.0
        %3225 = vmatprep.subr.mxu0 0.0
        %3226 = vmatpush1.msra.mxu0 0.0
        %3227 = vmatprep.subr.mxu0 0.0
        %3228 = vmatpush1.msra.mxu0 0.0
        %3229 = vmatprep.subr.mxu0 0.0
        %3230 = vmatpush1.msra.mxu0 0.0
        %3231 = vmatprep.subr.mxu0 0.0
        %3232 = vmatpush1.msra.mxu0 0.0
        %3233 = vmatprep.subr.mxu0 0.0
        %3234 = vmatpush1.msra.mxu0 0.0
        %3235 = vmatprep.subr.mxu0 0.0
        %3236 = vmatpush1.msra.mxu0 0.0
        %3237 = vmatprep.subr.mxu0 0.0
        %3238 = vmatpush1.msra.mxu0 0.0
        %3239 = vmatprep.subr.mxu0 0.0
        %3240 = vmatpush1.msra.mxu0 0.0
        %3241 = vmatprep.subr.mxu0 0.0
        %3242 = vmatpush1.msra.mxu0 0.0
        %3243 = vmatprep.subr.mxu0 0.0
        %3244 = vmatpush1.msra.mxu0 0.0
        %3245 = vmatprep.subr.mxu0 0.0
        %3246 = vmatpush1.msra.mxu0 0.0
        %3247 = vmatprep.subr.mxu0 0.0
        %3248 = vmatpush1.msra.mxu0 0.0
        %3249 = vmatprep.subr.mxu0 0.0
        %3250 = vmatpush1.msra.mxu0 0.0
        %3251 = vmatprep.mubr.f32.mxu0 0.0
        %3252 = vmatmul.mubr.f32.gmra.mrb[0].mxu0 %v3171
        %v3253 = vpop.f32.mrb[0].mxu0
        %v3254 = vadd.f32 %v485, %v3253
        %v3255 = vpop.f32.mrb[0].mxu0
        %3256 = vmatprep.mubr.f32.mxu0 0.0
        %3257 = vmatmul.mubr.f32.gmra.mrb[0].mxu0 %v3172
        %v3258 = vpop.f32.mrb[0].mxu0
        %v3259 = vadd.f32 %v485, %v3258
        %v3260 = vpop.f32.mrb[0].mxu0
        %3261 = vmatprep.mubr.f32.mxu0 0.0
        %3262 = vmatmul.mubr.f32.gmra.mrb[0].mxu0 %v3173
        %v3263 = vpop.f32.mrb[0].mxu0
        %v3264 = vadd.f32 %v485, %v3263
        %v3265 = vpop.f32.mrb[0].mxu0
        %3266 = vmatprep.mubr.f32.mxu0 0.0
        %3267 = vmatmul.mubr.f32.gmra.mrb[0].mxu0 %v3174
        %v3268 = vpop.f32.mrb[0].mxu0
        %v3269 = vadd.f32 %v485, %v3268
        %v3270 = vpop.f32.mrb[0].mxu0
        %3271 = vmatprep.mubr.f32.mxu0 0.0
        %3272 = vmatmul.mubr.f32.gmra.mrb[0].mxu0 %v3175
        %v3273 = vpop.f32.mrb[0].mxu0
        %v3274 = vadd.f32 %v485, %v3273
        %v3275 = vpop.f32.mrb[0].mxu0
        %3276 = vmatprep.mubr.f32.mxu0 0.0
        %3277 = vmatmul.mubr.f32.gmra.mrb[0].mxu0 %v3176
        %v3278 = vpop.f32.mrb[0].mxu0
        %v3279 = vadd.f32 %v485, %v3278
        %v3280 = vpop.f32.mrb[0].mxu0
        %3281 = vmatprep.mubr.f32.mxu0 0.0
        %3282 = vmatmul.mubr.f32.gmra.mrb[0].mxu0 %v3177
        %v3283 = vpop.f32.mrb[0].mxu0
        %v3284 = vadd.f32 %v485, %v3283
        %v3285 = vpop.f32.mrb[0].mxu0
        %3286 = vmatprep.mubr.f32.mxu0 0.0
        %3287 = vmatmul.mubr.f32.gmra.mrb[0].mxu0 %v3178
        %v3288 = vpop.f32.mrb[0].mxu0
        %v3289 = vadd.f32 %v485, %v3288
        %v3290 = vpop.f32.mrb[0].mxu0
        %3291 = vmatprep.mubr.f32.mxu0 0.0
        %3292 = vmatmul.mubr.f32.gmra.mrb[0].mxu0 %v3179
        %v3293 = vpop.f32.mrb[0].mxu0
        %v3294 = vadd.f32 %v485, %v3293
        %v3295 = vpop.f32.mrb[0].mxu0
        %3296 = vmatprep.mubr.f32.mxu0 0.0
        %3297 = vmatmul.mubr.f32.gmra.mrb[0].mxu0 %v3180
        %v3298 = vpop.f32.mrb[0].mxu0
        %v3299 = vadd.f32 %v485, %v3298
        %v3300 = vpop.f32.mrb[0].mxu0
        %3301 = vmatprep.mubr.f32.mxu0 0.0
        %3302 = vmatmul.mubr.f32.gmra.mrb[0].mxu0 %v3181
        %v3303 = vpop.f32.mrb[0].mxu0
        %v3304 = vadd.f32 %v485, %v3303
        %v3305 = vpop.f32.mrb[0].mxu0
        %3306 = vmatprep.mubr.f32.mxu0 0.0
        %3307 = vmatmul.mubr.f32.gmra.mrb[0].mxu0 %v3182
        %v3308 = vpop.f32.mrb[0].mxu0
        %v3309 = vadd.f32 %v485, %v3308
        %v3310 = vpop.f32.mrb[0].mxu0
        %3311 = vmatprep.mubr.f32.mxu0 0.0
        %3312 = vmatmul.mubr.f32.gmra.mrb[0].mxu0 %v3183
        %v3313 = vpop.f32.mrb[0].mxu0
        %v3314 = vadd.f32 %v485, %v3313
        %v3315 = vpop.f32.mrb[0].mxu0
        %3316 = vmatprep.mubr.f32.mxu0 0.0
        %3317 = vmatmul.mubr.f32.gmra.mrb[0].mxu0 %v3184
        %v3318 = vpop.f32.mrb[0].mxu0
        %v3319 = vadd.f32 %v485, %v3318
        %v3320 = vpop.f32.mrb[0].mxu0
        %3321 = vmatprep.mubr.f32.mxu0 0.0
        %3322 = vmatmul.mubr.f32.gmra.mrb[0].mxu0 %v3185
        %v3323 = vpop.f32.mrb[0].mxu0
        %v3324 = vadd.f32 %v485, %v3323
        %v3325 = vpop.f32.mrb[0].mxu0
        %3326 = vmatprep.mubr.f32.mxu0 0.0
        %3327 = vmatmul.mubr.f32.gmra.mrb[0].mxu0 %v3186
        %v3328 = vpop.f32.mrb[0].mxu0
        %v3329 = vadd.f32 %v485, %v3328
        %v3330 = vpop.f32.mrb[0].mxu0
        %3331 = vdwg.mxu0
        %v3332 = vmax.f32 %v3254, 0.0
        %v3333 = vmax.f32 %v3259, 0.0
        %v3334 = vmax.f32 %v3264, 0.0
        %v3335 = vmax.f32 %v3269, 0.0
        %v3336 = vmax.f32 %v3274, 0.0
        %v3337 = vmax.f32 %v3279, 0.0
        %v3338 = vmax.f32 %v3284, 0.0
        %v3339 = vmax.f32 %v3289, 0.0
        %v3340 = vmax.f32 %v3294, 0.0
        %v3341 = vmax.f32 %v3299, 0.0
        %v3342 = vmax.f32 %v3304, 0.0
        %v3343 = vmax.f32 %v3309, 0.0
        %v3344 = vmax.f32 %v3314, 0.0
        %v3345 = vmax.f32 %v3319, 0.0
        %v3346 = vmax.f32 %v3324, 0.0
        %v3347 = vmax.f32 %v3329, 0.0
        %v3348 = vmax.f32 %v3154, %v3332
        %v3349 = vmax.f32 %v3155, %v3333
        %v3350 = vmax.f32 %v3156, %v3334
        %v3351 = vmax.f32 %v3157, %v3335
        %v3352 = vmax.f32 %v3158, %v3336
        %v3353 = vmax.f32 %v3159, %v3337
        %v3354 = vmax.f32 %v3160, %v3338
        %v3355 = vmax.f32 %v3161, %v3339
        %v3356 = vmax.f32 %v3162, %v3340
        %v3357 = vmax.f32 %v3163, %v3341
        %v3358 = vmax.f32 %v3164, %v3342
        %v3359 = vmax.f32 %v3165, %v3343
        %v3360 = vmax.f32 %v3166, %v3344
        %v3361 = vmax.f32 %v3167, %v3345
        %v3362 = vmax.f32 %v3168, %v3346
        %v3363 = vmax.f32 %v3169, %v3347
        %s3364 = scalar_lea.vmem %s447, 1920
        %v3365 = vld [vmem:[%s3364] sm:$0xff]
        %v3366 = vld [vmem:[%s3364 + $0x8] sm:$0xff]
        %v3367 = vld [vmem:[%s3364 + $0x10] sm:$0xff]
        %v3368 = vld [vmem:[%s3364 + $0x18] sm:$0xff]
        %v3369 = vld [vmem:[%s3364 + $0x20] sm:$0xff]
        %v3370 = vld [vmem:[%s3364 + $0x28] sm:$0xff]
        %v3371 = vld [vmem:[%s3364 + $0x30] sm:$0xff]
        %v3372 = vld [vmem:[%s3364 + $0x38] sm:$0xff]
        %v3373 = vld [vmem:[%s3364 + $0x40] sm:$0xff]
        %v3374 = vld [vmem:[%s3364 + $0x48] sm:$0xff]
        %v3375 = vld [vmem:[%s3364 + $0x50] sm:$0xff]
        %v3376 = vld [vmem:[%s3364 + $0x58] sm:$0xff]
        %v3377 = vld [vmem:[%s3364 + $0x60] sm:$0xff]
        %v3378 = vld [vmem:[%s3364 + $0x68] sm:$0xff]
        %v3379 = vld [vmem:[%s3364 + $0x70] sm:$0xff]
        %v3380 = vld [vmem:[%s3364 + $0x78] sm:$0xff]
        %3381 = vmatprep.subr.mxu0 0.0
        %3382 = vmatpush1.msra.mxu0 %v448
        %3383 = vmatprep.subr.mxu0 0.0
        %3384 = vmatpush1.msra.mxu0 %v449
        %3385 = vmatprep.subr.mxu0 0.0
        %3386 = vmatpush1.msra.mxu0 %v450
        %3387 = vmatprep.subr.mxu0 0.0
        %3388 = vmatpush1.msra.mxu0 %v451
        %3389 = vmatprep.subr.mxu0 0.0
        %3390 = vmatpush1.msra.mxu0 %v452
        %3391 = vmatprep.subr.mxu0 0.0
        %3392 = vmatpush1.msra.mxu0 %v453
        %3393 = vmatprep.subr.mxu0 0.0
        %3394 = vmatpush1.msra.mxu0 %v454
        %3395 = vmatprep.subr.mxu0 0.0
        %3396 = vmatpush1.msra.mxu0 %v455
        %3397 = vmatprep.subr.mxu0 0.0
        %3398 = vmatpush1.msra.mxu0 %v456
        %3399 = vmatprep.subr.mxu0 0.0
        %3400 = vmatpush1.msra.mxu0 %v457
        %3401 = vmatprep.subr.mxu0 0.0
        %3402 = vmatpush1.msra.mxu0 %v458
        %3403 = vmatprep.subr.mxu0 0.0
        %3404 = vmatpush1.msra.mxu0 %v459
        %3405 = vmatprep.subr.mxu0 0.0
        %3406 = vmatpush1.msra.mxu0 %v460
        %3407 = vmatprep.subr.mxu0 0.0
        %3408 = vmatpush1.msra.mxu0 %v461
        %3409 = vmatprep.subr.mxu0 0.0
        %3410 = vmatpush1.msra.mxu0 %v462
        %3411 = vmatprep.subr.mxu0 0.0
        %3412 = vmatpush1.msra.mxu0 %v463
        %3413 = vmatprep.subr.mxu0 0.0
        %3414 = vmatpush1.msra.mxu0 0.0
        %3415 = vmatprep.subr.mxu0 0.0
        %3416 = vmatpush1.msra.mxu0 0.0
        %3417 = vmatprep.subr.mxu0 0.0
        %3418 = vmatpush1.msra.mxu0 0.0
        %3419 = vmatprep.subr.mxu0 0.0
        %3420 = vmatpush1.msra.mxu0 0.0
        %3421 = vmatprep.subr.mxu0 0.0
        %3422 = vmatpush1.msra.mxu0 0.0
        %3423 = vmatprep.subr.mxu0 0.0
        %3424 = vmatpush1.msra.mxu0 0.0
        %3425 = vmatprep.subr.mxu0 0.0
        %3426 = vmatpush1.msra.mxu0 0.0
        %3427 = vmatprep.subr.mxu0 0.0
        %3428 = vmatpush1.msra.mxu0 0.0
        %3429 = vmatprep.subr.mxu0 0.0
        %3430 = vmatpush1.msra.mxu0 0.0
        %3431 = vmatprep.subr.mxu0 0.0
        %3432 = vmatpush1.msra.mxu0 0.0
        %3433 = vmatprep.subr.mxu0 0.0
        %3434 = vmatpush1.msra.mxu0 0.0
        %3435 = vmatprep.subr.mxu0 0.0
        %3436 = vmatpush1.msra.mxu0 0.0
        %3437 = vmatprep.subr.mxu0 0.0
        %3438 = vmatpush1.msra.mxu0 0.0
        %3439 = vmatprep.subr.mxu0 0.0
        %3440 = vmatpush1.msra.mxu0 0.0
        %3441 = vmatprep.subr.mxu0 0.0
        %3442 = vmatpush1.msra.mxu0 0.0
        %3443 = vmatprep.subr.mxu0 0.0
        %3444 = vmatpush1.msra.mxu0 0.0
        %3445 = vmatprep.mubr.f32.mxu0 0.0
        %3446 = vmatmul.mubr.f32.gmra.mrb[0].mxu0 %v3365
        %v3447 = vpop.f32.mrb[0].mxu0
        %v3448 = vadd.f32 %v485, %v3447
        %v3449 = vpop.f32.mrb[0].mxu0
        %3450 = vmatprep.mubr.f32.mxu0 0.0
        %3451 = vmatmul.mubr.f32.gmra.mrb[0].mxu0 %v3366
        %v3452 = vpop.f32.mrb[0].mxu0
        %v3453 = vadd.f32 %v485, %v3452
        %v3454 = vpop.f32.mrb[0].mxu0
        %3455 = vmatprep.mubr.f32.mxu0 0.0
        %3456 = vmatmul.mubr.f32.gmra.mrb[0].mxu0 %v3367
        %v3457 = vpop.f32.mrb[0].mxu0
        %v3458 = vadd.f32 %v485, %v3457
        %v3459 = vpop.f32.mrb[0].mxu0
        %3460 = vmatprep.mubr.f32.mxu0 0.0
        %3461 = vmatmul.mubr.f32.gmra.mrb[0].mxu0 %v3368
        %v3462 = vpop.f32.mrb[0].mxu0
        %v3463 = vadd.f32 %v485, %v3462
        %v3464 = vpop.f32.mrb[0].mxu0
        %3465 = vmatprep.mubr.f32.mxu0 0.0
        %3466 = vmatmul.mubr.f32.gmra.mrb[0].mxu0 %v3369
        %v3467 = vpop.f32.mrb[0].mxu0
        %v3468 = vadd.f32 %v485, %v3467
        %v3469 = vpop.f32.mrb[0].mxu0
        %3470 = vmatprep.mubr.f32.mxu0 0.0
        %3471 = vmatmul.mubr.f32.gmra.mrb[0].mxu0 %v3370
        %v3472 = vpop.f32.mrb[0].mxu0
        %v3473 = vadd.f32 %v485, %v3472
        %v3474 = vpop.f32.mrb[0].mxu0
        %3475 = vmatprep.mubr.f32.mxu0 0.0
        %3476 = vmatmul.mubr.f32.gmra.mrb[0].mxu0 %v3371
        %v3477 = vpop.f32.mrb[0].mxu0
        %v3478 = vadd.f32 %v485, %v3477
        %v3479 = vpop.f32.mrb[0].mxu0
        %3480 = vmatprep.mubr.f32.mxu0 0.0
        %3481 = vmatmul.mubr.f32.gmra.mrb[0].mxu0 %v3372
        %v3482 = vpop.f32.mrb[0].mxu0
        %v3483 = vadd.f32 %v485, %v3482
        %v3484 = vpop.f32.mrb[0].mxu0
        %3485 = vmatprep.mubr.f32.mxu0 0.0
        %3486 = vmatmul.mubr.f32.gmra.mrb[0].mxu0 %v3373
        %v3487 = vpop.f32.mrb[0].mxu0
        %v3488 = vadd.f32 %v485, %v3487
        %v3489 = vpop.f32.mrb[0].mxu0
        %3490 = vmatprep.mubr.f32.mxu0 0.0
        %3491 = vmatmul.mubr.f32.gmra.mrb[0].mxu0 %v3374
        %v3492 = vpop.f32.mrb[0].mxu0
        %v3493 = vadd.f32 %v485, %v3492
        %v3494 = vpop.f32.mrb[0].mxu0
        %3495 = vmatprep.mubr.f32.mxu0 0.0
        %3496 = vmatmul.mubr.f32.gmra.mrb[0].mxu0 %v3375
        %v3497 = vpop.f32.mrb[0].mxu0
        %v3498 = vadd.f32 %v485, %v3497
        %v3499 = vpop.f32.mrb[0].mxu0
        %3500 = vmatprep.mubr.f32.mxu0 0.0
        %3501 = vmatmul.mubr.f32.gmra.mrb[0].mxu0 %v3376
        %v3502 = vpop.f32.mrb[0].mxu0
        %v3503 = vadd.f32 %v485, %v3502
        %v3504 = vpop.f32.mrb[0].mxu0
        %3505 = vmatprep.mubr.f32.mxu0 0.0
        %3506 = vmatmul.mubr.f32.gmra.mrb[0].mxu0 %v3377
        %v3507 = vpop.f32.mrb[0].mxu0
        %v3508 = vadd.f32 %v485, %v3507
        %v3509 = vpop.f32.mrb[0].mxu0
        %3510 = vmatprep.mubr.f32.mxu0 0.0
        %3511 = vmatmul.mubr.f32.gmra.mrb[0].mxu0 %v3378
        %v3512 = vpop.f32.mrb[0].mxu0
        %v3513 = vadd.f32 %v485, %v3512
        %v3514 = vpop.f32.mrb[0].mxu0
        %3515 = vmatprep.mubr.f32.mxu0 0.0
        %3516 = vmatmul.mubr.f32.gmra.mrb[0].mxu0 %v3379
        %v3517 = vpop.f32.mrb[0].mxu0
        %v3518 = vadd.f32 %v485, %v3517
        %v3519 = vpop.f32.mrb[0].mxu0
        %3520 = vmatprep.mubr.f32.mxu0 0.0
        %3521 = vmatmul.mubr.f32.gmra.mrb[0].mxu0 %v3380
        %v3522 = vpop.f32.mrb[0].mxu0
        %v3523 = vadd.f32 %v485, %v3522
        %v3524 = vpop.f32.mrb[0].mxu0
        %3525 = vdwg.mxu0
        %v3526 = vmax.f32 %v3448, 0.0
        %v3527 = vmax.f32 %v3453, 0.0
        %v3528 = vmax.f32 %v3458, 0.0
        %v3529 = vmax.f32 %v3463, 0.0
        %v3530 = vmax.f32 %v3468, 0.0
        %v3531 = vmax.f32 %v3473, 0.0
        %v3532 = vmax.f32 %v3478, 0.0
        %v3533 = vmax.f32 %v3483, 0.0
        %v3534 = vmax.f32 %v3488, 0.0
        %v3535 = vmax.f32 %v3493, 0.0
        %v3536 = vmax.f32 %v3498, 0.0
        %v3537 = vmax.f32 %v3503, 0.0
        %v3538 = vmax.f32 %v3508, 0.0
        %v3539 = vmax.f32 %v3513, 0.0
        %v3540 = vmax.f32 %v3518, 0.0
        %v3541 = vmax.f32 %v3523, 0.0
        %v3542 = vmax.f32 %v3348, %v3526
        %v3543 = vmax.f32 %v3349, %v3527
        %v3544 = vmax.f32 %v3350, %v3528
        %v3545 = vmax.f32 %v3351, %v3529
        %v3546 = vmax.f32 %v3352, %v3530
        %v3547 = vmax.f32 %v3353, %v3531
        %v3548 = vmax.f32 %v3354, %v3532
        %v3549 = vmax.f32 %v3355, %v3533
        %v3550 = vmax.f32 %v3356, %v3534
        %v3551 = vmax.f32 %v3357, %v3535
        %v3552 = vmax.f32 %v3358, %v3536
        %v3553 = vmax.f32 %v3359, %v3537
        %v3554 = vmax.f32 %v3360, %v3538
        %v3555 = vmax.f32 %v3361, %v3539
        %v3556 = vmax.f32 %v3362, %v3540
        %v3557 = vmax.f32 %v3363, %v3541
        %s3558 = scalar_lea.vmem %s447, 2048
        %v3559 = vld [vmem:[%s3558] sm:$0xff]
        %v3560 = vld [vmem:[%s3558 + $0x8] sm:$0xff]
        %v3561 = vld [vmem:[%s3558 + $0x10] sm:$0xff]
        %v3562 = vld [vmem:[%s3558 + $0x18] sm:$0xff]
        %v3563 = vld [vmem:[%s3558 + $0x20] sm:$0xff]
        %v3564 = vld [vmem:[%s3558 + $0x28] sm:$0xff]
        %v3565 = vld [vmem:[%s3558 + $0x30] sm:$0xff]
        %v3566 = vld [vmem:[%s3558 + $0x38] sm:$0xff]
        %v3567 = vld [vmem:[%s3558 + $0x40] sm:$0xff]
        %v3568 = vld [vmem:[%s3558 + $0x48] sm:$0xff]
        %v3569 = vld [vmem:[%s3558 + $0x50] sm:$0xff]
        %v3570 = vld [vmem:[%s3558 + $0x58] sm:$0xff]
        %v3571 = vld [vmem:[%s3558 + $0x60] sm:$0xff]
        %v3572 = vld [vmem:[%s3558 + $0x68] sm:$0xff]
        %v3573 = vld [vmem:[%s3558 + $0x70] sm:$0xff]
        %v3574 = vld [vmem:[%s3558 + $0x78] sm:$0xff]
        %3575 = vmatprep.subr.mxu0 0.0
        %3576 = vmatpush1.msra.mxu0 %v448
        %3577 = vmatprep.subr.mxu0 0.0
        %3578 = vmatpush1.msra.mxu0 %v449
        %3579 = vmatprep.subr.mxu0 0.0
        %3580 = vmatpush1.msra.mxu0 %v450
        %3581 = vmatprep.subr.mxu0 0.0
        %3582 = vmatpush1.msra.mxu0 %v451
        %3583 = vmatprep.subr.mxu0 0.0
        %3584 = vmatpush1.msra.mxu0 %v452
        %3585 = vmatprep.subr.mxu0 0.0
        %3586 = vmatpush1.msra.mxu0 %v453
        %3587 = vmatprep.subr.mxu0 0.0
        %3588 = vmatpush1.msra.mxu0 %v454
        %3589 = vmatprep.subr.mxu0 0.0
        %3590 = vmatpush1.msra.mxu0 %v455
        %3591 = vmatprep.subr.mxu0 0.0
        %3592 = vmatpush1.msra.mxu0 %v456
        %3593 = vmatprep.subr.mxu0 0.0
        %3594 = vmatpush1.msra.mxu0 %v457
        %3595 = vmatprep.subr.mxu0 0.0
        %3596 = vmatpush1.msra.mxu0 %v458
        %3597 = vmatprep.subr.mxu0 0.0
        %3598 = vmatpush1.msra.mxu0 %v459
        %3599 = vmatprep.subr.mxu0 0.0
        %3600 = vmatpush1.msra.mxu0 %v460
        %3601 = vmatprep.subr.mxu0 0.0
        %3602 = vmatpush1.msra.mxu0 %v461
        %3603 = vmatprep.subr.mxu0 0.0
        %3604 = vmatpush1.msra.mxu0 %v462
        %3605 = vmatprep.subr.mxu0 0.0
        %3606 = vmatpush1.msra.mxu0 %v463
        %3607 = vmatprep.subr.mxu0 0.0
        %3608 = vmatpush1.msra.mxu0 0.0
        %3609 = vmatprep.subr.mxu0 0.0
        %3610 = vmatpush1.msra.mxu0 0.0
        %3611 = vmatprep.subr.mxu0 0.0
        %3612 = vmatpush1.msra.mxu0 0.0
        %3613 = vmatprep.subr.mxu0 0.0
        %3614 = vmatpush1.msra.mxu0 0.0
        %3615 = vmatprep.subr.mxu0 0.0
        %3616 = vmatpush1.msra.mxu0 0.0
        %3617 = vmatprep.subr.mxu0 0.0
        %3618 = vmatpush1.msra.mxu0 0.0
        %3619 = vmatprep.subr.mxu0 0.0
        %3620 = vmatpush1.msra.mxu0 0.0
        %3621 = vmatprep.subr.mxu0 0.0
        %3622 = vmatpush1.msra.mxu0 0.0
        %3623 = vmatprep.subr.mxu0 0.0
        %3624 = vmatpush1.msra.mxu0 0.0
        %3625 = vmatprep.subr.mxu0 0.0
        %3626 = vmatpush1.msra.mxu0 0.0
        %3627 = vmatprep.subr.mxu0 0.0
        %3628 = vmatpush1.msra.mxu0 0.0
        %3629 = vmatprep.subr.mxu0 0.0
        %3630 = vmatpush1.msra.mxu0 0.0
        %3631 = vmatprep.subr.mxu0 0.0
        %3632 = vmatpush1.msra.mxu0 0.0
        %3633 = vmatprep.subr.mxu0 0.0
        %3634 = vmatpush1.msra.mxu0 0.0
        %3635 = vmatprep.subr.mxu0 0.0
        %3636 = vmatpush1.msra.mxu0 0.0
        %3637 = vmatprep.subr.mxu0 0.0
        %3638 = vmatpush1.msra.mxu0 0.0
        %3639 = vmatprep.mubr.f32.mxu0 0.0
        %3640 = vmatmul.mubr.f32.gmra.mrb[0].mxu0 %v3559
        %v3641 = vpop.f32.mrb[0].mxu0
        %v3642 = vadd.f32 %v485, %v3641
        %v3643 = vpop.f32.mrb[0].mxu0
        %3644 = vmatprep.mubr.f32.mxu0 0.0
        %3645 = vmatmul.mubr.f32.gmra.mrb[0].mxu0 %v3560
        %v3646 = vpop.f32.mrb[0].mxu0
        %v3647 = vadd.f32 %v485, %v3646
        %v3648 = vpop.f32.mrb[0].mxu0
        %3649 = vmatprep.mubr.f32.mxu0 0.0
        %3650 = vmatmul.mubr.f32.gmra.mrb[0].mxu0 %v3561
        %v3651 = vpop.f32.mrb[0].mxu0
        %v3652 = vadd.f32 %v485, %v3651
        %v3653 = vpop.f32.mrb[0].mxu0
        %3654 = vmatprep.mubr.f32.mxu0 0.0
        %3655 = vmatmul.mubr.f32.gmra.mrb[0].mxu0 %v3562
        %v3656 = vpop.f32.mrb[0].mxu0
        %v3657 = vadd.f32 %v485, %v3656
        %v3658 = vpop.f32.mrb[0].mxu0
        %3659 = vmatprep.mubr.f32.mxu0 0.0
        %3660 = vmatmul.mubr.f32.gmra.mrb[0].mxu0 %v3563
        %v3661 = vpop.f32.mrb[0].mxu0
        %v3662 = vadd.f32 %v485, %v3661
        %v3663 = vpop.f32.mrb[0].mxu0
        %3664 = vmatprep.mubr.f32.mxu0 0.0
        %3665 = vmatmul.mubr.f32.gmra.mrb[0].mxu0 %v3564
        %v3666 = vpop.f32.mrb[0].mxu0
        %v3667 = vadd.f32 %v485, %v3666
        %v3668 = vpop.f32.mrb[0].mxu0
        %3669 = vmatprep.mubr.f32.mxu0 0.0
        %3670 = vmatmul.mubr.f32.gmra.mrb[0].mxu0 %v3565
        %v3671 = vpop.f32.mrb[0].mxu0
        %v3672 = vadd.f32 %v485, %v3671
        %v3673 = vpop.f32.mrb[0].mxu0
        %3674 = vmatprep.mubr.f32.mxu0 0.0
        %3675 = vmatmul.mubr.f32.gmra.mrb[0].mxu0 %v3566
        %v3676 = vpop.f32.mrb[0].mxu0
        %v3677 = vadd.f32 %v485, %v3676
        %v3678 = vpop.f32.mrb[0].mxu0
        %3679 = vmatprep.mubr.f32.mxu0 0.0
        %3680 = vmatmul.mubr.f32.gmra.mrb[0].mxu0 %v3567
        %v3681 = vpop.f32.mrb[0].mxu0
        %v3682 = vadd.f32 %v485, %v3681
        %v3683 = vpop.f32.mrb[0].mxu0
        %3684 = vmatprep.mubr.f32.mxu0 0.0
        %3685 = vmatmul.mubr.f32.gmra.mrb[0].mxu0 %v3568
        %v3686 = vpop.f32.mrb[0].mxu0
        %v3687 = vadd.f32 %v485, %v3686
        %v3688 = vpop.f32.mrb[0].mxu0
        %3689 = vmatprep.mubr.f32.mxu0 0.0
        %3690 = vmatmul.mubr.f32.gmra.mrb[0].mxu0 %v3569
        %v3691 = vpop.f32.mrb[0].mxu0
        %v3692 = vadd.f32 %v485, %v3691
        %v3693 = vpop.f32.mrb[0].mxu0
        %3694 = vmatprep.mubr.f32.mxu0 0.0
        %3695 = vmatmul.mubr.f32.gmra.mrb[0].mxu0 %v3570
        %v3696 = vpop.f32.mrb[0].mxu0
        %v3697 = vadd.f32 %v485, %v3696
        %v3698 = vpop.f32.mrb[0].mxu0
        %3699 = vmatprep.mubr.f32.mxu0 0.0
        %3700 = vmatmul.mubr.f32.gmra.mrb[0].mxu0 %v3571
        %v3701 = vpop.f32.mrb[0].mxu0
        %v3702 = vadd.f32 %v485, %v3701
        %v3703 = vpop.f32.mrb[0].mxu0
        %3704 = vmatprep.mubr.f32.mxu0 0.0
        %3705 = vmatmul.mubr.f32.gmra.mrb[0].mxu0 %v3572
        %v3706 = vpop.f32.mrb[0].mxu0
        %v3707 = vadd.f32 %v485, %v3706
        %v3708 = vpop.f32.mrb[0].mxu0
        %3709 = vmatprep.mubr.f32.mxu0 0.0
        %3710 = vmatmul.mubr.f32.gmra.mrb[0].mxu0 %v3573
        %v3711 = vpop.f32.mrb[0].mxu0
        %v3712 = vadd.f32 %v485, %v3711
        %v3713 = vpop.f32.mrb[0].mxu0
        %3714 = vmatprep.mubr.f32.mxu0 0.0
        %3715 = vmatmul.mubr.f32.gmra.mrb[0].mxu0 %v3574
        %v3716 = vpop.f32.mrb[0].mxu0
        %v3717 = vadd.f32 %v485, %v3716
        %v3718 = vpop.f32.mrb[0].mxu0
        %3719 = vdwg.mxu0
        %v3720 = vmax.f32 %v3642, 0.0
        %v3721 = vmax.f32 %v3647, 0.0
        %v3722 = vmax.f32 %v3652, 0.0
        %v3723 = vmax.f32 %v3657, 0.0
        %v3724 = vmax.f32 %v3662, 0.0
        %v3725 = vmax.f32 %v3667, 0.0
        %v3726 = vmax.f32 %v3672, 0.0
        %v3727 = vmax.f32 %v3677, 0.0
        %v3728 = vmax.f32 %v3682, 0.0
        %v3729 = vmax.f32 %v3687, 0.0
        %v3730 = vmax.f32 %v3692, 0.0
        %v3731 = vmax.f32 %v3697, 0.0
        %v3732 = vmax.f32 %v3702, 0.0
        %v3733 = vmax.f32 %v3707, 0.0
        %v3734 = vmax.f32 %v3712, 0.0
        %v3735 = vmax.f32 %v3717, 0.0
        %v3736 = vmax.f32 %v3542, %v3720
        %v3737 = vmax.f32 %v3543, %v3721
        %v3738 = vmax.f32 %v3544, %v3722
        %v3739 = vmax.f32 %v3545, %v3723
        %v3740 = vmax.f32 %v3546, %v3724
        %v3741 = vmax.f32 %v3547, %v3725
        %v3742 = vmax.f32 %v3548, %v3726
        %v3743 = vmax.f32 %v3549, %v3727
        %v3744 = vmax.f32 %v3550, %v3728
        %v3745 = vmax.f32 %v3551, %v3729
        %v3746 = vmax.f32 %v3552, %v3730
        %v3747 = vmax.f32 %v3553, %v3731
        %v3748 = vmax.f32 %v3554, %v3732
        %v3749 = vmax.f32 %v3555, %v3733
        %v3750 = vmax.f32 %v3556, %v3734
        %v3751 = vmax.f32 %v3557, %v3735
        %s3752 = scalar_lea.vmem %s447, 2176
        %v3753 = vld [vmem:[%s3752] sm:$0xff]
        %v3754 = vld [vmem:[%s3752 + $0x8] sm:$0xff]
        %v3755 = vld [vmem:[%s3752 + $0x10] sm:$0xff]
        %v3756 = vld [vmem:[%s3752 + $0x18] sm:$0xff]
        %v3757 = vld [vmem:[%s3752 + $0x20] sm:$0xff]
        %v3758 = vld [vmem:[%s3752 + $0x28] sm:$0xff]
        %v3759 = vld [vmem:[%s3752 + $0x30] sm:$0xff]
        %v3760 = vld [vmem:[%s3752 + $0x38] sm:$0xff]
        %v3761 = vld [vmem:[%s3752 + $0x40] sm:$0xff]
        %v3762 = vld [vmem:[%s3752 + $0x48] sm:$0xff]
        %v3763 = vld [vmem:[%s3752 + $0x50] sm:$0xff]
        %v3764 = vld [vmem:[%s3752 + $0x58] sm:$0xff]
        %v3765 = vld [vmem:[%s3752 + $0x60] sm:$0xff]
        %v3766 = vld [vmem:[%s3752 + $0x68] sm:$0xff]
        %v3767 = vld [vmem:[%s3752 + $0x70] sm:$0xff]
        %v3768 = vld [vmem:[%s3752 + $0x78] sm:$0xff]
        %3769 = vmatprep.subr.mxu0 0.0
        %3770 = vmatpush1.msra.mxu0 %v448
        %3771 = vmatprep.subr.mxu0 0.0
        %3772 = vmatpush1.msra.mxu0 %v449
        %3773 = vmatprep.subr.mxu0 0.0
        %3774 = vmatpush1.msra.mxu0 %v450
        %3775 = vmatprep.subr.mxu0 0.0
        %3776 = vmatpush1.msra.mxu0 %v451
        %3777 = vmatprep.subr.mxu0 0.0
        %3778 = vmatpush1.msra.mxu0 %v452
        %3779 = vmatprep.subr.mxu0 0.0
        %3780 = vmatpush1.msra.mxu0 %v453
        %3781 = vmatprep.subr.mxu0 0.0
        %3782 = vmatpush1.msra.mxu0 %v454
        %3783 = vmatprep.subr.mxu0 0.0
        %3784 = vmatpush1.msra.mxu0 %v455
        %3785 = vmatprep.subr.mxu0 0.0
        %3786 = vmatpush1.msra.mxu0 %v456
        %3787 = vmatprep.subr.mxu0 0.0
        %3788 = vmatpush1.msra.mxu0 %v457
        %3789 = vmatprep.subr.mxu0 0.0
        %3790 = vmatpush1.msra.mxu0 %v458
        %3791 = vmatprep.subr.mxu0 0.0
        %3792 = vmatpush1.msra.mxu0 %v459
        %3793 = vmatprep.subr.mxu0 0.0
        %3794 = vmatpush1.msra.mxu0 %v460
        %3795 = vmatprep.subr.mxu0 0.0
        %3796 = vmatpush1.msra.mxu0 %v461
        %3797 = vmatprep.subr.mxu0 0.0
        %3798 = vmatpush1.msra.mxu0 %v462
        %3799 = vmatprep.subr.mxu0 0.0
        %3800 = vmatpush1.msra.mxu0 %v463
        %3801 = vmatprep.subr.mxu0 0.0
        %3802 = vmatpush1.msra.mxu0 0.0
        %3803 = vmatprep.subr.mxu0 0.0
        %3804 = vmatpush1.msra.mxu0 0.0
        %3805 = vmatprep.subr.mxu0 0.0
        %3806 = vmatpush1.msra.mxu0 0.0
        %3807 = vmatprep.subr.mxu0 0.0
        %3808 = vmatpush1.msra.mxu0 0.0
        %3809 = vmatprep.subr.mxu0 0.0
        %3810 = vmatpush1.msra.mxu0 0.0
        %3811 = vmatprep.subr.mxu0 0.0
        %3812 = vmatpush1.msra.mxu0 0.0
        %3813 = vmatprep.subr.mxu0 0.0
        %3814 = vmatpush1.msra.mxu0 0.0
        %3815 = vmatprep.subr.mxu0 0.0
        %3816 = vmatpush1.msra.mxu0 0.0
        %3817 = vmatprep.subr.mxu0 0.0
        %3818 = vmatpush1.msra.mxu0 0.0
        %3819 = vmatprep.subr.mxu0 0.0
        %3820 = vmatpush1.msra.mxu0 0.0
        %3821 = vmatprep.subr.mxu0 0.0
        %3822 = vmatpush1.msra.mxu0 0.0
        %3823 = vmatprep.subr.mxu0 0.0
        %3824 = vmatpush1.msra.mxu0 0.0
        %3825 = vmatprep.subr.mxu0 0.0
        %3826 = vmatpush1.msra.mxu0 0.0
        %3827 = vmatprep.subr.mxu0 0.0
        %3828 = vmatpush1.msra.mxu0 0.0
        %3829 = vmatprep.subr.mxu0 0.0
        %3830 = vmatpush1.msra.mxu0 0.0
        %3831 = vmatprep.subr.mxu0 0.0
        %3832 = vmatpush1.msra.mxu0 0.0
        %3833 = vmatprep.mubr.f32.mxu0 0.0
        %3834 = vmatmul.mubr.f32.gmra.mrb[0].mxu0 %v3753
        %v3835 = vpop.f32.mrb[0].mxu0
        %v3836 = vadd.f32 %v485, %v3835
        %v3837 = vpop.f32.mrb[0].mxu0
        %3838 = vmatprep.mubr.f32.mxu0 0.0
        %3839 = vmatmul.mubr.f32.gmra.mrb[0].mxu0 %v3754
        %v3840 = vpop.f32.mrb[0].mxu0
        %v3841 = vadd.f32 %v485, %v3840
        %v3842 = vpop.f32.mrb[0].mxu0
        %3843 = vmatprep.mubr.f32.mxu0 0.0
        %3844 = vmatmul.mubr.f32.gmra.mrb[0].mxu0 %v3755
        %v3845 = vpop.f32.mrb[0].mxu0
        %v3846 = vadd.f32 %v485, %v3845
        %v3847 = vpop.f32.mrb[0].mxu0
        %3848 = vmatprep.mubr.f32.mxu0 0.0
        %3849 = vmatmul.mubr.f32.gmra.mrb[0].mxu0 %v3756
        %v3850 = vpop.f32.mrb[0].mxu0
        %v3851 = vadd.f32 %v485, %v3850
        %v3852 = vpop.f32.mrb[0].mxu0
        %3853 = vmatprep.mubr.f32.mxu0 0.0
        %3854 = vmatmul.mubr.f32.gmra.mrb[0].mxu0 %v3757
        %v3855 = vpop.f32.mrb[0].mxu0
        %v3856 = vadd.f32 %v485, %v3855
        %v3857 = vpop.f32.mrb[0].mxu0
        %3858 = vmatprep.mubr.f32.mxu0 0.0
        %3859 = vmatmul.mubr.f32.gmra.mrb[0].mxu0 %v3758
        %v3860 = vpop.f32.mrb[0].mxu0
        %v3861 = vadd.f32 %v485, %v3860
        %v3862 = vpop.f32.mrb[0].mxu0
        %3863 = vmatprep.mubr.f32.mxu0 0.0
        %3864 = vmatmul.mubr.f32.gmra.mrb[0].mxu0 %v3759
        %v3865 = vpop.f32.mrb[0].mxu0
        %v3866 = vadd.f32 %v485, %v3865
        %v3867 = vpop.f32.mrb[0].mxu0
        %3868 = vmatprep.mubr.f32.mxu0 0.0
        %3869 = vmatmul.mubr.f32.gmra.mrb[0].mxu0 %v3760
        %v3870 = vpop.f32.mrb[0].mxu0
        %v3871 = vadd.f32 %v485, %v3870
        %v3872 = vpop.f32.mrb[0].mxu0
        %3873 = vmatprep.mubr.f32.mxu0 0.0
        %3874 = vmatmul.mubr.f32.gmra.mrb[0].mxu0 %v3761
        %v3875 = vpop.f32.mrb[0].mxu0
        %v3876 = vadd.f32 %v485, %v3875
        %v3877 = vpop.f32.mrb[0].mxu0
        %3878 = vmatprep.mubr.f32.mxu0 0.0
        %3879 = vmatmul.mubr.f32.gmra.mrb[0].mxu0 %v3762
        %v3880 = vpop.f32.mrb[0].mxu0
        %v3881 = vadd.f32 %v485, %v3880
        %v3882 = vpop.f32.mrb[0].mxu0
        %3883 = vmatprep.mubr.f32.mxu0 0.0
        %3884 = vmatmul.mubr.f32.gmra.mrb[0].mxu0 %v3763
        %v3885 = vpop.f32.mrb[0].mxu0
        %v3886 = vadd.f32 %v485, %v3885
        %v3887 = vpop.f32.mrb[0].mxu0
        %3888 = vmatprep.mubr.f32.mxu0 0.0
        %3889 = vmatmul.mubr.f32.gmra.mrb[0].mxu0 %v3764
        %v3890 = vpop.f32.mrb[0].mxu0
        %v3891 = vadd.f32 %v485, %v3890
        %v3892 = vpop.f32.mrb[0].mxu0
        %3893 = vmatprep.mubr.f32.mxu0 0.0
        %3894 = vmatmul.mubr.f32.gmra.mrb[0].mxu0 %v3765
        %v3895 = vpop.f32.mrb[0].mxu0
        %v3896 = vadd.f32 %v485, %v3895
        %v3897 = vpop.f32.mrb[0].mxu0
        %3898 = vmatprep.mubr.f32.mxu0 0.0
        %3899 = vmatmul.mubr.f32.gmra.mrb[0].mxu0 %v3766
        %v3900 = vpop.f32.mrb[0].mxu0
        %v3901 = vadd.f32 %v485, %v3900
        %v3902 = vpop.f32.mrb[0].mxu0
        %3903 = vmatprep.mubr.f32.mxu0 0.0
        %3904 = vmatmul.mubr.f32.gmra.mrb[0].mxu0 %v3767
        %v3905 = vpop.f32.mrb[0].mxu0
        %v3906 = vadd.f32 %v485, %v3905
        %v3907 = vpop.f32.mrb[0].mxu0
        %3908 = vmatprep.mubr.f32.mxu0 0.0
        %3909 = vmatmul.mubr.f32.gmra.mrb[0].mxu0 %v3768
        %v3910 = vpop.f32.mrb[0].mxu0
        %v3911 = vadd.f32 %v485, %v3910
        %v3912 = vpop.f32.mrb[0].mxu0
        %3913 = vdwg.mxu0
        %v3914 = vmax.f32 %v3836, 0.0
        %v3915 = vmax.f32 %v3841, 0.0
        %v3916 = vmax.f32 %v3846, 0.0
        %v3917 = vmax.f32 %v3851, 0.0
        %v3918 = vmax.f32 %v3856, 0.0
        %v3919 = vmax.f32 %v3861, 0.0
        %v3920 = vmax.f32 %v3866, 0.0
        %v3921 = vmax.f32 %v3871, 0.0
        %v3922 = vmax.f32 %v3876, 0.0
        %v3923 = vmax.f32 %v3881, 0.0
        %v3924 = vmax.f32 %v3886, 0.0
        %v3925 = vmax.f32 %v3891, 0.0
        %v3926 = vmax.f32 %v3896, 0.0
        %v3927 = vmax.f32 %v3901, 0.0
        %v3928 = vmax.f32 %v3906, 0.0
        %v3929 = vmax.f32 %v3911, 0.0
        %v3930 = vmax.f32 %v3736, %v3914
        %v3931 = vmax.f32 %v3737, %v3915
        %v3932 = vmax.f32 %v3738, %v3916
        %v3933 = vmax.f32 %v3739, %v3917
        %v3934 = vmax.f32 %v3740, %v3918
        %v3935 = vmax.f32 %v3741, %v3919
        %v3936 = vmax.f32 %v3742, %v3920
        %v3937 = vmax.f32 %v3743, %v3921
        %v3938 = vmax.f32 %v3744, %v3922
        %v3939 = vmax.f32 %v3745, %v3923
        %v3940 = vmax.f32 %v3746, %v3924
        %v3941 = vmax.f32 %v3747, %v3925
        %v3942 = vmax.f32 %v3748, %v3926
        %v3943 = vmax.f32 %v3749, %v3927
        %v3944 = vmax.f32 %v3750, %v3928
        %v3945 = vmax.f32 %v3751, %v3929
        %s3946 = scalar_lea.vmem %s447, 2304
        %v3947 = vld [vmem:[%s3946] sm:$0xff]
        %v3948 = vld [vmem:[%s3946 + $0x8] sm:$0xff]
        %v3949 = vld [vmem:[%s3946 + $0x10] sm:$0xff]
        %v3950 = vld [vmem:[%s3946 + $0x18] sm:$0xff]
        %v3951 = vld [vmem:[%s3946 + $0x20] sm:$0xff]
        %v3952 = vld [vmem:[%s3946 + $0x28] sm:$0xff]
        %v3953 = vld [vmem:[%s3946 + $0x30] sm:$0xff]
        %v3954 = vld [vmem:[%s3946 + $0x38] sm:$0xff]
        %v3955 = vld [vmem:[%s3946 + $0x40] sm:$0xff]
        %v3956 = vld [vmem:[%s3946 + $0x48] sm:$0xff]
        %v3957 = vld [vmem:[%s3946 + $0x50] sm:$0xff]
        %v3958 = vld [vmem:[%s3946 + $0x58] sm:$0xff]
        %v3959 = vld [vmem:[%s3946 + $0x60] sm:$0xff]
        %v3960 = vld [vmem:[%s3946 + $0x68] sm:$0xff]
        %v3961 = vld [vmem:[%s3946 + $0x70] sm:$0xff]
        %v3962 = vld [vmem:[%s3946 + $0x78] sm:$0xff]
        %3963 = vmatprep.subr.mxu0 0.0
        %3964 = vmatpush1.msra.mxu0 %v448
        %3965 = vmatprep.subr.mxu0 0.0
        %3966 = vmatpush1.msra.mxu0 %v449
        %3967 = vmatprep.subr.mxu0 0.0
        %3968 = vmatpush1.msra.mxu0 %v450
        %3969 = vmatprep.subr.mxu0 0.0
        %3970 = vmatpush1.msra.mxu0 %v451
        %3971 = vmatprep.subr.mxu0 0.0
        %3972 = vmatpush1.msra.mxu0 %v452
        %3973 = vmatprep.subr.mxu0 0.0
        %3974 = vmatpush1.msra.mxu0 %v453
        %3975 = vmatprep.subr.mxu0 0.0
        %3976 = vmatpush1.msra.mxu0 %v454
        %3977 = vmatprep.subr.mxu0 0.0
        %3978 = vmatpush1.msra.mxu0 %v455
        %3979 = vmatprep.subr.mxu0 0.0
        %3980 = vmatpush1.msra.mxu0 %v456
        %3981 = vmatprep.subr.mxu0 0.0
        %3982 = vmatpush1.msra.mxu0 %v457
        %3983 = vmatprep.subr.mxu0 0.0
        %3984 = vmatpush1.msra.mxu0 %v458
        %3985 = vmatprep.subr.mxu0 0.0
        %3986 = vmatpush1.msra.mxu0 %v459
        %3987 = vmatprep.subr.mxu0 0.0
        %3988 = vmatpush1.msra.mxu0 %v460
        %3989 = vmatprep.subr.mxu0 0.0
        %3990 = vmatpush1.msra.mxu0 %v461
        %3991 = vmatprep.subr.mxu0 0.0
        %3992 = vmatpush1.msra.mxu0 %v462
        %3993 = vmatprep.subr.mxu0 0.0
        %3994 = vmatpush1.msra.mxu0 %v463
        %3995 = vmatprep.subr.mxu0 0.0
        %3996 = vmatpush1.msra.mxu0 0.0
        %3997 = vmatprep.subr.mxu0 0.0
        %3998 = vmatpush1.msra.mxu0 0.0
        %3999 = vmatprep.subr.mxu0 0.0
        %4000 = vmatpush1.msra.mxu0 0.0
        %4001 = vmatprep.subr.mxu0 0.0
        %4002 = vmatpush1.msra.mxu0 0.0
        %4003 = vmatprep.subr.mxu0 0.0
        %4004 = vmatpush1.msra.mxu0 0.0
        %4005 = vmatprep.subr.mxu0 0.0
        %4006 = vmatpush1.msra.mxu0 0.0
        %4007 = vmatprep.subr.mxu0 0.0
        %4008 = vmatpush1.msra.mxu0 0.0
        %4009 = vmatprep.subr.mxu0 0.0
        %4010 = vmatpush1.msra.mxu0 0.0
        %4011 = vmatprep.subr.mxu0 0.0
        %4012 = vmatpush1.msra.mxu0 0.0
        %4013 = vmatprep.subr.mxu0 0.0
        %4014 = vmatpush1.msra.mxu0 0.0
        %4015 = vmatprep.subr.mxu0 0.0
        %4016 = vmatpush1.msra.mxu0 0.0
        %4017 = vmatprep.subr.mxu0 0.0
        %4018 = vmatpush1.msra.mxu0 0.0
        %4019 = vmatprep.subr.mxu0 0.0
        %4020 = vmatpush1.msra.mxu0 0.0
        %4021 = vmatprep.subr.mxu0 0.0
        %4022 = vmatpush1.msra.mxu0 0.0
        %4023 = vmatprep.subr.mxu0 0.0
        %4024 = vmatpush1.msra.mxu0 0.0
        %4025 = vmatprep.subr.mxu0 0.0
        %4026 = vmatpush1.msra.mxu0 0.0
        %4027 = vmatprep.mubr.f32.mxu0 0.0
        %4028 = vmatmul.mubr.f32.gmra.mrb[0].mxu0 %v3947
        %v4029 = vpop.f32.mrb[0].mxu0
        %v4030 = vadd.f32 %v485, %v4029
        %v4031 = vpop.f32.mrb[0].mxu0
        %4032 = vmatprep.mubr.f32.mxu0 0.0
        %4033 = vmatmul.mubr.f32.gmra.mrb[0].mxu0 %v3948
        %v4034 = vpop.f32.mrb[0].mxu0
        %v4035 = vadd.f32 %v485, %v4034
        %v4036 = vpop.f32.mrb[0].mxu0
        %4037 = vmatprep.mubr.f32.mxu0 0.0
        %4038 = vmatmul.mubr.f32.gmra.mrb[0].mxu0 %v3949
        %v4039 = vpop.f32.mrb[0].mxu0
        %v4040 = vadd.f32 %v485, %v4039
        %v4041 = vpop.f32.mrb[0].mxu0
        %4042 = vmatprep.mubr.f32.mxu0 0.0
        %4043 = vmatmul.mubr.f32.gmra.mrb[0].mxu0 %v3950
        %v4044 = vpop.f32.mrb[0].mxu0
        %v4045 = vadd.f32 %v485, %v4044
        %v4046 = vpop.f32.mrb[0].mxu0
        %4047 = vmatprep.mubr.f32.mxu0 0.0
        %4048 = vmatmul.mubr.f32.gmra.mrb[0].mxu0 %v3951
        %v4049 = vpop.f32.mrb[0].mxu0
        %v4050 = vadd.f32 %v485, %v4049
        %v4051 = vpop.f32.mrb[0].mxu0
        %4052 = vmatprep.mubr.f32.mxu0 0.0
        %4053 = vmatmul.mubr.f32.gmra.mrb[0].mxu0 %v3952
        %v4054 = vpop.f32.mrb[0].mxu0
        %v4055 = vadd.f32 %v485, %v4054
        %v4056 = vpop.f32.mrb[0].mxu0
        %4057 = vmatprep.mubr.f32.mxu0 0.0
        %4058 = vmatmul.mubr.f32.gmra.mrb[0].mxu0 %v3953
        %v4059 = vpop.f32.mrb[0].mxu0
        %v4060 = vadd.f32 %v485, %v4059
        %v4061 = vpop.f32.mrb[0].mxu0
        %4062 = vmatprep.mubr.f32.mxu0 0.0
        %4063 = vmatmul.mubr.f32.gmra.mrb[0].mxu0 %v3954
        %v4064 = vpop.f32.mrb[0].mxu0
        %v4065 = vadd.f32 %v485, %v4064
        %v4066 = vpop.f32.mrb[0].mxu0
        %4067 = vmatprep.mubr.f32.mxu0 0.0
        %4068 = vmatmul.mubr.f32.gmra.mrb[0].mxu0 %v3955
        %v4069 = vpop.f32.mrb[0].mxu0
        %v4070 = vadd.f32 %v485, %v4069
        %v4071 = vpop.f32.mrb[0].mxu0
        %4072 = vmatprep.mubr.f32.mxu0 0.0
        %4073 = vmatmul.mubr.f32.gmra.mrb[0].mxu0 %v3956
        %v4074 = vpop.f32.mrb[0].mxu0
        %v4075 = vadd.f32 %v485, %v4074
        %v4076 = vpop.f32.mrb[0].mxu0
        %4077 = vmatprep.mubr.f32.mxu0 0.0
        %4078 = vmatmul.mubr.f32.gmra.mrb[0].mxu0 %v3957
        %v4079 = vpop.f32.mrb[0].mxu0
        %v4080 = vadd.f32 %v485, %v4079
        %v4081 = vpop.f32.mrb[0].mxu0
        %4082 = vmatprep.mubr.f32.mxu0 0.0
        %4083 = vmatmul.mubr.f32.gmra.mrb[0].mxu0 %v3958
        %v4084 = vpop.f32.mrb[0].mxu0
        %v4085 = vadd.f32 %v485, %v4084
        %v4086 = vpop.f32.mrb[0].mxu0
        %4087 = vmatprep.mubr.f32.mxu0 0.0
        %4088 = vmatmul.mubr.f32.gmra.mrb[0].mxu0 %v3959
        %v4089 = vpop.f32.mrb[0].mxu0
        %v4090 = vadd.f32 %v485, %v4089
        %v4091 = vpop.f32.mrb[0].mxu0
        %4092 = vmatprep.mubr.f32.mxu0 0.0
        %4093 = vmatmul.mubr.f32.gmra.mrb[0].mxu0 %v3960
        %v4094 = vpop.f32.mrb[0].mxu0
        %v4095 = vadd.f32 %v485, %v4094
        %v4096 = vpop.f32.mrb[0].mxu0
        %4097 = vmatprep.mubr.f32.mxu0 0.0
        %4098 = vmatmul.mubr.f32.gmra.mrb[0].mxu0 %v3961
        %v4099 = vpop.f32.mrb[0].mxu0
        %v4100 = vadd.f32 %v485, %v4099
        %v4101 = vpop.f32.mrb[0].mxu0
        %4102 = vmatprep.mubr.f32.mxu0 0.0
        %4103 = vmatmul.mubr.f32.gmra.mrb[0].mxu0 %v3962
        %v4104 = vpop.f32.mrb[0].mxu0
        %v4105 = vadd.f32 %v485, %v4104
        %v4106 = vpop.f32.mrb[0].mxu0
        %4107 = vdwg.mxu0
        %v4108 = vmax.f32 %v4030, 0.0
        %v4109 = vmax.f32 %v4035, 0.0
        %v4110 = vmax.f32 %v4040, 0.0
        %v4111 = vmax.f32 %v4045, 0.0
        %v4112 = vmax.f32 %v4050, 0.0
        %v4113 = vmax.f32 %v4055, 0.0
        %v4114 = vmax.f32 %v4060, 0.0
        %v4115 = vmax.f32 %v4065, 0.0
        %v4116 = vmax.f32 %v4070, 0.0
        %v4117 = vmax.f32 %v4075, 0.0
        %v4118 = vmax.f32 %v4080, 0.0
        %v4119 = vmax.f32 %v4085, 0.0
        %v4120 = vmax.f32 %v4090, 0.0
        %v4121 = vmax.f32 %v4095, 0.0
        %v4122 = vmax.f32 %v4100, 0.0
        %v4123 = vmax.f32 %v4105, 0.0
        %v4124 = vmax.f32 %v3930, %v4108
        %v4125 = vmax.f32 %v3931, %v4109
        %v4126 = vmax.f32 %v3932, %v4110
        %v4127 = vmax.f32 %v3933, %v4111
        %v4128 = vmax.f32 %v3934, %v4112
        %v4129 = vmax.f32 %v3935, %v4113
        %v4130 = vmax.f32 %v3936, %v4114
        %v4131 = vmax.f32 %v3937, %v4115
        %v4132 = vmax.f32 %v3938, %v4116
        %v4133 = vmax.f32 %v3939, %v4117
        %v4134 = vmax.f32 %v3940, %v4118
        %v4135 = vmax.f32 %v3941, %v4119
        %v4136 = vmax.f32 %v3942, %v4120
        %v4137 = vmax.f32 %v3943, %v4121
        %v4138 = vmax.f32 %v3944, %v4122
        %v4139 = vmax.f32 %v3945, %v4123
        %s4140 = scalar_lea.vmem %s447, 2432
        %v4141 = vld [vmem:[%s4140] sm:$0xff]
        %v4142 = vld [vmem:[%s4140 + $0x8] sm:$0xff]
        %v4143 = vld [vmem:[%s4140 + $0x10] sm:$0xff]
        %v4144 = vld [vmem:[%s4140 + $0x18] sm:$0xff]
        %v4145 = vld [vmem:[%s4140 + $0x20] sm:$0xff]
        %v4146 = vld [vmem:[%s4140 + $0x28] sm:$0xff]
        %v4147 = vld [vmem:[%s4140 + $0x30] sm:$0xff]
        %v4148 = vld [vmem:[%s4140 + $0x38] sm:$0xff]
        %v4149 = vld [vmem:[%s4140 + $0x40] sm:$0xff]
        %v4150 = vld [vmem:[%s4140 + $0x48] sm:$0xff]
        %v4151 = vld [vmem:[%s4140 + $0x50] sm:$0xff]
        %v4152 = vld [vmem:[%s4140 + $0x58] sm:$0xff]
        %v4153 = vld [vmem:[%s4140 + $0x60] sm:$0xff]
        %v4154 = vld [vmem:[%s4140 + $0x68] sm:$0xff]
        %v4155 = vld [vmem:[%s4140 + $0x70] sm:$0xff]
        %v4156 = vld [vmem:[%s4140 + $0x78] sm:$0xff]
        %4157 = vmatprep.subr.mxu0 0.0
        %4158 = vmatpush1.msra.mxu0 %v448
        %4159 = vmatprep.subr.mxu0 0.0
        %4160 = vmatpush1.msra.mxu0 %v449
        %4161 = vmatprep.subr.mxu0 0.0
        %4162 = vmatpush1.msra.mxu0 %v450
        %4163 = vmatprep.subr.mxu0 0.0
        %4164 = vmatpush1.msra.mxu0 %v451
        %4165 = vmatprep.subr.mxu0 0.0
        %4166 = vmatpush1.msra.mxu0 %v452
        %4167 = vmatprep.subr.mxu0 0.0
        %4168 = vmatpush1.msra.mxu0 %v453
        %4169 = vmatprep.subr.mxu0 0.0
        %4170 = vmatpush1.msra.mxu0 %v454
        %4171 = vmatprep.subr.mxu0 0.0
        %4172 = vmatpush1.msra.mxu0 %v455
        %4173 = vmatprep.subr.mxu0 0.0
        %4174 = vmatpush1.msra.mxu0 %v456
        %4175 = vmatprep.subr.mxu0 0.0
        %4176 = vmatpush1.msra.mxu0 %v457
        %4177 = vmatprep.subr.mxu0 0.0
        %4178 = vmatpush1.msra.mxu0 %v458
        %4179 = vmatprep.subr.mxu0 0.0
        %4180 = vmatpush1.msra.mxu0 %v459
        %4181 = vmatprep.subr.mxu0 0.0
        %4182 = vmatpush1.msra.mxu0 %v460
        %4183 = vmatprep.subr.mxu0 0.0
        %4184 = vmatpush1.msra.mxu0 %v461
        %4185 = vmatprep.subr.mxu0 0.0
        %4186 = vmatpush1.msra.mxu0 %v462
        %4187 = vmatprep.subr.mxu0 0.0
        %4188 = vmatpush1.msra.mxu0 %v463
        %4189 = vmatprep.subr.mxu0 0.0
        %4190 = vmatpush1.msra.mxu0 0.0
        %4191 = vmatprep.subr.mxu0 0.0
        %4192 = vmatpush1.msra.mxu0 0.0
        %4193 = vmatprep.subr.mxu0 0.0
        %4194 = vmatpush1.msra.mxu0 0.0
        %4195 = vmatprep.subr.mxu0 0.0
        %4196 = vmatpush1.msra.mxu0 0.0
        %4197 = vmatprep.subr.mxu0 0.0
        %4198 = vmatpush1.msra.mxu0 0.0
        %4199 = vmatprep.subr.mxu0 0.0
        %4200 = vmatpush1.msra.mxu0 0.0
        %4201 = vmatprep.subr.mxu0 0.0
        %4202 = vmatpush1.msra.mxu0 0.0
        %4203 = vmatprep.subr.mxu0 0.0
        %4204 = vmatpush1.msra.mxu0 0.0
        %4205 = vmatprep.subr.mxu0 0.0
        %4206 = vmatpush1.msra.mxu0 0.0
        %4207 = vmatprep.subr.mxu0 0.0
        %4208 = vmatpush1.msra.mxu0 0.0
        %4209 = vmatprep.subr.mxu0 0.0
        %4210 = vmatpush1.msra.mxu0 0.0
        %4211 = vmatprep.subr.mxu0 0.0
        %4212 = vmatpush1.msra.mxu0 0.0
        %4213 = vmatprep.subr.mxu0 0.0
        %4214 = vmatpush1.msra.mxu0 0.0
        %4215 = vmatprep.subr.mxu0 0.0
        %4216 = vmatpush1.msra.mxu0 0.0
        %4217 = vmatprep.subr.mxu0 0.0
        %4218 = vmatpush1.msra.mxu0 0.0
        %4219 = vmatprep.subr.mxu0 0.0
        %4220 = vmatpush1.msra.mxu0 0.0
        %4221 = vmatprep.mubr.f32.mxu0 0.0
        %4222 = vmatmul.mubr.f32.gmra.mrb[0].mxu0 %v4141
        %v4223 = vpop.f32.mrb[0].mxu0
        %v4224 = vadd.f32 %v485, %v4223
        %v4225 = vpop.f32.mrb[0].mxu0
        %4226 = vmatprep.mubr.f32.mxu0 0.0
        %4227 = vmatmul.mubr.f32.gmra.mrb[0].mxu0 %v4142
        %v4228 = vpop.f32.mrb[0].mxu0
        %v4229 = vadd.f32 %v485, %v4228
        %v4230 = vpop.f32.mrb[0].mxu0
        %4231 = vmatprep.mubr.f32.mxu0 0.0
        %4232 = vmatmul.mubr.f32.gmra.mrb[0].mxu0 %v4143
        %v4233 = vpop.f32.mrb[0].mxu0
        %v4234 = vadd.f32 %v485, %v4233
        %v4235 = vpop.f32.mrb[0].mxu0
        %4236 = vmatprep.mubr.f32.mxu0 0.0
        %4237 = vmatmul.mubr.f32.gmra.mrb[0].mxu0 %v4144
        %v4238 = vpop.f32.mrb[0].mxu0
        %v4239 = vadd.f32 %v485, %v4238
        %v4240 = vpop.f32.mrb[0].mxu0
        %4241 = vmatprep.mubr.f32.mxu0 0.0
        %4242 = vmatmul.mubr.f32.gmra.mrb[0].mxu0 %v4145
        %v4243 = vpop.f32.mrb[0].mxu0
        %v4244 = vadd.f32 %v485, %v4243
        %v4245 = vpop.f32.mrb[0].mxu0
        %4246 = vmatprep.mubr.f32.mxu0 0.0
        %4247 = vmatmul.mubr.f32.gmra.mrb[0].mxu0 %v4146
        %v4248 = vpop.f32.mrb[0].mxu0
        %v4249 = vadd.f32 %v485, %v4248
        %v4250 = vpop.f32.mrb[0].mxu0
        %4251 = vmatprep.mubr.f32.mxu0 0.0
        %4252 = vmatmul.mubr.f32.gmra.mrb[0].mxu0 %v4147
        %v4253 = vpop.f32.mrb[0].mxu0
        %v4254 = vadd.f32 %v485, %v4253
        %v4255 = vpop.f32.mrb[0].mxu0
        %4256 = vmatprep.mubr.f32.mxu0 0.0
        %4257 = vmatmul.mubr.f32.gmra.mrb[0].mxu0 %v4148
        %v4258 = vpop.f32.mrb[0].mxu0
        %v4259 = vadd.f32 %v485, %v4258
        %v4260 = vpop.f32.mrb[0].mxu0
        %4261 = vmatprep.mubr.f32.mxu0 0.0
        %4262 = vmatmul.mubr.f32.gmra.mrb[0].mxu0 %v4149
        %v4263 = vpop.f32.mrb[0].mxu0
        %v4264 = vadd.f32 %v485, %v4263
        %v4265 = vpop.f32.mrb[0].mxu0
        %4266 = vmatprep.mubr.f32.mxu0 0.0
        %4267 = vmatmul.mubr.f32.gmra.mrb[0].mxu0 %v4150
        %v4268 = vpop.f32.mrb[0].mxu0
        %v4269 = vadd.f32 %v485, %v4268
        %v4270 = vpop.f32.mrb[0].mxu0
        %4271 = vmatprep.mubr.f32.mxu0 0.0
        %4272 = vmatmul.mubr.f32.gmra.mrb[0].mxu0 %v4151
        %v4273 = vpop.f32.mrb[0].mxu0
        %v4274 = vadd.f32 %v485, %v4273
        %v4275 = vpop.f32.mrb[0].mxu0
        %4276 = vmatprep.mubr.f32.mxu0 0.0
        %4277 = vmatmul.mubr.f32.gmra.mrb[0].mxu0 %v4152
        %v4278 = vpop.f32.mrb[0].mxu0
        %v4279 = vadd.f32 %v485, %v4278
        %v4280 = vpop.f32.mrb[0].mxu0
        %4281 = vmatprep.mubr.f32.mxu0 0.0
        %4282 = vmatmul.mubr.f32.gmra.mrb[0].mxu0 %v4153
        %v4283 = vpop.f32.mrb[0].mxu0
        %v4284 = vadd.f32 %v485, %v4283
        %v4285 = vpop.f32.mrb[0].mxu0
        %4286 = vmatprep.mubr.f32.mxu0 0.0
        %4287 = vmatmul.mubr.f32.gmra.mrb[0].mxu0 %v4154
        %v4288 = vpop.f32.mrb[0].mxu0
        %v4289 = vadd.f32 %v485, %v4288
        %v4290 = vpop.f32.mrb[0].mxu0
        %4291 = vmatprep.mubr.f32.mxu0 0.0
        %4292 = vmatmul.mubr.f32.gmra.mrb[0].mxu0 %v4155
        %v4293 = vpop.f32.mrb[0].mxu0
        %v4294 = vadd.f32 %v485, %v4293
        %v4295 = vpop.f32.mrb[0].mxu0
        %4296 = vmatprep.mubr.f32.mxu0 0.0
        %4297 = vmatmul.mubr.f32.gmra.mrb[0].mxu0 %v4156
        %v4298 = vpop.f32.mrb[0].mxu0
        %v4299 = vadd.f32 %v485, %v4298
        %v4300 = vpop.f32.mrb[0].mxu0
        %4301 = vdwg.mxu0
        %v4302 = vmax.f32 %v4224, 0.0
        %v4303 = vmax.f32 %v4229, 0.0
        %v4304 = vmax.f32 %v4234, 0.0
        %v4305 = vmax.f32 %v4239, 0.0
        %v4306 = vmax.f32 %v4244, 0.0
        %v4307 = vmax.f32 %v4249, 0.0
        %v4308 = vmax.f32 %v4254, 0.0
        %v4309 = vmax.f32 %v4259, 0.0
        %v4310 = vmax.f32 %v4264, 0.0
        %v4311 = vmax.f32 %v4269, 0.0
        %v4312 = vmax.f32 %v4274, 0.0
        %v4313 = vmax.f32 %v4279, 0.0
        %v4314 = vmax.f32 %v4284, 0.0
        %v4315 = vmax.f32 %v4289, 0.0
        %v4316 = vmax.f32 %v4294, 0.0
        %v4317 = vmax.f32 %v4299, 0.0
        %v4318 = vmax.f32 %v4124, %v4302
        %v4319 = vmax.f32 %v4125, %v4303
        %v4320 = vmax.f32 %v4126, %v4304
        %v4321 = vmax.f32 %v4127, %v4305
        %v4322 = vmax.f32 %v4128, %v4306
        %v4323 = vmax.f32 %v4129, %v4307
        %v4324 = vmax.f32 %v4130, %v4308
        %v4325 = vmax.f32 %v4131, %v4309
        %v4326 = vmax.f32 %v4132, %v4310
        %v4327 = vmax.f32 %v4133, %v4311
        %v4328 = vmax.f32 %v4134, %v4312
        %v4329 = vmax.f32 %v4135, %v4313
        %v4330 = vmax.f32 %v4136, %v4314
        %v4331 = vmax.f32 %v4137, %v4315
        %v4332 = vmax.f32 %v4138, %v4316
        %v4333 = vmax.f32 %v4139, %v4317
        %s4334 = scalar_lea.vmem %s447, 2560
        %v4335 = vld [vmem:[%s4334] sm:$0xff]
        %v4336 = vld [vmem:[%s4334 + $0x8] sm:$0xff]
        %v4337 = vld [vmem:[%s4334 + $0x10] sm:$0xff]
        %v4338 = vld [vmem:[%s4334 + $0x18] sm:$0xff]
        %v4339 = vld [vmem:[%s4334 + $0x20] sm:$0xff]
        %v4340 = vld [vmem:[%s4334 + $0x28] sm:$0xff]
        %v4341 = vld [vmem:[%s4334 + $0x30] sm:$0xff]
        %v4342 = vld [vmem:[%s4334 + $0x38] sm:$0xff]
        %v4343 = vld [vmem:[%s4334 + $0x40] sm:$0xff]
        %v4344 = vld [vmem:[%s4334 + $0x48] sm:$0xff]
        %v4345 = vld [vmem:[%s4334 + $0x50] sm:$0xff]
        %v4346 = vld [vmem:[%s4334 + $0x58] sm:$0xff]
        %v4347 = vld [vmem:[%s4334 + $0x60] sm:$0xff]
        %v4348 = vld [vmem:[%s4334 + $0x68] sm:$0xff]
        %v4349 = vld [vmem:[%s4334 + $0x70] sm:$0xff]
        %v4350 = vld [vmem:[%s4334 + $0x78] sm:$0xff]
        %4351 = vmatprep.subr.mxu0 0.0
        %4352 = vmatpush1.msra.mxu0 %v448
        %4353 = vmatprep.subr.mxu0 0.0
        %4354 = vmatpush1.msra.mxu0 %v449
        %4355 = vmatprep.subr.mxu0 0.0
        %4356 = vmatpush1.msra.mxu0 %v450
        %4357 = vmatprep.subr.mxu0 0.0
        %4358 = vmatpush1.msra.mxu0 %v451
        %4359 = vmatprep.subr.mxu0 0.0
        %4360 = vmatpush1.msra.mxu0 %v452
        %4361 = vmatprep.subr.mxu0 0.0
        %4362 = vmatpush1.msra.mxu0 %v453
        %4363 = vmatprep.subr.mxu0 0.0
        %4364 = vmatpush1.msra.mxu0 %v454
        %4365 = vmatprep.subr.mxu0 0.0
        %4366 = vmatpush1.msra.mxu0 %v455
        %4367 = vmatprep.subr.mxu0 0.0
        %4368 = vmatpush1.msra.mxu0 %v456
        %4369 = vmatprep.subr.mxu0 0.0
        %4370 = vmatpush1.msra.mxu0 %v457
        %4371 = vmatprep.subr.mxu0 0.0
        %4372 = vmatpush1.msra.mxu0 %v458
        %4373 = vmatprep.subr.mxu0 0.0
        %4374 = vmatpush1.msra.mxu0 %v459
        %4375 = vmatprep.subr.mxu0 0.0
        %4376 = vmatpush1.msra.mxu0 %v460
        %4377 = vmatprep.subr.mxu0 0.0
        %4378 = vmatpush1.msra.mxu0 %v461
        %4379 = vmatprep.subr.mxu0 0.0
        %4380 = vmatpush1.msra.mxu0 %v462
        %4381 = vmatprep.subr.mxu0 0.0
        %4382 = vmatpush1.msra.mxu0 %v463
        %4383 = vmatprep.subr.mxu0 0.0
        %4384 = vmatpush1.msra.mxu0 0.0
        %4385 = vmatprep.subr.mxu0 0.0
        %4386 = vmatpush1.msra.mxu0 0.0
        %4387 = vmatprep.subr.mxu0 0.0
        %4388 = vmatpush1.msra.mxu0 0.0
        %4389 = vmatprep.subr.mxu0 0.0
        %4390 = vmatpush1.msra.mxu0 0.0
        %4391 = vmatprep.subr.mxu0 0.0
        %4392 = vmatpush1.msra.mxu0 0.0
        %4393 = vmatprep.subr.mxu0 0.0
        %4394 = vmatpush1.msra.mxu0 0.0
        %4395 = vmatprep.subr.mxu0 0.0
        %4396 = vmatpush1.msra.mxu0 0.0
        %4397 = vmatprep.subr.mxu0 0.0
        %4398 = vmatpush1.msra.mxu0 0.0
        %4399 = vmatprep.subr.mxu0 0.0
        %4400 = vmatpush1.msra.mxu0 0.0
        %4401 = vmatprep.subr.mxu0 0.0
        %4402 = vmatpush1.msra.mxu0 0.0
        %4403 = vmatprep.subr.mxu0 0.0
        %4404 = vmatpush1.msra.mxu0 0.0
        %4405 = vmatprep.subr.mxu0 0.0
        %4406 = vmatpush1.msra.mxu0 0.0
        %4407 = vmatprep.subr.mxu0 0.0
        %4408 = vmatpush1.msra.mxu0 0.0
        %4409 = vmatprep.subr.mxu0 0.0
        %4410 = vmatpush1.msra.mxu0 0.0
        %4411 = vmatprep.subr.mxu0 0.0
        %4412 = vmatpush1.msra.mxu0 0.0
        %4413 = vmatprep.subr.mxu0 0.0
        %4414 = vmatpush1.msra.mxu0 0.0
        %4415 = vmatprep.mubr.f32.mxu0 0.0
        %4416 = vmatmul.mubr.f32.gmra.mrb[0].mxu0 %v4335
        %v4417 = vpop.f32.mrb[0].mxu0
        %v4418 = vadd.f32 %v485, %v4417
        %v4419 = vpop.f32.mrb[0].mxu0
        %4420 = vmatprep.mubr.f32.mxu0 0.0
        %4421 = vmatmul.mubr.f32.gmra.mrb[0].mxu0 %v4336
        %v4422 = vpop.f32.mrb[0].mxu0
        %v4423 = vadd.f32 %v485, %v4422
        %v4424 = vpop.f32.mrb[0].mxu0
        %4425 = vmatprep.mubr.f32.mxu0 0.0
        %4426 = vmatmul.mubr.f32.gmra.mrb[0].mxu0 %v4337
        %v4427 = vpop.f32.mrb[0].mxu0
        %v4428 = vadd.f32 %v485, %v4427
        %v4429 = vpop.f32.mrb[0].mxu0
        %4430 = vmatprep.mubr.f32.mxu0 0.0
        %4431 = vmatmul.mubr.f32.gmra.mrb[0].mxu0 %v4338
        %v4432 = vpop.f32.mrb[0].mxu0
        %v4433 = vadd.f32 %v485, %v4432
        %v4434 = vpop.f32.mrb[0].mxu0
        %4435 = vmatprep.mubr.f32.mxu0 0.0
        %4436 = vmatmul.mubr.f32.gmra.mrb[0].mxu0 %v4339
        %v4437 = vpop.f32.mrb[0].mxu0
        %v4438 = vadd.f32 %v485, %v4437
        %v4439 = vpop.f32.mrb[0].mxu0
        %4440 = vmatprep.mubr.f32.mxu0 0.0
        %4441 = vmatmul.mubr.f32.gmra.mrb[0].mxu0 %v4340
        %v4442 = vpop.f32.mrb[0].mxu0
        %v4443 = vadd.f32 %v485, %v4442
        %v4444 = vpop.f32.mrb[0].mxu0
        %4445 = vmatprep.mubr.f32.mxu0 0.0
        %4446 = vmatmul.mubr.f32.gmra.mrb[0].mxu0 %v4341
        %v4447 = vpop.f32.mrb[0].mxu0
        %v4448 = vadd.f32 %v485, %v4447
        %v4449 = vpop.f32.mrb[0].mxu0
        %4450 = vmatprep.mubr.f32.mxu0 0.0
        %4451 = vmatmul.mubr.f32.gmra.mrb[0].mxu0 %v4342
        %v4452 = vpop.f32.mrb[0].mxu0
        %v4453 = vadd.f32 %v485, %v4452
        %v4454 = vpop.f32.mrb[0].mxu0
        %4455 = vmatprep.mubr.f32.mxu0 0.0
        %4456 = vmatmul.mubr.f32.gmra.mrb[0].mxu0 %v4343
        %v4457 = vpop.f32.mrb[0].mxu0
        %v4458 = vadd.f32 %v485, %v4457
        %v4459 = vpop.f32.mrb[0].mxu0
        %4460 = vmatprep.mubr.f32.mxu0 0.0
        %4461 = vmatmul.mubr.f32.gmra.mrb[0].mxu0 %v4344
        %v4462 = vpop.f32.mrb[0].mxu0
        %v4463 = vadd.f32 %v485, %v4462
        %v4464 = vpop.f32.mrb[0].mxu0
        %4465 = vmatprep.mubr.f32.mxu0 0.0
        %4466 = vmatmul.mubr.f32.gmra.mrb[0].mxu0 %v4345
        %v4467 = vpop.f32.mrb[0].mxu0
        %v4468 = vadd.f32 %v485, %v4467
        %v4469 = vpop.f32.mrb[0].mxu0
        %4470 = vmatprep.mubr.f32.mxu0 0.0
        %4471 = vmatmul.mubr.f32.gmra.mrb[0].mxu0 %v4346
        %v4472 = vpop.f32.mrb[0].mxu0
        %v4473 = vadd.f32 %v485, %v4472
        %v4474 = vpop.f32.mrb[0].mxu0
        %4475 = vmatprep.mubr.f32.mxu0 0.0
        %4476 = vmatmul.mubr.f32.gmra.mrb[0].mxu0 %v4347
        %v4477 = vpop.f32.mrb[0].mxu0
        %v4478 = vadd.f32 %v485, %v4477
        %v4479 = vpop.f32.mrb[0].mxu0
        %4480 = vmatprep.mubr.f32.mxu0 0.0
        %4481 = vmatmul.mubr.f32.gmra.mrb[0].mxu0 %v4348
        %v4482 = vpop.f32.mrb[0].mxu0
        %v4483 = vadd.f32 %v485, %v4482
        %v4484 = vpop.f32.mrb[0].mxu0
        %4485 = vmatprep.mubr.f32.mxu0 0.0
        %4486 = vmatmul.mubr.f32.gmra.mrb[0].mxu0 %v4349
        %v4487 = vpop.f32.mrb[0].mxu0
        %v4488 = vadd.f32 %v485, %v4487
        %v4489 = vpop.f32.mrb[0].mxu0
        %4490 = vmatprep.mubr.f32.mxu0 0.0
        %4491 = vmatmul.mubr.f32.gmra.mrb[0].mxu0 %v4350
        %v4492 = vpop.f32.mrb[0].mxu0
        %v4493 = vadd.f32 %v485, %v4492
        %v4494 = vpop.f32.mrb[0].mxu0
        %4495 = vdwg.mxu0
        %v4496 = vmax.f32 %v4418, 0.0
        %v4497 = vmax.f32 %v4423, 0.0
        %v4498 = vmax.f32 %v4428, 0.0
        %v4499 = vmax.f32 %v4433, 0.0
        %v4500 = vmax.f32 %v4438, 0.0
        %v4501 = vmax.f32 %v4443, 0.0
        %v4502 = vmax.f32 %v4448, 0.0
        %v4503 = vmax.f32 %v4453, 0.0
        %v4504 = vmax.f32 %v4458, 0.0
        %v4505 = vmax.f32 %v4463, 0.0
        %v4506 = vmax.f32 %v4468, 0.0
        %v4507 = vmax.f32 %v4473, 0.0
        %v4508 = vmax.f32 %v4478, 0.0
        %v4509 = vmax.f32 %v4483, 0.0
        %v4510 = vmax.f32 %v4488, 0.0
        %v4511 = vmax.f32 %v4493, 0.0
        %v4512 = vmax.f32 %v4318, %v4496
        %v4513 = vmax.f32 %v4319, %v4497
        %v4514 = vmax.f32 %v4320, %v4498
        %v4515 = vmax.f32 %v4321, %v4499
        %v4516 = vmax.f32 %v4322, %v4500
        %v4517 = vmax.f32 %v4323, %v4501
        %v4518 = vmax.f32 %v4324, %v4502
        %v4519 = vmax.f32 %v4325, %v4503
        %v4520 = vmax.f32 %v4326, %v4504
        %v4521 = vmax.f32 %v4327, %v4505
        %v4522 = vmax.f32 %v4328, %v4506
        %v4523 = vmax.f32 %v4329, %v4507
        %v4524 = vmax.f32 %v4330, %v4508
        %v4525 = vmax.f32 %v4331, %v4509
        %v4526 = vmax.f32 %v4332, %v4510
        %v4527 = vmax.f32 %v4333, %v4511
        %s4528 = scalar_lea.vmem %s447, 2688
        %v4529 = vld [vmem:[%s4528] sm:$0xff]
        %v4530 = vld [vmem:[%s4528 + $0x8] sm:$0xff]
        %v4531 = vld [vmem:[%s4528 + $0x10] sm:$0xff]
        %v4532 = vld [vmem:[%s4528 + $0x18] sm:$0xff]
        %v4533 = vld [vmem:[%s4528 + $0x20] sm:$0xff]
        %v4534 = vld [vmem:[%s4528 + $0x28] sm:$0xff]
        %v4535 = vld [vmem:[%s4528 + $0x30] sm:$0xff]
        %v4536 = vld [vmem:[%s4528 + $0x38] sm:$0xff]
        %v4537 = vld [vmem:[%s4528 + $0x40] sm:$0xff]
        %v4538 = vld [vmem:[%s4528 + $0x48] sm:$0xff]
        %v4539 = vld [vmem:[%s4528 + $0x50] sm:$0xff]
        %v4540 = vld [vmem:[%s4528 + $0x58] sm:$0xff]
        %v4541 = vld [vmem:[%s4528 + $0x60] sm:$0xff]
        %v4542 = vld [vmem:[%s4528 + $0x68] sm:$0xff]
        %v4543 = vld [vmem:[%s4528 + $0x70] sm:$0xff]
        %v4544 = vld [vmem:[%s4528 + $0x78] sm:$0xff]
        %4545 = vmatprep.subr.mxu0 0.0
        %4546 = vmatpush1.msra.mxu0 %v448
        %4547 = vmatprep.subr.mxu0 0.0
        %4548 = vmatpush1.msra.mxu0 %v449
        %4549 = vmatprep.subr.mxu0 0.0
        %4550 = vmatpush1.msra.mxu0 %v450
        %4551 = vmatprep.subr.mxu0 0.0
        %4552 = vmatpush1.msra.mxu0 %v451
        %4553 = vmatprep.subr.mxu0 0.0
        %4554 = vmatpush1.msra.mxu0 %v452
        %4555 = vmatprep.subr.mxu0 0.0
        %4556 = vmatpush1.msra.mxu0 %v453
        %4557 = vmatprep.subr.mxu0 0.0
        %4558 = vmatpush1.msra.mxu0 %v454
        %4559 = vmatprep.subr.mxu0 0.0
        %4560 = vmatpush1.msra.mxu0 %v455
        %4561 = vmatprep.subr.mxu0 0.0
        %4562 = vmatpush1.msra.mxu0 %v456
        %4563 = vmatprep.subr.mxu0 0.0
        %4564 = vmatpush1.msra.mxu0 %v457
        %4565 = vmatprep.subr.mxu0 0.0
        %4566 = vmatpush1.msra.mxu0 %v458
        %4567 = vmatprep.subr.mxu0 0.0
        %4568 = vmatpush1.msra.mxu0 %v459
        %4569 = vmatprep.subr.mxu0 0.0
        %4570 = vmatpush1.msra.mxu0 %v460
        %4571 = vmatprep.subr.mxu0 0.0
        %4572 = vmatpush1.msra.mxu0 %v461
        %4573 = vmatprep.subr.mxu0 0.0
        %4574 = vmatpush1.msra.mxu0 %v462
        %4575 = vmatprep.subr.mxu0 0.0
        %4576 = vmatpush1.msra.mxu0 %v463
        %4577 = vmatprep.subr.mxu0 0.0
        %4578 = vmatpush1.msra.mxu0 0.0
        %4579 = vmatprep.subr.mxu0 0.0
        %4580 = vmatpush1.msra.mxu0 0.0
        %4581 = vmatprep.subr.mxu0 0.0
        %4582 = vmatpush1.msra.mxu0 0.0
        %4583 = vmatprep.subr.mxu0 0.0
        %4584 = vmatpush1.msra.mxu0 0.0
        %4585 = vmatprep.subr.mxu0 0.0
        %4586 = vmatpush1.msra.mxu0 0.0
        %4587 = vmatprep.subr.mxu0 0.0
        %4588 = vmatpush1.msra.mxu0 0.0
        %4589 = vmatprep.subr.mxu0 0.0
        %4590 = vmatpush1.msra.mxu0 0.0
        %4591 = vmatprep.subr.mxu0 0.0
        %4592 = vmatpush1.msra.mxu0 0.0
        %4593 = vmatprep.subr.mxu0 0.0
        %4594 = vmatpush1.msra.mxu0 0.0
        %4595 = vmatprep.subr.mxu0 0.0
        %4596 = vmatpush1.msra.mxu0 0.0
        %4597 = vmatprep.subr.mxu0 0.0
        %4598 = vmatpush1.msra.mxu0 0.0
        %4599 = vmatprep.subr.mxu0 0.0
        %4600 = vmatpush1.msra.mxu0 0.0
        %4601 = vmatprep.subr.mxu0 0.0
        %4602 = vmatpush1.msra.mxu0 0.0
        %4603 = vmatprep.subr.mxu0 0.0
        %4604 = vmatpush1.msra.mxu0 0.0
        %4605 = vmatprep.subr.mxu0 0.0
        %4606 = vmatpush1.msra.mxu0 0.0
        %4607 = vmatprep.subr.mxu0 0.0
        %4608 = vmatpush1.msra.mxu0 0.0
        %4609 = vmatprep.mubr.f32.mxu0 0.0
        %4610 = vmatmul.mubr.f32.gmra.mrb[0].mxu0 %v4529
        %v4611 = vpop.f32.mrb[0].mxu0
        %v4612 = vadd.f32 %v485, %v4611
        %v4613 = vpop.f32.mrb[0].mxu0
        %4614 = vmatprep.mubr.f32.mxu0 0.0
        %4615 = vmatmul.mubr.f32.gmra.mrb[0].mxu0 %v4530
        %v4616 = vpop.f32.mrb[0].mxu0
        %v4617 = vadd.f32 %v485, %v4616
        %v4618 = vpop.f32.mrb[0].mxu0
        %4619 = vmatprep.mubr.f32.mxu0 0.0
        %4620 = vmatmul.mubr.f32.gmra.mrb[0].mxu0 %v4531
        %v4621 = vpop.f32.mrb[0].mxu0
        %v4622 = vadd.f32 %v485, %v4621
        %v4623 = vpop.f32.mrb[0].mxu0
        %4624 = vmatprep.mubr.f32.mxu0 0.0
        %4625 = vmatmul.mubr.f32.gmra.mrb[0].mxu0 %v4532
        %v4626 = vpop.f32.mrb[0].mxu0
        %v4627 = vadd.f32 %v485, %v4626
        %v4628 = vpop.f32.mrb[0].mxu0
        %4629 = vmatprep.mubr.f32.mxu0 0.0
        %4630 = vmatmul.mubr.f32.gmra.mrb[0].mxu0 %v4533
        %v4631 = vpop.f32.mrb[0].mxu0
        %v4632 = vadd.f32 %v485, %v4631
        %v4633 = vpop.f32.mrb[0].mxu0
        %4634 = vmatprep.mubr.f32.mxu0 0.0
        %4635 = vmatmul.mubr.f32.gmra.mrb[0].mxu0 %v4534
        %v4636 = vpop.f32.mrb[0].mxu0
        %v4637 = vadd.f32 %v485, %v4636
        %v4638 = vpop.f32.mrb[0].mxu0
        %4639 = vmatprep.mubr.f32.mxu0 0.0
        %4640 = vmatmul.mubr.f32.gmra.mrb[0].mxu0 %v4535
        %v4641 = vpop.f32.mrb[0].mxu0
        %v4642 = vadd.f32 %v485, %v4641
        %v4643 = vpop.f32.mrb[0].mxu0
        %4644 = vmatprep.mubr.f32.mxu0 0.0
        %4645 = vmatmul.mubr.f32.gmra.mrb[0].mxu0 %v4536
        %v4646 = vpop.f32.mrb[0].mxu0
        %v4647 = vadd.f32 %v485, %v4646
        %v4648 = vpop.f32.mrb[0].mxu0
        %4649 = vmatprep.mubr.f32.mxu0 0.0
        %4650 = vmatmul.mubr.f32.gmra.mrb[0].mxu0 %v4537
        %v4651 = vpop.f32.mrb[0].mxu0
        %v4652 = vadd.f32 %v485, %v4651
        %v4653 = vpop.f32.mrb[0].mxu0
        %4654 = vmatprep.mubr.f32.mxu0 0.0
        %4655 = vmatmul.mubr.f32.gmra.mrb[0].mxu0 %v4538
        %v4656 = vpop.f32.mrb[0].mxu0
        %v4657 = vadd.f32 %v485, %v4656
        %v4658 = vpop.f32.mrb[0].mxu0
        %4659 = vmatprep.mubr.f32.mxu0 0.0
        %4660 = vmatmul.mubr.f32.gmra.mrb[0].mxu0 %v4539
        %v4661 = vpop.f32.mrb[0].mxu0
        %v4662 = vadd.f32 %v485, %v4661
        %v4663 = vpop.f32.mrb[0].mxu0
        %4664 = vmatprep.mubr.f32.mxu0 0.0
        %4665 = vmatmul.mubr.f32.gmra.mrb[0].mxu0 %v4540
        %v4666 = vpop.f32.mrb[0].mxu0
        %v4667 = vadd.f32 %v485, %v4666
        %v4668 = vpop.f32.mrb[0].mxu0
        %4669 = vmatprep.mubr.f32.mxu0 0.0
        %4670 = vmatmul.mubr.f32.gmra.mrb[0].mxu0 %v4541
        %v4671 = vpop.f32.mrb[0].mxu0
        %v4672 = vadd.f32 %v485, %v4671
        %v4673 = vpop.f32.mrb[0].mxu0
        %4674 = vmatprep.mubr.f32.mxu0 0.0
        %4675 = vmatmul.mubr.f32.gmra.mrb[0].mxu0 %v4542
        %v4676 = vpop.f32.mrb[0].mxu0
        %v4677 = vadd.f32 %v485, %v4676
        %v4678 = vpop.f32.mrb[0].mxu0
        %4679 = vmatprep.mubr.f32.mxu0 0.0
        %4680 = vmatmul.mubr.f32.gmra.mrb[0].mxu0 %v4543
        %v4681 = vpop.f32.mrb[0].mxu0
        %v4682 = vadd.f32 %v485, %v4681
        %v4683 = vpop.f32.mrb[0].mxu0
        %4684 = vmatprep.mubr.f32.mxu0 0.0
        %4685 = vmatmul.mubr.f32.gmra.mrb[0].mxu0 %v4544
        %v4686 = vpop.f32.mrb[0].mxu0
        %v4687 = vadd.f32 %v485, %v4686
        %v4688 = vpop.f32.mrb[0].mxu0
        %4689 = vdwg.mxu0
        %v4690 = vmax.f32 %v4612, 0.0
        %v4691 = vmax.f32 %v4617, 0.0
        %v4692 = vmax.f32 %v4622, 0.0
        %v4693 = vmax.f32 %v4627, 0.0
        %v4694 = vmax.f32 %v4632, 0.0
        %v4695 = vmax.f32 %v4637, 0.0
        %v4696 = vmax.f32 %v4642, 0.0
        %v4697 = vmax.f32 %v4647, 0.0
        %v4698 = vmax.f32 %v4652, 0.0
        %v4699 = vmax.f32 %v4657, 0.0
        %v4700 = vmax.f32 %v4662, 0.0
        %v4701 = vmax.f32 %v4667, 0.0
        %v4702 = vmax.f32 %v4672, 0.0
        %v4703 = vmax.f32 %v4677, 0.0
        %v4704 = vmax.f32 %v4682, 0.0
        %v4705 = vmax.f32 %v4687, 0.0
        %v4706 = vmax.f32 %v4512, %v4690
        %v4707 = vmax.f32 %v4513, %v4691
        %v4708 = vmax.f32 %v4514, %v4692
        %v4709 = vmax.f32 %v4515, %v4693
        %v4710 = vmax.f32 %v4516, %v4694
        %v4711 = vmax.f32 %v4517, %v4695
        %v4712 = vmax.f32 %v4518, %v4696
        %v4713 = vmax.f32 %v4519, %v4697
        %v4714 = vmax.f32 %v4520, %v4698
        %v4715 = vmax.f32 %v4521, %v4699
        %v4716 = vmax.f32 %v4522, %v4700
        %v4717 = vmax.f32 %v4523, %v4701
        %v4718 = vmax.f32 %v4524, %v4702
        %v4719 = vmax.f32 %v4525, %v4703
        %v4720 = vmax.f32 %v4526, %v4704
        %v4721 = vmax.f32 %v4527, %v4705
        %s4722 = scalar_lea.vmem %s447, 2816
        %v4723 = vld [vmem:[%s4722] sm:$0xff]
        %v4724 = vld [vmem:[%s4722 + $0x8] sm:$0xff]
        %v4725 = vld [vmem:[%s4722 + $0x10] sm:$0xff]
        %v4726 = vld [vmem:[%s4722 + $0x18] sm:$0xff]
        %v4727 = vld [vmem:[%s4722 + $0x20] sm:$0xff]
        %v4728 = vld [vmem:[%s4722 + $0x28] sm:$0xff]
        %v4729 = vld [vmem:[%s4722 + $0x30] sm:$0xff]
        %v4730 = vld [vmem:[%s4722 + $0x38] sm:$0xff]
        %v4731 = vld [vmem:[%s4722 + $0x40] sm:$0xff]
        %v4732 = vld [vmem:[%s4722 + $0x48] sm:$0xff]
        %v4733 = vld [vmem:[%s4722 + $0x50] sm:$0xff]
        %v4734 = vld [vmem:[%s4722 + $0x58] sm:$0xff]
        %v4735 = vld [vmem:[%s4722 + $0x60] sm:$0xff]
        %v4736 = vld [vmem:[%s4722 + $0x68] sm:$0xff]
        %v4737 = vld [vmem:[%s4722 + $0x70] sm:$0xff]
        %v4738 = vld [vmem:[%s4722 + $0x78] sm:$0xff]
        %4739 = vmatprep.subr.mxu0 0.0
        %4740 = vmatpush1.msra.mxu0 %v448
        %4741 = vmatprep.subr.mxu0 0.0
        %4742 = vmatpush1.msra.mxu0 %v449
        %4743 = vmatprep.subr.mxu0 0.0
        %4744 = vmatpush1.msra.mxu0 %v450
        %4745 = vmatprep.subr.mxu0 0.0
        %4746 = vmatpush1.msra.mxu0 %v451
        %4747 = vmatprep.subr.mxu0 0.0
        %4748 = vmatpush1.msra.mxu0 %v452
        %4749 = vmatprep.subr.mxu0 0.0
        %4750 = vmatpush1.msra.mxu0 %v453
        %4751 = vmatprep.subr.mxu0 0.0
        %4752 = vmatpush1.msra.mxu0 %v454
        %4753 = vmatprep.subr.mxu0 0.0
        %4754 = vmatpush1.msra.mxu0 %v455
        %4755 = vmatprep.subr.mxu0 0.0
        %4756 = vmatpush1.msra.mxu0 %v456
        %4757 = vmatprep.subr.mxu0 0.0
        %4758 = vmatpush1.msra.mxu0 %v457
        %4759 = vmatprep.subr.mxu0 0.0
        %4760 = vmatpush1.msra.mxu0 %v458
        %4761 = vmatprep.subr.mxu0 0.0
        %4762 = vmatpush1.msra.mxu0 %v459
        %4763 = vmatprep.subr.mxu0 0.0
        %4764 = vmatpush1.msra.mxu0 %v460
        %4765 = vmatprep.subr.mxu0 0.0
        %4766 = vmatpush1.msra.mxu0 %v461
        %4767 = vmatprep.subr.mxu0 0.0
        %4768 = vmatpush1.msra.mxu0 %v462
        %4769 = vmatprep.subr.mxu0 0.0
        %4770 = vmatpush1.msra.mxu0 %v463
        %4771 = vmatprep.subr.mxu0 0.0
        %4772 = vmatpush1.msra.mxu0 0.0
        %4773 = vmatprep.subr.mxu0 0.0
        %4774 = vmatpush1.msra.mxu0 0.0
        %4775 = vmatprep.subr.mxu0 0.0
        %4776 = vmatpush1.msra.mxu0 0.0
        %4777 = vmatprep.subr.mxu0 0.0
        %4778 = vmatpush1.msra.mxu0 0.0
        %4779 = vmatprep.subr.mxu0 0.0
        %4780 = vmatpush1.msra.mxu0 0.0
        %4781 = vmatprep.subr.mxu0 0.0
        %4782 = vmatpush1.msra.mxu0 0.0
        %4783 = vmatprep.subr.mxu0 0.0
        %4784 = vmatpush1.msra.mxu0 0.0
        %4785 = vmatprep.subr.mxu0 0.0
        %4786 = vmatpush1.msra.mxu0 0.0
        %4787 = vmatprep.subr.mxu0 0.0
        %4788 = vmatpush1.msra.mxu0 0.0
        %4789 = vmatprep.subr.mxu0 0.0
        %4790 = vmatpush1.msra.mxu0 0.0
        %4791 = vmatprep.subr.mxu0 0.0
        %4792 = vmatpush1.msra.mxu0 0.0
        %4793 = vmatprep.subr.mxu0 0.0
        %4794 = vmatpush1.msra.mxu0 0.0
        %4795 = vmatprep.subr.mxu0 0.0
        %4796 = vmatpush1.msra.mxu0 0.0
        %4797 = vmatprep.subr.mxu0 0.0
        %4798 = vmatpush1.msra.mxu0 0.0
        %4799 = vmatprep.subr.mxu0 0.0
        %4800 = vmatpush1.msra.mxu0 0.0
        %4801 = vmatprep.subr.mxu0 0.0
        %4802 = vmatpush1.msra.mxu0 0.0
        %4803 = vmatprep.mubr.f32.mxu0 0.0
        %4804 = vmatmul.mubr.f32.gmra.mrb[0].mxu0 %v4723
        %v4805 = vpop.f32.mrb[0].mxu0
        %v4806 = vadd.f32 %v485, %v4805
        %v4807 = vpop.f32.mrb[0].mxu0
        %4808 = vmatprep.mubr.f32.mxu0 0.0
        %4809 = vmatmul.mubr.f32.gmra.mrb[0].mxu0 %v4724
        %v4810 = vpop.f32.mrb[0].mxu0
        %v4811 = vadd.f32 %v485, %v4810
        %v4812 = vpop.f32.mrb[0].mxu0
        %4813 = vmatprep.mubr.f32.mxu0 0.0
        %4814 = vmatmul.mubr.f32.gmra.mrb[0].mxu0 %v4725
        %v4815 = vpop.f32.mrb[0].mxu0
        %v4816 = vadd.f32 %v485, %v4815
        %v4817 = vpop.f32.mrb[0].mxu0
        %4818 = vmatprep.mubr.f32.mxu0 0.0
        %4819 = vmatmul.mubr.f32.gmra.mrb[0].mxu0 %v4726
        %v4820 = vpop.f32.mrb[0].mxu0
        %v4821 = vadd.f32 %v485, %v4820
        %v4822 = vpop.f32.mrb[0].mxu0
        %4823 = vmatprep.mubr.f32.mxu0 0.0
        %4824 = vmatmul.mubr.f32.gmra.mrb[0].mxu0 %v4727
        %v4825 = vpop.f32.mrb[0].mxu0
        %v4826 = vadd.f32 %v485, %v4825
        %v4827 = vpop.f32.mrb[0].mxu0
        %4828 = vmatprep.mubr.f32.mxu0 0.0
        %4829 = vmatmul.mubr.f32.gmra.mrb[0].mxu0 %v4728
        %v4830 = vpop.f32.mrb[0].mxu0
        %v4831 = vadd.f32 %v485, %v4830
        %v4832 = vpop.f32.mrb[0].mxu0
        %4833 = vmatprep.mubr.f32.mxu0 0.0
        %4834 = vmatmul.mubr.f32.gmra.mrb[0].mxu0 %v4729
        %v4835 = vpop.f32.mrb[0].mxu0
        %v4836 = vadd.f32 %v485, %v4835
        %v4837 = vpop.f32.mrb[0].mxu0
        %4838 = vmatprep.mubr.f32.mxu0 0.0
        %4839 = vmatmul.mubr.f32.gmra.mrb[0].mxu0 %v4730
        %v4840 = vpop.f32.mrb[0].mxu0
        %v4841 = vadd.f32 %v485, %v4840
        %v4842 = vpop.f32.mrb[0].mxu0
        %4843 = vmatprep.mubr.f32.mxu0 0.0
        %4844 = vmatmul.mubr.f32.gmra.mrb[0].mxu0 %v4731
        %v4845 = vpop.f32.mrb[0].mxu0
        %v4846 = vadd.f32 %v485, %v4845
        %v4847 = vpop.f32.mrb[0].mxu0
        %4848 = vmatprep.mubr.f32.mxu0 0.0
        %4849 = vmatmul.mubr.f32.gmra.mrb[0].mxu0 %v4732
        %v4850 = vpop.f32.mrb[0].mxu0
        %v4851 = vadd.f32 %v485, %v4850
        %v4852 = vpop.f32.mrb[0].mxu0
        %4853 = vmatprep.mubr.f32.mxu0 0.0
        %4854 = vmatmul.mubr.f32.gmra.mrb[0].mxu0 %v4733
        %v4855 = vpop.f32.mrb[0].mxu0
        %v4856 = vadd.f32 %v485, %v4855
        %v4857 = vpop.f32.mrb[0].mxu0
        %4858 = vmatprep.mubr.f32.mxu0 0.0
        %4859 = vmatmul.mubr.f32.gmra.mrb[0].mxu0 %v4734
        %v4860 = vpop.f32.mrb[0].mxu0
        %v4861 = vadd.f32 %v485, %v4860
        %v4862 = vpop.f32.mrb[0].mxu0
        %4863 = vmatprep.mubr.f32.mxu0 0.0
        %4864 = vmatmul.mubr.f32.gmra.mrb[0].mxu0 %v4735
        %v4865 = vpop.f32.mrb[0].mxu0
        %v4866 = vadd.f32 %v485, %v4865
        %v4867 = vpop.f32.mrb[0].mxu0
        %4868 = vmatprep.mubr.f32.mxu0 0.0
        %4869 = vmatmul.mubr.f32.gmra.mrb[0].mxu0 %v4736
        %v4870 = vpop.f32.mrb[0].mxu0
        %v4871 = vadd.f32 %v485, %v4870
        %v4872 = vpop.f32.mrb[0].mxu0
        %4873 = vmatprep.mubr.f32.mxu0 0.0
        %4874 = vmatmul.mubr.f32.gmra.mrb[0].mxu0 %v4737
        %v4875 = vpop.f32.mrb[0].mxu0
        %v4876 = vadd.f32 %v485, %v4875
        %v4877 = vpop.f32.mrb[0].mxu0
        %4878 = vmatprep.mubr.f32.mxu0 0.0
        %4879 = vmatmul.mubr.f32.gmra.mrb[0].mxu0 %v4738
        %v4880 = vpop.f32.mrb[0].mxu0
        %v4881 = vadd.f32 %v485, %v4880
        %v4882 = vpop.f32.mrb[0].mxu0
        %4883 = vdwg.mxu0
        %v4884 = vmax.f32 %v4806, 0.0
        %v4885 = vmax.f32 %v4811, 0.0
        %v4886 = vmax.f32 %v4816, 0.0
        %v4887 = vmax.f32 %v4821, 0.0
        %v4888 = vmax.f32 %v4826, 0.0
        %v4889 = vmax.f32 %v4831, 0.0
        %v4890 = vmax.f32 %v4836, 0.0
        %v4891 = vmax.f32 %v4841, 0.0
        %v4892 = vmax.f32 %v4846, 0.0
        %v4893 = vmax.f32 %v4851, 0.0
        %v4894 = vmax.f32 %v4856, 0.0
        %v4895 = vmax.f32 %v4861, 0.0
        %v4896 = vmax.f32 %v4866, 0.0
        %v4897 = vmax.f32 %v4871, 0.0
        %v4898 = vmax.f32 %v4876, 0.0
        %v4899 = vmax.f32 %v4881, 0.0
        %v4900 = vmax.f32 %v4706, %v4884
        %v4901 = vmax.f32 %v4707, %v4885
        %v4902 = vmax.f32 %v4708, %v4886
        %v4903 = vmax.f32 %v4709, %v4887
        %v4904 = vmax.f32 %v4710, %v4888
        %v4905 = vmax.f32 %v4711, %v4889
        %v4906 = vmax.f32 %v4712, %v4890
        %v4907 = vmax.f32 %v4713, %v4891
        %v4908 = vmax.f32 %v4714, %v4892
        %v4909 = vmax.f32 %v4715, %v4893
        %v4910 = vmax.f32 %v4716, %v4894
        %v4911 = vmax.f32 %v4717, %v4895
        %v4912 = vmax.f32 %v4718, %v4896
        %v4913 = vmax.f32 %v4719, %v4897
        %v4914 = vmax.f32 %v4720, %v4898
        %v4915 = vmax.f32 %v4721, %v4899
        %s4916 = scalar_lea.vmem %s447, 2944
        %v4917 = vld [vmem:[%s4916] sm:$0xff]
        %v4918 = vld [vmem:[%s4916 + $0x8] sm:$0xff]
        %v4919 = vld [vmem:[%s4916 + $0x10] sm:$0xff]
        %v4920 = vld [vmem:[%s4916 + $0x18] sm:$0xff]
        %v4921 = vld [vmem:[%s4916 + $0x20] sm:$0xff]
        %v4922 = vld [vmem:[%s4916 + $0x28] sm:$0xff]
        %v4923 = vld [vmem:[%s4916 + $0x30] sm:$0xff]
        %v4924 = vld [vmem:[%s4916 + $0x38] sm:$0xff]
        %v4925 = vld [vmem:[%s4916 + $0x40] sm:$0xff]
        %v4926 = vld [vmem:[%s4916 + $0x48] sm:$0xff]
        %v4927 = vld [vmem:[%s4916 + $0x50] sm:$0xff]
        %v4928 = vld [vmem:[%s4916 + $0x58] sm:$0xff]
        %v4929 = vld [vmem:[%s4916 + $0x60] sm:$0xff]
        %v4930 = vld [vmem:[%s4916 + $0x68] sm:$0xff]
        %v4931 = vld [vmem:[%s4916 + $0x70] sm:$0xff]
        %v4932 = vld [vmem:[%s4916 + $0x78] sm:$0xff]
        %4933 = vmatprep.subr.mxu0 0.0
        %4934 = vmatpush1.msra.mxu0 %v448
        %4935 = vmatprep.subr.mxu0 0.0
        %4936 = vmatpush1.msra.mxu0 %v449
        %4937 = vmatprep.subr.mxu0 0.0
        %4938 = vmatpush1.msra.mxu0 %v450
        %4939 = vmatprep.subr.mxu0 0.0
        %4940 = vmatpush1.msra.mxu0 %v451
        %4941 = vmatprep.subr.mxu0 0.0
        %4942 = vmatpush1.msra.mxu0 %v452
        %4943 = vmatprep.subr.mxu0 0.0
        %4944 = vmatpush1.msra.mxu0 %v453
        %4945 = vmatprep.subr.mxu0 0.0
        %4946 = vmatpush1.msra.mxu0 %v454
        %4947 = vmatprep.subr.mxu0 0.0
        %4948 = vmatpush1.msra.mxu0 %v455
        %4949 = vmatprep.subr.mxu0 0.0
        %4950 = vmatpush1.msra.mxu0 %v456
        %4951 = vmatprep.subr.mxu0 0.0
        %4952 = vmatpush1.msra.mxu0 %v457
        %4953 = vmatprep.subr.mxu0 0.0
        %4954 = vmatpush1.msra.mxu0 %v458
        %4955 = vmatprep.subr.mxu0 0.0
        %4956 = vmatpush1.msra.mxu0 %v459
        %4957 = vmatprep.subr.mxu0 0.0
        %4958 = vmatpush1.msra.mxu0 %v460
        %4959 = vmatprep.subr.mxu0 0.0
        %4960 = vmatpush1.msra.mxu0 %v461
        %4961 = vmatprep.subr.mxu0 0.0
        %4962 = vmatpush1.msra.mxu0 %v462
        %4963 = vmatprep.subr.mxu0 0.0
        %4964 = vmatpush1.msra.mxu0 %v463
        %4965 = vmatprep.subr.mxu0 0.0
        %4966 = vmatpush1.msra.mxu0 0.0
        %4967 = vmatprep.subr.mxu0 0.0
        %4968 = vmatpush1.msra.mxu0 0.0
        %4969 = vmatprep.subr.mxu0 0.0
        %4970 = vmatpush1.msra.mxu0 0.0
        %4971 = vmatprep.subr.mxu0 0.0
        %4972 = vmatpush1.msra.mxu0 0.0
        %4973 = vmatprep.subr.mxu0 0.0
        %4974 = vmatpush1.msra.mxu0 0.0
        %4975 = vmatprep.subr.mxu0 0.0
        %4976 = vmatpush1.msra.mxu0 0.0
        %4977 = vmatprep.subr.mxu0 0.0
        %4978 = vmatpush1.msra.mxu0 0.0
        %4979 = vmatprep.subr.mxu0 0.0
        %4980 = vmatpush1.msra.mxu0 0.0
        %4981 = vmatprep.subr.mxu0 0.0
        %4982 = vmatpush1.msra.mxu0 0.0
        %4983 = vmatprep.subr.mxu0 0.0
        %4984 = vmatpush1.msra.mxu0 0.0
        %4985 = vmatprep.subr.mxu0 0.0
        %4986 = vmatpush1.msra.mxu0 0.0
        %4987 = vmatprep.subr.mxu0 0.0
        %4988 = vmatpush1.msra.mxu0 0.0
        %4989 = vmatprep.subr.mxu0 0.0
        %4990 = vmatpush1.msra.mxu0 0.0
        %4991 = vmatprep.subr.mxu0 0.0
        %4992 = vmatpush1.msra.mxu0 0.0
        %4993 = vmatprep.subr.mxu0 0.0
        %4994 = vmatpush1.msra.mxu0 0.0
        %4995 = vmatprep.subr.mxu0 0.0
        %4996 = vmatpush1.msra.mxu0 0.0
        %4997 = vmatprep.mubr.f32.mxu0 0.0
        %4998 = vmatmul.mubr.f32.gmra.mrb[0].mxu0 %v4917
        %v4999 = vpop.f32.mrb[0].mxu0
        %v5000 = vadd.f32 %v485, %v4999
        %v5001 = vpop.f32.mrb[0].mxu0
        %5002 = vmatprep.mubr.f32.mxu0 0.0
        %5003 = vmatmul.mubr.f32.gmra.mrb[0].mxu0 %v4918
        %v5004 = vpop.f32.mrb[0].mxu0
        %v5005 = vadd.f32 %v485, %v5004
        %v5006 = vpop.f32.mrb[0].mxu0
        %5007 = vmatprep.mubr.f32.mxu0 0.0
        %5008 = vmatmul.mubr.f32.gmra.mrb[0].mxu0 %v4919
        %v5009 = vpop.f32.mrb[0].mxu0
        %v5010 = vadd.f32 %v485, %v5009
        %v5011 = vpop.f32.mrb[0].mxu0
        %5012 = vmatprep.mubr.f32.mxu0 0.0
        %5013 = vmatmul.mubr.f32.gmra.mrb[0].mxu0 %v4920
        %v5014 = vpop.f32.mrb[0].mxu0
        %v5015 = vadd.f32 %v485, %v5014
        %v5016 = vpop.f32.mrb[0].mxu0
        %5017 = vmatprep.mubr.f32.mxu0 0.0
        %5018 = vmatmul.mubr.f32.gmra.mrb[0].mxu0 %v4921
        %v5019 = vpop.f32.mrb[0].mxu0
        %v5020 = vadd.f32 %v485, %v5019
        %v5021 = vpop.f32.mrb[0].mxu0
        %5022 = vmatprep.mubr.f32.mxu0 0.0
        %5023 = vmatmul.mubr.f32.gmra.mrb[0].mxu0 %v4922
        %v5024 = vpop.f32.mrb[0].mxu0
        %v5025 = vadd.f32 %v485, %v5024
        %v5026 = vpop.f32.mrb[0].mxu0
        %5027 = vmatprep.mubr.f32.mxu0 0.0
        %5028 = vmatmul.mubr.f32.gmra.mrb[0].mxu0 %v4923
        %v5029 = vpop.f32.mrb[0].mxu0
        %v5030 = vadd.f32 %v485, %v5029
        %v5031 = vpop.f32.mrb[0].mxu0
        %5032 = vmatprep.mubr.f32.mxu0 0.0
        %5033 = vmatmul.mubr.f32.gmra.mrb[0].mxu0 %v4924
        %v5034 = vpop.f32.mrb[0].mxu0
        %v5035 = vadd.f32 %v485, %v5034
        %v5036 = vpop.f32.mrb[0].mxu0
        %5037 = vmatprep.mubr.f32.mxu0 0.0
        %5038 = vmatmul.mubr.f32.gmra.mrb[0].mxu0 %v4925
        %v5039 = vpop.f32.mrb[0].mxu0
        %v5040 = vadd.f32 %v485, %v5039
        %v5041 = vpop.f32.mrb[0].mxu0
        %5042 = vmatprep.mubr.f32.mxu0 0.0
        %5043 = vmatmul.mubr.f32.gmra.mrb[0].mxu0 %v4926
        %v5044 = vpop.f32.mrb[0].mxu0
        %v5045 = vadd.f32 %v485, %v5044
        %v5046 = vpop.f32.mrb[0].mxu0
        %5047 = vmatprep.mubr.f32.mxu0 0.0
        %5048 = vmatmul.mubr.f32.gmra.mrb[0].mxu0 %v4927
        %v5049 = vpop.f32.mrb[0].mxu0
        %v5050 = vadd.f32 %v485, %v5049
        %v5051 = vpop.f32.mrb[0].mxu0
        %5052 = vmatprep.mubr.f32.mxu0 0.0
        %5053 = vmatmul.mubr.f32.gmra.mrb[0].mxu0 %v4928
        %v5054 = vpop.f32.mrb[0].mxu0
        %v5055 = vadd.f32 %v485, %v5054
        %v5056 = vpop.f32.mrb[0].mxu0
        %5057 = vmatprep.mubr.f32.mxu0 0.0
        %5058 = vmatmul.mubr.f32.gmra.mrb[0].mxu0 %v4929
        %v5059 = vpop.f32.mrb[0].mxu0
        %v5060 = vadd.f32 %v485, %v5059
        %v5061 = vpop.f32.mrb[0].mxu0
        %5062 = vmatprep.mubr.f32.mxu0 0.0
        %5063 = vmatmul.mubr.f32.gmra.mrb[0].mxu0 %v4930
        %v5064 = vpop.f32.mrb[0].mxu0
        %v5065 = vadd.f32 %v485, %v5064
        %v5066 = vpop.f32.mrb[0].mxu0
        %5067 = vmatprep.mubr.f32.mxu0 0.0
        %5068 = vmatmul.mubr.f32.gmra.mrb[0].mxu0 %v4931
        %v5069 = vpop.f32.mrb[0].mxu0
        %v5070 = vadd.f32 %v485, %v5069
        %v5071 = vpop.f32.mrb[0].mxu0
        %5072 = vmatprep.mubr.f32.mxu0 0.0
        %5073 = vmatmul.mubr.f32.gmra.mrb[0].mxu0 %v4932
        %v5074 = vpop.f32.mrb[0].mxu0
        %v5075 = vadd.f32 %v485, %v5074
        %v5076 = vpop.f32.mrb[0].mxu0
        %5077 = vdwg.mxu0
        %v5078 = vmax.f32 %v5000, 0.0
        %v5079 = vmax.f32 %v5005, 0.0
        %v5080 = vmax.f32 %v5010, 0.0
        %v5081 = vmax.f32 %v5015, 0.0
        %v5082 = vmax.f32 %v5020, 0.0
        %v5083 = vmax.f32 %v5025, 0.0
        %v5084 = vmax.f32 %v5030, 0.0
        %v5085 = vmax.f32 %v5035, 0.0
        %v5086 = vmax.f32 %v5040, 0.0
        %v5087 = vmax.f32 %v5045, 0.0
        %v5088 = vmax.f32 %v5050, 0.0
        %v5089 = vmax.f32 %v5055, 0.0
        %v5090 = vmax.f32 %v5060, 0.0
        %v5091 = vmax.f32 %v5065, 0.0
        %v5092 = vmax.f32 %v5070, 0.0
        %v5093 = vmax.f32 %v5075, 0.0
        %v5094 = vmax.f32 %v4900, %v5078
        %v5095 = vmax.f32 %v4901, %v5079
        %v5096 = vmax.f32 %v4902, %v5080
        %v5097 = vmax.f32 %v4903, %v5081
        %v5098 = vmax.f32 %v4904, %v5082
        %v5099 = vmax.f32 %v4905, %v5083
        %v5100 = vmax.f32 %v4906, %v5084
        %v5101 = vmax.f32 %v4907, %v5085
        %v5102 = vmax.f32 %v4908, %v5086
        %v5103 = vmax.f32 %v4909, %v5087
        %v5104 = vmax.f32 %v4910, %v5088
        %v5105 = vmax.f32 %v4911, %v5089
        %v5106 = vmax.f32 %v4912, %v5090
        %v5107 = vmax.f32 %v4913, %v5091
        %v5108 = vmax.f32 %v4914, %v5092
        %v5109 = vmax.f32 %v4915, %v5093
        %s5110 = scalar_lea.vmem %s447, 3072
        %v5111 = vld [vmem:[%s5110] sm:$0xff]
        %v5112 = vld [vmem:[%s5110 + $0x8] sm:$0xff]
        %v5113 = vld [vmem:[%s5110 + $0x10] sm:$0xff]
        %v5114 = vld [vmem:[%s5110 + $0x18] sm:$0xff]
        %v5115 = vld [vmem:[%s5110 + $0x20] sm:$0xff]
        %v5116 = vld [vmem:[%s5110 + $0x28] sm:$0xff]
        %v5117 = vld [vmem:[%s5110 + $0x30] sm:$0xff]
        %v5118 = vld [vmem:[%s5110 + $0x38] sm:$0xff]
        %v5119 = vld [vmem:[%s5110 + $0x40] sm:$0xff]
        %v5120 = vld [vmem:[%s5110 + $0x48] sm:$0xff]
        %v5121 = vld [vmem:[%s5110 + $0x50] sm:$0xff]
        %v5122 = vld [vmem:[%s5110 + $0x58] sm:$0xff]
        %v5123 = vld [vmem:[%s5110 + $0x60] sm:$0xff]
        %v5124 = vld [vmem:[%s5110 + $0x68] sm:$0xff]
        %v5125 = vld [vmem:[%s5110 + $0x70] sm:$0xff]
        %v5126 = vld [vmem:[%s5110 + $0x78] sm:$0xff]
        %5127 = vmatprep.subr.mxu0 0.0
        %5128 = vmatpush1.msra.mxu0 %v448
        %5129 = vmatprep.subr.mxu0 0.0
        %5130 = vmatpush1.msra.mxu0 %v449
        %5131 = vmatprep.subr.mxu0 0.0
        %5132 = vmatpush1.msra.mxu0 %v450
        %5133 = vmatprep.subr.mxu0 0.0
        %5134 = vmatpush1.msra.mxu0 %v451
        %5135 = vmatprep.subr.mxu0 0.0
        %5136 = vmatpush1.msra.mxu0 %v452
        %5137 = vmatprep.subr.mxu0 0.0
        %5138 = vmatpush1.msra.mxu0 %v453
        %5139 = vmatprep.subr.mxu0 0.0
        %5140 = vmatpush1.msra.mxu0 %v454
        %5141 = vmatprep.subr.mxu0 0.0
        %5142 = vmatpush1.msra.mxu0 %v455
        %5143 = vmatprep.subr.mxu0 0.0
        %5144 = vmatpush1.msra.mxu0 %v456
        %5145 = vmatprep.subr.mxu0 0.0
        %5146 = vmatpush1.msra.mxu0 %v457
        %5147 = vmatprep.subr.mxu0 0.0
        %5148 = vmatpush1.msra.mxu0 %v458
        %5149 = vmatprep.subr.mxu0 0.0
        %5150 = vmatpush1.msra.mxu0 %v459
        %5151 = vmatprep.subr.mxu0 0.0
        %5152 = vmatpush1.msra.mxu0 %v460
        %5153 = vmatprep.subr.mxu0 0.0
        %5154 = vmatpush1.msra.mxu0 %v461
        %5155 = vmatprep.subr.mxu0 0.0
        %5156 = vmatpush1.msra.mxu0 %v462
        %5157 = vmatprep.subr.mxu0 0.0
        %5158 = vmatpush1.msra.mxu0 %v463
        %5159 = vmatprep.subr.mxu0 0.0
        %5160 = vmatpush1.msra.mxu0 0.0
        %5161 = vmatprep.subr.mxu0 0.0
        %5162 = vmatpush1.msra.mxu0 0.0
        %5163 = vmatprep.subr.mxu0 0.0
        %5164 = vmatpush1.msra.mxu0 0.0
        %5165 = vmatprep.subr.mxu0 0.0
        %5166 = vmatpush1.msra.mxu0 0.0
        %5167 = vmatprep.subr.mxu0 0.0
        %5168 = vmatpush1.msra.mxu0 0.0
        %5169 = vmatprep.subr.mxu0 0.0
        %5170 = vmatpush1.msra.mxu0 0.0
        %5171 = vmatprep.subr.mxu0 0.0
        %5172 = vmatpush1.msra.mxu0 0.0
        %5173 = vmatprep.subr.mxu0 0.0
        %5174 = vmatpush1.msra.mxu0 0.0
        %5175 = vmatprep.subr.mxu0 0.0
        %5176 = vmatpush1.msra.mxu0 0.0
        %5177 = vmatprep.subr.mxu0 0.0
        %5178 = vmatpush1.msra.mxu0 0.0
        %5179 = vmatprep.subr.mxu0 0.0
        %5180 = vmatpush1.msra.mxu0 0.0
        %5181 = vmatprep.subr.mxu0 0.0
        %5182 = vmatpush1.msra.mxu0 0.0
        %5183 = vmatprep.subr.mxu0 0.0
        %5184 = vmatpush1.msra.mxu0 0.0
        %5185 = vmatprep.subr.mxu0 0.0
        %5186 = vmatpush1.msra.mxu0 0.0
        %5187 = vmatprep.subr.mxu0 0.0
        %5188 = vmatpush1.msra.mxu0 0.0
        %5189 = vmatprep.subr.mxu0 0.0
        %5190 = vmatpush1.msra.mxu0 0.0
        %5191 = vmatprep.mubr.f32.mxu0 0.0
        %5192 = vmatmul.mubr.f32.gmra.mrb[0].mxu0 %v5111
        %v5193 = vpop.f32.mrb[0].mxu0
        %v5194 = vadd.f32 %v485, %v5193
        %v5195 = vpop.f32.mrb[0].mxu0
        %5196 = vmatprep.mubr.f32.mxu0 0.0
        %5197 = vmatmul.mubr.f32.gmra.mrb[0].mxu0 %v5112
        %v5198 = vpop.f32.mrb[0].mxu0
        %v5199 = vadd.f32 %v485, %v5198
        %v5200 = vpop.f32.mrb[0].mxu0
        %5201 = vmatprep.mubr.f32.mxu0 0.0
        %5202 = vmatmul.mubr.f32.gmra.mrb[0].mxu0 %v5113
        %v5203 = vpop.f32.mrb[0].mxu0
        %v5204 = vadd.f32 %v485, %v5203
        %v5205 = vpop.f32.mrb[0].mxu0
        %5206 = vmatprep.mubr.f32.mxu0 0.0
        %5207 = vmatmul.mubr.f32.gmra.mrb[0].mxu0 %v5114
        %v5208 = vpop.f32.mrb[0].mxu0
        %v5209 = vadd.f32 %v485, %v5208
        %v5210 = vpop.f32.mrb[0].mxu0
        %5211 = vmatprep.mubr.f32.mxu0 0.0
        %5212 = vmatmul.mubr.f32.gmra.mrb[0].mxu0 %v5115
        %v5213 = vpop.f32.mrb[0].mxu0
        %v5214 = vadd.f32 %v485, %v5213
        %v5215 = vpop.f32.mrb[0].mxu0
        %5216 = vmatprep.mubr.f32.mxu0 0.0
        %5217 = vmatmul.mubr.f32.gmra.mrb[0].mxu0 %v5116
        %v5218 = vpop.f32.mrb[0].mxu0
        %v5219 = vadd.f32 %v485, %v5218
        %v5220 = vpop.f32.mrb[0].mxu0
        %5221 = vmatprep.mubr.f32.mxu0 0.0
        %5222 = vmatmul.mubr.f32.gmra.mrb[0].mxu0 %v5117
        %v5223 = vpop.f32.mrb[0].mxu0
        %v5224 = vadd.f32 %v485, %v5223
        %v5225 = vpop.f32.mrb[0].mxu0
        %5226 = vmatprep.mubr.f32.mxu0 0.0
        %5227 = vmatmul.mubr.f32.gmra.mrb[0].mxu0 %v5118
        %v5228 = vpop.f32.mrb[0].mxu0
        %v5229 = vadd.f32 %v485, %v5228
        %v5230 = vpop.f32.mrb[0].mxu0
        %5231 = vmatprep.mubr.f32.mxu0 0.0
        %5232 = vmatmul.mubr.f32.gmra.mrb[0].mxu0 %v5119
        %v5233 = vpop.f32.mrb[0].mxu0
        %v5234 = vadd.f32 %v485, %v5233
        %v5235 = vpop.f32.mrb[0].mxu0
        %5236 = vmatprep.mubr.f32.mxu0 0.0
        %5237 = vmatmul.mubr.f32.gmra.mrb[0].mxu0 %v5120
        %v5238 = vpop.f32.mrb[0].mxu0
        %v5239 = vadd.f32 %v485, %v5238
        %v5240 = vpop.f32.mrb[0].mxu0
        %5241 = vmatprep.mubr.f32.mxu0 0.0
        %5242 = vmatmul.mubr.f32.gmra.mrb[0].mxu0 %v5121
        %v5243 = vpop.f32.mrb[0].mxu0
        %v5244 = vadd.f32 %v485, %v5243
        %v5245 = vpop.f32.mrb[0].mxu0
        %5246 = vmatprep.mubr.f32.mxu0 0.0
        %5247 = vmatmul.mubr.f32.gmra.mrb[0].mxu0 %v5122
        %v5248 = vpop.f32.mrb[0].mxu0
        %v5249 = vadd.f32 %v485, %v5248
        %v5250 = vpop.f32.mrb[0].mxu0
        %5251 = vmatprep.mubr.f32.mxu0 0.0
        %5252 = vmatmul.mubr.f32.gmra.mrb[0].mxu0 %v5123
        %v5253 = vpop.f32.mrb[0].mxu0
        %v5254 = vadd.f32 %v485, %v5253
        %v5255 = vpop.f32.mrb[0].mxu0
        %5256 = vmatprep.mubr.f32.mxu0 0.0
        %5257 = vmatmul.mubr.f32.gmra.mrb[0].mxu0 %v5124
        %v5258 = vpop.f32.mrb[0].mxu0
        %v5259 = vadd.f32 %v485, %v5258
        %v5260 = vpop.f32.mrb[0].mxu0
        %5261 = vmatprep.mubr.f32.mxu0 0.0
        %5262 = vmatmul.mubr.f32.gmra.mrb[0].mxu0 %v5125
        %v5263 = vpop.f32.mrb[0].mxu0
        %v5264 = vadd.f32 %v485, %v5263
        %v5265 = vpop.f32.mrb[0].mxu0
        %5266 = vmatprep.mubr.f32.mxu0 0.0
        %5267 = vmatmul.mubr.f32.gmra.mrb[0].mxu0 %v5126
        %v5268 = vpop.f32.mrb[0].mxu0
        %v5269 = vadd.f32 %v485, %v5268
        %v5270 = vpop.f32.mrb[0].mxu0
        %5271 = vdwg.mxu0
        %v5272 = vmax.f32 %v5194, 0.0
        %v5273 = vmax.f32 %v5199, 0.0
        %v5274 = vmax.f32 %v5204, 0.0
        %v5275 = vmax.f32 %v5209, 0.0
        %v5276 = vmax.f32 %v5214, 0.0
        %v5277 = vmax.f32 %v5219, 0.0
        %v5278 = vmax.f32 %v5224, 0.0
        %v5279 = vmax.f32 %v5229, 0.0
        %v5280 = vmax.f32 %v5234, 0.0
        %v5281 = vmax.f32 %v5239, 0.0
        %v5282 = vmax.f32 %v5244, 0.0
        %v5283 = vmax.f32 %v5249, 0.0
        %v5284 = vmax.f32 %v5254, 0.0
        %v5285 = vmax.f32 %v5259, 0.0
        %v5286 = vmax.f32 %v5264, 0.0
        %v5287 = vmax.f32 %v5269, 0.0
        %v5288 = vmax.f32 %v5094, %v5272
        %v5289 = vmax.f32 %v5095, %v5273
        %v5290 = vmax.f32 %v5096, %v5274
        %v5291 = vmax.f32 %v5097, %v5275
        %v5292 = vmax.f32 %v5098, %v5276
        %v5293 = vmax.f32 %v5099, %v5277
        %v5294 = vmax.f32 %v5100, %v5278
        %v5295 = vmax.f32 %v5101, %v5279
        %v5296 = vmax.f32 %v5102, %v5280
        %v5297 = vmax.f32 %v5103, %v5281
        %v5298 = vmax.f32 %v5104, %v5282
        %v5299 = vmax.f32 %v5105, %v5283
        %v5300 = vmax.f32 %v5106, %v5284
        %v5301 = vmax.f32 %v5107, %v5285
        %v5302 = vmax.f32 %v5108, %v5286
        %v5303 = vmax.f32 %v5109, %v5287
        %s5304 = scalar_lea.vmem %s447, 3200
        %v5305 = vld [vmem:[%s5304] sm:$0xff]
        %v5306 = vld [vmem:[%s5304 + $0x8] sm:$0xff]
        %v5307 = vld [vmem:[%s5304 + $0x10] sm:$0xff]
        %v5308 = vld [vmem:[%s5304 + $0x18] sm:$0xff]
        %v5309 = vld [vmem:[%s5304 + $0x20] sm:$0xff]
        %v5310 = vld [vmem:[%s5304 + $0x28] sm:$0xff]
        %v5311 = vld [vmem:[%s5304 + $0x30] sm:$0xff]
        %v5312 = vld [vmem:[%s5304 + $0x38] sm:$0xff]
        %v5313 = vld [vmem:[%s5304 + $0x40] sm:$0xff]
        %v5314 = vld [vmem:[%s5304 + $0x48] sm:$0xff]
        %v5315 = vld [vmem:[%s5304 + $0x50] sm:$0xff]
        %v5316 = vld [vmem:[%s5304 + $0x58] sm:$0xff]
        %v5317 = vld [vmem:[%s5304 + $0x60] sm:$0xff]
        %v5318 = vld [vmem:[%s5304 + $0x68] sm:$0xff]
        %v5319 = vld [vmem:[%s5304 + $0x70] sm:$0xff]
        %v5320 = vld [vmem:[%s5304 + $0x78] sm:$0xff]
        %5321 = vmatprep.subr.mxu0 0.0
        %5322 = vmatpush1.msra.mxu0 %v448
        %5323 = vmatprep.subr.mxu0 0.0
        %5324 = vmatpush1.msra.mxu0 %v449
        %5325 = vmatprep.subr.mxu0 0.0
        %5326 = vmatpush1.msra.mxu0 %v450
        %5327 = vmatprep.subr.mxu0 0.0
        %5328 = vmatpush1.msra.mxu0 %v451
        %5329 = vmatprep.subr.mxu0 0.0
        %5330 = vmatpush1.msra.mxu0 %v452
        %5331 = vmatprep.subr.mxu0 0.0
        %5332 = vmatpush1.msra.mxu0 %v453
        %5333 = vmatprep.subr.mxu0 0.0
        %5334 = vmatpush1.msra.mxu0 %v454
        %5335 = vmatprep.subr.mxu0 0.0
        %5336 = vmatpush1.msra.mxu0 %v455
        %5337 = vmatprep.subr.mxu0 0.0
        %5338 = vmatpush1.msra.mxu0 %v456
        %5339 = vmatprep.subr.mxu0 0.0
        %5340 = vmatpush1.msra.mxu0 %v457
        %5341 = vmatprep.subr.mxu0 0.0
        %5342 = vmatpush1.msra.mxu0 %v458
        %5343 = vmatprep.subr.mxu0 0.0
        %5344 = vmatpush1.msra.mxu0 %v459
        %5345 = vmatprep.subr.mxu0 0.0
        %5346 = vmatpush1.msra.mxu0 %v460
        %5347 = vmatprep.subr.mxu0 0.0
        %5348 = vmatpush1.msra.mxu0 %v461
        %5349 = vmatprep.subr.mxu0 0.0
        %5350 = vmatpush1.msra.mxu0 %v462
        %5351 = vmatprep.subr.mxu0 0.0
        %5352 = vmatpush1.msra.mxu0 %v463
        %5353 = vmatprep.subr.mxu0 0.0
        %5354 = vmatpush1.msra.mxu0 0.0
        %5355 = vmatprep.subr.mxu0 0.0
        %5356 = vmatpush1.msra.mxu0 0.0
        %5357 = vmatprep.subr.mxu0 0.0
        %5358 = vmatpush1.msra.mxu0 0.0
        %5359 = vmatprep.subr.mxu0 0.0
        %5360 = vmatpush1.msra.mxu0 0.0
        %5361 = vmatprep.subr.mxu0 0.0
        %5362 = vmatpush1.msra.mxu0 0.0
        %5363 = vmatprep.subr.mxu0 0.0
        %5364 = vmatpush1.msra.mxu0 0.0
        %5365 = vmatprep.subr.mxu0 0.0
        %5366 = vmatpush1.msra.mxu0 0.0
        %5367 = vmatprep.subr.mxu0 0.0
        %5368 = vmatpush1.msra.mxu0 0.0
        %5369 = vmatprep.subr.mxu0 0.0
        %5370 = vmatpush1.msra.mxu0 0.0
        %5371 = vmatprep.subr.mxu0 0.0
        %5372 = vmatpush1.msra.mxu0 0.0
        %5373 = vmatprep.subr.mxu0 0.0
        %5374 = vmatpush1.msra.mxu0 0.0
        %5375 = vmatprep.subr.mxu0 0.0
        %5376 = vmatpush1.msra.mxu0 0.0
        %5377 = vmatprep.subr.mxu0 0.0
        %5378 = vmatpush1.msra.mxu0 0.0
        %5379 = vmatprep.subr.mxu0 0.0
        %5380 = vmatpush1.msra.mxu0 0.0
        %5381 = vmatprep.subr.mxu0 0.0
        %5382 = vmatpush1.msra.mxu0 0.0
        %5383 = vmatprep.subr.mxu0 0.0
        %5384 = vmatpush1.msra.mxu0 0.0
        %5385 = vmatprep.mubr.f32.mxu0 0.0
        %5386 = vmatmul.mubr.f32.gmra.mrb[0].mxu0 %v5305
        %v5387 = vpop.f32.mrb[0].mxu0
        %v5388 = vadd.f32 %v485, %v5387
        %v5389 = vpop.f32.mrb[0].mxu0
        %5390 = vmatprep.mubr.f32.mxu0 0.0
        %5391 = vmatmul.mubr.f32.gmra.mrb[0].mxu0 %v5306
        %v5392 = vpop.f32.mrb[0].mxu0
        %v5393 = vadd.f32 %v485, %v5392
        %v5394 = vpop.f32.mrb[0].mxu0
        %5395 = vmatprep.mubr.f32.mxu0 0.0
        %5396 = vmatmul.mubr.f32.gmra.mrb[0].mxu0 %v5307
        %v5397 = vpop.f32.mrb[0].mxu0
        %v5398 = vadd.f32 %v485, %v5397
        %v5399 = vpop.f32.mrb[0].mxu0
        %5400 = vmatprep.mubr.f32.mxu0 0.0
        %5401 = vmatmul.mubr.f32.gmra.mrb[0].mxu0 %v5308
        %v5402 = vpop.f32.mrb[0].mxu0
        %v5403 = vadd.f32 %v485, %v5402
        %v5404 = vpop.f32.mrb[0].mxu0
        %5405 = vmatprep.mubr.f32.mxu0 0.0
        %5406 = vmatmul.mubr.f32.gmra.mrb[0].mxu0 %v5309
        %v5407 = vpop.f32.mrb[0].mxu0
        %v5408 = vadd.f32 %v485, %v5407
        %v5409 = vpop.f32.mrb[0].mxu0
        %5410 = vmatprep.mubr.f32.mxu0 0.0
        %5411 = vmatmul.mubr.f32.gmra.mrb[0].mxu0 %v5310
        %v5412 = vpop.f32.mrb[0].mxu0
        %v5413 = vadd.f32 %v485, %v5412
        %v5414 = vpop.f32.mrb[0].mxu0
        %5415 = vmatprep.mubr.f32.mxu0 0.0
        %5416 = vmatmul.mubr.f32.gmra.mrb[0].mxu0 %v5311
        %v5417 = vpop.f32.mrb[0].mxu0
        %v5418 = vadd.f32 %v485, %v5417
        %v5419 = vpop.f32.mrb[0].mxu0
        %5420 = vmatprep.mubr.f32.mxu0 0.0
        %5421 = vmatmul.mubr.f32.gmra.mrb[0].mxu0 %v5312
        %v5422 = vpop.f32.mrb[0].mxu0
        %v5423 = vadd.f32 %v485, %v5422
        %v5424 = vpop.f32.mrb[0].mxu0
        %5425 = vmatprep.mubr.f32.mxu0 0.0
        %5426 = vmatmul.mubr.f32.gmra.mrb[0].mxu0 %v5313
        %v5427 = vpop.f32.mrb[0].mxu0
        %v5428 = vadd.f32 %v485, %v5427
        %v5429 = vpop.f32.mrb[0].mxu0
        %5430 = vmatprep.mubr.f32.mxu0 0.0
        %5431 = vmatmul.mubr.f32.gmra.mrb[0].mxu0 %v5314
        %v5432 = vpop.f32.mrb[0].mxu0
        %v5433 = vadd.f32 %v485, %v5432
        %v5434 = vpop.f32.mrb[0].mxu0
        %5435 = vmatprep.mubr.f32.mxu0 0.0
        %5436 = vmatmul.mubr.f32.gmra.mrb[0].mxu0 %v5315
        %v5437 = vpop.f32.mrb[0].mxu0
        %v5438 = vadd.f32 %v485, %v5437
        %v5439 = vpop.f32.mrb[0].mxu0
        %5440 = vmatprep.mubr.f32.mxu0 0.0
        %5441 = vmatmul.mubr.f32.gmra.mrb[0].mxu0 %v5316
        %v5442 = vpop.f32.mrb[0].mxu0
        %v5443 = vadd.f32 %v485, %v5442
        %v5444 = vpop.f32.mrb[0].mxu0
        %5445 = vmatprep.mubr.f32.mxu0 0.0
        %5446 = vmatmul.mubr.f32.gmra.mrb[0].mxu0 %v5317
        %v5447 = vpop.f32.mrb[0].mxu0
        %v5448 = vadd.f32 %v485, %v5447
        %v5449 = vpop.f32.mrb[0].mxu0
        %5450 = vmatprep.mubr.f32.mxu0 0.0
        %5451 = vmatmul.mubr.f32.gmra.mrb[0].mxu0 %v5318
        %v5452 = vpop.f32.mrb[0].mxu0
        %v5453 = vadd.f32 %v485, %v5452
        %v5454 = vpop.f32.mrb[0].mxu0
        %5455 = vmatprep.mubr.f32.mxu0 0.0
        %5456 = vmatmul.mubr.f32.gmra.mrb[0].mxu0 %v5319
        %v5457 = vpop.f32.mrb[0].mxu0
        %v5458 = vadd.f32 %v485, %v5457
        %v5459 = vpop.f32.mrb[0].mxu0
        %5460 = vmatprep.mubr.f32.mxu0 0.0
        %5461 = vmatmul.mubr.f32.gmra.mrb[0].mxu0 %v5320
        %v5462 = vpop.f32.mrb[0].mxu0
        %v5463 = vadd.f32 %v485, %v5462
        %v5464 = vpop.f32.mrb[0].mxu0
        %5465 = vdwg.mxu0
        %v5466 = vmax.f32 %v5388, 0.0
        %v5467 = vmax.f32 %v5393, 0.0
        %v5468 = vmax.f32 %v5398, 0.0
        %v5469 = vmax.f32 %v5403, 0.0
        %v5470 = vmax.f32 %v5408, 0.0
        %v5471 = vmax.f32 %v5413, 0.0
        %v5472 = vmax.f32 %v5418, 0.0
        %v5473 = vmax.f32 %v5423, 0.0
        %v5474 = vmax.f32 %v5428, 0.0
        %v5475 = vmax.f32 %v5433, 0.0
        %v5476 = vmax.f32 %v5438, 0.0
        %v5477 = vmax.f32 %v5443, 0.0
        %v5478 = vmax.f32 %v5448, 0.0
        %v5479 = vmax.f32 %v5453, 0.0
        %v5480 = vmax.f32 %v5458, 0.0
        %v5481 = vmax.f32 %v5463, 0.0
        %v5482 = vmax.f32 %v5288, %v5466
        %v5483 = vmax.f32 %v5289, %v5467
        %v5484 = vmax.f32 %v5290, %v5468
        %v5485 = vmax.f32 %v5291, %v5469
        %v5486 = vmax.f32 %v5292, %v5470
        %v5487 = vmax.f32 %v5293, %v5471
        %v5488 = vmax.f32 %v5294, %v5472
        %v5489 = vmax.f32 %v5295, %v5473
        %v5490 = vmax.f32 %v5296, %v5474
        %v5491 = vmax.f32 %v5297, %v5475
        %v5492 = vmax.f32 %v5298, %v5476
        %v5493 = vmax.f32 %v5299, %v5477
        %v5494 = vmax.f32 %v5300, %v5478
        %v5495 = vmax.f32 %v5301, %v5479
        %v5496 = vmax.f32 %v5302, %v5480
        %v5497 = vmax.f32 %v5303, %v5481
        %s5498 = scalar_lea.vmem %s447, 3328
        %v5499 = vld [vmem:[%s5498] sm:$0xff]
        %v5500 = vld [vmem:[%s5498 + $0x8] sm:$0xff]
        %v5501 = vld [vmem:[%s5498 + $0x10] sm:$0xff]
        %v5502 = vld [vmem:[%s5498 + $0x18] sm:$0xff]
        %v5503 = vld [vmem:[%s5498 + $0x20] sm:$0xff]
        %v5504 = vld [vmem:[%s5498 + $0x28] sm:$0xff]
        %v5505 = vld [vmem:[%s5498 + $0x30] sm:$0xff]
        %v5506 = vld [vmem:[%s5498 + $0x38] sm:$0xff]
        %v5507 = vld [vmem:[%s5498 + $0x40] sm:$0xff]
        %v5508 = vld [vmem:[%s5498 + $0x48] sm:$0xff]
        %v5509 = vld [vmem:[%s5498 + $0x50] sm:$0xff]
        %v5510 = vld [vmem:[%s5498 + $0x58] sm:$0xff]
        %v5511 = vld [vmem:[%s5498 + $0x60] sm:$0xff]
        %v5512 = vld [vmem:[%s5498 + $0x68] sm:$0xff]
        %v5513 = vld [vmem:[%s5498 + $0x70] sm:$0xff]
        %v5514 = vld [vmem:[%s5498 + $0x78] sm:$0xff]
        %5515 = vmatprep.subr.mxu0 0.0
        %5516 = vmatpush1.msra.mxu0 %v448
        %5517 = vmatprep.subr.mxu0 0.0
        %5518 = vmatpush1.msra.mxu0 %v449
        %5519 = vmatprep.subr.mxu0 0.0
        %5520 = vmatpush1.msra.mxu0 %v450
        %5521 = vmatprep.subr.mxu0 0.0
        %5522 = vmatpush1.msra.mxu0 %v451
        %5523 = vmatprep.subr.mxu0 0.0
        %5524 = vmatpush1.msra.mxu0 %v452
        %5525 = vmatprep.subr.mxu0 0.0
        %5526 = vmatpush1.msra.mxu0 %v453
        %5527 = vmatprep.subr.mxu0 0.0
        %5528 = vmatpush1.msra.mxu0 %v454
        %5529 = vmatprep.subr.mxu0 0.0
        %5530 = vmatpush1.msra.mxu0 %v455
        %5531 = vmatprep.subr.mxu0 0.0
        %5532 = vmatpush1.msra.mxu0 %v456
        %5533 = vmatprep.subr.mxu0 0.0
        %5534 = vmatpush1.msra.mxu0 %v457
        %5535 = vmatprep.subr.mxu0 0.0
        %5536 = vmatpush1.msra.mxu0 %v458
        %5537 = vmatprep.subr.mxu0 0.0
        %5538 = vmatpush1.msra.mxu0 %v459
        %5539 = vmatprep.subr.mxu0 0.0
        %5540 = vmatpush1.msra.mxu0 %v460
        %5541 = vmatprep.subr.mxu0 0.0
        %5542 = vmatpush1.msra.mxu0 %v461
        %5543 = vmatprep.subr.mxu0 0.0
        %5544 = vmatpush1.msra.mxu0 %v462
        %5545 = vmatprep.subr.mxu0 0.0
        %5546 = vmatpush1.msra.mxu0 %v463
        %5547 = vmatprep.subr.mxu0 0.0
        %5548 = vmatpush1.msra.mxu0 0.0
        %5549 = vmatprep.subr.mxu0 0.0
        %5550 = vmatpush1.msra.mxu0 0.0
        %5551 = vmatprep.subr.mxu0 0.0
        %5552 = vmatpush1.msra.mxu0 0.0
        %5553 = vmatprep.subr.mxu0 0.0
        %5554 = vmatpush1.msra.mxu0 0.0
        %5555 = vmatprep.subr.mxu0 0.0
        %5556 = vmatpush1.msra.mxu0 0.0
        %5557 = vmatprep.subr.mxu0 0.0
        %5558 = vmatpush1.msra.mxu0 0.0
        %5559 = vmatprep.subr.mxu0 0.0
        %5560 = vmatpush1.msra.mxu0 0.0
        %5561 = vmatprep.subr.mxu0 0.0
        %5562 = vmatpush1.msra.mxu0 0.0
        %5563 = vmatprep.subr.mxu0 0.0
        %5564 = vmatpush1.msra.mxu0 0.0
        %5565 = vmatprep.subr.mxu0 0.0
        %5566 = vmatpush1.msra.mxu0 0.0
        %5567 = vmatprep.subr.mxu0 0.0
        %5568 = vmatpush1.msra.mxu0 0.0
        %5569 = vmatprep.subr.mxu0 0.0
        %5570 = vmatpush1.msra.mxu0 0.0
        %5571 = vmatprep.subr.mxu0 0.0
        %5572 = vmatpush1.msra.mxu0 0.0
        %5573 = vmatprep.subr.mxu0 0.0
        %5574 = vmatpush1.msra.mxu0 0.0
        %5575 = vmatprep.subr.mxu0 0.0
        %5576 = vmatpush1.msra.mxu0 0.0
        %5577 = vmatprep.subr.mxu0 0.0
        %5578 = vmatpush1.msra.mxu0 0.0
        %5579 = vmatprep.mubr.f32.mxu0 0.0
        %5580 = vmatmul.mubr.f32.gmra.mrb[0].mxu0 %v5499
        %v5581 = vpop.f32.mrb[0].mxu0
        %v5582 = vadd.f32 %v485, %v5581
        %v5583 = vpop.f32.mrb[0].mxu0
        %5584 = vmatprep.mubr.f32.mxu0 0.0
        %5585 = vmatmul.mubr.f32.gmra.mrb[0].mxu0 %v5500
        %v5586 = vpop.f32.mrb[0].mxu0
        %v5587 = vadd.f32 %v485, %v5586
        %v5588 = vpop.f32.mrb[0].mxu0
        %5589 = vmatprep.mubr.f32.mxu0 0.0
        %5590 = vmatmul.mubr.f32.gmra.mrb[0].mxu0 %v5501
        %v5591 = vpop.f32.mrb[0].mxu0
        %v5592 = vadd.f32 %v485, %v5591
        %v5593 = vpop.f32.mrb[0].mxu0
        %5594 = vmatprep.mubr.f32.mxu0 0.0
        %5595 = vmatmul.mubr.f32.gmra.mrb[0].mxu0 %v5502
        %v5596 = vpop.f32.mrb[0].mxu0
        %v5597 = vadd.f32 %v485, %v5596
        %v5598 = vpop.f32.mrb[0].mxu0
        %5599 = vmatprep.mubr.f32.mxu0 0.0
        %5600 = vmatmul.mubr.f32.gmra.mrb[0].mxu0 %v5503
        %v5601 = vpop.f32.mrb[0].mxu0
        %v5602 = vadd.f32 %v485, %v5601
        %v5603 = vpop.f32.mrb[0].mxu0
        %5604 = vmatprep.mubr.f32.mxu0 0.0
        %5605 = vmatmul.mubr.f32.gmra.mrb[0].mxu0 %v5504
        %v5606 = vpop.f32.mrb[0].mxu0
        %v5607 = vadd.f32 %v485, %v5606
        %v5608 = vpop.f32.mrb[0].mxu0
        %5609 = vmatprep.mubr.f32.mxu0 0.0
        %5610 = vmatmul.mubr.f32.gmra.mrb[0].mxu0 %v5505
        %v5611 = vpop.f32.mrb[0].mxu0
        %v5612 = vadd.f32 %v485, %v5611
        %v5613 = vpop.f32.mrb[0].mxu0
        %5614 = vmatprep.mubr.f32.mxu0 0.0
        %5615 = vmatmul.mubr.f32.gmra.mrb[0].mxu0 %v5506
        %v5616 = vpop.f32.mrb[0].mxu0
        %v5617 = vadd.f32 %v485, %v5616
        %v5618 = vpop.f32.mrb[0].mxu0
        %5619 = vmatprep.mubr.f32.mxu0 0.0
        %5620 = vmatmul.mubr.f32.gmra.mrb[0].mxu0 %v5507
        %v5621 = vpop.f32.mrb[0].mxu0
        %v5622 = vadd.f32 %v485, %v5621
        %v5623 = vpop.f32.mrb[0].mxu0
        %5624 = vmatprep.mubr.f32.mxu0 0.0
        %5625 = vmatmul.mubr.f32.gmra.mrb[0].mxu0 %v5508
        %v5626 = vpop.f32.mrb[0].mxu0
        %v5627 = vadd.f32 %v485, %v5626
        %v5628 = vpop.f32.mrb[0].mxu0
        %5629 = vmatprep.mubr.f32.mxu0 0.0
        %5630 = vmatmul.mubr.f32.gmra.mrb[0].mxu0 %v5509
        %v5631 = vpop.f32.mrb[0].mxu0
        %v5632 = vadd.f32 %v485, %v5631
        %v5633 = vpop.f32.mrb[0].mxu0
        %5634 = vmatprep.mubr.f32.mxu0 0.0
        %5635 = vmatmul.mubr.f32.gmra.mrb[0].mxu0 %v5510
        %v5636 = vpop.f32.mrb[0].mxu0
        %v5637 = vadd.f32 %v485, %v5636
        %v5638 = vpop.f32.mrb[0].mxu0
        %5639 = vmatprep.mubr.f32.mxu0 0.0
        %5640 = vmatmul.mubr.f32.gmra.mrb[0].mxu0 %v5511
        %v5641 = vpop.f32.mrb[0].mxu0
        %v5642 = vadd.f32 %v485, %v5641
        %v5643 = vpop.f32.mrb[0].mxu0
        %5644 = vmatprep.mubr.f32.mxu0 0.0
        %5645 = vmatmul.mubr.f32.gmra.mrb[0].mxu0 %v5512
        %v5646 = vpop.f32.mrb[0].mxu0
        %v5647 = vadd.f32 %v485, %v5646
        %v5648 = vpop.f32.mrb[0].mxu0
        %5649 = vmatprep.mubr.f32.mxu0 0.0
        %5650 = vmatmul.mubr.f32.gmra.mrb[0].mxu0 %v5513
        %v5651 = vpop.f32.mrb[0].mxu0
        %v5652 = vadd.f32 %v485, %v5651
        %v5653 = vpop.f32.mrb[0].mxu0
        %5654 = vmatprep.mubr.f32.mxu0 0.0
        %5655 = vmatmul.mubr.f32.gmra.mrb[0].mxu0 %v5514
        %v5656 = vpop.f32.mrb[0].mxu0
        %v5657 = vadd.f32 %v485, %v5656
        %v5658 = vpop.f32.mrb[0].mxu0
        %5659 = vdwg.mxu0
        %v5660 = vmax.f32 %v5582, 0.0
        %v5661 = vmax.f32 %v5587, 0.0
        %v5662 = vmax.f32 %v5592, 0.0
        %v5663 = vmax.f32 %v5597, 0.0
        %v5664 = vmax.f32 %v5602, 0.0
        %v5665 = vmax.f32 %v5607, 0.0
        %v5666 = vmax.f32 %v5612, 0.0
        %v5667 = vmax.f32 %v5617, 0.0
        %v5668 = vmax.f32 %v5622, 0.0
        %v5669 = vmax.f32 %v5627, 0.0
        %v5670 = vmax.f32 %v5632, 0.0
        %v5671 = vmax.f32 %v5637, 0.0
        %v5672 = vmax.f32 %v5642, 0.0
        %v5673 = vmax.f32 %v5647, 0.0
        %v5674 = vmax.f32 %v5652, 0.0
        %v5675 = vmax.f32 %v5657, 0.0
        %v5676 = vmax.f32 %v5482, %v5660
        %v5677 = vmax.f32 %v5483, %v5661
        %v5678 = vmax.f32 %v5484, %v5662
        %v5679 = vmax.f32 %v5485, %v5663
        %v5680 = vmax.f32 %v5486, %v5664
        %v5681 = vmax.f32 %v5487, %v5665
        %v5682 = vmax.f32 %v5488, %v5666
        %v5683 = vmax.f32 %v5489, %v5667
        %v5684 = vmax.f32 %v5490, %v5668
        %v5685 = vmax.f32 %v5491, %v5669
        %v5686 = vmax.f32 %v5492, %v5670
        %v5687 = vmax.f32 %v5493, %v5671
        %v5688 = vmax.f32 %v5494, %v5672
        %v5689 = vmax.f32 %v5495, %v5673
        %v5690 = vmax.f32 %v5496, %v5674
        %v5691 = vmax.f32 %v5497, %v5675
        %v5692 = vld [vmem:[%s3] sm:$0xff]
        %v5693 = vld [vmem:[%s3 + $0x8] sm:$0xff]
        %v5694 = vld [vmem:[%s3 + $0x10] sm:$0xff]
        %v5695 = vld [vmem:[%s3 + $0x18] sm:$0xff]
        %v5696 = vld [vmem:[%s3 + $0x20] sm:$0xff]
        %v5697 = vld [vmem:[%s3 + $0x28] sm:$0xff]
        %v5698 = vld [vmem:[%s3 + $0x30] sm:$0xff]
        %v5699 = vld [vmem:[%s3 + $0x38] sm:$0xff]
        %v5700 = vld [vmem:[%s3 + $0x40] sm:$0xff]
        %v5701 = vld [vmem:[%s3 + $0x48] sm:$0xff]
        %v5702 = vld [vmem:[%s3 + $0x50] sm:$0xff]
        %v5703 = vld [vmem:[%s3 + $0x58] sm:$0xff]
        %v5704 = vld [vmem:[%s3 + $0x60] sm:$0xff]
        %v5705 = vld [vmem:[%s3 + $0x68] sm:$0xff]
        %v5706 = vld [vmem:[%s3 + $0x70] sm:$0xff]
        %v5707 = vld [vmem:[%s3 + $0x78] sm:$0xff]
        %v5708 = vld [vmem:[%s3 + $0x80] sm:$0xff]
        %v5709 = vld [vmem:[%s3 + $0x88] sm:$0xff]
        %v5710 = vld [vmem:[%s3 + $0x90] sm:$0xff]
        %v5711 = vld [vmem:[%s3 + $0x98] sm:$0xff]
        %v5712 = vld [vmem:[%s3 + $0xa0] sm:$0xff]
        %v5713 = vld [vmem:[%s3 + $0xa8] sm:$0xff]
        %v5714 = vld [vmem:[%s3 + $0xb0] sm:$0xff]
        %v5715 = vld [vmem:[%s3 + $0xb8] sm:$0xff]
        %v5716 = vld [vmem:[%s3 + $0xc0] sm:$0xff]
        %v5717 = vld [vmem:[%s3 + $0xc8] sm:$0xff]
        %v5718 = vld [vmem:[%s3 + $0xd0] sm:$0xff]
        %v5719 = vld [vmem:[%s3 + $0xd8] sm:$0xff]
        %v5720 = vld [vmem:[%s3 + $0xe0] sm:$0xff]
        %v5721 = vld [vmem:[%s3 + $0xe8] sm:$0xff]
        %v5722 = vld [vmem:[%s3 + $0xf0] sm:$0xff]
        %v5723 = vld [vmem:[%s3 + $0xf8] sm:$0xff]
        %v5724 = vld [vmem:[%s3 + $0x100] sm:$0xff]
        %v5725 = vld [vmem:[%s3 + $0x108] sm:$0xff]
        %v5726 = vld [vmem:[%s3 + $0x110] sm:$0xff]
        %v5727 = vld [vmem:[%s3 + $0x118] sm:$0xff]
        %v5728 = vld [vmem:[%s3 + $0x120] sm:$0xff]
        %v5729 = vld [vmem:[%s3 + $0x128] sm:$0xff]
        %v5730 = vld [vmem:[%s3 + $0x130] sm:$0xff]
        %v5731 = vld [vmem:[%s3 + $0x138] sm:$0xff]
        %v5732 = vld [vmem:[%s3 + $0x140] sm:$0xff]
        %v5733 = vld [vmem:[%s3 + $0x148] sm:$0xff]
        %v5734 = vld [vmem:[%s3 + $0x150] sm:$0xff]
        %v5735 = vld [vmem:[%s3 + $0x158] sm:$0xff]
        %v5736 = vld [vmem:[%s3 + $0x160] sm:$0xff]
        %v5737 = vld [vmem:[%s3 + $0x168] sm:$0xff]
        %v5738 = vld [vmem:[%s3 + $0x170] sm:$0xff]
        %v5739 = vld [vmem:[%s3 + $0x178] sm:$0xff]
        %v5740 = vld [vmem:[%s3 + $0x180] sm:$0xff]
        %v5741 = vld [vmem:[%s3 + $0x188] sm:$0xff]
        %v5742 = vld [vmem:[%s3 + $0x190] sm:$0xff]
        %v5743 = vld [vmem:[%s3 + $0x198] sm:$0xff]
        %v5744 = vld [vmem:[%s3 + $0x1a0] sm:$0xff]
        %v5745 = vld [vmem:[%s3 + $0x1a8] sm:$0xff]
        %v5746 = vld [vmem:[%s3 + $0x1b0] sm:$0xff]
        %v5747 = vld [vmem:[%s3 + $0x1b8] sm:$0xff]
        %v5748 = vld [vmem:[%s3 + $0x1c0] sm:$0xff]
        %v5749 = vld [vmem:[%s3 + $0x1c8] sm:$0xff]
        %v5750 = vld [vmem:[%s3 + $0x1d0] sm:$0xff]
        %v5751 = vld [vmem:[%s3 + $0x1d8] sm:$0xff]
        %v5752 = vld [vmem:[%s3 + $0x1e0] sm:$0xff]
        %v5753 = vld [vmem:[%s3 + $0x1e8] sm:$0xff]
        %v5754 = vld [vmem:[%s3 + $0x1f0] sm:$0xff]
        %v5755 = vld [vmem:[%s3 + $0x1f8] sm:$0xff]
        %v5756 = vld [vmem:[%s3 + $0x200] sm:$0xff]
        %v5757 = vld [vmem:[%s3 + $0x208] sm:$0xff]
        %v5758 = vld [vmem:[%s3 + $0x210] sm:$0xff]
        %v5759 = vld [vmem:[%s3 + $0x218] sm:$0xff]
        %v5760 = vld [vmem:[%s3 + $0x220] sm:$0xff]
        %v5761 = vld [vmem:[%s3 + $0x228] sm:$0xff]
        %v5762 = vld [vmem:[%s3 + $0x230] sm:$0xff]
        %v5763 = vld [vmem:[%s3 + $0x238] sm:$0xff]
        %v5764 = vld [vmem:[%s3 + $0x240] sm:$0xff]
        %v5765 = vld [vmem:[%s3 + $0x248] sm:$0xff]
        %v5766 = vld [vmem:[%s3 + $0x250] sm:$0xff]
        %v5767 = vld [vmem:[%s3 + $0x258] sm:$0xff]
        %v5768 = vld [vmem:[%s3 + $0x260] sm:$0xff]
        %v5769 = vld [vmem:[%s3 + $0x268] sm:$0xff]
        %v5770 = vld [vmem:[%s3 + $0x270] sm:$0xff]
        %v5771 = vld [vmem:[%s3 + $0x278] sm:$0xff]
        %v5772 = vld [vmem:[%s3 + $0x280] sm:$0xff]
        %v5773 = vld [vmem:[%s3 + $0x288] sm:$0xff]
        %v5774 = vld [vmem:[%s3 + $0x290] sm:$0xff]
        %v5775 = vld [vmem:[%s3 + $0x298] sm:$0xff]
        %v5776 = vld [vmem:[%s3 + $0x2a0] sm:$0xff]
        %v5777 = vld [vmem:[%s3 + $0x2a8] sm:$0xff]
        %v5778 = vld [vmem:[%s3 + $0x2b0] sm:$0xff]
        %v5779 = vld [vmem:[%s3 + $0x2b8] sm:$0xff]
        %v5780 = vld [vmem:[%s3 + $0x2c0] sm:$0xff]
        %v5781 = vld [vmem:[%s3 + $0x2c8] sm:$0xff]
        %v5782 = vld [vmem:[%s3 + $0x2d0] sm:$0xff]
        %v5783 = vld [vmem:[%s3 + $0x2d8] sm:$0xff]
        %v5784 = vld [vmem:[%s3 + $0x2e0] sm:$0xff]
        %v5785 = vld [vmem:[%s3 + $0x2e8] sm:$0xff]
        %v5786 = vld [vmem:[%s3 + $0x2f0] sm:$0xff]
        %v5787 = vld [vmem:[%s3 + $0x2f8] sm:$0xff]
        %v5788 = vld [vmem:[%s3 + $0x300] sm:$0xff]
        %v5789 = vld [vmem:[%s3 + $0x308] sm:$0xff]
        %v5790 = vld [vmem:[%s3 + $0x310] sm:$0xff]
        %v5791 = vld [vmem:[%s3 + $0x318] sm:$0xff]
        %v5792 = vld [vmem:[%s3 + $0x320] sm:$0xff]
        %v5793 = vld [vmem:[%s3 + $0x328] sm:$0xff]
        %v5794 = vld [vmem:[%s3 + $0x330] sm:$0xff]
        %v5795 = vld [vmem:[%s3 + $0x338] sm:$0xff]
        %v5796 = vld [vmem:[%s3 + $0x340] sm:$0xff]
        %v5797 = vld [vmem:[%s3 + $0x348] sm:$0xff]
        %v5798 = vld [vmem:[%s3 + $0x350] sm:$0xff]
        %v5799 = vld [vmem:[%s3 + $0x358] sm:$0xff]
        %5800 = vmatprep.subr.mxu0 0.0
        %5801 = vmatpush1.msra.mxu0 %v5676
        %5802 = vmatprep.subr.mxu0 0.0
        %5803 = vmatpush1.msra.mxu0 %v5677
        %5804 = vmatprep.subr.mxu0 0.0
        %5805 = vmatpush1.msra.mxu0 %v5678
        %5806 = vmatprep.subr.mxu0 0.0
        %5807 = vmatpush1.msra.mxu0 %v5679
        %5808 = vmatprep.subr.mxu0 0.0
        %5809 = vmatpush1.msra.mxu0 %v5680
        %5810 = vmatprep.subr.mxu0 0.0
        %5811 = vmatpush1.msra.mxu0 %v5681
        %5812 = vmatprep.subr.mxu0 0.0
        %5813 = vmatpush1.msra.mxu0 %v5682
        %5814 = vmatprep.subr.mxu0 0.0
        %5815 = vmatpush1.msra.mxu0 %v5683
        %5816 = vmatprep.subr.mxu0 0.0
        %5817 = vmatpush1.msra.mxu0 %v5684
        %5818 = vmatprep.subr.mxu0 0.0
        %5819 = vmatpush1.msra.mxu0 %v5685
        %5820 = vmatprep.subr.mxu0 0.0
        %5821 = vmatpush1.msra.mxu0 %v5686
        %5822 = vmatprep.subr.mxu0 0.0
        %5823 = vmatpush1.msra.mxu0 %v5687
        %5824 = vmatprep.subr.mxu0 0.0
        %5825 = vmatpush1.msra.mxu0 %v5688
        %5826 = vmatprep.subr.mxu0 0.0
        %5827 = vmatpush1.msra.mxu0 %v5689
        %5828 = vmatprep.subr.mxu0 0.0
        %5829 = vmatpush1.msra.mxu0 %v5690
        %5830 = vmatprep.subr.mxu0 0.0
        %5831 = vmatpush1.msra.mxu0 %v5691
        %5832 = vmatprep.subr.mxu0 0.0
        %5833 = vmatpush1.msra.mxu0 0.0
        %5834 = vmatprep.subr.mxu0 0.0
        %5835 = vmatpush1.msra.mxu0 0.0
        %5836 = vmatprep.subr.mxu0 0.0
        %5837 = vmatpush1.msra.mxu0 0.0
        %5838 = vmatprep.subr.mxu0 0.0
        %5839 = vmatpush1.msra.mxu0 0.0
        %5840 = vmatprep.subr.mxu0 0.0
        %5841 = vmatpush1.msra.mxu0 0.0
        %5842 = vmatprep.subr.mxu0 0.0
        %5843 = vmatpush1.msra.mxu0 0.0
        %5844 = vmatprep.subr.mxu0 0.0
        %5845 = vmatpush1.msra.mxu0 0.0
        %5846 = vmatprep.subr.mxu0 0.0
        %5847 = vmatpush1.msra.mxu0 0.0
        %5848 = vmatprep.subr.mxu0 0.0
        %5849 = vmatpush1.msra.mxu0 0.0
        %5850 = vmatprep.subr.mxu0 0.0
        %5851 = vmatpush1.msra.mxu0 0.0
        %5852 = vmatprep.subr.mxu0 0.0
        %5853 = vmatpush1.msra.mxu0 0.0
        %5854 = vmatprep.subr.mxu0 0.0
        %5855 = vmatpush1.msra.mxu0 0.0
        %5856 = vmatprep.subr.mxu0 0.0
        %5857 = vmatpush1.msra.mxu0 0.0
        %5858 = vmatprep.subr.mxu0 0.0
        %5859 = vmatpush1.msra.mxu0 0.0
        %5860 = vmatprep.subr.mxu0 0.0
        %5861 = vmatpush1.msra.mxu0 0.0
        %5862 = vmatprep.subr.mxu0 0.0
        %5863 = vmatpush1.msra.mxu0 0.0
        %5864 = vmatprep.mubr.f32.mxu0 0.0
        %5865 = vmatmul.mubr.f32.gmra.mrb[0].mxu0 %v5692
        %v5866 = vpop.f32.mrb[0].mxu0
        %v5867 = vadd.f32 0.0, %v5866
        %v5868 = vpop.f32.mrb[0].mxu0
        %5869 = vmatprep.mubr.f32.mxu0 0.0
        %5870 = vmatmul.mubr.f32.gmra.mrb[0].mxu0 %v5693
        %v5871 = vpop.f32.mrb[0].mxu0
        %v5872 = vadd.f32 0.0, %v5871
        %v5873 = vpop.f32.mrb[0].mxu0
        %5874 = vmatprep.mubr.f32.mxu0 0.0
        %5875 = vmatmul.mubr.f32.gmra.mrb[0].mxu0 %v5694
        %v5876 = vpop.f32.mrb[0].mxu0
        %v5877 = vadd.f32 0.0, %v5876
        %v5878 = vpop.f32.mrb[0].mxu0
        %5879 = vmatprep.mubr.f32.mxu0 0.0
        %5880 = vmatmul.mubr.f32.gmra.mrb[0].mxu0 %v5695
        %v5881 = vpop.f32.mrb[0].mxu0
        %v5882 = vadd.f32 0.0, %v5881
        %v5883 = vpop.f32.mrb[0].mxu0
        %5884 = vmatprep.mubr.f32.mxu0 0.0
        %5885 = vmatmul.mubr.f32.gmra.mrb[0].mxu0 %v5696
        %v5886 = vpop.f32.mrb[0].mxu0
        %v5887 = vadd.f32 0.0, %v5886
        %v5888 = vpop.f32.mrb[0].mxu0
        %5889 = vmatprep.mubr.f32.mxu0 0.0
        %5890 = vmatmul.mubr.f32.gmra.mrb[0].mxu0 %v5697
        %v5891 = vpop.f32.mrb[0].mxu0
        %v5892 = vadd.f32 0.0, %v5891
        %v5893 = vpop.f32.mrb[0].mxu0
        %5894 = vmatprep.mubr.f32.mxu0 0.0
        %5895 = vmatmul.mubr.f32.gmra.mrb[0].mxu0 %v5698
        %v5896 = vpop.f32.mrb[0].mxu0
        %v5897 = vadd.f32 0.0, %v5896
        %v5898 = vpop.f32.mrb[0].mxu0
        %5899 = vmatprep.mubr.f32.mxu0 0.0
        %5900 = vmatmul.mubr.f32.gmra.mrb[0].mxu0 %v5699
        %v5901 = vpop.f32.mrb[0].mxu0
        %v5902 = vadd.f32 0.0, %v5901
        %v5903 = vpop.f32.mrb[0].mxu0
        %5904 = vmatprep.mubr.f32.mxu0 0.0
        %5905 = vmatmul.mubr.f32.gmra.mrb[0].mxu0 %v5700
        %v5906 = vpop.f32.mrb[0].mxu0
        %v5907 = vadd.f32 0.0, %v5906
        %v5908 = vpop.f32.mrb[0].mxu0
        %5909 = vmatprep.mubr.f32.mxu0 0.0
        %5910 = vmatmul.mubr.f32.gmra.mrb[0].mxu0 %v5701
        %v5911 = vpop.f32.mrb[0].mxu0
        %v5912 = vadd.f32 0.0, %v5911
        %v5913 = vpop.f32.mrb[0].mxu0
        %5914 = vmatprep.mubr.f32.mxu0 0.0
        %5915 = vmatmul.mubr.f32.gmra.mrb[0].mxu0 %v5702
        %v5916 = vpop.f32.mrb[0].mxu0
        %v5917 = vadd.f32 0.0, %v5916
        %v5918 = vpop.f32.mrb[0].mxu0
        %5919 = vmatprep.mubr.f32.mxu0 0.0
        %5920 = vmatmul.mubr.f32.gmra.mrb[0].mxu0 %v5703
        %v5921 = vpop.f32.mrb[0].mxu0
        %v5922 = vadd.f32 0.0, %v5921
        %v5923 = vpop.f32.mrb[0].mxu0
        %5924 = vmatprep.mubr.f32.mxu0 0.0
        %5925 = vmatmul.mubr.f32.gmra.mrb[0].mxu0 %v5704
        %v5926 = vpop.f32.mrb[0].mxu0
        %v5927 = vadd.f32 0.0, %v5926
        %v5928 = vpop.f32.mrb[0].mxu0
        %5929 = vmatprep.mubr.f32.mxu0 0.0
        %5930 = vmatmul.mubr.f32.gmra.mrb[0].mxu0 %v5705
        %v5931 = vpop.f32.mrb[0].mxu0
        %v5932 = vadd.f32 0.0, %v5931
        %v5933 = vpop.f32.mrb[0].mxu0
        %5934 = vmatprep.mubr.f32.mxu0 0.0
        %5935 = vmatmul.mubr.f32.gmra.mrb[0].mxu0 %v5706
        %v5936 = vpop.f32.mrb[0].mxu0
        %v5937 = vadd.f32 0.0, %v5936
        %v5938 = vpop.f32.mrb[0].mxu0
        %5939 = vmatprep.mubr.f32.mxu0 0.0
        %5940 = vmatmul.mubr.f32.gmra.mrb[0].mxu0 %v5707
        %v5941 = vpop.f32.mrb[0].mxu0
        %v5942 = vadd.f32 0.0, %v5941
        %v5943 = vpop.f32.mrb[0].mxu0
        %5944 = vmatprep.mubr.f32.mxu0 0.0
        %5945 = vmatmul.mubr.f32.gmra.mrb[0].mxu0 %v5708
        %v5946 = vpop.f32.mrb[0].mxu0
        %v5947 = vadd.f32 0.0, %v5946
        %v5948 = vpop.f32.mrb[0].mxu0
        %5949 = vmatprep.mubr.f32.mxu0 0.0
        %5950 = vmatmul.mubr.f32.gmra.mrb[0].mxu0 %v5709
        %v5951 = vpop.f32.mrb[0].mxu0
        %v5952 = vadd.f32 0.0, %v5951
        %v5953 = vpop.f32.mrb[0].mxu0
        %5954 = vmatprep.mubr.f32.mxu0 0.0
        %5955 = vmatmul.mubr.f32.gmra.mrb[0].mxu0 %v5710
        %v5956 = vpop.f32.mrb[0].mxu0
        %v5957 = vadd.f32 0.0, %v5956
        %v5958 = vpop.f32.mrb[0].mxu0
        %5959 = vmatprep.mubr.f32.mxu0 0.0
        %5960 = vmatmul.mubr.f32.gmra.mrb[0].mxu0 %v5711
        %v5961 = vpop.f32.mrb[0].mxu0
        %v5962 = vadd.f32 0.0, %v5961
        %v5963 = vpop.f32.mrb[0].mxu0
        %5964 = vmatprep.mubr.f32.mxu0 0.0
        %5965 = vmatmul.mubr.f32.gmra.mrb[0].mxu0 %v5712
        %v5966 = vpop.f32.mrb[0].mxu0
        %v5967 = vadd.f32 0.0, %v5966
        %v5968 = vpop.f32.mrb[0].mxu0
        %5969 = vmatprep.mubr.f32.mxu0 0.0
        %5970 = vmatmul.mubr.f32.gmra.mrb[0].mxu0 %v5713
        %v5971 = vpop.f32.mrb[0].mxu0
        %v5972 = vadd.f32 0.0, %v5971
        %v5973 = vpop.f32.mrb[0].mxu0
        %5974 = vmatprep.mubr.f32.mxu0 0.0
        %5975 = vmatmul.mubr.f32.gmra.mrb[0].mxu0 %v5714
        %v5976 = vpop.f32.mrb[0].mxu0
        %v5977 = vadd.f32 0.0, %v5976
        %v5978 = vpop.f32.mrb[0].mxu0
        %5979 = vmatprep.mubr.f32.mxu0 0.0
        %5980 = vmatmul.mubr.f32.gmra.mrb[0].mxu0 %v5715
        %v5981 = vpop.f32.mrb[0].mxu0
        %v5982 = vadd.f32 0.0, %v5981
        %v5983 = vpop.f32.mrb[0].mxu0
        %5984 = vmatprep.mubr.f32.mxu0 0.0
        %5985 = vmatmul.mubr.f32.gmra.mrb[0].mxu0 %v5716
        %v5986 = vpop.f32.mrb[0].mxu0
        %v5987 = vadd.f32 0.0, %v5986
        %v5988 = vpop.f32.mrb[0].mxu0
        %5989 = vmatprep.mubr.f32.mxu0 0.0
        %5990 = vmatmul.mubr.f32.gmra.mrb[0].mxu0 %v5717
        %v5991 = vpop.f32.mrb[0].mxu0
        %v5992 = vadd.f32 0.0, %v5991
        %v5993 = vpop.f32.mrb[0].mxu0
        %5994 = vmatprep.mubr.f32.mxu0 0.0
        %5995 = vmatmul.mubr.f32.gmra.mrb[0].mxu0 %v5718
        %v5996 = vpop.f32.mrb[0].mxu0
        %v5997 = vadd.f32 0.0, %v5996
        %v5998 = vpop.f32.mrb[0].mxu0
        %5999 = vmatprep.mubr.f32.mxu0 0.0
        %6000 = vmatmul.mubr.f32.gmra.mrb[0].mxu0 %v5719
        %v6001 = vpop.f32.mrb[0].mxu0
        %v6002 = vadd.f32 0.0, %v6001
        %v6003 = vpop.f32.mrb[0].mxu0
        %6004 = vmatprep.mubr.f32.mxu0 0.0
        %6005 = vmatmul.mubr.f32.gmra.mrb[0].mxu0 %v5720
        %v6006 = vpop.f32.mrb[0].mxu0
        %v6007 = vadd.f32 0.0, %v6006
        %v6008 = vpop.f32.mrb[0].mxu0
        %6009 = vmatprep.mubr.f32.mxu0 0.0
        %6010 = vmatmul.mubr.f32.gmra.mrb[0].mxu0 %v5721
        %v6011 = vpop.f32.mrb[0].mxu0
        %v6012 = vadd.f32 0.0, %v6011
        %v6013 = vpop.f32.mrb[0].mxu0
        %6014 = vmatprep.mubr.f32.mxu0 0.0
        %6015 = vmatmul.mubr.f32.gmra.mrb[0].mxu0 %v5722
        %v6016 = vpop.f32.mrb[0].mxu0
        %v6017 = vadd.f32 0.0, %v6016
        %v6018 = vpop.f32.mrb[0].mxu0
        %6019 = vmatprep.mubr.f32.mxu0 0.0
        %6020 = vmatmul.mubr.f32.gmra.mrb[0].mxu0 %v5723
        %v6021 = vpop.f32.mrb[0].mxu0
        %v6022 = vadd.f32 0.0, %v6021
        %v6023 = vpop.f32.mrb[0].mxu0
        %6024 = vmatprep.mubr.f32.mxu0 0.0
        %6025 = vmatmul.mubr.f32.gmra.mrb[0].mxu0 %v5724
        %v6026 = vpop.f32.mrb[0].mxu0
        %v6027 = vadd.f32 0.0, %v6026
        %v6028 = vpop.f32.mrb[0].mxu0
        %6029 = vmatprep.mubr.f32.mxu0 0.0
        %6030 = vmatmul.mubr.f32.gmra.mrb[0].mxu0 %v5725
        %v6031 = vpop.f32.mrb[0].mxu0
        %v6032 = vadd.f32 0.0, %v6031
        %v6033 = vpop.f32.mrb[0].mxu0
        %6034 = vmatprep.mubr.f32.mxu0 0.0
        %6035 = vmatmul.mubr.f32.gmra.mrb[0].mxu0 %v5726
        %v6036 = vpop.f32.mrb[0].mxu0
        %v6037 = vadd.f32 0.0, %v6036
        %v6038 = vpop.f32.mrb[0].mxu0
        %6039 = vmatprep.mubr.f32.mxu0 0.0
        %6040 = vmatmul.mubr.f32.gmra.mrb[0].mxu0 %v5727
        %v6041 = vpop.f32.mrb[0].mxu0
        %v6042 = vadd.f32 0.0, %v6041
        %v6043 = vpop.f32.mrb[0].mxu0
        %6044 = vmatprep.mubr.f32.mxu0 0.0
        %6045 = vmatmul.mubr.f32.gmra.mrb[0].mxu0 %v5728
        %v6046 = vpop.f32.mrb[0].mxu0
        %v6047 = vadd.f32 0.0, %v6046
        %v6048 = vpop.f32.mrb[0].mxu0
        %6049 = vmatprep.mubr.f32.mxu0 0.0
        %6050 = vmatmul.mubr.f32.gmra.mrb[0].mxu0 %v5729
        %v6051 = vpop.f32.mrb[0].mxu0
        %v6052 = vadd.f32 0.0, %v6051
        %v6053 = vpop.f32.mrb[0].mxu0
        %6054 = vmatprep.mubr.f32.mxu0 0.0
        %6055 = vmatmul.mubr.f32.gmra.mrb[0].mxu0 %v5730
        %v6056 = vpop.f32.mrb[0].mxu0
        %v6057 = vadd.f32 0.0, %v6056
        %v6058 = vpop.f32.mrb[0].mxu0
        %6059 = vmatprep.mubr.f32.mxu0 0.0
        %6060 = vmatmul.mubr.f32.gmra.mrb[0].mxu0 %v5731
        %v6061 = vpop.f32.mrb[0].mxu0
        %v6062 = vadd.f32 0.0, %v6061
        %v6063 = vpop.f32.mrb[0].mxu0
        %6064 = vmatprep.mubr.f32.mxu0 0.0
        %6065 = vmatmul.mubr.f32.gmra.mrb[0].mxu0 %v5732
        %v6066 = vpop.f32.mrb[0].mxu0
        %v6067 = vadd.f32 0.0, %v6066
        %v6068 = vpop.f32.mrb[0].mxu0
        %6069 = vmatprep.mubr.f32.mxu0 0.0
        %6070 = vmatmul.mubr.f32.gmra.mrb[0].mxu0 %v5733
        %v6071 = vpop.f32.mrb[0].mxu0
        %v6072 = vadd.f32 0.0, %v6071
        %v6073 = vpop.f32.mrb[0].mxu0
        %6074 = vmatprep.mubr.f32.mxu0 0.0
        %6075 = vmatmul.mubr.f32.gmra.mrb[0].mxu0 %v5734
        %v6076 = vpop.f32.mrb[0].mxu0
        %v6077 = vadd.f32 0.0, %v6076
        %v6078 = vpop.f32.mrb[0].mxu0
        %6079 = vmatprep.mubr.f32.mxu0 0.0
        %6080 = vmatmul.mubr.f32.gmra.mrb[0].mxu0 %v5735
        %v6081 = vpop.f32.mrb[0].mxu0
        %v6082 = vadd.f32 0.0, %v6081
        %v6083 = vpop.f32.mrb[0].mxu0
        %6084 = vmatprep.mubr.f32.mxu0 0.0
        %6085 = vmatmul.mubr.f32.gmra.mrb[0].mxu0 %v5736
        %v6086 = vpop.f32.mrb[0].mxu0
        %v6087 = vadd.f32 0.0, %v6086
        %v6088 = vpop.f32.mrb[0].mxu0
        %6089 = vmatprep.mubr.f32.mxu0 0.0
        %6090 = vmatmul.mubr.f32.gmra.mrb[0].mxu0 %v5737
        %v6091 = vpop.f32.mrb[0].mxu0
        %v6092 = vadd.f32 0.0, %v6091
        %v6093 = vpop.f32.mrb[0].mxu0
        %6094 = vmatprep.mubr.f32.mxu0 0.0
        %6095 = vmatmul.mubr.f32.gmra.mrb[0].mxu0 %v5738
        %v6096 = vpop.f32.mrb[0].mxu0
        %v6097 = vadd.f32 0.0, %v6096
        %v6098 = vpop.f32.mrb[0].mxu0
        %6099 = vmatprep.mubr.f32.mxu0 0.0
        %6100 = vmatmul.mubr.f32.gmra.mrb[0].mxu0 %v5739
        %v6101 = vpop.f32.mrb[0].mxu0
        %v6102 = vadd.f32 0.0, %v6101
        %v6103 = vpop.f32.mrb[0].mxu0
        %6104 = vmatprep.mubr.f32.mxu0 0.0
        %6105 = vmatmul.mubr.f32.gmra.mrb[0].mxu0 %v5740
        %v6106 = vpop.f32.mrb[0].mxu0
        %v6107 = vadd.f32 0.0, %v6106
        %v6108 = vpop.f32.mrb[0].mxu0
        %6109 = vmatprep.mubr.f32.mxu0 0.0
        %6110 = vmatmul.mubr.f32.gmra.mrb[0].mxu0 %v5741
        %v6111 = vpop.f32.mrb[0].mxu0
        %v6112 = vadd.f32 0.0, %v6111
        %v6113 = vpop.f32.mrb[0].mxu0
        %6114 = vmatprep.mubr.f32.mxu0 0.0
        %6115 = vmatmul.mubr.f32.gmra.mrb[0].mxu0 %v5742
        %v6116 = vpop.f32.mrb[0].mxu0
        %v6117 = vadd.f32 0.0, %v6116
        %v6118 = vpop.f32.mrb[0].mxu0
        %6119 = vmatprep.mubr.f32.mxu0 0.0
        %6120 = vmatmul.mubr.f32.gmra.mrb[0].mxu0 %v5743
        %v6121 = vpop.f32.mrb[0].mxu0
        %v6122 = vadd.f32 0.0, %v6121
        %v6123 = vpop.f32.mrb[0].mxu0
        %6124 = vmatprep.mubr.f32.mxu0 0.0
        %6125 = vmatmul.mubr.f32.gmra.mrb[0].mxu0 %v5744
        %v6126 = vpop.f32.mrb[0].mxu0
        %v6127 = vadd.f32 0.0, %v6126
        %v6128 = vpop.f32.mrb[0].mxu0
        %6129 = vmatprep.mubr.f32.mxu0 0.0
        %6130 = vmatmul.mubr.f32.gmra.mrb[0].mxu0 %v5745
        %v6131 = vpop.f32.mrb[0].mxu0
        %v6132 = vadd.f32 0.0, %v6131
        %v6133 = vpop.f32.mrb[0].mxu0
        %6134 = vmatprep.mubr.f32.mxu0 0.0
        %6135 = vmatmul.mubr.f32.gmra.mrb[0].mxu0 %v5746
        %v6136 = vpop.f32.mrb[0].mxu0
        %v6137 = vadd.f32 0.0, %v6136
        %v6138 = vpop.f32.mrb[0].mxu0
        %6139 = vmatprep.mubr.f32.mxu0 0.0
        %6140 = vmatmul.mubr.f32.gmra.mrb[0].mxu0 %v5747
        %v6141 = vpop.f32.mrb[0].mxu0
        %v6142 = vadd.f32 0.0, %v6141
        %v6143 = vpop.f32.mrb[0].mxu0
        %6144 = vmatprep.mubr.f32.mxu0 0.0
        %6145 = vmatmul.mubr.f32.gmra.mrb[0].mxu0 %v5748
        %v6146 = vpop.f32.mrb[0].mxu0
        %v6147 = vadd.f32 0.0, %v6146
        %v6148 = vpop.f32.mrb[0].mxu0
        %6149 = vmatprep.mubr.f32.mxu0 0.0
        %6150 = vmatmul.mubr.f32.gmra.mrb[0].mxu0 %v5749
        %v6151 = vpop.f32.mrb[0].mxu0
        %v6152 = vadd.f32 0.0, %v6151
        %v6153 = vpop.f32.mrb[0].mxu0
        %6154 = vmatprep.mubr.f32.mxu0 0.0
        %6155 = vmatmul.mubr.f32.gmra.mrb[0].mxu0 %v5750
        %v6156 = vpop.f32.mrb[0].mxu0
        %v6157 = vadd.f32 0.0, %v6156
        %v6158 = vpop.f32.mrb[0].mxu0
        %6159 = vmatprep.mubr.f32.mxu0 0.0
        %6160 = vmatmul.mubr.f32.gmra.mrb[0].mxu0 %v5751
        %v6161 = vpop.f32.mrb[0].mxu0
        %v6162 = vadd.f32 0.0, %v6161
        %v6163 = vpop.f32.mrb[0].mxu0
        %6164 = vmatprep.mubr.f32.mxu0 0.0
        %6165 = vmatmul.mubr.f32.gmra.mrb[0].mxu0 %v5752
        %v6166 = vpop.f32.mrb[0].mxu0
        %v6167 = vadd.f32 0.0, %v6166
        %v6168 = vpop.f32.mrb[0].mxu0
        %6169 = vmatprep.mubr.f32.mxu0 0.0
        %6170 = vmatmul.mubr.f32.gmra.mrb[0].mxu0 %v5753
        %v6171 = vpop.f32.mrb[0].mxu0
        %v6172 = vadd.f32 0.0, %v6171
        %v6173 = vpop.f32.mrb[0].mxu0
        %6174 = vmatprep.mubr.f32.mxu0 0.0
        %6175 = vmatmul.mubr.f32.gmra.mrb[0].mxu0 %v5754
        %v6176 = vpop.f32.mrb[0].mxu0
        %v6177 = vadd.f32 0.0, %v6176
        %v6178 = vpop.f32.mrb[0].mxu0
        %6179 = vmatprep.mubr.f32.mxu0 0.0
        %6180 = vmatmul.mubr.f32.gmra.mrb[0].mxu0 %v5755
        %v6181 = vpop.f32.mrb[0].mxu0
        %v6182 = vadd.f32 0.0, %v6181
        %v6183 = vpop.f32.mrb[0].mxu0
        %6184 = vmatprep.mubr.f32.mxu0 0.0
        %6185 = vmatmul.mubr.f32.gmra.mrb[0].mxu0 %v5756
        %v6186 = vpop.f32.mrb[0].mxu0
        %v6187 = vadd.f32 0.0, %v6186
        %v6188 = vpop.f32.mrb[0].mxu0
        %6189 = vmatprep.mubr.f32.mxu0 0.0
        %6190 = vmatmul.mubr.f32.gmra.mrb[0].mxu0 %v5757
        %v6191 = vpop.f32.mrb[0].mxu0
        %v6192 = vadd.f32 0.0, %v6191
        %v6193 = vpop.f32.mrb[0].mxu0
        %6194 = vmatprep.mubr.f32.mxu0 0.0
        %6195 = vmatmul.mubr.f32.gmra.mrb[0].mxu0 %v5758
        %v6196 = vpop.f32.mrb[0].mxu0
        %v6197 = vadd.f32 0.0, %v6196
        %v6198 = vpop.f32.mrb[0].mxu0
        %6199 = vmatprep.mubr.f32.mxu0 0.0
        %6200 = vmatmul.mubr.f32.gmra.mrb[0].mxu0 %v5759
        %v6201 = vpop.f32.mrb[0].mxu0
        %v6202 = vadd.f32 0.0, %v6201
        %v6203 = vpop.f32.mrb[0].mxu0
        %6204 = vmatprep.mubr.f32.mxu0 0.0
        %6205 = vmatmul.mubr.f32.gmra.mrb[0].mxu0 %v5760
        %v6206 = vpop.f32.mrb[0].mxu0
        %v6207 = vadd.f32 0.0, %v6206
        %v6208 = vpop.f32.mrb[0].mxu0
        %6209 = vmatprep.mubr.f32.mxu0 0.0
        %6210 = vmatmul.mubr.f32.gmra.mrb[0].mxu0 %v5761
        %v6211 = vpop.f32.mrb[0].mxu0
        %v6212 = vadd.f32 0.0, %v6211
        %v6213 = vpop.f32.mrb[0].mxu0
        %6214 = vmatprep.mubr.f32.mxu0 0.0
        %6215 = vmatmul.mubr.f32.gmra.mrb[0].mxu0 %v5762
        %v6216 = vpop.f32.mrb[0].mxu0
        %v6217 = vadd.f32 0.0, %v6216
        %v6218 = vpop.f32.mrb[0].mxu0
        %6219 = vmatprep.mubr.f32.mxu0 0.0
        %6220 = vmatmul.mubr.f32.gmra.mrb[0].mxu0 %v5763
        %v6221 = vpop.f32.mrb[0].mxu0
        %v6222 = vadd.f32 0.0, %v6221
        %v6223 = vpop.f32.mrb[0].mxu0
        %6224 = vmatprep.mubr.f32.mxu0 0.0
        %6225 = vmatmul.mubr.f32.gmra.mrb[0].mxu0 %v5764
        %v6226 = vpop.f32.mrb[0].mxu0
        %v6227 = vadd.f32 0.0, %v6226
        %v6228 = vpop.f32.mrb[0].mxu0
        %6229 = vmatprep.mubr.f32.mxu0 0.0
        %6230 = vmatmul.mubr.f32.gmra.mrb[0].mxu0 %v5765
        %v6231 = vpop.f32.mrb[0].mxu0
        %v6232 = vadd.f32 0.0, %v6231
        %v6233 = vpop.f32.mrb[0].mxu0
        %6234 = vmatprep.mubr.f32.mxu0 0.0
        %6235 = vmatmul.mubr.f32.gmra.mrb[0].mxu0 %v5766
        %v6236 = vpop.f32.mrb[0].mxu0
        %v6237 = vadd.f32 0.0, %v6236
        %v6238 = vpop.f32.mrb[0].mxu0
        %6239 = vmatprep.mubr.f32.mxu0 0.0
        %6240 = vmatmul.mubr.f32.gmra.mrb[0].mxu0 %v5767
        %v6241 = vpop.f32.mrb[0].mxu0
        %v6242 = vadd.f32 0.0, %v6241
        %v6243 = vpop.f32.mrb[0].mxu0
        %6244 = vmatprep.mubr.f32.mxu0 0.0
        %6245 = vmatmul.mubr.f32.gmra.mrb[0].mxu0 %v5768
        %v6246 = vpop.f32.mrb[0].mxu0
        %v6247 = vadd.f32 0.0, %v6246
        %v6248 = vpop.f32.mrb[0].mxu0
        %6249 = vmatprep.mubr.f32.mxu0 0.0
        %6250 = vmatmul.mubr.f32.gmra.mrb[0].mxu0 %v5769
        %v6251 = vpop.f32.mrb[0].mxu0
        %v6252 = vadd.f32 0.0, %v6251
        %v6253 = vpop.f32.mrb[0].mxu0
        %6254 = vmatprep.mubr.f32.mxu0 0.0
        %6255 = vmatmul.mubr.f32.gmra.mrb[0].mxu0 %v5770
        %v6256 = vpop.f32.mrb[0].mxu0
        %v6257 = vadd.f32 0.0, %v6256
        %v6258 = vpop.f32.mrb[0].mxu0
        %6259 = vmatprep.mubr.f32.mxu0 0.0
        %6260 = vmatmul.mubr.f32.gmra.mrb[0].mxu0 %v5771
        %v6261 = vpop.f32.mrb[0].mxu0
        %v6262 = vadd.f32 0.0, %v6261
        %v6263 = vpop.f32.mrb[0].mxu0
        %6264 = vmatprep.mubr.f32.mxu0 0.0
        %6265 = vmatmul.mubr.f32.gmra.mrb[0].mxu0 %v5772
        %v6266 = vpop.f32.mrb[0].mxu0
        %v6267 = vadd.f32 0.0, %v6266
        %v6268 = vpop.f32.mrb[0].mxu0
        %6269 = vmatprep.mubr.f32.mxu0 0.0
        %6270 = vmatmul.mubr.f32.gmra.mrb[0].mxu0 %v5773
        %v6271 = vpop.f32.mrb[0].mxu0
        %v6272 = vadd.f32 0.0, %v6271
        %v6273 = vpop.f32.mrb[0].mxu0
        %6274 = vmatprep.mubr.f32.mxu0 0.0
        %6275 = vmatmul.mubr.f32.gmra.mrb[0].mxu0 %v5774
        %v6276 = vpop.f32.mrb[0].mxu0
        %v6277 = vadd.f32 0.0, %v6276
        %v6278 = vpop.f32.mrb[0].mxu0
        %6279 = vmatprep.mubr.f32.mxu0 0.0
        %6280 = vmatmul.mubr.f32.gmra.mrb[0].mxu0 %v5775
        %v6281 = vpop.f32.mrb[0].mxu0
        %v6282 = vadd.f32 0.0, %v6281
        %v6283 = vpop.f32.mrb[0].mxu0
        %6284 = vmatprep.mubr.f32.mxu0 0.0
        %6285 = vmatmul.mubr.f32.gmra.mrb[0].mxu0 %v5776
        %v6286 = vpop.f32.mrb[0].mxu0
        %v6287 = vadd.f32 0.0, %v6286
        %v6288 = vpop.f32.mrb[0].mxu0
        %6289 = vmatprep.mubr.f32.mxu0 0.0
        %6290 = vmatmul.mubr.f32.gmra.mrb[0].mxu0 %v5777
        %v6291 = vpop.f32.mrb[0].mxu0
        %v6292 = vadd.f32 0.0, %v6291
        %v6293 = vpop.f32.mrb[0].mxu0
        %6294 = vmatprep.mubr.f32.mxu0 0.0
        %6295 = vmatmul.mubr.f32.gmra.mrb[0].mxu0 %v5778
        %v6296 = vpop.f32.mrb[0].mxu0
        %v6297 = vadd.f32 0.0, %v6296
        %v6298 = vpop.f32.mrb[0].mxu0
        %6299 = vmatprep.mubr.f32.mxu0 0.0
        %6300 = vmatmul.mubr.f32.gmra.mrb[0].mxu0 %v5779
        %v6301 = vpop.f32.mrb[0].mxu0
        %v6302 = vadd.f32 0.0, %v6301
        %v6303 = vpop.f32.mrb[0].mxu0
        %6304 = vmatprep.mubr.f32.mxu0 0.0
        %6305 = vmatmul.mubr.f32.gmra.mrb[0].mxu0 %v5780
        %v6306 = vpop.f32.mrb[0].mxu0
        %v6307 = vadd.f32 0.0, %v6306
        %v6308 = vpop.f32.mrb[0].mxu0
        %6309 = vmatprep.mubr.f32.mxu0 0.0
        %6310 = vmatmul.mubr.f32.gmra.mrb[0].mxu0 %v5781
        %v6311 = vpop.f32.mrb[0].mxu0
        %v6312 = vadd.f32 0.0, %v6311
        %v6313 = vpop.f32.mrb[0].mxu0
        %6314 = vmatprep.mubr.f32.mxu0 0.0
        %6315 = vmatmul.mubr.f32.gmra.mrb[0].mxu0 %v5782
        %v6316 = vpop.f32.mrb[0].mxu0
        %v6317 = vadd.f32 0.0, %v6316
        %v6318 = vpop.f32.mrb[0].mxu0
        %6319 = vmatprep.mubr.f32.mxu0 0.0
        %6320 = vmatmul.mubr.f32.gmra.mrb[0].mxu0 %v5783
        %v6321 = vpop.f32.mrb[0].mxu0
        %v6322 = vadd.f32 0.0, %v6321
        %v6323 = vpop.f32.mrb[0].mxu0
        %6324 = vmatprep.mubr.f32.mxu0 0.0
        %6325 = vmatmul.mubr.f32.gmra.mrb[0].mxu0 %v5784
        %v6326 = vpop.f32.mrb[0].mxu0
        %v6327 = vadd.f32 0.0, %v6326
        %v6328 = vpop.f32.mrb[0].mxu0
        %6329 = vmatprep.mubr.f32.mxu0 0.0
        %6330 = vmatmul.mubr.f32.gmra.mrb[0].mxu0 %v5785
        %v6331 = vpop.f32.mrb[0].mxu0
        %v6332 = vadd.f32 0.0, %v6331
        %v6333 = vpop.f32.mrb[0].mxu0
        %6334 = vmatprep.mubr.f32.mxu0 0.0
        %6335 = vmatmul.mubr.f32.gmra.mrb[0].mxu0 %v5786
        %v6336 = vpop.f32.mrb[0].mxu0
        %v6337 = vadd.f32 0.0, %v6336
        %v6338 = vpop.f32.mrb[0].mxu0
        %6339 = vmatprep.mubr.f32.mxu0 0.0
        %6340 = vmatmul.mubr.f32.gmra.mrb[0].mxu0 %v5787
        %v6341 = vpop.f32.mrb[0].mxu0
        %v6342 = vadd.f32 0.0, %v6341
        %v6343 = vpop.f32.mrb[0].mxu0
        %6344 = vmatprep.mubr.f32.mxu0 0.0
        %6345 = vmatmul.mubr.f32.gmra.mrb[0].mxu0 %v5788
        %v6346 = vpop.f32.mrb[0].mxu0
        %v6347 = vadd.f32 0.0, %v6346
        %v6348 = vpop.f32.mrb[0].mxu0
        %6349 = vmatprep.mubr.f32.mxu0 0.0
        %6350 = vmatmul.mubr.f32.gmra.mrb[0].mxu0 %v5789
        %v6351 = vpop.f32.mrb[0].mxu0
        %v6352 = vadd.f32 0.0, %v6351
        %v6353 = vpop.f32.mrb[0].mxu0
        %6354 = vmatprep.mubr.f32.mxu0 0.0
        %6355 = vmatmul.mubr.f32.gmra.mrb[0].mxu0 %v5790
        %v6356 = vpop.f32.mrb[0].mxu0
        %v6357 = vadd.f32 0.0, %v6356
        %v6358 = vpop.f32.mrb[0].mxu0
        %6359 = vmatprep.mubr.f32.mxu0 0.0
        %6360 = vmatmul.mubr.f32.gmra.mrb[0].mxu0 %v5791
        %v6361 = vpop.f32.mrb[0].mxu0
        %v6362 = vadd.f32 0.0, %v6361
        %v6363 = vpop.f32.mrb[0].mxu0
        %6364 = vmatprep.mubr.f32.mxu0 0.0
        %6365 = vmatmul.mubr.f32.gmra.mrb[0].mxu0 %v5792
        %v6366 = vpop.f32.mrb[0].mxu0
        %v6367 = vadd.f32 0.0, %v6366
        %v6368 = vpop.f32.mrb[0].mxu0
        %6369 = vmatprep.mubr.f32.mxu0 0.0
        %6370 = vmatmul.mubr.f32.gmra.mrb[0].mxu0 %v5793
        %v6371 = vpop.f32.mrb[0].mxu0
        %v6372 = vadd.f32 0.0, %v6371
        %v6373 = vpop.f32.mrb[0].mxu0
        %6374 = vmatprep.mubr.f32.mxu0 0.0
        %6375 = vmatmul.mubr.f32.gmra.mrb[0].mxu0 %v5794
        %v6376 = vpop.f32.mrb[0].mxu0
        %v6377 = vadd.f32 0.0, %v6376
        %v6378 = vpop.f32.mrb[0].mxu0
        %6379 = vmatprep.mubr.f32.mxu0 0.0
        %6380 = vmatmul.mubr.f32.gmra.mrb[0].mxu0 %v5795
        %v6381 = vpop.f32.mrb[0].mxu0
        %v6382 = vadd.f32 0.0, %v6381
        %v6383 = vpop.f32.mrb[0].mxu0
        %6384 = vmatprep.mubr.f32.mxu0 0.0
        %6385 = vmatmul.mubr.f32.gmra.mrb[0].mxu0 %v5796
        %v6386 = vpop.f32.mrb[0].mxu0
        %v6387 = vadd.f32 0.0, %v6386
        %v6388 = vpop.f32.mrb[0].mxu0
        %6389 = vmatprep.mubr.f32.mxu0 0.0
        %6390 = vmatmul.mubr.f32.gmra.mrb[0].mxu0 %v5797
        %v6391 = vpop.f32.mrb[0].mxu0
        %v6392 = vadd.f32 0.0, %v6391
        %v6393 = vpop.f32.mrb[0].mxu0
        %6394 = vmatprep.mubr.f32.mxu0 0.0
        %6395 = vmatmul.mubr.f32.gmra.mrb[0].mxu0 %v5798
        %v6396 = vpop.f32.mrb[0].mxu0
        %v6397 = vadd.f32 0.0, %v6396
        %v6398 = vpop.f32.mrb[0].mxu0
        %6399 = vmatprep.mubr.f32.mxu0 0.0
        %6400 = vmatmul.mubr.f32.gmra.mrb[0].mxu0 %v5799
        %v6401 = vpop.f32.mrb[0].mxu0
        %v6402 = vadd.f32 0.0, %v6401
        %v6403 = vpop.f32.mrb[0].mxu0
        %6404 = vdwg.mxu0
        %v6405 = vld [vmem:[%s4] sm:$0x3f]
        %s6406 = scalar_lea.vmem %s4, 8
        %v6407 = vld [vmem:[%s6406] sm:$0x3f]
        %vm6408 = vcmask 48128
        %v6410 = vsel %vm6408, %v5887, 0
        %v6413 = vsel %vm6408, %v5892, 0
        %v6416 = vsel %vm6408, %v5897, 0
        %v6419 = vsel %vm6408, %v5902, 0
        %vm6421 = vcmask 1045504
        %v6423 = vsel %vm6421, %v6407, 0
        %6425 = vmatprep.subr.mxu0 0.0
        %6426 = vmatpush1.msra.mxu0 %v6423
        %6427 = vmatprep.subr.mxu0 0.0
        %6428 = vmatpush1.msra.mxu0 0.0
        %6429 = vmatprep.subr.mxu0 0.0
        %6430 = vmatpush1.msra.mxu0 0.0
        %6431 = vmatprep.subr.mxu0 0.0
        %6432 = vmatpush1.msra.mxu0 0.0
        %6433 = vmatprep.subr.mxu0 0.0
        %6434 = vmatpush1.msra.mxu0 0.0
        %6435 = vmatprep.subr.mxu0 0.0
        %6436 = vmatpush1.msra.mxu0 0.0
        %6437 = vmatprep.subr.mxu0 0.0
        %6438 = vmatpush1.msra.mxu0 0.0
        %6439 = vmatprep.subr.mxu0 0.0
        %6440 = vmatpush1.msra.mxu0 0.0
        %6441 = vmatprep.subr.mxu0 0.0
        %6442 = vmatpush1.msra.mxu0 0.0
        %6443 = vmatprep.subr.mxu0 0.0
        %6444 = vmatpush1.msra.mxu0 0.0
        %6445 = vmatprep.subr.mxu0 0.0
        %6446 = vmatpush1.msra.mxu0 0.0
        %6447 = vmatprep.subr.mxu0 0.0
        %6448 = vmatpush1.msra.mxu0 0.0
        %6449 = vmatprep.subr.mxu0 0.0
        %6450 = vmatpush1.msra.mxu0 0.0
        %6451 = vmatprep.subr.mxu0 0.0
        %6452 = vmatpush1.msra.mxu0 0.0
        %6453 = vmatprep.subr.mxu0 0.0
        %6454 = vmatpush1.msra.mxu0 0.0
        %6455 = vmatprep.subr.mxu0 0.0
        %6456 = vmatpush1.msra.mxu0 0.0
        %6457 = vmatprep.subr.mxu0 0.0
        %6458 = vmatpush1.msra.mxu0 0.0
        %6459 = vmatprep.subr.mxu0 0.0
        %6460 = vmatpush1.msra.mxu0 0.0
        %6461 = vmatprep.subr.mxu0 0.0
        %6462 = vmatpush1.msra.mxu0 0.0
        %6463 = vmatprep.subr.mxu0 0.0
        %6464 = vmatpush1.msra.mxu0 0.0
        %6465 = vmatprep.subr.mxu0 0.0
        %6466 = vmatpush1.msra.mxu0 0.0
        %6467 = vmatprep.subr.mxu0 0.0
        %6468 = vmatpush1.msra.mxu0 0.0
        %6469 = vmatprep.subr.mxu0 0.0
        %6470 = vmatpush1.msra.mxu0 0.0
        %6471 = vmatprep.subr.mxu0 0.0
        %6472 = vmatpush1.msra.mxu0 0.0
        %6473 = vmatprep.subr.mxu0 0.0
        %6474 = vmatpush1.msra.mxu0 0.0
        %6475 = vmatprep.subr.mxu0 0.0
        %6476 = vmatpush1.msra.mxu0 0.0
        %6477 = vmatprep.subr.mxu0 0.0
        %6478 = vmatpush1.msra.mxu0 0.0
        %6479 = vmatprep.subr.mxu0 0.0
        %6480 = vmatpush1.msra.mxu0 0.0
        %6481 = vmatprep.subr.mxu0 0.0
        %6482 = vmatpush1.msra.mxu0 0.0
        %6483 = vmatprep.subr.mxu0 0.0
        %6484 = vmatpush1.msra.mxu0 0.0
        %6485 = vmatprep.subr.mxu0 0.0
        %6486 = vmatpush1.msra.mxu0 0.0
        %6487 = vmatprep.subr.mxu0 0.0
        %6488 = vmatpush1.msra.mxu0 0.0
        %6489 = vmatprep.mubr.f32.mxu0 0.0
        %6490 = vmatmul.mubr.f32.gmra.mrb[0].mxu0 %v6410
        %v6491 = vpop.f32.mrb[0].mxu0
        %v6492 = vadd.f32 0.0, %v6491
        %v6493 = vpop.f32.mrb[0].mxu0
        %6494 = vmatprep.mubr.f32.mxu0 0.0
        %6495 = vmatmul.mubr.f32.gmra.mrb[0].mxu0 %v6413
        %v6496 = vpop.f32.mrb[0].mxu0
        %v6497 = vadd.f32 0.0, %v6496
        %v6498 = vpop.f32.mrb[0].mxu0
        %6499 = vmatprep.mubr.f32.mxu0 0.0
        %6500 = vmatmul.mubr.f32.gmra.mrb[0].mxu0 %v6416
        %v6501 = vpop.f32.mrb[0].mxu0
        %v6502 = vadd.f32 0.0, %v6501
        %v6503 = vpop.f32.mrb[0].mxu0
        %6504 = vmatprep.mubr.f32.mxu0 0.0
        %6505 = vmatmul.mubr.f32.gmra.mrb[0].mxu0 %v6419
        %v6506 = vpop.f32.mrb[0].mxu0
        %v6507 = vadd.f32 0.0, %v6506
        %v6508 = vpop.f32.mrb[0].mxu0
        %6509 = vdwg.mxu0
        %v6511 = vsel %vm6408, %v5867, 0
        %v6514 = vsel %vm6408, %v5872, 0
        %v6517 = vsel %vm6408, %v5877, 0
        %v6520 = vsel %vm6408, %v5882, 0
        %v6523 = vsel %vm6421, %v6405, 0
        %6525 = vmatprep.subr.mxu0 0.0
        %6526 = vmatpush1.msra.mxu0 %v6523
        %6527 = vmatprep.subr.mxu0 0.0
        %6528 = vmatpush1.msra.mxu0 0.0
        %6529 = vmatprep.subr.mxu0 0.0
        %6530 = vmatpush1.msra.mxu0 0.0
        %6531 = vmatprep.subr.mxu0 0.0
        %6532 = vmatpush1.msra.mxu0 0.0
        %6533 = vmatprep.subr.mxu0 0.0
        %6534 = vmatpush1.msra.mxu0 0.0
        %6535 = vmatprep.subr.mxu0 0.0
        %6536 = vmatpush1.msra.mxu0 0.0
        %6537 = vmatprep.subr.mxu0 0.0
        %6538 = vmatpush1.msra.mxu0 0.0
        %6539 = vmatprep.subr.mxu0 0.0
        %6540 = vmatpush1.msra.mxu0 0.0
        %6541 = vmatprep.subr.mxu0 0.0
        %6542 = vmatpush1.msra.mxu0 0.0
        %6543 = vmatprep.subr.mxu0 0.0
        %6544 = vmatpush1.msra.mxu0 0.0
        %6545 = vmatprep.subr.mxu0 0.0
        %6546 = vmatpush1.msra.mxu0 0.0
        %6547 = vmatprep.subr.mxu0 0.0
        %6548 = vmatpush1.msra.mxu0 0.0
        %6549 = vmatprep.subr.mxu0 0.0
        %6550 = vmatpush1.msra.mxu0 0.0
        %6551 = vmatprep.subr.mxu0 0.0
        %6552 = vmatpush1.msra.mxu0 0.0
        %6553 = vmatprep.subr.mxu0 0.0
        %6554 = vmatpush1.msra.mxu0 0.0
        %6555 = vmatprep.subr.mxu0 0.0
        %6556 = vmatpush1.msra.mxu0 0.0
        %6557 = vmatprep.subr.mxu0 0.0
        %6558 = vmatpush1.msra.mxu0 0.0
        %6559 = vmatprep.subr.mxu0 0.0
        %6560 = vmatpush1.msra.mxu0 0.0
        %6561 = vmatprep.subr.mxu0 0.0
        %6562 = vmatpush1.msra.mxu0 0.0
        %6563 = vmatprep.subr.mxu0 0.0
        %6564 = vmatpush1.msra.mxu0 0.0
        %6565 = vmatprep.subr.mxu0 0.0
        %6566 = vmatpush1.msra.mxu0 0.0
        %6567 = vmatprep.subr.mxu0 0.0
        %6568 = vmatpush1.msra.mxu0 0.0
        %6569 = vmatprep.subr.mxu0 0.0
        %6570 = vmatpush1.msra.mxu0 0.0
        %6571 = vmatprep.subr.mxu0 0.0
        %6572 = vmatpush1.msra.mxu0 0.0
        %6573 = vmatprep.subr.mxu0 0.0
        %6574 = vmatpush1.msra.mxu0 0.0
        %6575 = vmatprep.subr.mxu0 0.0
        %6576 = vmatpush1.msra.mxu0 0.0
        %6577 = vmatprep.subr.mxu0 0.0
        %6578 = vmatpush1.msra.mxu0 0.0
        %6579 = vmatprep.subr.mxu0 0.0
        %6580 = vmatpush1.msra.mxu0 0.0
        %6581 = vmatprep.subr.mxu0 0.0
        %6582 = vmatpush1.msra.mxu0 0.0
        %6583 = vmatprep.subr.mxu0 0.0
        %6584 = vmatpush1.msra.mxu0 0.0
        %6585 = vmatprep.subr.mxu0 0.0
        %6586 = vmatpush1.msra.mxu0 0.0
        %6587 = vmatprep.subr.mxu0 0.0
        %6588 = vmatpush1.msra.mxu0 0.0
        %6589 = vmatprep.mubr.f32.mxu0 0.0
        %6590 = vmatmul.mubr.f32.gmra.mrb[0].mxu0 %v6511
        %v6591 = vpop.f32.mrb[0].mxu0
        %v6592 = vadd.f32 %v6492, %v6591
        %v6593 = vpop.f32.mrb[0].mxu0
        %6594 = vmatprep.mubr.f32.mxu0 0.0
        %6595 = vmatmul.mubr.f32.gmra.mrb[0].mxu0 %v6514
        %v6596 = vpop.f32.mrb[0].mxu0
        %v6597 = vadd.f32 %v6497, %v6596
        %v6598 = vpop.f32.mrb[0].mxu0
        %6599 = vmatprep.mubr.f32.mxu0 0.0
        %6600 = vmatmul.mubr.f32.gmra.mrb[0].mxu0 %v6517
        %v6601 = vpop.f32.mrb[0].mxu0
        %v6602 = vadd.f32 %v6502, %v6601
        %v6603 = vpop.f32.mrb[0].mxu0
        %6604 = vmatprep.mubr.f32.mxu0 0.0
        %6605 = vmatmul.mubr.f32.gmra.mrb[0].mxu0 %v6520
        %v6606 = vpop.f32.mrb[0].mxu0
        %v6607 = vadd.f32 %v6507, %v6606
        %v6608 = vpop.f32.mrb[0].mxu0
        %6609 = vdwg.mxu0
        %s6610 = scalar_lea.vmem %s4, 16
        %v6611 = vld [vmem:[%s6610] sm:$0x3f]
        %v6613 = vsel %vm6408, %v5907, 0
        %v6616 = vsel %vm6408, %v5912, 0
        %v6619 = vsel %vm6408, %v5917, 0
        %v6622 = vsel %vm6408, %v5922, 0
        %v6625 = vsel %vm6421, %v6611, 0
        %6627 = vmatprep.subr.mxu0 0.0
        %6628 = vmatpush1.msra.mxu0 %v6625
        %6629 = vmatprep.subr.mxu0 0.0
        %6630 = vmatpush1.msra.mxu0 0.0
        %6631 = vmatprep.subr.mxu0 0.0
        %6632 = vmatpush1.msra.mxu0 0.0
        %6633 = vmatprep.subr.mxu0 0.0
        %6634 = vmatpush1.msra.mxu0 0.0
        %6635 = vmatprep.subr.mxu0 0.0
        %6636 = vmatpush1.msra.mxu0 0.0
        %6637 = vmatprep.subr.mxu0 0.0
        %6638 = vmatpush1.msra.mxu0 0.0
        %6639 = vmatprep.subr.mxu0 0.0
        %6640 = vmatpush1.msra.mxu0 0.0
        %6641 = vmatprep.subr.mxu0 0.0
        %6642 = vmatpush1.msra.mxu0 0.0
        %6643 = vmatprep.subr.mxu0 0.0
        %6644 = vmatpush1.msra.mxu0 0.0
        %6645 = vmatprep.subr.mxu0 0.0
        %6646 = vmatpush1.msra.mxu0 0.0
        %6647 = vmatprep.subr.mxu0 0.0
        %6648 = vmatpush1.msra.mxu0 0.0
        %6649 = vmatprep.subr.mxu0 0.0
        %6650 = vmatpush1.msra.mxu0 0.0
        %6651 = vmatprep.subr.mxu0 0.0
        %6652 = vmatpush1.msra.mxu0 0.0
        %6653 = vmatprep.subr.mxu0 0.0
        %6654 = vmatpush1.msra.mxu0 0.0
        %6655 = vmatprep.subr.mxu0 0.0
        %6656 = vmatpush1.msra.mxu0 0.0
        %6657 = vmatprep.subr.mxu0 0.0
        %6658 = vmatpush1.msra.mxu0 0.0
        %6659 = vmatprep.subr.mxu0 0.0
        %6660 = vmatpush1.msra.mxu0 0.0
        %6661 = vmatprep.subr.mxu0 0.0
        %6662 = vmatpush1.msra.mxu0 0.0
        %6663 = vmatprep.subr.mxu0 0.0
        %6664 = vmatpush1.msra.mxu0 0.0
        %6665 = vmatprep.subr.mxu0 0.0
        %6666 = vmatpush1.msra.mxu0 0.0
        %6667 = vmatprep.subr.mxu0 0.0
        %6668 = vmatpush1.msra.mxu0 0.0
        %6669 = vmatprep.subr.mxu0 0.0
        %6670 = vmatpush1.msra.mxu0 0.0
        %6671 = vmatprep.subr.mxu0 0.0
        %6672 = vmatpush1.msra.mxu0 0.0
        %6673 = vmatprep.subr.mxu0 0.0
        %6674 = vmatpush1.msra.mxu0 0.0
        %6675 = vmatprep.subr.mxu0 0.0
        %6676 = vmatpush1.msra.mxu0 0.0
        %6677 = vmatprep.subr.mxu0 0.0
        %6678 = vmatpush1.msra.mxu0 0.0
        %6679 = vmatprep.subr.mxu0 0.0
        %6680 = vmatpush1.msra.mxu0 0.0
        %6681 = vmatprep.subr.mxu0 0.0
        %6682 = vmatpush1.msra.mxu0 0.0
        %6683 = vmatprep.subr.mxu0 0.0
        %6684 = vmatpush1.msra.mxu0 0.0
        %6685 = vmatprep.subr.mxu0 0.0
        %6686 = vmatpush1.msra.mxu0 0.0
        %6687 = vmatprep.subr.mxu0 0.0
        %6688 = vmatpush1.msra.mxu0 0.0
        %6689 = vmatprep.subr.mxu0 0.0
        %6690 = vmatpush1.msra.mxu0 0.0
        %6691 = vmatprep.mubr.f32.mxu0 0.0
        %6692 = vmatmul.mubr.f32.gmra.mrb[0].mxu0 %v6613
        %v6693 = vpop.f32.mrb[0].mxu0
        %v6694 = vadd.f32 0.0, %v6693
        %v6695 = vpop.f32.mrb[0].mxu0
        %6696 = vmatprep.mubr.f32.mxu0 0.0
        %6697 = vmatmul.mubr.f32.gmra.mrb[0].mxu0 %v6616
        %v6698 = vpop.f32.mrb[0].mxu0
        %v6699 = vadd.f32 0.0, %v6698
        %v6700 = vpop.f32.mrb[0].mxu0
        %6701 = vmatprep.mubr.f32.mxu0 0.0
        %6702 = vmatmul.mubr.f32.gmra.mrb[0].mxu0 %v6619
        %v6703 = vpop.f32.mrb[0].mxu0
        %v6704 = vadd.f32 0.0, %v6703
        %v6705 = vpop.f32.mrb[0].mxu0
        %6706 = vmatprep.mubr.f32.mxu0 0.0
        %6707 = vmatmul.mubr.f32.gmra.mrb[0].mxu0 %v6622
        %v6708 = vpop.f32.mrb[0].mxu0
        %v6709 = vadd.f32 0.0, %v6708
        %v6710 = vpop.f32.mrb[0].mxu0
        %6711 = vdwg.mxu0
        %v6712 = vadd.f32 %v6592, %v6694
        %v6713 = vadd.f32 %v6597, %v6699
        %v6714 = vadd.f32 %v6602, %v6704
        %v6715 = vadd.f32 %v6607, %v6709
        %s6716 = scalar_lea.vmem %s4, 24
        %v6717 = vld [vmem:[%s6716] sm:$0x3f]
        %v6719 = vsel %vm6408, %v5927, 0
        %v6722 = vsel %vm6408, %v5932, 0
        %v6725 = vsel %vm6408, %v5937, 0
        %v6728 = vsel %vm6408, %v5942, 0
        %v6731 = vsel %vm6421, %v6717, 0
        %6733 = vmatprep.subr.mxu0 0.0
        %6734 = vmatpush1.msra.mxu0 %v6731
        %6735 = vmatprep.subr.mxu0 0.0
        %6736 = vmatpush1.msra.mxu0 0.0
        %6737 = vmatprep.subr.mxu0 0.0
        %6738 = vmatpush1.msra.mxu0 0.0
        %6739 = vmatprep.subr.mxu0 0.0
        %6740 = vmatpush1.msra.mxu0 0.0
        %6741 = vmatprep.subr.mxu0 0.0
        %6742 = vmatpush1.msra.mxu0 0.0
        %6743 = vmatprep.subr.mxu0 0.0
        %6744 = vmatpush1.msra.mxu0 0.0
        %6745 = vmatprep.subr.mxu0 0.0
        %6746 = vmatpush1.msra.mxu0 0.0
        %6747 = vmatprep.subr.mxu0 0.0
        %6748 = vmatpush1.msra.mxu0 0.0
        %6749 = vmatprep.subr.mxu0 0.0
        %6750 = vmatpush1.msra.mxu0 0.0
        %6751 = vmatprep.subr.mxu0 0.0
        %6752 = vmatpush1.msra.mxu0 0.0
        %6753 = vmatprep.subr.mxu0 0.0
        %6754 = vmatpush1.msra.mxu0 0.0
        %6755 = vmatprep.subr.mxu0 0.0
        %6756 = vmatpush1.msra.mxu0 0.0
        %6757 = vmatprep.subr.mxu0 0.0
        %6758 = vmatpush1.msra.mxu0 0.0
        %6759 = vmatprep.subr.mxu0 0.0
        %6760 = vmatpush1.msra.mxu0 0.0
        %6761 = vmatprep.subr.mxu0 0.0
        %6762 = vmatpush1.msra.mxu0 0.0
        %6763 = vmatprep.subr.mxu0 0.0
        %6764 = vmatpush1.msra.mxu0 0.0
        %6765 = vmatprep.subr.mxu0 0.0
        %6766 = vmatpush1.msra.mxu0 0.0
        %6767 = vmatprep.subr.mxu0 0.0
        %6768 = vmatpush1.msra.mxu0 0.0
        %6769 = vmatprep.subr.mxu0 0.0
        %6770 = vmatpush1.msra.mxu0 0.0
        %6771 = vmatprep.subr.mxu0 0.0
        %6772 = vmatpush1.msra.mxu0 0.0
        %6773 = vmatprep.subr.mxu0 0.0
        %6774 = vmatpush1.msra.mxu0 0.0
        %6775 = vmatprep.subr.mxu0 0.0
        %6776 = vmatpush1.msra.mxu0 0.0
        %6777 = vmatprep.subr.mxu0 0.0
        %6778 = vmatpush1.msra.mxu0 0.0
        %6779 = vmatprep.subr.mxu0 0.0
        %6780 = vmatpush1.msra.mxu0 0.0
        %6781 = vmatprep.subr.mxu0 0.0
        %6782 = vmatpush1.msra.mxu0 0.0
        %6783 = vmatprep.subr.mxu0 0.0
        %6784 = vmatpush1.msra.mxu0 0.0
        %6785 = vmatprep.subr.mxu0 0.0
        %6786 = vmatpush1.msra.mxu0 0.0
        %6787 = vmatprep.subr.mxu0 0.0
        %6788 = vmatpush1.msra.mxu0 0.0
        %6789 = vmatprep.subr.mxu0 0.0
        %6790 = vmatpush1.msra.mxu0 0.0
        %6791 = vmatprep.subr.mxu0 0.0
        %6792 = vmatpush1.msra.mxu0 0.0
        %6793 = vmatprep.subr.mxu0 0.0
        %6794 = vmatpush1.msra.mxu0 0.0
        %6795 = vmatprep.subr.mxu0 0.0
        %6796 = vmatpush1.msra.mxu0 0.0
        %6797 = vmatprep.mubr.f32.mxu0 0.0
        %6798 = vmatmul.mubr.f32.gmra.mrb[0].mxu0 %v6719
        %v6799 = vpop.f32.mrb[0].mxu0
        %v6800 = vadd.f32 0.0, %v6799
        %v6801 = vpop.f32.mrb[0].mxu0
        %6802 = vmatprep.mubr.f32.mxu0 0.0
        %6803 = vmatmul.mubr.f32.gmra.mrb[0].mxu0 %v6722
        %v6804 = vpop.f32.mrb[0].mxu0
        %v6805 = vadd.f32 0.0, %v6804
        %v6806 = vpop.f32.mrb[0].mxu0
        %6807 = vmatprep.mubr.f32.mxu0 0.0
        %6808 = vmatmul.mubr.f32.gmra.mrb[0].mxu0 %v6725
        %v6809 = vpop.f32.mrb[0].mxu0
        %v6810 = vadd.f32 0.0, %v6809
        %v6811 = vpop.f32.mrb[0].mxu0
        %6812 = vmatprep.mubr.f32.mxu0 0.0
        %6813 = vmatmul.mubr.f32.gmra.mrb[0].mxu0 %v6728
        %v6814 = vpop.f32.mrb[0].mxu0
        %v6815 = vadd.f32 0.0, %v6814
        %v6816 = vpop.f32.mrb[0].mxu0
        %6817 = vdwg.mxu0
        %v6818 = vadd.f32 %v6712, %v6800
        %v6819 = vadd.f32 %v6713, %v6805
        %v6820 = vadd.f32 %v6714, %v6810
        %v6821 = vadd.f32 %v6715, %v6815
        %s6822 = scalar_lea.vmem %s4, 32
        %v6823 = vld [vmem:[%s6822] sm:$0x3f]
        %v6825 = vsel %vm6408, %v5947, 0
        %v6828 = vsel %vm6408, %v5952, 0
        %v6831 = vsel %vm6408, %v5957, 0
        %v6834 = vsel %vm6408, %v5962, 0
        %v6837 = vsel %vm6421, %v6823, 0
        %6839 = vmatprep.subr.mxu0 0.0
        %6840 = vmatpush1.msra.mxu0 %v6837
        %6841 = vmatprep.subr.mxu0 0.0
        %6842 = vmatpush1.msra.mxu0 0.0
        %6843 = vmatprep.subr.mxu0 0.0
        %6844 = vmatpush1.msra.mxu0 0.0
        %6845 = vmatprep.subr.mxu0 0.0
        %6846 = vmatpush1.msra.mxu0 0.0
        %6847 = vmatprep.subr.mxu0 0.0
        %6848 = vmatpush1.msra.mxu0 0.0
        %6849 = vmatprep.subr.mxu0 0.0
        %6850 = vmatpush1.msra.mxu0 0.0
        %6851 = vmatprep.subr.mxu0 0.0
        %6852 = vmatpush1.msra.mxu0 0.0
        %6853 = vmatprep.subr.mxu0 0.0
        %6854 = vmatpush1.msra.mxu0 0.0
        %6855 = vmatprep.subr.mxu0 0.0
        %6856 = vmatpush1.msra.mxu0 0.0
        %6857 = vmatprep.subr.mxu0 0.0
        %6858 = vmatpush1.msra.mxu0 0.0
        %6859 = vmatprep.subr.mxu0 0.0
        %6860 = vmatpush1.msra.mxu0 0.0
        %6861 = vmatprep.subr.mxu0 0.0
        %6862 = vmatpush1.msra.mxu0 0.0
        %6863 = vmatprep.subr.mxu0 0.0
        %6864 = vmatpush1.msra.mxu0 0.0
        %6865 = vmatprep.subr.mxu0 0.0
        %6866 = vmatpush1.msra.mxu0 0.0
        %6867 = vmatprep.subr.mxu0 0.0
        %6868 = vmatpush1.msra.mxu0 0.0
        %6869 = vmatprep.subr.mxu0 0.0
        %6870 = vmatpush1.msra.mxu0 0.0
        %6871 = vmatprep.subr.mxu0 0.0
        %6872 = vmatpush1.msra.mxu0 0.0
        %6873 = vmatprep.subr.mxu0 0.0
        %6874 = vmatpush1.msra.mxu0 0.0
        %6875 = vmatprep.subr.mxu0 0.0
        %6876 = vmatpush1.msra.mxu0 0.0
        %6877 = vmatprep.subr.mxu0 0.0
        %6878 = vmatpush1.msra.mxu0 0.0
        %6879 = vmatprep.subr.mxu0 0.0
        %6880 = vmatpush1.msra.mxu0 0.0
        %6881 = vmatprep.subr.mxu0 0.0
        %6882 = vmatpush1.msra.mxu0 0.0
        %6883 = vmatprep.subr.mxu0 0.0
        %6884 = vmatpush1.msra.mxu0 0.0
        %6885 = vmatprep.subr.mxu0 0.0
        %6886 = vmatpush1.msra.mxu0 0.0
        %6887 = vmatprep.subr.mxu0 0.0
        %6888 = vmatpush1.msra.mxu0 0.0
        %6889 = vmatprep.subr.mxu0 0.0
        %6890 = vmatpush1.msra.mxu0 0.0
        %6891 = vmatprep.subr.mxu0 0.0
        %6892 = vmatpush1.msra.mxu0 0.0
        %6893 = vmatprep.subr.mxu0 0.0
        %6894 = vmatpush1.msra.mxu0 0.0
        %6895 = vmatprep.subr.mxu0 0.0
        %6896 = vmatpush1.msra.mxu0 0.0
        %6897 = vmatprep.subr.mxu0 0.0
        %6898 = vmatpush1.msra.mxu0 0.0
        %6899 = vmatprep.subr.mxu0 0.0
        %6900 = vmatpush1.msra.mxu0 0.0
        %6901 = vmatprep.subr.mxu0 0.0
        %6902 = vmatpush1.msra.mxu0 0.0
        %6903 = vmatprep.mubr.f32.mxu0 0.0
        %6904 = vmatmul.mubr.f32.gmra.mrb[0].mxu0 %v6825
        %v6905 = vpop.f32.mrb[0].mxu0
        %v6906 = vadd.f32 0.0, %v6905
        %v6907 = vpop.f32.mrb[0].mxu0
        %6908 = vmatprep.mubr.f32.mxu0 0.0
        %6909 = vmatmul.mubr.f32.gmra.mrb[0].mxu0 %v6828
        %v6910 = vpop.f32.mrb[0].mxu0
        %v6911 = vadd.f32 0.0, %v6910
        %v6912 = vpop.f32.mrb[0].mxu0
        %6913 = vmatprep.mubr.f32.mxu0 0.0
        %6914 = vmatmul.mubr.f32.gmra.mrb[0].mxu0 %v6831
        %v6915 = vpop.f32.mrb[0].mxu0
        %v6916 = vadd.f32 0.0, %v6915
        %v6917 = vpop.f32.mrb[0].mxu0
        %6918 = vmatprep.mubr.f32.mxu0 0.0
        %6919 = vmatmul.mubr.f32.gmra.mrb[0].mxu0 %v6834
        %v6920 = vpop.f32.mrb[0].mxu0
        %v6921 = vadd.f32 0.0, %v6920
        %v6922 = vpop.f32.mrb[0].mxu0
        %6923 = vdwg.mxu0
        %v6924 = vadd.f32 %v6818, %v6906
        %v6925 = vadd.f32 %v6819, %v6911
        %v6926 = vadd.f32 %v6820, %v6916
        %v6927 = vadd.f32 %v6821, %v6921
        %s6928 = scalar_lea.vmem %s4, 40
        %v6929 = vld [vmem:[%s6928] sm:$0x3f]
        %v6931 = vsel %vm6408, %v5967, 0
        %v6934 = vsel %vm6408, %v5972, 0
        %v6937 = vsel %vm6408, %v5977, 0
        %v6940 = vsel %vm6408, %v5982, 0
        %v6943 = vsel %vm6421, %v6929, 0
        %6945 = vmatprep.subr.mxu0 0.0
        %6946 = vmatpush1.msra.mxu0 %v6943
        %6947 = vmatprep.subr.mxu0 0.0
        %6948 = vmatpush1.msra.mxu0 0.0
        %6949 = vmatprep.subr.mxu0 0.0
        %6950 = vmatpush1.msra.mxu0 0.0
        %6951 = vmatprep.subr.mxu0 0.0
        %6952 = vmatpush1.msra.mxu0 0.0
        %6953 = vmatprep.subr.mxu0 0.0
        %6954 = vmatpush1.msra.mxu0 0.0
        %6955 = vmatprep.subr.mxu0 0.0
        %6956 = vmatpush1.msra.mxu0 0.0
        %6957 = vmatprep.subr.mxu0 0.0
        %6958 = vmatpush1.msra.mxu0 0.0
        %6959 = vmatprep.subr.mxu0 0.0
        %6960 = vmatpush1.msra.mxu0 0.0
        %6961 = vmatprep.subr.mxu0 0.0
        %6962 = vmatpush1.msra.mxu0 0.0
        %6963 = vmatprep.subr.mxu0 0.0
        %6964 = vmatpush1.msra.mxu0 0.0
        %6965 = vmatprep.subr.mxu0 0.0
        %6966 = vmatpush1.msra.mxu0 0.0
        %6967 = vmatprep.subr.mxu0 0.0
        %6968 = vmatpush1.msra.mxu0 0.0
        %6969 = vmatprep.subr.mxu0 0.0
        %6970 = vmatpush1.msra.mxu0 0.0
        %6971 = vmatprep.subr.mxu0 0.0
        %6972 = vmatpush1.msra.mxu0 0.0
        %6973 = vmatprep.subr.mxu0 0.0
        %6974 = vmatpush1.msra.mxu0 0.0
        %6975 = vmatprep.subr.mxu0 0.0
        %6976 = vmatpush1.msra.mxu0 0.0
        %6977 = vmatprep.subr.mxu0 0.0
        %6978 = vmatpush1.msra.mxu0 0.0
        %6979 = vmatprep.subr.mxu0 0.0
        %6980 = vmatpush1.msra.mxu0 0.0
        %6981 = vmatprep.subr.mxu0 0.0
        %6982 = vmatpush1.msra.mxu0 0.0
        %6983 = vmatprep.subr.mxu0 0.0
        %6984 = vmatpush1.msra.mxu0 0.0
        %6985 = vmatprep.subr.mxu0 0.0
        %6986 = vmatpush1.msra.mxu0 0.0
        %6987 = vmatprep.subr.mxu0 0.0
        %6988 = vmatpush1.msra.mxu0 0.0
        %6989 = vmatprep.subr.mxu0 0.0
        %6990 = vmatpush1.msra.mxu0 0.0
        %6991 = vmatprep.subr.mxu0 0.0
        %6992 = vmatpush1.msra.mxu0 0.0
        %6993 = vmatprep.subr.mxu0 0.0
        %6994 = vmatpush1.msra.mxu0 0.0
        %6995 = vmatprep.subr.mxu0 0.0
        %6996 = vmatpush1.msra.mxu0 0.0
        %6997 = vmatprep.subr.mxu0 0.0
        %6998 = vmatpush1.msra.mxu0 0.0
        %6999 = vmatprep.subr.mxu0 0.0
        %7000 = vmatpush1.msra.mxu0 0.0
        %7001 = vmatprep.subr.mxu0 0.0
        %7002 = vmatpush1.msra.mxu0 0.0
        %7003 = vmatprep.subr.mxu0 0.0
        %7004 = vmatpush1.msra.mxu0 0.0
        %7005 = vmatprep.subr.mxu0 0.0
        %7006 = vmatpush1.msra.mxu0 0.0
        %7007 = vmatprep.subr.mxu0 0.0
        %7008 = vmatpush1.msra.mxu0 0.0
        %7009 = vmatprep.mubr.f32.mxu0 0.0
        %7010 = vmatmul.mubr.f32.gmra.mrb[0].mxu0 %v6931
        %v7011 = vpop.f32.mrb[0].mxu0
        %v7012 = vadd.f32 0.0, %v7011
        %v7013 = vpop.f32.mrb[0].mxu0
        %7014 = vmatprep.mubr.f32.mxu0 0.0
        %7015 = vmatmul.mubr.f32.gmra.mrb[0].mxu0 %v6934
        %v7016 = vpop.f32.mrb[0].mxu0
        %v7017 = vadd.f32 0.0, %v7016
        %v7018 = vpop.f32.mrb[0].mxu0
        %7019 = vmatprep.mubr.f32.mxu0 0.0
        %7020 = vmatmul.mubr.f32.gmra.mrb[0].mxu0 %v6937
        %v7021 = vpop.f32.mrb[0].mxu0
        %v7022 = vadd.f32 0.0, %v7021
        %v7023 = vpop.f32.mrb[0].mxu0
        %7024 = vmatprep.mubr.f32.mxu0 0.0
        %7025 = vmatmul.mubr.f32.gmra.mrb[0].mxu0 %v6940
        %v7026 = vpop.f32.mrb[0].mxu0
        %v7027 = vadd.f32 0.0, %v7026
        %v7028 = vpop.f32.mrb[0].mxu0
        %7029 = vdwg.mxu0
        %v7030 = vadd.f32 %v6924, %v7012
        %v7031 = vadd.f32 %v6925, %v7017
        %v7032 = vadd.f32 %v6926, %v7022
        %v7033 = vadd.f32 %v6927, %v7027
        %s7034 = scalar_lea.vmem %s4, 48
        %v7035 = vld [vmem:[%s7034] sm:$0x3f]
        %v7037 = vsel %vm6408, %v5987, 0
        %v7040 = vsel %vm6408, %v5992, 0
        %v7043 = vsel %vm6408, %v5997, 0
        %v7046 = vsel %vm6408, %v6002, 0
        %v7049 = vsel %vm6421, %v7035, 0
        %7051 = vmatprep.subr.mxu0 0.0
        %7052 = vmatpush1.msra.mxu0 %v7049
        %7053 = vmatprep.subr.mxu0 0.0
        %7054 = vmatpush1.msra.mxu0 0.0
        %7055 = vmatprep.subr.mxu0 0.0
        %7056 = vmatpush1.msra.mxu0 0.0
        %7057 = vmatprep.subr.mxu0 0.0
        %7058 = vmatpush1.msra.mxu0 0.0
        %7059 = vmatprep.subr.mxu0 0.0
        %7060 = vmatpush1.msra.mxu0 0.0
        %7061 = vmatprep.subr.mxu0 0.0
        %7062 = vmatpush1.msra.mxu0 0.0
        %7063 = vmatprep.subr.mxu0 0.0
        %7064 = vmatpush1.msra.mxu0 0.0
        %7065 = vmatprep.subr.mxu0 0.0
        %7066 = vmatpush1.msra.mxu0 0.0
        %7067 = vmatprep.subr.mxu0 0.0
        %7068 = vmatpush1.msra.mxu0 0.0
        %7069 = vmatprep.subr.mxu0 0.0
        %7070 = vmatpush1.msra.mxu0 0.0
        %7071 = vmatprep.subr.mxu0 0.0
        %7072 = vmatpush1.msra.mxu0 0.0
        %7073 = vmatprep.subr.mxu0 0.0
        %7074 = vmatpush1.msra.mxu0 0.0
        %7075 = vmatprep.subr.mxu0 0.0
        %7076 = vmatpush1.msra.mxu0 0.0
        %7077 = vmatprep.subr.mxu0 0.0
        %7078 = vmatpush1.msra.mxu0 0.0
        %7079 = vmatprep.subr.mxu0 0.0
        %7080 = vmatpush1.msra.mxu0 0.0
        %7081 = vmatprep.subr.mxu0 0.0
        %7082 = vmatpush1.msra.mxu0 0.0
        %7083 = vmatprep.subr.mxu0 0.0
        %7084 = vmatpush1.msra.mxu0 0.0
        %7085 = vmatprep.subr.mxu0 0.0
        %7086 = vmatpush1.msra.mxu0 0.0
        %7087 = vmatprep.subr.mxu0 0.0
        %7088 = vmatpush1.msra.mxu0 0.0
        %7089 = vmatprep.subr.mxu0 0.0
        %7090 = vmatpush1.msra.mxu0 0.0
        %7091 = vmatprep.subr.mxu0 0.0
        %7092 = vmatpush1.msra.mxu0 0.0
        %7093 = vmatprep.subr.mxu0 0.0
        %7094 = vmatpush1.msra.mxu0 0.0
        %7095 = vmatprep.subr.mxu0 0.0
        %7096 = vmatpush1.msra.mxu0 0.0
        %7097 = vmatprep.subr.mxu0 0.0
        %7098 = vmatpush1.msra.mxu0 0.0
        %7099 = vmatprep.subr.mxu0 0.0
        %7100 = vmatpush1.msra.mxu0 0.0
        %7101 = vmatprep.subr.mxu0 0.0
        %7102 = vmatpush1.msra.mxu0 0.0
        %7103 = vmatprep.subr.mxu0 0.0
        %7104 = vmatpush1.msra.mxu0 0.0
        %7105 = vmatprep.subr.mxu0 0.0
        %7106 = vmatpush1.msra.mxu0 0.0
        %7107 = vmatprep.subr.mxu0 0.0
        %7108 = vmatpush1.msra.mxu0 0.0
        %7109 = vmatprep.subr.mxu0 0.0
        %7110 = vmatpush1.msra.mxu0 0.0
        %7111 = vmatprep.subr.mxu0 0.0
        %7112 = vmatpush1.msra.mxu0 0.0
        %7113 = vmatprep.subr.mxu0 0.0
        %7114 = vmatpush1.msra.mxu0 0.0
        %7115 = vmatprep.mubr.f32.mxu0 0.0
        %7116 = vmatmul.mubr.f32.gmra.mrb[0].mxu0 %v7037
        %v7117 = vpop.f32.mrb[0].mxu0
        %v7118 = vadd.f32 0.0, %v7117
        %v7119 = vpop.f32.mrb[0].mxu0
        %7120 = vmatprep.mubr.f32.mxu0 0.0
        %7121 = vmatmul.mubr.f32.gmra.mrb[0].mxu0 %v7040
        %v7122 = vpop.f32.mrb[0].mxu0
        %v7123 = vadd.f32 0.0, %v7122
        %v7124 = vpop.f32.mrb[0].mxu0
        %7125 = vmatprep.mubr.f32.mxu0 0.0
        %7126 = vmatmul.mubr.f32.gmra.mrb[0].mxu0 %v7043
        %v7127 = vpop.f32.mrb[0].mxu0
        %v7128 = vadd.f32 0.0, %v7127
        %v7129 = vpop.f32.mrb[0].mxu0
        %7130 = vmatprep.mubr.f32.mxu0 0.0
        %7131 = vmatmul.mubr.f32.gmra.mrb[0].mxu0 %v7046
        %v7132 = vpop.f32.mrb[0].mxu0
        %v7133 = vadd.f32 0.0, %v7132
        %v7134 = vpop.f32.mrb[0].mxu0
        %7135 = vdwg.mxu0
        %v7136 = vadd.f32 %v7030, %v7118
        %v7137 = vadd.f32 %v7031, %v7123
        %v7138 = vadd.f32 %v7032, %v7128
        %v7139 = vadd.f32 %v7033, %v7133
        %s7140 = scalar_lea.vmem %s4, 56
        %v7141 = vld [vmem:[%s7140] sm:$0x3f]
        %v7143 = vsel %vm6408, %v6007, 0
        %v7146 = vsel %vm6408, %v6012, 0
        %v7149 = vsel %vm6408, %v6017, 0
        %v7152 = vsel %vm6408, %v6022, 0
        %v7155 = vsel %vm6421, %v7141, 0
        %7157 = vmatprep.subr.mxu0 0.0
        %7158 = vmatpush1.msra.mxu0 %v7155
        %7159 = vmatprep.subr.mxu0 0.0
        %7160 = vmatpush1.msra.mxu0 0.0
        %7161 = vmatprep.subr.mxu0 0.0
        %7162 = vmatpush1.msra.mxu0 0.0
        %7163 = vmatprep.subr.mxu0 0.0
        %7164 = vmatpush1.msra.mxu0 0.0
        %7165 = vmatprep.subr.mxu0 0.0
        %7166 = vmatpush1.msra.mxu0 0.0
        %7167 = vmatprep.subr.mxu0 0.0
        %7168 = vmatpush1.msra.mxu0 0.0
        %7169 = vmatprep.subr.mxu0 0.0
        %7170 = vmatpush1.msra.mxu0 0.0
        %7171 = vmatprep.subr.mxu0 0.0
        %7172 = vmatpush1.msra.mxu0 0.0
        %7173 = vmatprep.subr.mxu0 0.0
        %7174 = vmatpush1.msra.mxu0 0.0
        %7175 = vmatprep.subr.mxu0 0.0
        %7176 = vmatpush1.msra.mxu0 0.0
        %7177 = vmatprep.subr.mxu0 0.0
        %7178 = vmatpush1.msra.mxu0 0.0
        %7179 = vmatprep.subr.mxu0 0.0
        %7180 = vmatpush1.msra.mxu0 0.0
        %7181 = vmatprep.subr.mxu0 0.0
        %7182 = vmatpush1.msra.mxu0 0.0
        %7183 = vmatprep.subr.mxu0 0.0
        %7184 = vmatpush1.msra.mxu0 0.0
        %7185 = vmatprep.subr.mxu0 0.0
        %7186 = vmatpush1.msra.mxu0 0.0
        %7187 = vmatprep.subr.mxu0 0.0
        %7188 = vmatpush1.msra.mxu0 0.0
        %7189 = vmatprep.subr.mxu0 0.0
        %7190 = vmatpush1.msra.mxu0 0.0
        %7191 = vmatprep.subr.mxu0 0.0
        %7192 = vmatpush1.msra.mxu0 0.0
        %7193 = vmatprep.subr.mxu0 0.0
        %7194 = vmatpush1.msra.mxu0 0.0
        %7195 = vmatprep.subr.mxu0 0.0
        %7196 = vmatpush1.msra.mxu0 0.0
        %7197 = vmatprep.subr.mxu0 0.0
        %7198 = vmatpush1.msra.mxu0 0.0
        %7199 = vmatprep.subr.mxu0 0.0
        %7200 = vmatpush1.msra.mxu0 0.0
        %7201 = vmatprep.subr.mxu0 0.0
        %7202 = vmatpush1.msra.mxu0 0.0
        %7203 = vmatprep.subr.mxu0 0.0
        %7204 = vmatpush1.msra.mxu0 0.0
        %7205 = vmatprep.subr.mxu0 0.0
        %7206 = vmatpush1.msra.mxu0 0.0
        %7207 = vmatprep.subr.mxu0 0.0
        %7208 = vmatpush1.msra.mxu0 0.0
        %7209 = vmatprep.subr.mxu0 0.0
        %7210 = vmatpush1.msra.mxu0 0.0
        %7211 = vmatprep.subr.mxu0 0.0
        %7212 = vmatpush1.msra.mxu0 0.0
        %7213 = vmatprep.subr.mxu0 0.0
        %7214 = vmatpush1.msra.mxu0 0.0
        %7215 = vmatprep.subr.mxu0 0.0
        %7216 = vmatpush1.msra.mxu0 0.0
        %7217 = vmatprep.subr.mxu0 0.0
        %7218 = vmatpush1.msra.mxu0 0.0
        %7219 = vmatprep.subr.mxu0 0.0
        %7220 = vmatpush1.msra.mxu0 0.0
        %7221 = vmatprep.mubr.f32.mxu0 0.0
        %7222 = vmatmul.mubr.f32.gmra.mrb[0].mxu0 %v7143
        %v7223 = vpop.f32.mrb[0].mxu0
        %v7224 = vadd.f32 0.0, %v7223
        %v7225 = vpop.f32.mrb[0].mxu0
        %7226 = vmatprep.mubr.f32.mxu0 0.0
        %7227 = vmatmul.mubr.f32.gmra.mrb[0].mxu0 %v7146
        %v7228 = vpop.f32.mrb[0].mxu0
        %v7229 = vadd.f32 0.0, %v7228
        %v7230 = vpop.f32.mrb[0].mxu0
        %7231 = vmatprep.mubr.f32.mxu0 0.0
        %7232 = vmatmul.mubr.f32.gmra.mrb[0].mxu0 %v7149
        %v7233 = vpop.f32.mrb[0].mxu0
        %v7234 = vadd.f32 0.0, %v7233
        %v7235 = vpop.f32.mrb[0].mxu0
        %7236 = vmatprep.mubr.f32.mxu0 0.0
        %7237 = vmatmul.mubr.f32.gmra.mrb[0].mxu0 %v7152
        %v7238 = vpop.f32.mrb[0].mxu0
        %v7239 = vadd.f32 0.0, %v7238
        %v7240 = vpop.f32.mrb[0].mxu0
        %7241 = vdwg.mxu0
        %v7242 = vadd.f32 %v7136, %v7224
        %v7243 = vadd.f32 %v7137, %v7229
        %v7244 = vadd.f32 %v7138, %v7234
        %v7245 = vadd.f32 %v7139, %v7239
        %s7246 = scalar_lea.vmem %s4, 64
        %v7247 = vld [vmem:[%s7246] sm:$0x3f]
        %v7249 = vsel %vm6408, %v6027, 0
        %v7252 = vsel %vm6408, %v6032, 0
        %v7255 = vsel %vm6408, %v6037, 0
        %v7258 = vsel %vm6408, %v6042, 0
        %v7261 = vsel %vm6421, %v7247, 0
        %7263 = vmatprep.subr.mxu0 0.0
        %7264 = vmatpush1.msra.mxu0 %v7261
        %7265 = vmatprep.subr.mxu0 0.0
        %7266 = vmatpush1.msra.mxu0 0.0
        %7267 = vmatprep.subr.mxu0 0.0
        %7268 = vmatpush1.msra.mxu0 0.0
        %7269 = vmatprep.subr.mxu0 0.0
        %7270 = vmatpush1.msra.mxu0 0.0
        %7271 = vmatprep.subr.mxu0 0.0
        %7272 = vmatpush1.msra.mxu0 0.0
        %7273 = vmatprep.subr.mxu0 0.0
        %7274 = vmatpush1.msra.mxu0 0.0
        %7275 = vmatprep.subr.mxu0 0.0
        %7276 = vmatpush1.msra.mxu0 0.0
        %7277 = vmatprep.subr.mxu0 0.0
        %7278 = vmatpush1.msra.mxu0 0.0
        %7279 = vmatprep.subr.mxu0 0.0
        %7280 = vmatpush1.msra.mxu0 0.0
        %7281 = vmatprep.subr.mxu0 0.0
        %7282 = vmatpush1.msra.mxu0 0.0
        %7283 = vmatprep.subr.mxu0 0.0
        %7284 = vmatpush1.msra.mxu0 0.0
        %7285 = vmatprep.subr.mxu0 0.0
        %7286 = vmatpush1.msra.mxu0 0.0
        %7287 = vmatprep.subr.mxu0 0.0
        %7288 = vmatpush1.msra.mxu0 0.0
        %7289 = vmatprep.subr.mxu0 0.0
        %7290 = vmatpush1.msra.mxu0 0.0
        %7291 = vmatprep.subr.mxu0 0.0
        %7292 = vmatpush1.msra.mxu0 0.0
        %7293 = vmatprep.subr.mxu0 0.0
        %7294 = vmatpush1.msra.mxu0 0.0
        %7295 = vmatprep.subr.mxu0 0.0
        %7296 = vmatpush1.msra.mxu0 0.0
        %7297 = vmatprep.subr.mxu0 0.0
        %7298 = vmatpush1.msra.mxu0 0.0
        %7299 = vmatprep.subr.mxu0 0.0
        %7300 = vmatpush1.msra.mxu0 0.0
        %7301 = vmatprep.subr.mxu0 0.0
        %7302 = vmatpush1.msra.mxu0 0.0
        %7303 = vmatprep.subr.mxu0 0.0
        %7304 = vmatpush1.msra.mxu0 0.0
        %7305 = vmatprep.subr.mxu0 0.0
        %7306 = vmatpush1.msra.mxu0 0.0
        %7307 = vmatprep.subr.mxu0 0.0
        %7308 = vmatpush1.msra.mxu0 0.0
        %7309 = vmatprep.subr.mxu0 0.0
        %7310 = vmatpush1.msra.mxu0 0.0
        %7311 = vmatprep.subr.mxu0 0.0
        %7312 = vmatpush1.msra.mxu0 0.0
        %7313 = vmatprep.subr.mxu0 0.0
        %7314 = vmatpush1.msra.mxu0 0.0
        %7315 = vmatprep.subr.mxu0 0.0
        %7316 = vmatpush1.msra.mxu0 0.0
        %7317 = vmatprep.subr.mxu0 0.0
        %7318 = vmatpush1.msra.mxu0 0.0
        %7319 = vmatprep.subr.mxu0 0.0
        %7320 = vmatpush1.msra.mxu0 0.0
        %7321 = vmatprep.subr.mxu0 0.0
        %7322 = vmatpush1.msra.mxu0 0.0
        %7323 = vmatprep.subr.mxu0 0.0
        %7324 = vmatpush1.msra.mxu0 0.0
        %7325 = vmatprep.subr.mxu0 0.0
        %7326 = vmatpush1.msra.mxu0 0.0
        %7327 = vmatprep.mubr.f32.mxu0 0.0
        %7328 = vmatmul.mubr.f32.gmra.mrb[0].mxu0 %v7249
        %v7329 = vpop.f32.mrb[0].mxu0
        %v7330 = vadd.f32 0.0, %v7329
        %v7331 = vpop.f32.mrb[0].mxu0
        %7332 = vmatprep.mubr.f32.mxu0 0.0
        %7333 = vmatmul.mubr.f32.gmra.mrb[0].mxu0 %v7252
        %v7334 = vpop.f32.mrb[0].mxu0
        %v7335 = vadd.f32 0.0, %v7334
        %v7336 = vpop.f32.mrb[0].mxu0
        %7337 = vmatprep.mubr.f32.mxu0 0.0
        %7338 = vmatmul.mubr.f32.gmra.mrb[0].mxu0 %v7255
        %v7339 = vpop.f32.mrb[0].mxu0
        %v7340 = vadd.f32 0.0, %v7339
        %v7341 = vpop.f32.mrb[0].mxu0
        %7342 = vmatprep.mubr.f32.mxu0 0.0
        %7343 = vmatmul.mubr.f32.gmra.mrb[0].mxu0 %v7258
        %v7344 = vpop.f32.mrb[0].mxu0
        %v7345 = vadd.f32 0.0, %v7344
        %v7346 = vpop.f32.mrb[0].mxu0
        %7347 = vdwg.mxu0
        %v7348 = vadd.f32 %v7242, %v7330
        %v7349 = vadd.f32 %v7243, %v7335
        %v7350 = vadd.f32 %v7244, %v7340
        %v7351 = vadd.f32 %v7245, %v7345
        %s7352 = scalar_lea.vmem %s4, 72
        %v7353 = vld [vmem:[%s7352] sm:$0x3f]
        %v7355 = vsel %vm6408, %v6047, 0
        %v7358 = vsel %vm6408, %v6052, 0
        %v7361 = vsel %vm6408, %v6057, 0
        %v7364 = vsel %vm6408, %v6062, 0
        %v7367 = vsel %vm6421, %v7353, 0
        %7369 = vmatprep.subr.mxu0 0.0
        %7370 = vmatpush1.msra.mxu0 %v7367
        %7371 = vmatprep.subr.mxu0 0.0
        %7372 = vmatpush1.msra.mxu0 0.0
        %7373 = vmatprep.subr.mxu0 0.0
        %7374 = vmatpush1.msra.mxu0 0.0
        %7375 = vmatprep.subr.mxu0 0.0
        %7376 = vmatpush1.msra.mxu0 0.0
        %7377 = vmatprep.subr.mxu0 0.0
        %7378 = vmatpush1.msra.mxu0 0.0
        %7379 = vmatprep.subr.mxu0 0.0
        %7380 = vmatpush1.msra.mxu0 0.0
        %7381 = vmatprep.subr.mxu0 0.0
        %7382 = vmatpush1.msra.mxu0 0.0
        %7383 = vmatprep.subr.mxu0 0.0
        %7384 = vmatpush1.msra.mxu0 0.0
        %7385 = vmatprep.subr.mxu0 0.0
        %7386 = vmatpush1.msra.mxu0 0.0
        %7387 = vmatprep.subr.mxu0 0.0
        %7388 = vmatpush1.msra.mxu0 0.0
        %7389 = vmatprep.subr.mxu0 0.0
        %7390 = vmatpush1.msra.mxu0 0.0
        %7391 = vmatprep.subr.mxu0 0.0
        %7392 = vmatpush1.msra.mxu0 0.0
        %7393 = vmatprep.subr.mxu0 0.0
        %7394 = vmatpush1.msra.mxu0 0.0
        %7395 = vmatprep.subr.mxu0 0.0
        %7396 = vmatpush1.msra.mxu0 0.0
        %7397 = vmatprep.subr.mxu0 0.0
        %7398 = vmatpush1.msra.mxu0 0.0
        %7399 = vmatprep.subr.mxu0 0.0
        %7400 = vmatpush1.msra.mxu0 0.0
        %7401 = vmatprep.subr.mxu0 0.0
        %7402 = vmatpush1.msra.mxu0 0.0
        %7403 = vmatprep.subr.mxu0 0.0
        %7404 = vmatpush1.msra.mxu0 0.0
        %7405 = vmatprep.subr.mxu0 0.0
        %7406 = vmatpush1.msra.mxu0 0.0
        %7407 = vmatprep.subr.mxu0 0.0
        %7408 = vmatpush1.msra.mxu0 0.0
        %7409 = vmatprep.subr.mxu0 0.0
        %7410 = vmatpush1.msra.mxu0 0.0
        %7411 = vmatprep.subr.mxu0 0.0
        %7412 = vmatpush1.msra.mxu0 0.0
        %7413 = vmatprep.subr.mxu0 0.0
        %7414 = vmatpush1.msra.mxu0 0.0
        %7415 = vmatprep.subr.mxu0 0.0
        %7416 = vmatpush1.msra.mxu0 0.0
        %7417 = vmatprep.subr.mxu0 0.0
        %7418 = vmatpush1.msra.mxu0 0.0
        %7419 = vmatprep.subr.mxu0 0.0
        %7420 = vmatpush1.msra.mxu0 0.0
        %7421 = vmatprep.subr.mxu0 0.0
        %7422 = vmatpush1.msra.mxu0 0.0
        %7423 = vmatprep.subr.mxu0 0.0
        %7424 = vmatpush1.msra.mxu0 0.0
        %7425 = vmatprep.subr.mxu0 0.0
        %7426 = vmatpush1.msra.mxu0 0.0
        %7427 = vmatprep.subr.mxu0 0.0
        %7428 = vmatpush1.msra.mxu0 0.0
        %7429 = vmatprep.subr.mxu0 0.0
        %7430 = vmatpush1.msra.mxu0 0.0
        %7431 = vmatprep.subr.mxu0 0.0
        %7432 = vmatpush1.msra.mxu0 0.0
        %7433 = vmatprep.mubr.f32.mxu0 0.0
        %7434 = vmatmul.mubr.f32.gmra.mrb[0].mxu0 %v7355
        %v7435 = vpop.f32.mrb[0].mxu0
        %v7436 = vadd.f32 0.0, %v7435
        %v7437 = vpop.f32.mrb[0].mxu0
        %7438 = vmatprep.mubr.f32.mxu0 0.0
        %7439 = vmatmul.mubr.f32.gmra.mrb[0].mxu0 %v7358
        %v7440 = vpop.f32.mrb[0].mxu0
        %v7441 = vadd.f32 0.0, %v7440
        %v7442 = vpop.f32.mrb[0].mxu0
        %7443 = vmatprep.mubr.f32.mxu0 0.0
        %7444 = vmatmul.mubr.f32.gmra.mrb[0].mxu0 %v7361
        %v7445 = vpop.f32.mrb[0].mxu0
        %v7446 = vadd.f32 0.0, %v7445
        %v7447 = vpop.f32.mrb[0].mxu0
        %7448 = vmatprep.mubr.f32.mxu0 0.0
        %7449 = vmatmul.mubr.f32.gmra.mrb[0].mxu0 %v7364
        %v7450 = vpop.f32.mrb[0].mxu0
        %v7451 = vadd.f32 0.0, %v7450
        %v7452 = vpop.f32.mrb[0].mxu0
        %7453 = vdwg.mxu0
        %v7454 = vadd.f32 %v7348, %v7436
        %v7455 = vadd.f32 %v7349, %v7441
        %v7456 = vadd.f32 %v7350, %v7446
        %v7457 = vadd.f32 %v7351, %v7451
        %s7458 = scalar_lea.vmem %s4, 80
        %v7459 = vld [vmem:[%s7458] sm:$0x3f]
        %v7461 = vsel %vm6408, %v6067, 0
        %v7464 = vsel %vm6408, %v6072, 0
        %v7467 = vsel %vm6408, %v6077, 0
        %v7470 = vsel %vm6408, %v6082, 0
        %v7473 = vsel %vm6421, %v7459, 0
        %7475 = vmatprep.subr.mxu0 0.0
        %7476 = vmatpush1.msra.mxu0 %v7473
        %7477 = vmatprep.subr.mxu0 0.0
        %7478 = vmatpush1.msra.mxu0 0.0
        %7479 = vmatprep.subr.mxu0 0.0
        %7480 = vmatpush1.msra.mxu0 0.0
        %7481 = vmatprep.subr.mxu0 0.0
        %7482 = vmatpush1.msra.mxu0 0.0
        %7483 = vmatprep.subr.mxu0 0.0
        %7484 = vmatpush1.msra.mxu0 0.0
        %7485 = vmatprep.subr.mxu0 0.0
        %7486 = vmatpush1.msra.mxu0 0.0
        %7487 = vmatprep.subr.mxu0 0.0
        %7488 = vmatpush1.msra.mxu0 0.0
        %7489 = vmatprep.subr.mxu0 0.0
        %7490 = vmatpush1.msra.mxu0 0.0
        %7491 = vmatprep.subr.mxu0 0.0
        %7492 = vmatpush1.msra.mxu0 0.0
        %7493 = vmatprep.subr.mxu0 0.0
        %7494 = vmatpush1.msra.mxu0 0.0
        %7495 = vmatprep.subr.mxu0 0.0
        %7496 = vmatpush1.msra.mxu0 0.0
        %7497 = vmatprep.subr.mxu0 0.0
        %7498 = vmatpush1.msra.mxu0 0.0
        %7499 = vmatprep.subr.mxu0 0.0
        %7500 = vmatpush1.msra.mxu0 0.0
        %7501 = vmatprep.subr.mxu0 0.0
        %7502 = vmatpush1.msra.mxu0 0.0
        %7503 = vmatprep.subr.mxu0 0.0
        %7504 = vmatpush1.msra.mxu0 0.0
        %7505 = vmatprep.subr.mxu0 0.0
        %7506 = vmatpush1.msra.mxu0 0.0
        %7507 = vmatprep.subr.mxu0 0.0
        %7508 = vmatpush1.msra.mxu0 0.0
        %7509 = vmatprep.subr.mxu0 0.0
        %7510 = vmatpush1.msra.mxu0 0.0
        %7511 = vmatprep.subr.mxu0 0.0
        %7512 = vmatpush1.msra.mxu0 0.0
        %7513 = vmatprep.subr.mxu0 0.0
        %7514 = vmatpush1.msra.mxu0 0.0
        %7515 = vmatprep.subr.mxu0 0.0
        %7516 = vmatpush1.msra.mxu0 0.0
        %7517 = vmatprep.subr.mxu0 0.0
        %7518 = vmatpush1.msra.mxu0 0.0
        %7519 = vmatprep.subr.mxu0 0.0
        %7520 = vmatpush1.msra.mxu0 0.0
        %7521 = vmatprep.subr.mxu0 0.0
        %7522 = vmatpush1.msra.mxu0 0.0
        %7523 = vmatprep.subr.mxu0 0.0
        %7524 = vmatpush1.msra.mxu0 0.0
        %7525 = vmatprep.subr.mxu0 0.0
        %7526 = vmatpush1.msra.mxu0 0.0
        %7527 = vmatprep.subr.mxu0 0.0
        %7528 = vmatpush1.msra.mxu0 0.0
        %7529 = vmatprep.subr.mxu0 0.0
        %7530 = vmatpush1.msra.mxu0 0.0
        %7531 = vmatprep.subr.mxu0 0.0
        %7532 = vmatpush1.msra.mxu0 0.0
        %7533 = vmatprep.subr.mxu0 0.0
        %7534 = vmatpush1.msra.mxu0 0.0
        %7535 = vmatprep.subr.mxu0 0.0
        %7536 = vmatpush1.msra.mxu0 0.0
        %7537 = vmatprep.subr.mxu0 0.0
        %7538 = vmatpush1.msra.mxu0 0.0
        %7539 = vmatprep.mubr.f32.mxu0 0.0
        %7540 = vmatmul.mubr.f32.gmra.mrb[0].mxu0 %v7461
        %v7541 = vpop.f32.mrb[0].mxu0
        %v7542 = vadd.f32 0.0, %v7541
        %v7543 = vpop.f32.mrb[0].mxu0
        %7544 = vmatprep.mubr.f32.mxu0 0.0
        %7545 = vmatmul.mubr.f32.gmra.mrb[0].mxu0 %v7464
        %v7546 = vpop.f32.mrb[0].mxu0
        %v7547 = vadd.f32 0.0, %v7546
        %v7548 = vpop.f32.mrb[0].mxu0
        %7549 = vmatprep.mubr.f32.mxu0 0.0
        %7550 = vmatmul.mubr.f32.gmra.mrb[0].mxu0 %v7467
        %v7551 = vpop.f32.mrb[0].mxu0
        %v7552 = vadd.f32 0.0, %v7551
        %v7553 = vpop.f32.mrb[0].mxu0
        %7554 = vmatprep.mubr.f32.mxu0 0.0
        %7555 = vmatmul.mubr.f32.gmra.mrb[0].mxu0 %v7470
        %v7556 = vpop.f32.mrb[0].mxu0
        %v7557 = vadd.f32 0.0, %v7556
        %v7558 = vpop.f32.mrb[0].mxu0
        %7559 = vdwg.mxu0
        %v7560 = vadd.f32 %v7454, %v7542
        %v7561 = vadd.f32 %v7455, %v7547
        %v7562 = vadd.f32 %v7456, %v7552
        %v7563 = vadd.f32 %v7457, %v7557
        %s7564 = scalar_lea.vmem %s4, 88
        %v7565 = vld [vmem:[%s7564] sm:$0x3f]
        %v7567 = vsel %vm6408, %v6087, 0
        %v7570 = vsel %vm6408, %v6092, 0
        %v7573 = vsel %vm6408, %v6097, 0
        %v7576 = vsel %vm6408, %v6102, 0
        %v7579 = vsel %vm6421, %v7565, 0
        %7581 = vmatprep.subr.mxu0 0.0
        %7582 = vmatpush1.msra.mxu0 %v7579
        %7583 = vmatprep.subr.mxu0 0.0
        %7584 = vmatpush1.msra.mxu0 0.0
        %7585 = vmatprep.subr.mxu0 0.0
        %7586 = vmatpush1.msra.mxu0 0.0
        %7587 = vmatprep.subr.mxu0 0.0
        %7588 = vmatpush1.msra.mxu0 0.0
        %7589 = vmatprep.subr.mxu0 0.0
        %7590 = vmatpush1.msra.mxu0 0.0
        %7591 = vmatprep.subr.mxu0 0.0
        %7592 = vmatpush1.msra.mxu0 0.0
        %7593 = vmatprep.subr.mxu0 0.0
        %7594 = vmatpush1.msra.mxu0 0.0
        %7595 = vmatprep.subr.mxu0 0.0
        %7596 = vmatpush1.msra.mxu0 0.0
        %7597 = vmatprep.subr.mxu0 0.0
        %7598 = vmatpush1.msra.mxu0 0.0
        %7599 = vmatprep.subr.mxu0 0.0
        %7600 = vmatpush1.msra.mxu0 0.0
        %7601 = vmatprep.subr.mxu0 0.0
        %7602 = vmatpush1.msra.mxu0 0.0
        %7603 = vmatprep.subr.mxu0 0.0
        %7604 = vmatpush1.msra.mxu0 0.0
        %7605 = vmatprep.subr.mxu0 0.0
        %7606 = vmatpush1.msra.mxu0 0.0
        %7607 = vmatprep.subr.mxu0 0.0
        %7608 = vmatpush1.msra.mxu0 0.0
        %7609 = vmatprep.subr.mxu0 0.0
        %7610 = vmatpush1.msra.mxu0 0.0
        %7611 = vmatprep.subr.mxu0 0.0
        %7612 = vmatpush1.msra.mxu0 0.0
        %7613 = vmatprep.subr.mxu0 0.0
        %7614 = vmatpush1.msra.mxu0 0.0
        %7615 = vmatprep.subr.mxu0 0.0
        %7616 = vmatpush1.msra.mxu0 0.0
        %7617 = vmatprep.subr.mxu0 0.0
        %7618 = vmatpush1.msra.mxu0 0.0
        %7619 = vmatprep.subr.mxu0 0.0
        %7620 = vmatpush1.msra.mxu0 0.0
        %7621 = vmatprep.subr.mxu0 0.0
        %7622 = vmatpush1.msra.mxu0 0.0
        %7623 = vmatprep.subr.mxu0 0.0
        %7624 = vmatpush1.msra.mxu0 0.0
        %7625 = vmatprep.subr.mxu0 0.0
        %7626 = vmatpush1.msra.mxu0 0.0
        %7627 = vmatprep.subr.mxu0 0.0
        %7628 = vmatpush1.msra.mxu0 0.0
        %7629 = vmatprep.subr.mxu0 0.0
        %7630 = vmatpush1.msra.mxu0 0.0
        %7631 = vmatprep.subr.mxu0 0.0
        %7632 = vmatpush1.msra.mxu0 0.0
        %7633 = vmatprep.subr.mxu0 0.0
        %7634 = vmatpush1.msra.mxu0 0.0
        %7635 = vmatprep.subr.mxu0 0.0
        %7636 = vmatpush1.msra.mxu0 0.0
        %7637 = vmatprep.subr.mxu0 0.0
        %7638 = vmatpush1.msra.mxu0 0.0
        %7639 = vmatprep.subr.mxu0 0.0
        %7640 = vmatpush1.msra.mxu0 0.0
        %7641 = vmatprep.subr.mxu0 0.0
        %7642 = vmatpush1.msra.mxu0 0.0
        %7643 = vmatprep.subr.mxu0 0.0
        %7644 = vmatpush1.msra.mxu0 0.0
        %7645 = vmatprep.mubr.f32.mxu0 0.0
        %7646 = vmatmul.mubr.f32.gmra.mrb[0].mxu0 %v7567
        %v7647 = vpop.f32.mrb[0].mxu0
        %v7648 = vadd.f32 0.0, %v7647
        %v7649 = vpop.f32.mrb[0].mxu0
        %7650 = vmatprep.mubr.f32.mxu0 0.0
        %7651 = vmatmul.mubr.f32.gmra.mrb[0].mxu0 %v7570
        %v7652 = vpop.f32.mrb[0].mxu0
        %v7653 = vadd.f32 0.0, %v7652
        %v7654 = vpop.f32.mrb[0].mxu0
        %7655 = vmatprep.mubr.f32.mxu0 0.0
        %7656 = vmatmul.mubr.f32.gmra.mrb[0].mxu0 %v7573
        %v7657 = vpop.f32.mrb[0].mxu0
        %v7658 = vadd.f32 0.0, %v7657
        %v7659 = vpop.f32.mrb[0].mxu0
        %7660 = vmatprep.mubr.f32.mxu0 0.0
        %7661 = vmatmul.mubr.f32.gmra.mrb[0].mxu0 %v7576
        %v7662 = vpop.f32.mrb[0].mxu0
        %v7663 = vadd.f32 0.0, %v7662
        %v7664 = vpop.f32.mrb[0].mxu0
        %7665 = vdwg.mxu0
        %v7666 = vadd.f32 %v7560, %v7648
        %v7667 = vadd.f32 %v7561, %v7653
        %v7668 = vadd.f32 %v7562, %v7658
        %v7669 = vadd.f32 %v7563, %v7663
        %s7670 = scalar_lea.vmem %s4, 96
        %v7671 = vld [vmem:[%s7670] sm:$0x3f]
        %v7673 = vsel %vm6408, %v6107, 0
        %v7676 = vsel %vm6408, %v6112, 0
        %v7679 = vsel %vm6408, %v6117, 0
        %v7682 = vsel %vm6408, %v6122, 0
        %v7685 = vsel %vm6421, %v7671, 0
        %7687 = vmatprep.subr.mxu0 0.0
        %7688 = vmatpush1.msra.mxu0 %v7685
        %7689 = vmatprep.subr.mxu0 0.0
        %7690 = vmatpush1.msra.mxu0 0.0
        %7691 = vmatprep.subr.mxu0 0.0
        %7692 = vmatpush1.msra.mxu0 0.0
        %7693 = vmatprep.subr.mxu0 0.0
        %7694 = vmatpush1.msra.mxu0 0.0
        %7695 = vmatprep.subr.mxu0 0.0
        %7696 = vmatpush1.msra.mxu0 0.0
        %7697 = vmatprep.subr.mxu0 0.0
        %7698 = vmatpush1.msra.mxu0 0.0
        %7699 = vmatprep.subr.mxu0 0.0
        %7700 = vmatpush1.msra.mxu0 0.0
        %7701 = vmatprep.subr.mxu0 0.0
        %7702 = vmatpush1.msra.mxu0 0.0
        %7703 = vmatprep.subr.mxu0 0.0
        %7704 = vmatpush1.msra.mxu0 0.0
        %7705 = vmatprep.subr.mxu0 0.0
        %7706 = vmatpush1.msra.mxu0 0.0
        %7707 = vmatprep.subr.mxu0 0.0
        %7708 = vmatpush1.msra.mxu0 0.0
        %7709 = vmatprep.subr.mxu0 0.0
        %7710 = vmatpush1.msra.mxu0 0.0
        %7711 = vmatprep.subr.mxu0 0.0
        %7712 = vmatpush1.msra.mxu0 0.0
        %7713 = vmatprep.subr.mxu0 0.0
        %7714 = vmatpush1.msra.mxu0 0.0
        %7715 = vmatprep.subr.mxu0 0.0
        %7716 = vmatpush1.msra.mxu0 0.0
        %7717 = vmatprep.subr.mxu0 0.0
        %7718 = vmatpush1.msra.mxu0 0.0
        %7719 = vmatprep.subr.mxu0 0.0
        %7720 = vmatpush1.msra.mxu0 0.0
        %7721 = vmatprep.subr.mxu0 0.0
        %7722 = vmatpush1.msra.mxu0 0.0
        %7723 = vmatprep.subr.mxu0 0.0
        %7724 = vmatpush1.msra.mxu0 0.0
        %7725 = vmatprep.subr.mxu0 0.0
        %7726 = vmatpush1.msra.mxu0 0.0
        %7727 = vmatprep.subr.mxu0 0.0
        %7728 = vmatpush1.msra.mxu0 0.0
        %7729 = vmatprep.subr.mxu0 0.0
        %7730 = vmatpush1.msra.mxu0 0.0
        %7731 = vmatprep.subr.mxu0 0.0
        %7732 = vmatpush1.msra.mxu0 0.0
        %7733 = vmatprep.subr.mxu0 0.0
        %7734 = vmatpush1.msra.mxu0 0.0
        %7735 = vmatprep.subr.mxu0 0.0
        %7736 = vmatpush1.msra.mxu0 0.0
        %7737 = vmatprep.subr.mxu0 0.0
        %7738 = vmatpush1.msra.mxu0 0.0
        %7739 = vmatprep.subr.mxu0 0.0
        %7740 = vmatpush1.msra.mxu0 0.0
        %7741 = vmatprep.subr.mxu0 0.0
        %7742 = vmatpush1.msra.mxu0 0.0
        %7743 = vmatprep.subr.mxu0 0.0
        %7744 = vmatpush1.msra.mxu0 0.0
        %7745 = vmatprep.subr.mxu0 0.0
        %7746 = vmatpush1.msra.mxu0 0.0
        %7747 = vmatprep.subr.mxu0 0.0
        %7748 = vmatpush1.msra.mxu0 0.0
        %7749 = vmatprep.subr.mxu0 0.0
        %7750 = vmatpush1.msra.mxu0 0.0
        %7751 = vmatprep.mubr.f32.mxu0 0.0
        %7752 = vmatmul.mubr.f32.gmra.mrb[0].mxu0 %v7673
        %v7753 = vpop.f32.mrb[0].mxu0
        %v7754 = vadd.f32 0.0, %v7753
        %v7755 = vpop.f32.mrb[0].mxu0
        %7756 = vmatprep.mubr.f32.mxu0 0.0
        %7757 = vmatmul.mubr.f32.gmra.mrb[0].mxu0 %v7676
        %v7758 = vpop.f32.mrb[0].mxu0
        %v7759 = vadd.f32 0.0, %v7758
        %v7760 = vpop.f32.mrb[0].mxu0
        %7761 = vmatprep.mubr.f32.mxu0 0.0
        %7762 = vmatmul.mubr.f32.gmra.mrb[0].mxu0 %v7679
        %v7763 = vpop.f32.mrb[0].mxu0
        %v7764 = vadd.f32 0.0, %v7763
        %v7765 = vpop.f32.mrb[0].mxu0
        %7766 = vmatprep.mubr.f32.mxu0 0.0
        %7767 = vmatmul.mubr.f32.gmra.mrb[0].mxu0 %v7682
        %v7768 = vpop.f32.mrb[0].mxu0
        %v7769 = vadd.f32 0.0, %v7768
        %v7770 = vpop.f32.mrb[0].mxu0
        %7771 = vdwg.mxu0
        %v7772 = vadd.f32 %v7666, %v7754
        %v7773 = vadd.f32 %v7667, %v7759
        %v7774 = vadd.f32 %v7668, %v7764
        %v7775 = vadd.f32 %v7669, %v7769
        %s7776 = scalar_lea.vmem %s4, 104
        %v7777 = vld [vmem:[%s7776] sm:$0x3f]
        %v7779 = vsel %vm6408, %v6127, 0
        %v7782 = vsel %vm6408, %v6132, 0
        %v7785 = vsel %vm6408, %v6137, 0
        %v7788 = vsel %vm6408, %v6142, 0
        %v7791 = vsel %vm6421, %v7777, 0
        %7793 = vmatprep.subr.mxu0 0.0
        %7794 = vmatpush1.msra.mxu0 %v7791
        %7795 = vmatprep.subr.mxu0 0.0
        %7796 = vmatpush1.msra.mxu0 0.0
        %7797 = vmatprep.subr.mxu0 0.0
        %7798 = vmatpush1.msra.mxu0 0.0
        %7799 = vmatprep.subr.mxu0 0.0
        %7800 = vmatpush1.msra.mxu0 0.0
        %7801 = vmatprep.subr.mxu0 0.0
        %7802 = vmatpush1.msra.mxu0 0.0
        %7803 = vmatprep.subr.mxu0 0.0
        %7804 = vmatpush1.msra.mxu0 0.0
        %7805 = vmatprep.subr.mxu0 0.0
        %7806 = vmatpush1.msra.mxu0 0.0
        %7807 = vmatprep.subr.mxu0 0.0
        %7808 = vmatpush1.msra.mxu0 0.0
        %7809 = vmatprep.subr.mxu0 0.0
        %7810 = vmatpush1.msra.mxu0 0.0
        %7811 = vmatprep.subr.mxu0 0.0
        %7812 = vmatpush1.msra.mxu0 0.0
        %7813 = vmatprep.subr.mxu0 0.0
        %7814 = vmatpush1.msra.mxu0 0.0
        %7815 = vmatprep.subr.mxu0 0.0
        %7816 = vmatpush1.msra.mxu0 0.0
        %7817 = vmatprep.subr.mxu0 0.0
        %7818 = vmatpush1.msra.mxu0 0.0
        %7819 = vmatprep.subr.mxu0 0.0
        %7820 = vmatpush1.msra.mxu0 0.0
        %7821 = vmatprep.subr.mxu0 0.0
        %7822 = vmatpush1.msra.mxu0 0.0
        %7823 = vmatprep.subr.mxu0 0.0
        %7824 = vmatpush1.msra.mxu0 0.0
        %7825 = vmatprep.subr.mxu0 0.0
        %7826 = vmatpush1.msra.mxu0 0.0
        %7827 = vmatprep.subr.mxu0 0.0
        %7828 = vmatpush1.msra.mxu0 0.0
        %7829 = vmatprep.subr.mxu0 0.0
        %7830 = vmatpush1.msra.mxu0 0.0
        %7831 = vmatprep.subr.mxu0 0.0
        %7832 = vmatpush1.msra.mxu0 0.0
        %7833 = vmatprep.subr.mxu0 0.0
        %7834 = vmatpush1.msra.mxu0 0.0
        %7835 = vmatprep.subr.mxu0 0.0
        %7836 = vmatpush1.msra.mxu0 0.0
        %7837 = vmatprep.subr.mxu0 0.0
        %7838 = vmatpush1.msra.mxu0 0.0
        %7839 = vmatprep.subr.mxu0 0.0
        %7840 = vmatpush1.msra.mxu0 0.0
        %7841 = vmatprep.subr.mxu0 0.0
        %7842 = vmatpush1.msra.mxu0 0.0
        %7843 = vmatprep.subr.mxu0 0.0
        %7844 = vmatpush1.msra.mxu0 0.0
        %7845 = vmatprep.subr.mxu0 0.0
        %7846 = vmatpush1.msra.mxu0 0.0
        %7847 = vmatprep.subr.mxu0 0.0
        %7848 = vmatpush1.msra.mxu0 0.0
        %7849 = vmatprep.subr.mxu0 0.0
        %7850 = vmatpush1.msra.mxu0 0.0
        %7851 = vmatprep.subr.mxu0 0.0
        %7852 = vmatpush1.msra.mxu0 0.0
        %7853 = vmatprep.subr.mxu0 0.0
        %7854 = vmatpush1.msra.mxu0 0.0
        %7855 = vmatprep.subr.mxu0 0.0
        %7856 = vmatpush1.msra.mxu0 0.0
        %7857 = vmatprep.mubr.f32.mxu0 0.0
        %7858 = vmatmul.mubr.f32.gmra.mrb[0].mxu0 %v7779
        %v7859 = vpop.f32.mrb[0].mxu0
        %v7860 = vadd.f32 0.0, %v7859
        %v7861 = vpop.f32.mrb[0].mxu0
        %7862 = vmatprep.mubr.f32.mxu0 0.0
        %7863 = vmatmul.mubr.f32.gmra.mrb[0].mxu0 %v7782
        %v7864 = vpop.f32.mrb[0].mxu0
        %v7865 = vadd.f32 0.0, %v7864
        %v7866 = vpop.f32.mrb[0].mxu0
        %7867 = vmatprep.mubr.f32.mxu0 0.0
        %7868 = vmatmul.mubr.f32.gmra.mrb[0].mxu0 %v7785
        %v7869 = vpop.f32.mrb[0].mxu0
        %v7870 = vadd.f32 0.0, %v7869
        %v7871 = vpop.f32.mrb[0].mxu0
        %7872 = vmatprep.mubr.f32.mxu0 0.0
        %7873 = vmatmul.mubr.f32.gmra.mrb[0].mxu0 %v7788
        %v7874 = vpop.f32.mrb[0].mxu0
        %v7875 = vadd.f32 0.0, %v7874
        %v7876 = vpop.f32.mrb[0].mxu0
        %7877 = vdwg.mxu0
        %v7878 = vadd.f32 %v7772, %v7860
        %v7879 = vadd.f32 %v7773, %v7865
        %v7880 = vadd.f32 %v7774, %v7870
        %v7881 = vadd.f32 %v7775, %v7875
        %s7882 = scalar_lea.vmem %s4, 112
        %v7883 = vld [vmem:[%s7882] sm:$0x3f]
        %v7885 = vsel %vm6408, %v6147, 0
        %v7888 = vsel %vm6408, %v6152, 0
        %v7891 = vsel %vm6408, %v6157, 0
        %v7894 = vsel %vm6408, %v6162, 0
        %v7897 = vsel %vm6421, %v7883, 0
        %7899 = vmatprep.subr.mxu0 0.0
        %7900 = vmatpush1.msra.mxu0 %v7897
        %7901 = vmatprep.subr.mxu0 0.0
        %7902 = vmatpush1.msra.mxu0 0.0
        %7903 = vmatprep.subr.mxu0 0.0
        %7904 = vmatpush1.msra.mxu0 0.0
        %7905 = vmatprep.subr.mxu0 0.0
        %7906 = vmatpush1.msra.mxu0 0.0
        %7907 = vmatprep.subr.mxu0 0.0
        %7908 = vmatpush1.msra.mxu0 0.0
        %7909 = vmatprep.subr.mxu0 0.0
        %7910 = vmatpush1.msra.mxu0 0.0
        %7911 = vmatprep.subr.mxu0 0.0
        %7912 = vmatpush1.msra.mxu0 0.0
        %7913 = vmatprep.subr.mxu0 0.0
        %7914 = vmatpush1.msra.mxu0 0.0
        %7915 = vmatprep.subr.mxu0 0.0
        %7916 = vmatpush1.msra.mxu0 0.0
        %7917 = vmatprep.subr.mxu0 0.0
        %7918 = vmatpush1.msra.mxu0 0.0
        %7919 = vmatprep.subr.mxu0 0.0
        %7920 = vmatpush1.msra.mxu0 0.0
        %7921 = vmatprep.subr.mxu0 0.0
        %7922 = vmatpush1.msra.mxu0 0.0
        %7923 = vmatprep.subr.mxu0 0.0
        %7924 = vmatpush1.msra.mxu0 0.0
        %7925 = vmatprep.subr.mxu0 0.0
        %7926 = vmatpush1.msra.mxu0 0.0
        %7927 = vmatprep.subr.mxu0 0.0
        %7928 = vmatpush1.msra.mxu0 0.0
        %7929 = vmatprep.subr.mxu0 0.0
        %7930 = vmatpush1.msra.mxu0 0.0
        %7931 = vmatprep.subr.mxu0 0.0
        %7932 = vmatpush1.msra.mxu0 0.0
        %7933 = vmatprep.subr.mxu0 0.0
        %7934 = vmatpush1.msra.mxu0 0.0
        %7935 = vmatprep.subr.mxu0 0.0
        %7936 = vmatpush1.msra.mxu0 0.0
        %7937 = vmatprep.subr.mxu0 0.0
        %7938 = vmatpush1.msra.mxu0 0.0
        %7939 = vmatprep.subr.mxu0 0.0
        %7940 = vmatpush1.msra.mxu0 0.0
        %7941 = vmatprep.subr.mxu0 0.0
        %7942 = vmatpush1.msra.mxu0 0.0
        %7943 = vmatprep.subr.mxu0 0.0
        %7944 = vmatpush1.msra.mxu0 0.0
        %7945 = vmatprep.subr.mxu0 0.0
        %7946 = vmatpush1.msra.mxu0 0.0
        %7947 = vmatprep.subr.mxu0 0.0
        %7948 = vmatpush1.msra.mxu0 0.0
        %7949 = vmatprep.subr.mxu0 0.0
        %7950 = vmatpush1.msra.mxu0 0.0
        %7951 = vmatprep.subr.mxu0 0.0
        %7952 = vmatpush1.msra.mxu0 0.0
        %7953 = vmatprep.subr.mxu0 0.0
        %7954 = vmatpush1.msra.mxu0 0.0
        %7955 = vmatprep.subr.mxu0 0.0
        %7956 = vmatpush1.msra.mxu0 0.0
        %7957 = vmatprep.subr.mxu0 0.0
        %7958 = vmatpush1.msra.mxu0 0.0
        %7959 = vmatprep.subr.mxu0 0.0
        %7960 = vmatpush1.msra.mxu0 0.0
        %7961 = vmatprep.subr.mxu0 0.0
        %7962 = vmatpush1.msra.mxu0 0.0
        %7963 = vmatprep.mubr.f32.mxu0 0.0
        %7964 = vmatmul.mubr.f32.gmra.mrb[0].mxu0 %v7885
        %v7965 = vpop.f32.mrb[0].mxu0
        %v7966 = vadd.f32 0.0, %v7965
        %v7967 = vpop.f32.mrb[0].mxu0
        %7968 = vmatprep.mubr.f32.mxu0 0.0
        %7969 = vmatmul.mubr.f32.gmra.mrb[0].mxu0 %v7888
        %v7970 = vpop.f32.mrb[0].mxu0
        %v7971 = vadd.f32 0.0, %v7970
        %v7972 = vpop.f32.mrb[0].mxu0
        %7973 = vmatprep.mubr.f32.mxu0 0.0
        %7974 = vmatmul.mubr.f32.gmra.mrb[0].mxu0 %v7891
        %v7975 = vpop.f32.mrb[0].mxu0
        %v7976 = vadd.f32 0.0, %v7975
        %v7977 = vpop.f32.mrb[0].mxu0
        %7978 = vmatprep.mubr.f32.mxu0 0.0
        %7979 = vmatmul.mubr.f32.gmra.mrb[0].mxu0 %v7894
        %v7980 = vpop.f32.mrb[0].mxu0
        %v7981 = vadd.f32 0.0, %v7980
        %v7982 = vpop.f32.mrb[0].mxu0
        %7983 = vdwg.mxu0
        %v7984 = vadd.f32 %v7878, %v7966
        %v7985 = vadd.f32 %v7879, %v7971
        %v7986 = vadd.f32 %v7880, %v7976
        %v7987 = vadd.f32 %v7881, %v7981
        %s7988 = scalar_lea.vmem %s4, 120
        %v7989 = vld [vmem:[%s7988] sm:$0x3f]
        %v7991 = vsel %vm6408, %v6167, 0
        %v7994 = vsel %vm6408, %v6172, 0
        %v7997 = vsel %vm6408, %v6177, 0
        %v8000 = vsel %vm6408, %v6182, 0
        %v8003 = vsel %vm6421, %v7989, 0
        %8005 = vmatprep.subr.mxu0 0.0
        %8006 = vmatpush1.msra.mxu0 %v8003
        %8007 = vmatprep.subr.mxu0 0.0
        %8008 = vmatpush1.msra.mxu0 0.0
        %8009 = vmatprep.subr.mxu0 0.0
        %8010 = vmatpush1.msra.mxu0 0.0
        %8011 = vmatprep.subr.mxu0 0.0
        %8012 = vmatpush1.msra.mxu0 0.0
        %8013 = vmatprep.subr.mxu0 0.0
        %8014 = vmatpush1.msra.mxu0 0.0
        %8015 = vmatprep.subr.mxu0 0.0
        %8016 = vmatpush1.msra.mxu0 0.0
        %8017 = vmatprep.subr.mxu0 0.0
        %8018 = vmatpush1.msra.mxu0 0.0
        %8019 = vmatprep.subr.mxu0 0.0
        %8020 = vmatpush1.msra.mxu0 0.0
        %8021 = vmatprep.subr.mxu0 0.0
        %8022 = vmatpush1.msra.mxu0 0.0
        %8023 = vmatprep.subr.mxu0 0.0
        %8024 = vmatpush1.msra.mxu0 0.0
        %8025 = vmatprep.subr.mxu0 0.0
        %8026 = vmatpush1.msra.mxu0 0.0
        %8027 = vmatprep.subr.mxu0 0.0
        %8028 = vmatpush1.msra.mxu0 0.0
        %8029 = vmatprep.subr.mxu0 0.0
        %8030 = vmatpush1.msra.mxu0 0.0
        %8031 = vmatprep.subr.mxu0 0.0
        %8032 = vmatpush1.msra.mxu0 0.0
        %8033 = vmatprep.subr.mxu0 0.0
        %8034 = vmatpush1.msra.mxu0 0.0
        %8035 = vmatprep.subr.mxu0 0.0
        %8036 = vmatpush1.msra.mxu0 0.0
        %8037 = vmatprep.subr.mxu0 0.0
        %8038 = vmatpush1.msra.mxu0 0.0
        %8039 = vmatprep.subr.mxu0 0.0
        %8040 = vmatpush1.msra.mxu0 0.0
        %8041 = vmatprep.subr.mxu0 0.0
        %8042 = vmatpush1.msra.mxu0 0.0
        %8043 = vmatprep.subr.mxu0 0.0
        %8044 = vmatpush1.msra.mxu0 0.0
        %8045 = vmatprep.subr.mxu0 0.0
        %8046 = vmatpush1.msra.mxu0 0.0
        %8047 = vmatprep.subr.mxu0 0.0
        %8048 = vmatpush1.msra.mxu0 0.0
        %8049 = vmatprep.subr.mxu0 0.0
        %8050 = vmatpush1.msra.mxu0 0.0
        %8051 = vmatprep.subr.mxu0 0.0
        %8052 = vmatpush1.msra.mxu0 0.0
        %8053 = vmatprep.subr.mxu0 0.0
        %8054 = vmatpush1.msra.mxu0 0.0
        %8055 = vmatprep.subr.mxu0 0.0
        %8056 = vmatpush1.msra.mxu0 0.0
        %8057 = vmatprep.subr.mxu0 0.0
        %8058 = vmatpush1.msra.mxu0 0.0
        %8059 = vmatprep.subr.mxu0 0.0
        %8060 = vmatpush1.msra.mxu0 0.0
        %8061 = vmatprep.subr.mxu0 0.0
        %8062 = vmatpush1.msra.mxu0 0.0
        %8063 = vmatprep.subr.mxu0 0.0
        %8064 = vmatpush1.msra.mxu0 0.0
        %8065 = vmatprep.subr.mxu0 0.0
        %8066 = vmatpush1.msra.mxu0 0.0
        %8067 = vmatprep.subr.mxu0 0.0
        %8068 = vmatpush1.msra.mxu0 0.0
        %8069 = vmatprep.mubr.f32.mxu0 0.0
        %8070 = vmatmul.mubr.f32.gmra.mrb[0].mxu0 %v7991
        %v8071 = vpop.f32.mrb[0].mxu0
        %v8072 = vadd.f32 0.0, %v8071
        %v8073 = vpop.f32.mrb[0].mxu0
        %8074 = vmatprep.mubr.f32.mxu0 0.0
        %8075 = vmatmul.mubr.f32.gmra.mrb[0].mxu0 %v7994
        %v8076 = vpop.f32.mrb[0].mxu0
        %v8077 = vadd.f32 0.0, %v8076
        %v8078 = vpop.f32.mrb[0].mxu0
        %8079 = vmatprep.mubr.f32.mxu0 0.0
        %8080 = vmatmul.mubr.f32.gmra.mrb[0].mxu0 %v7997
        %v8081 = vpop.f32.mrb[0].mxu0
        %v8082 = vadd.f32 0.0, %v8081
        %v8083 = vpop.f32.mrb[0].mxu0
        %8084 = vmatprep.mubr.f32.mxu0 0.0
        %8085 = vmatmul.mubr.f32.gmra.mrb[0].mxu0 %v8000
        %v8086 = vpop.f32.mrb[0].mxu0
        %v8087 = vadd.f32 0.0, %v8086
        %v8088 = vpop.f32.mrb[0].mxu0
        %8089 = vdwg.mxu0
        %v8090 = vadd.f32 %v7984, %v8072
        %v8091 = vadd.f32 %v7985, %v8077
        %v8092 = vadd.f32 %v7986, %v8082
        %v8093 = vadd.f32 %v7987, %v8087
        %s8094 = scalar_lea.vmem %s4, 128
        %v8095 = vld [vmem:[%s8094] sm:$0x3f]
        %v8097 = vsel %vm6408, %v6187, 0
        %v8100 = vsel %vm6408, %v6192, 0
        %v8103 = vsel %vm6408, %v6197, 0
        %v8106 = vsel %vm6408, %v6202, 0
        %v8109 = vsel %vm6421, %v8095, 0
        %8111 = vmatprep.subr.mxu0 0.0
        %8112 = vmatpush1.msra.mxu0 %v8109
        %8113 = vmatprep.subr.mxu0 0.0
        %8114 = vmatpush1.msra.mxu0 0.0
        %8115 = vmatprep.subr.mxu0 0.0
        %8116 = vmatpush1.msra.mxu0 0.0
        %8117 = vmatprep.subr.mxu0 0.0
        %8118 = vmatpush1.msra.mxu0 0.0
        %8119 = vmatprep.subr.mxu0 0.0
        %8120 = vmatpush1.msra.mxu0 0.0
        %8121 = vmatprep.subr.mxu0 0.0
        %8122 = vmatpush1.msra.mxu0 0.0
        %8123 = vmatprep.subr.mxu0 0.0
        %8124 = vmatpush1.msra.mxu0 0.0
        %8125 = vmatprep.subr.mxu0 0.0
        %8126 = vmatpush1.msra.mxu0 0.0
        %8127 = vmatprep.subr.mxu0 0.0
        %8128 = vmatpush1.msra.mxu0 0.0
        %8129 = vmatprep.subr.mxu0 0.0
        %8130 = vmatpush1.msra.mxu0 0.0
        %8131 = vmatprep.subr.mxu0 0.0
        %8132 = vmatpush1.msra.mxu0 0.0
        %8133 = vmatprep.subr.mxu0 0.0
        %8134 = vmatpush1.msra.mxu0 0.0
        %8135 = vmatprep.subr.mxu0 0.0
        %8136 = vmatpush1.msra.mxu0 0.0
        %8137 = vmatprep.subr.mxu0 0.0
        %8138 = vmatpush1.msra.mxu0 0.0
        %8139 = vmatprep.subr.mxu0 0.0
        %8140 = vmatpush1.msra.mxu0 0.0
        %8141 = vmatprep.subr.mxu0 0.0
        %8142 = vmatpush1.msra.mxu0 0.0
        %8143 = vmatprep.subr.mxu0 0.0
        %8144 = vmatpush1.msra.mxu0 0.0
        %8145 = vmatprep.subr.mxu0 0.0
        %8146 = vmatpush1.msra.mxu0 0.0
        %8147 = vmatprep.subr.mxu0 0.0
        %8148 = vmatpush1.msra.mxu0 0.0
        %8149 = vmatprep.subr.mxu0 0.0
        %8150 = vmatpush1.msra.mxu0 0.0
        %8151 = vmatprep.subr.mxu0 0.0
        %8152 = vmatpush1.msra.mxu0 0.0
        %8153 = vmatprep.subr.mxu0 0.0
        %8154 = vmatpush1.msra.mxu0 0.0
        %8155 = vmatprep.subr.mxu0 0.0
        %8156 = vmatpush1.msra.mxu0 0.0
        %8157 = vmatprep.subr.mxu0 0.0
        %8158 = vmatpush1.msra.mxu0 0.0
        %8159 = vmatprep.subr.mxu0 0.0
        %8160 = vmatpush1.msra.mxu0 0.0
        %8161 = vmatprep.subr.mxu0 0.0
        %8162 = vmatpush1.msra.mxu0 0.0
        %8163 = vmatprep.subr.mxu0 0.0
        %8164 = vmatpush1.msra.mxu0 0.0
        %8165 = vmatprep.subr.mxu0 0.0
        %8166 = vmatpush1.msra.mxu0 0.0
        %8167 = vmatprep.subr.mxu0 0.0
        %8168 = vmatpush1.msra.mxu0 0.0
        %8169 = vmatprep.subr.mxu0 0.0
        %8170 = vmatpush1.msra.mxu0 0.0
        %8171 = vmatprep.subr.mxu0 0.0
        %8172 = vmatpush1.msra.mxu0 0.0
        %8173 = vmatprep.subr.mxu0 0.0
        %8174 = vmatpush1.msra.mxu0 0.0
        %8175 = vmatprep.mubr.f32.mxu0 0.0
        %8176 = vmatmul.mubr.f32.gmra.mrb[0].mxu0 %v8097
        %v8177 = vpop.f32.mrb[0].mxu0
        %v8178 = vadd.f32 0.0, %v8177
        %v8179 = vpop.f32.mrb[0].mxu0
        %8180 = vmatprep.mubr.f32.mxu0 0.0
        %8181 = vmatmul.mubr.f32.gmra.mrb[0].mxu0 %v8100
        %v8182 = vpop.f32.mrb[0].mxu0
        %v8183 = vadd.f32 0.0, %v8182
        %v8184 = vpop.f32.mrb[0].mxu0
        %8185 = vmatprep.mubr.f32.mxu0 0.0
        %8186 = vmatmul.mubr.f32.gmra.mrb[0].mxu0 %v8103
        %v8187 = vpop.f32.mrb[0].mxu0
        %v8188 = vadd.f32 0.0, %v8187
        %v8189 = vpop.f32.mrb[0].mxu0
        %8190 = vmatprep.mubr.f32.mxu0 0.0
        %8191 = vmatmul.mubr.f32.gmra.mrb[0].mxu0 %v8106
        %v8192 = vpop.f32.mrb[0].mxu0
        %v8193 = vadd.f32 0.0, %v8192
        %v8194 = vpop.f32.mrb[0].mxu0
        %8195 = vdwg.mxu0
        %v8196 = vadd.f32 %v8090, %v8178
        %v8197 = vadd.f32 %v8091, %v8183
        %v8198 = vadd.f32 %v8092, %v8188
        %v8199 = vadd.f32 %v8093, %v8193
        %s8200 = scalar_lea.vmem %s4, 136
        %v8201 = vld [vmem:[%s8200] sm:$0x3f]
        %v8203 = vsel %vm6408, %v6207, 0
        %v8206 = vsel %vm6408, %v6212, 0
        %v8209 = vsel %vm6408, %v6217, 0
        %v8212 = vsel %vm6408, %v6222, 0
        %v8215 = vsel %vm6421, %v8201, 0
        %8217 = vmatprep.subr.mxu0 0.0
        %8218 = vmatpush1.msra.mxu0 %v8215
        %8219 = vmatprep.subr.mxu0 0.0
        %8220 = vmatpush1.msra.mxu0 0.0
        %8221 = vmatprep.subr.mxu0 0.0
        %8222 = vmatpush1.msra.mxu0 0.0
        %8223 = vmatprep.subr.mxu0 0.0
        %8224 = vmatpush1.msra.mxu0 0.0
        %8225 = vmatprep.subr.mxu0 0.0
        %8226 = vmatpush1.msra.mxu0 0.0
        %8227 = vmatprep.subr.mxu0 0.0
        %8228 = vmatpush1.msra.mxu0 0.0
        %8229 = vmatprep.subr.mxu0 0.0
        %8230 = vmatpush1.msra.mxu0 0.0
        %8231 = vmatprep.subr.mxu0 0.0
        %8232 = vmatpush1.msra.mxu0 0.0
        %8233 = vmatprep.subr.mxu0 0.0
        %8234 = vmatpush1.msra.mxu0 0.0
        %8235 = vmatprep.subr.mxu0 0.0
        %8236 = vmatpush1.msra.mxu0 0.0
        %8237 = vmatprep.subr.mxu0 0.0
        %8238 = vmatpush1.msra.mxu0 0.0
        %8239 = vmatprep.subr.mxu0 0.0
        %8240 = vmatpush1.msra.mxu0 0.0
        %8241 = vmatprep.subr.mxu0 0.0
        %8242 = vmatpush1.msra.mxu0 0.0
        %8243 = vmatprep.subr.mxu0 0.0
        %8244 = vmatpush1.msra.mxu0 0.0
        %8245 = vmatprep.subr.mxu0 0.0
        %8246 = vmatpush1.msra.mxu0 0.0
        %8247 = vmatprep.subr.mxu0 0.0
        %8248 = vmatpush1.msra.mxu0 0.0
        %8249 = vmatprep.subr.mxu0 0.0
        %8250 = vmatpush1.msra.mxu0 0.0
        %8251 = vmatprep.subr.mxu0 0.0
        %8252 = vmatpush1.msra.mxu0 0.0
        %8253 = vmatprep.subr.mxu0 0.0
        %8254 = vmatpush1.msra.mxu0 0.0
        %8255 = vmatprep.subr.mxu0 0.0
        %8256 = vmatpush1.msra.mxu0 0.0
        %8257 = vmatprep.subr.mxu0 0.0
        %8258 = vmatpush1.msra.mxu0 0.0
        %8259 = vmatprep.subr.mxu0 0.0
        %8260 = vmatpush1.msra.mxu0 0.0
        %8261 = vmatprep.subr.mxu0 0.0
        %8262 = vmatpush1.msra.mxu0 0.0
        %8263 = vmatprep.subr.mxu0 0.0
        %8264 = vmatpush1.msra.mxu0 0.0
        %8265 = vmatprep.subr.mxu0 0.0
        %8266 = vmatpush1.msra.mxu0 0.0
        %8267 = vmatprep.subr.mxu0 0.0
        %8268 = vmatpush1.msra.mxu0 0.0
        %8269 = vmatprep.subr.mxu0 0.0
        %8270 = vmatpush1.msra.mxu0 0.0
        %8271 = vmatprep.subr.mxu0 0.0
        %8272 = vmatpush1.msra.mxu0 0.0
        %8273 = vmatprep.subr.mxu0 0.0
        %8274 = vmatpush1.msra.mxu0 0.0
        %8275 = vmatprep.subr.mxu0 0.0
        %8276 = vmatpush1.msra.mxu0 0.0
        %8277 = vmatprep.subr.mxu0 0.0
        %8278 = vmatpush1.msra.mxu0 0.0
        %8279 = vmatprep.subr.mxu0 0.0
        %8280 = vmatpush1.msra.mxu0 0.0
        %8281 = vmatprep.mubr.f32.mxu0 0.0
        %8282 = vmatmul.mubr.f32.gmra.mrb[0].mxu0 %v8203
        %v8283 = vpop.f32.mrb[0].mxu0
        %v8284 = vadd.f32 0.0, %v8283
        %v8285 = vpop.f32.mrb[0].mxu0
        %8286 = vmatprep.mubr.f32.mxu0 0.0
        %8287 = vmatmul.mubr.f32.gmra.mrb[0].mxu0 %v8206
        %v8288 = vpop.f32.mrb[0].mxu0
        %v8289 = vadd.f32 0.0, %v8288
        %v8290 = vpop.f32.mrb[0].mxu0
        %8291 = vmatprep.mubr.f32.mxu0 0.0
        %8292 = vmatmul.mubr.f32.gmra.mrb[0].mxu0 %v8209
        %v8293 = vpop.f32.mrb[0].mxu0
        %v8294 = vadd.f32 0.0, %v8293
        %v8295 = vpop.f32.mrb[0].mxu0
        %8296 = vmatprep.mubr.f32.mxu0 0.0
        %8297 = vmatmul.mubr.f32.gmra.mrb[0].mxu0 %v8212
        %v8298 = vpop.f32.mrb[0].mxu0
        %v8299 = vadd.f32 0.0, %v8298
        %v8300 = vpop.f32.mrb[0].mxu0
        %8301 = vdwg.mxu0
        %v8302 = vadd.f32 %v8196, %v8284
        %v8303 = vadd.f32 %v8197, %v8289
        %v8304 = vadd.f32 %v8198, %v8294
        %v8305 = vadd.f32 %v8199, %v8299
        %s8306 = scalar_lea.vmem %s4, 144
        %v8307 = vld [vmem:[%s8306] sm:$0x3f]
        %v8309 = vsel %vm6408, %v6227, 0
        %v8312 = vsel %vm6408, %v6232, 0
        %v8315 = vsel %vm6408, %v6237, 0
        %v8318 = vsel %vm6408, %v6242, 0
        %v8321 = vsel %vm6421, %v8307, 0
        %8323 = vmatprep.subr.mxu0 0.0
        %8324 = vmatpush1.msra.mxu0 %v8321
        %8325 = vmatprep.subr.mxu0 0.0
        %8326 = vmatpush1.msra.mxu0 0.0
        %8327 = vmatprep.subr.mxu0 0.0
        %8328 = vmatpush1.msra.mxu0 0.0
        %8329 = vmatprep.subr.mxu0 0.0
        %8330 = vmatpush1.msra.mxu0 0.0
        %8331 = vmatprep.subr.mxu0 0.0
        %8332 = vmatpush1.msra.mxu0 0.0
        %8333 = vmatprep.subr.mxu0 0.0
        %8334 = vmatpush1.msra.mxu0 0.0
        %8335 = vmatprep.subr.mxu0 0.0
        %8336 = vmatpush1.msra.mxu0 0.0
        %8337 = vmatprep.subr.mxu0 0.0
        %8338 = vmatpush1.msra.mxu0 0.0
        %8339 = vmatprep.subr.mxu0 0.0
        %8340 = vmatpush1.msra.mxu0 0.0
        %8341 = vmatprep.subr.mxu0 0.0
        %8342 = vmatpush1.msra.mxu0 0.0
        %8343 = vmatprep.subr.mxu0 0.0
        %8344 = vmatpush1.msra.mxu0 0.0
        %8345 = vmatprep.subr.mxu0 0.0
        %8346 = vmatpush1.msra.mxu0 0.0
        %8347 = vmatprep.subr.mxu0 0.0
        %8348 = vmatpush1.msra.mxu0 0.0
        %8349 = vmatprep.subr.mxu0 0.0
        %8350 = vmatpush1.msra.mxu0 0.0
        %8351 = vmatprep.subr.mxu0 0.0
        %8352 = vmatpush1.msra.mxu0 0.0
        %8353 = vmatprep.subr.mxu0 0.0
        %8354 = vmatpush1.msra.mxu0 0.0
        %8355 = vmatprep.subr.mxu0 0.0
        %8356 = vmatpush1.msra.mxu0 0.0
        %8357 = vmatprep.subr.mxu0 0.0
        %8358 = vmatpush1.msra.mxu0 0.0
        %8359 = vmatprep.subr.mxu0 0.0
        %8360 = vmatpush1.msra.mxu0 0.0
        %8361 = vmatprep.subr.mxu0 0.0
        %8362 = vmatpush1.msra.mxu0 0.0
        %8363 = vmatprep.subr.mxu0 0.0
        %8364 = vmatpush1.msra.mxu0 0.0
        %8365 = vmatprep.subr.mxu0 0.0
        %8366 = vmatpush1.msra.mxu0 0.0
        %8367 = vmatprep.subr.mxu0 0.0
        %8368 = vmatpush1.msra.mxu0 0.0
        %8369 = vmatprep.subr.mxu0 0.0
        %8370 = vmatpush1.msra.mxu0 0.0
        %8371 = vmatprep.subr.mxu0 0.0
        %8372 = vmatpush1.msra.mxu0 0.0
        %8373 = vmatprep.subr.mxu0 0.0
        %8374 = vmatpush1.msra.mxu0 0.0
        %8375 = vmatprep.subr.mxu0 0.0
        %8376 = vmatpush1.msra.mxu0 0.0
        %8377 = vmatprep.subr.mxu0 0.0
        %8378 = vmatpush1.msra.mxu0 0.0
        %8379 = vmatprep.subr.mxu0 0.0
        %8380 = vmatpush1.msra.mxu0 0.0
        %8381 = vmatprep.subr.mxu0 0.0
        %8382 = vmatpush1.msra.mxu0 0.0
        %8383 = vmatprep.subr.mxu0 0.0
        %8384 = vmatpush1.msra.mxu0 0.0
        %8385 = vmatprep.subr.mxu0 0.0
        %8386 = vmatpush1.msra.mxu0 0.0
        %8387 = vmatprep.mubr.f32.mxu0 0.0
        %8388 = vmatmul.mubr.f32.gmra.mrb[0].mxu0 %v8309
        %v8389 = vpop.f32.mrb[0].mxu0
        %v8390 = vadd.f32 0.0, %v8389
        %v8391 = vpop.f32.mrb[0].mxu0
        %8392 = vmatprep.mubr.f32.mxu0 0.0
        %8393 = vmatmul.mubr.f32.gmra.mrb[0].mxu0 %v8312
        %v8394 = vpop.f32.mrb[0].mxu0
        %v8395 = vadd.f32 0.0, %v8394
        %v8396 = vpop.f32.mrb[0].mxu0
        %8397 = vmatprep.mubr.f32.mxu0 0.0
        %8398 = vmatmul.mubr.f32.gmra.mrb[0].mxu0 %v8315
        %v8399 = vpop.f32.mrb[0].mxu0
        %v8400 = vadd.f32 0.0, %v8399
        %v8401 = vpop.f32.mrb[0].mxu0
        %8402 = vmatprep.mubr.f32.mxu0 0.0
        %8403 = vmatmul.mubr.f32.gmra.mrb[0].mxu0 %v8318
        %v8404 = vpop.f32.mrb[0].mxu0
        %v8405 = vadd.f32 0.0, %v8404
        %v8406 = vpop.f32.mrb[0].mxu0
        %8407 = vdwg.mxu0
        %v8408 = vadd.f32 %v8302, %v8390
        %v8409 = vadd.f32 %v8303, %v8395
        %v8410 = vadd.f32 %v8304, %v8400
        %v8411 = vadd.f32 %v8305, %v8405
        %s8412 = scalar_lea.vmem %s4, 152
        %v8413 = vld [vmem:[%s8412] sm:$0x3f]
        %v8415 = vsel %vm6408, %v6247, 0
        %v8418 = vsel %vm6408, %v6252, 0
        %v8421 = vsel %vm6408, %v6257, 0
        %v8424 = vsel %vm6408, %v6262, 0
        %v8427 = vsel %vm6421, %v8413, 0
        %8429 = vmatprep.subr.mxu0 0.0
        %8430 = vmatpush1.msra.mxu0 %v8427
        %8431 = vmatprep.subr.mxu0 0.0
        %8432 = vmatpush1.msra.mxu0 0.0
        %8433 = vmatprep.subr.mxu0 0.0
        %8434 = vmatpush1.msra.mxu0 0.0
        %8435 = vmatprep.subr.mxu0 0.0
        %8436 = vmatpush1.msra.mxu0 0.0
        %8437 = vmatprep.subr.mxu0 0.0
        %8438 = vmatpush1.msra.mxu0 0.0
        %8439 = vmatprep.subr.mxu0 0.0
        %8440 = vmatpush1.msra.mxu0 0.0
        %8441 = vmatprep.subr.mxu0 0.0
        %8442 = vmatpush1.msra.mxu0 0.0
        %8443 = vmatprep.subr.mxu0 0.0
        %8444 = vmatpush1.msra.mxu0 0.0
        %8445 = vmatprep.subr.mxu0 0.0
        %8446 = vmatpush1.msra.mxu0 0.0
        %8447 = vmatprep.subr.mxu0 0.0
        %8448 = vmatpush1.msra.mxu0 0.0
        %8449 = vmatprep.subr.mxu0 0.0
        %8450 = vmatpush1.msra.mxu0 0.0
        %8451 = vmatprep.subr.mxu0 0.0
        %8452 = vmatpush1.msra.mxu0 0.0
        %8453 = vmatprep.subr.mxu0 0.0
        %8454 = vmatpush1.msra.mxu0 0.0
        %8455 = vmatprep.subr.mxu0 0.0
        %8456 = vmatpush1.msra.mxu0 0.0
        %8457 = vmatprep.subr.mxu0 0.0
        %8458 = vmatpush1.msra.mxu0 0.0
        %8459 = vmatprep.subr.mxu0 0.0
        %8460 = vmatpush1.msra.mxu0 0.0
        %8461 = vmatprep.subr.mxu0 0.0
        %8462 = vmatpush1.msra.mxu0 0.0
        %8463 = vmatprep.subr.mxu0 0.0
        %8464 = vmatpush1.msra.mxu0 0.0
        %8465 = vmatprep.subr.mxu0 0.0
        %8466 = vmatpush1.msra.mxu0 0.0
        %8467 = vmatprep.subr.mxu0 0.0
        %8468 = vmatpush1.msra.mxu0 0.0
        %8469 = vmatprep.subr.mxu0 0.0
        %8470 = vmatpush1.msra.mxu0 0.0
        %8471 = vmatprep.subr.mxu0 0.0
        %8472 = vmatpush1.msra.mxu0 0.0
        %8473 = vmatprep.subr.mxu0 0.0
        %8474 = vmatpush1.msra.mxu0 0.0
        %8475 = vmatprep.subr.mxu0 0.0
        %8476 = vmatpush1.msra.mxu0 0.0
        %8477 = vmatprep.subr.mxu0 0.0
        %8478 = vmatpush1.msra.mxu0 0.0
        %8479 = vmatprep.subr.mxu0 0.0
        %8480 = vmatpush1.msra.mxu0 0.0
        %8481 = vmatprep.subr.mxu0 0.0
        %8482 = vmatpush1.msra.mxu0 0.0
        %8483 = vmatprep.subr.mxu0 0.0
        %8484 = vmatpush1.msra.mxu0 0.0
        %8485 = vmatprep.subr.mxu0 0.0
        %8486 = vmatpush1.msra.mxu0 0.0
        %8487 = vmatprep.subr.mxu0 0.0
        %8488 = vmatpush1.msra.mxu0 0.0
        %8489 = vmatprep.subr.mxu0 0.0
        %8490 = vmatpush1.msra.mxu0 0.0
        %8491 = vmatprep.subr.mxu0 0.0
        %8492 = vmatpush1.msra.mxu0 0.0
        %8493 = vmatprep.mubr.f32.mxu0 0.0
        %8494 = vmatmul.mubr.f32.gmra.mrb[0].mxu0 %v8415
        %v8495 = vpop.f32.mrb[0].mxu0
        %v8496 = vadd.f32 0.0, %v8495
        %v8497 = vpop.f32.mrb[0].mxu0
        %8498 = vmatprep.mubr.f32.mxu0 0.0
        %8499 = vmatmul.mubr.f32.gmra.mrb[0].mxu0 %v8418
        %v8500 = vpop.f32.mrb[0].mxu0
        %v8501 = vadd.f32 0.0, %v8500
        %v8502 = vpop.f32.mrb[0].mxu0
        %8503 = vmatprep.mubr.f32.mxu0 0.0
        %8504 = vmatmul.mubr.f32.gmra.mrb[0].mxu0 %v8421
        %v8505 = vpop.f32.mrb[0].mxu0
        %v8506 = vadd.f32 0.0, %v8505
        %v8507 = vpop.f32.mrb[0].mxu0
        %8508 = vmatprep.mubr.f32.mxu0 0.0
        %8509 = vmatmul.mubr.f32.gmra.mrb[0].mxu0 %v8424
        %v8510 = vpop.f32.mrb[0].mxu0
        %v8511 = vadd.f32 0.0, %v8510
        %v8512 = vpop.f32.mrb[0].mxu0
        %8513 = vdwg.mxu0
        %v8514 = vadd.f32 %v8408, %v8496
        %v8515 = vadd.f32 %v8409, %v8501
        %v8516 = vadd.f32 %v8410, %v8506
        %v8517 = vadd.f32 %v8411, %v8511
        %s8518 = scalar_lea.vmem %s4, 160
        %v8519 = vld [vmem:[%s8518] sm:$0x3f]
        %v8521 = vsel %vm6408, %v6267, 0
        %v8524 = vsel %vm6408, %v6272, 0
        %v8527 = vsel %vm6408, %v6277, 0
        %v8530 = vsel %vm6408, %v6282, 0
        %v8533 = vsel %vm6421, %v8519, 0
        %8535 = vmatprep.subr.mxu0 0.0
        %8536 = vmatpush1.msra.mxu0 %v8533
        %8537 = vmatprep.subr.mxu0 0.0
        %8538 = vmatpush1.msra.mxu0 0.0
        %8539 = vmatprep.subr.mxu0 0.0
        %8540 = vmatpush1.msra.mxu0 0.0
        %8541 = vmatprep.subr.mxu0 0.0
        %8542 = vmatpush1.msra.mxu0 0.0
        %8543 = vmatprep.subr.mxu0 0.0
        %8544 = vmatpush1.msra.mxu0 0.0
        %8545 = vmatprep.subr.mxu0 0.0
        %8546 = vmatpush1.msra.mxu0 0.0
        %8547 = vmatprep.subr.mxu0 0.0
        %8548 = vmatpush1.msra.mxu0 0.0
        %8549 = vmatprep.subr.mxu0 0.0
        %8550 = vmatpush1.msra.mxu0 0.0
        %8551 = vmatprep.subr.mxu0 0.0
        %8552 = vmatpush1.msra.mxu0 0.0
        %8553 = vmatprep.subr.mxu0 0.0
        %8554 = vmatpush1.msra.mxu0 0.0
        %8555 = vmatprep.subr.mxu0 0.0
        %8556 = vmatpush1.msra.mxu0 0.0
        %8557 = vmatprep.subr.mxu0 0.0
        %8558 = vmatpush1.msra.mxu0 0.0
        %8559 = vmatprep.subr.mxu0 0.0
        %8560 = vmatpush1.msra.mxu0 0.0
        %8561 = vmatprep.subr.mxu0 0.0
        %8562 = vmatpush1.msra.mxu0 0.0
        %8563 = vmatprep.subr.mxu0 0.0
        %8564 = vmatpush1.msra.mxu0 0.0
        %8565 = vmatprep.subr.mxu0 0.0
        %8566 = vmatpush1.msra.mxu0 0.0
        %8567 = vmatprep.subr.mxu0 0.0
        %8568 = vmatpush1.msra.mxu0 0.0
        %8569 = vmatprep.subr.mxu0 0.0
        %8570 = vmatpush1.msra.mxu0 0.0
        %8571 = vmatprep.subr.mxu0 0.0
        %8572 = vmatpush1.msra.mxu0 0.0
        %8573 = vmatprep.subr.mxu0 0.0
        %8574 = vmatpush1.msra.mxu0 0.0
        %8575 = vmatprep.subr.mxu0 0.0
        %8576 = vmatpush1.msra.mxu0 0.0
        %8577 = vmatprep.subr.mxu0 0.0
        %8578 = vmatpush1.msra.mxu0 0.0
        %8579 = vmatprep.subr.mxu0 0.0
        %8580 = vmatpush1.msra.mxu0 0.0
        %8581 = vmatprep.subr.mxu0 0.0
        %8582 = vmatpush1.msra.mxu0 0.0
        %8583 = vmatprep.subr.mxu0 0.0
        %8584 = vmatpush1.msra.mxu0 0.0
        %8585 = vmatprep.subr.mxu0 0.0
        %8586 = vmatpush1.msra.mxu0 0.0
        %8587 = vmatprep.subr.mxu0 0.0
        %8588 = vmatpush1.msra.mxu0 0.0
        %8589 = vmatprep.subr.mxu0 0.0
        %8590 = vmatpush1.msra.mxu0 0.0
        %8591 = vmatprep.subr.mxu0 0.0
        %8592 = vmatpush1.msra.mxu0 0.0
        %8593 = vmatprep.subr.mxu0 0.0
        %8594 = vmatpush1.msra.mxu0 0.0
        %8595 = vmatprep.subr.mxu0 0.0
        %8596 = vmatpush1.msra.mxu0 0.0
        %8597 = vmatprep.subr.mxu0 0.0
        %8598 = vmatpush1.msra.mxu0 0.0
        %8599 = vmatprep.mubr.f32.mxu0 0.0
        %8600 = vmatmul.mubr.f32.gmra.mrb[0].mxu0 %v8521
        %v8601 = vpop.f32.mrb[0].mxu0
        %v8602 = vadd.f32 0.0, %v8601
        %v8603 = vpop.f32.mrb[0].mxu0
        %8604 = vmatprep.mubr.f32.mxu0 0.0
        %8605 = vmatmul.mubr.f32.gmra.mrb[0].mxu0 %v8524
        %v8606 = vpop.f32.mrb[0].mxu0
        %v8607 = vadd.f32 0.0, %v8606
        %v8608 = vpop.f32.mrb[0].mxu0
        %8609 = vmatprep.mubr.f32.mxu0 0.0
        %8610 = vmatmul.mubr.f32.gmra.mrb[0].mxu0 %v8527
        %v8611 = vpop.f32.mrb[0].mxu0
        %v8612 = vadd.f32 0.0, %v8611
        %v8613 = vpop.f32.mrb[0].mxu0
        %8614 = vmatprep.mubr.f32.mxu0 0.0
        %8615 = vmatmul.mubr.f32.gmra.mrb[0].mxu0 %v8530
        %v8616 = vpop.f32.mrb[0].mxu0
        %v8617 = vadd.f32 0.0, %v8616
        %v8618 = vpop.f32.mrb[0].mxu0
        %8619 = vdwg.mxu0
        %v8620 = vadd.f32 %v8514, %v8602
        %v8621 = vadd.f32 %v8515, %v8607
        %v8622 = vadd.f32 %v8516, %v8612
        %v8623 = vadd.f32 %v8517, %v8617
        %s8624 = scalar_lea.vmem %s4, 168
        %v8625 = vld [vmem:[%s8624] sm:$0x3f]
        %v8627 = vsel %vm6408, %v6287, 0
        %v8630 = vsel %vm6408, %v6292, 0
        %v8633 = vsel %vm6408, %v6297, 0
        %v8636 = vsel %vm6408, %v6302, 0
        %v8639 = vsel %vm6421, %v8625, 0
        %8641 = vmatprep.subr.mxu0 0.0
        %8642 = vmatpush1.msra.mxu0 %v8639
        %8643 = vmatprep.subr.mxu0 0.0
        %8644 = vmatpush1.msra.mxu0 0.0
        %8645 = vmatprep.subr.mxu0 0.0
        %8646 = vmatpush1.msra.mxu0 0.0
        %8647 = vmatprep.subr.mxu0 0.0
        %8648 = vmatpush1.msra.mxu0 0.0
        %8649 = vmatprep.subr.mxu0 0.0
        %8650 = vmatpush1.msra.mxu0 0.0
        %8651 = vmatprep.subr.mxu0 0.0
        %8652 = vmatpush1.msra.mxu0 0.0
        %8653 = vmatprep.subr.mxu0 0.0
        %8654 = vmatpush1.msra.mxu0 0.0
        %8655 = vmatprep.subr.mxu0 0.0
        %8656 = vmatpush1.msra.mxu0 0.0
        %8657 = vmatprep.subr.mxu0 0.0
        %8658 = vmatpush1.msra.mxu0 0.0
        %8659 = vmatprep.subr.mxu0 0.0
        %8660 = vmatpush1.msra.mxu0 0.0
        %8661 = vmatprep.subr.mxu0 0.0
        %8662 = vmatpush1.msra.mxu0 0.0
        %8663 = vmatprep.subr.mxu0 0.0
        %8664 = vmatpush1.msra.mxu0 0.0
        %8665 = vmatprep.subr.mxu0 0.0
        %8666 = vmatpush1.msra.mxu0 0.0
        %8667 = vmatprep.subr.mxu0 0.0
        %8668 = vmatpush1.msra.mxu0 0.0
        %8669 = vmatprep.subr.mxu0 0.0
        %8670 = vmatpush1.msra.mxu0 0.0
        %8671 = vmatprep.subr.mxu0 0.0
        %8672 = vmatpush1.msra.mxu0 0.0
        %8673 = vmatprep.subr.mxu0 0.0
        %8674 = vmatpush1.msra.mxu0 0.0
        %8675 = vmatprep.subr.mxu0 0.0
        %8676 = vmatpush1.msra.mxu0 0.0
        %8677 = vmatprep.subr.mxu0 0.0
        %8678 = vmatpush1.msra.mxu0 0.0
        %8679 = vmatprep.subr.mxu0 0.0
        %8680 = vmatpush1.msra.mxu0 0.0
        %8681 = vmatprep.subr.mxu0 0.0
        %8682 = vmatpush1.msra.mxu0 0.0
        %8683 = vmatprep.subr.mxu0 0.0
        %8684 = vmatpush1.msra.mxu0 0.0
        %8685 = vmatprep.subr.mxu0 0.0
        %8686 = vmatpush1.msra.mxu0 0.0
        %8687 = vmatprep.subr.mxu0 0.0
        %8688 = vmatpush1.msra.mxu0 0.0
        %8689 = vmatprep.subr.mxu0 0.0
        %8690 = vmatpush1.msra.mxu0 0.0
        %8691 = vmatprep.subr.mxu0 0.0
        %8692 = vmatpush1.msra.mxu0 0.0
        %8693 = vmatprep.subr.mxu0 0.0
        %8694 = vmatpush1.msra.mxu0 0.0
        %8695 = vmatprep.subr.mxu0 0.0
        %8696 = vmatpush1.msra.mxu0 0.0
        %8697 = vmatprep.subr.mxu0 0.0
        %8698 = vmatpush1.msra.mxu0 0.0
        %8699 = vmatprep.subr.mxu0 0.0
        %8700 = vmatpush1.msra.mxu0 0.0
        %8701 = vmatprep.subr.mxu0 0.0
        %8702 = vmatpush1.msra.mxu0 0.0
        %8703 = vmatprep.subr.mxu0 0.0
        %8704 = vmatpush1.msra.mxu0 0.0
        %8705 = vmatprep.mubr.f32.mxu0 0.0
        %8706 = vmatmul.mubr.f32.gmra.mrb[0].mxu0 %v8627
        %v8707 = vpop.f32.mrb[0].mxu0
        %v8708 = vadd.f32 0.0, %v8707
        %v8709 = vpop.f32.mrb[0].mxu0
        %8710 = vmatprep.mubr.f32.mxu0 0.0
        %8711 = vmatmul.mubr.f32.gmra.mrb[0].mxu0 %v8630
        %v8712 = vpop.f32.mrb[0].mxu0
        %v8713 = vadd.f32 0.0, %v8712
        %v8714 = vpop.f32.mrb[0].mxu0
        %8715 = vmatprep.mubr.f32.mxu0 0.0
        %8716 = vmatmul.mubr.f32.gmra.mrb[0].mxu0 %v8633
        %v8717 = vpop.f32.mrb[0].mxu0
        %v8718 = vadd.f32 0.0, %v8717
        %v8719 = vpop.f32.mrb[0].mxu0
        %8720 = vmatprep.mubr.f32.mxu0 0.0
        %8721 = vmatmul.mubr.f32.gmra.mrb[0].mxu0 %v8636
        %v8722 = vpop.f32.mrb[0].mxu0
        %v8723 = vadd.f32 0.0, %v8722
        %v8724 = vpop.f32.mrb[0].mxu0
        %8725 = vdwg.mxu0
        %v8726 = vadd.f32 %v8620, %v8708
        %v8727 = vadd.f32 %v8621, %v8713
        %v8728 = vadd.f32 %v8622, %v8718
        %v8729 = vadd.f32 %v8623, %v8723
        %s8730 = scalar_lea.vmem %s4, 176
        %v8731 = vld [vmem:[%s8730] sm:$0x3f]
        %v8733 = vsel %vm6408, %v6307, 0
        %v8736 = vsel %vm6408, %v6312, 0
        %v8739 = vsel %vm6408, %v6317, 0
        %v8742 = vsel %vm6408, %v6322, 0
        %v8745 = vsel %vm6421, %v8731, 0
        %8747 = vmatprep.subr.mxu0 0.0
        %8748 = vmatpush1.msra.mxu0 %v8745
        %8749 = vmatprep.subr.mxu0 0.0
        %8750 = vmatpush1.msra.mxu0 0.0
        %8751 = vmatprep.subr.mxu0 0.0
        %8752 = vmatpush1.msra.mxu0 0.0
        %8753 = vmatprep.subr.mxu0 0.0
        %8754 = vmatpush1.msra.mxu0 0.0
        %8755 = vmatprep.subr.mxu0 0.0
        %8756 = vmatpush1.msra.mxu0 0.0
        %8757 = vmatprep.subr.mxu0 0.0
        %8758 = vmatpush1.msra.mxu0 0.0
        %8759 = vmatprep.subr.mxu0 0.0
        %8760 = vmatpush1.msra.mxu0 0.0
        %8761 = vmatprep.subr.mxu0 0.0
        %8762 = vmatpush1.msra.mxu0 0.0
        %8763 = vmatprep.subr.mxu0 0.0
        %8764 = vmatpush1.msra.mxu0 0.0
        %8765 = vmatprep.subr.mxu0 0.0
        %8766 = vmatpush1.msra.mxu0 0.0
        %8767 = vmatprep.subr.mxu0 0.0
        %8768 = vmatpush1.msra.mxu0 0.0
        %8769 = vmatprep.subr.mxu0 0.0
        %8770 = vmatpush1.msra.mxu0 0.0
        %8771 = vmatprep.subr.mxu0 0.0
        %8772 = vmatpush1.msra.mxu0 0.0
        %8773 = vmatprep.subr.mxu0 0.0
        %8774 = vmatpush1.msra.mxu0 0.0
        %8775 = vmatprep.subr.mxu0 0.0
        %8776 = vmatpush1.msra.mxu0 0.0
        %8777 = vmatprep.subr.mxu0 0.0
        %8778 = vmatpush1.msra.mxu0 0.0
        %8779 = vmatprep.subr.mxu0 0.0
        %8780 = vmatpush1.msra.mxu0 0.0
        %8781 = vmatprep.subr.mxu0 0.0
        %8782 = vmatpush1.msra.mxu0 0.0
        %8783 = vmatprep.subr.mxu0 0.0
        %8784 = vmatpush1.msra.mxu0 0.0
        %8785 = vmatprep.subr.mxu0 0.0
        %8786 = vmatpush1.msra.mxu0 0.0
        %8787 = vmatprep.subr.mxu0 0.0
        %8788 = vmatpush1.msra.mxu0 0.0
        %8789 = vmatprep.subr.mxu0 0.0
        %8790 = vmatpush1.msra.mxu0 0.0
        %8791 = vmatprep.subr.mxu0 0.0
        %8792 = vmatpush1.msra.mxu0 0.0
        %8793 = vmatprep.subr.mxu0 0.0
        %8794 = vmatpush1.msra.mxu0 0.0
        %8795 = vmatprep.subr.mxu0 0.0
        %8796 = vmatpush1.msra.mxu0 0.0
        %8797 = vmatprep.subr.mxu0 0.0
        %8798 = vmatpush1.msra.mxu0 0.0
        %8799 = vmatprep.subr.mxu0 0.0
        %8800 = vmatpush1.msra.mxu0 0.0
        %8801 = vmatprep.subr.mxu0 0.0
        %8802 = vmatpush1.msra.mxu0 0.0
        %8803 = vmatprep.subr.mxu0 0.0
        %8804 = vmatpush1.msra.mxu0 0.0
        %8805 = vmatprep.subr.mxu0 0.0
        %8806 = vmatpush1.msra.mxu0 0.0
        %8807 = vmatprep.subr.mxu0 0.0
        %8808 = vmatpush1.msra.mxu0 0.0
        %8809 = vmatprep.subr.mxu0 0.0
        %8810 = vmatpush1.msra.mxu0 0.0
        %8811 = vmatprep.mubr.f32.mxu0 0.0
        %8812 = vmatmul.mubr.f32.gmra.mrb[0].mxu0 %v8733
        %v8813 = vpop.f32.mrb[0].mxu0
        %v8814 = vadd.f32 0.0, %v8813
        %v8815 = vpop.f32.mrb[0].mxu0
        %8816 = vmatprep.mubr.f32.mxu0 0.0
        %8817 = vmatmul.mubr.f32.gmra.mrb[0].mxu0 %v8736
        %v8818 = vpop.f32.mrb[0].mxu0
        %v8819 = vadd.f32 0.0, %v8818
        %v8820 = vpop.f32.mrb[0].mxu0
        %8821 = vmatprep.mubr.f32.mxu0 0.0
        %8822 = vmatmul.mubr.f32.gmra.mrb[0].mxu0 %v8739
        %v8823 = vpop.f32.mrb[0].mxu0
        %v8824 = vadd.f32 0.0, %v8823
        %v8825 = vpop.f32.mrb[0].mxu0
        %8826 = vmatprep.mubr.f32.mxu0 0.0
        %8827 = vmatmul.mubr.f32.gmra.mrb[0].mxu0 %v8742
        %v8828 = vpop.f32.mrb[0].mxu0
        %v8829 = vadd.f32 0.0, %v8828
        %v8830 = vpop.f32.mrb[0].mxu0
        %8831 = vdwg.mxu0
        %v8832 = vadd.f32 %v8726, %v8814
        %v8833 = vadd.f32 %v8727, %v8819
        %v8834 = vadd.f32 %v8728, %v8824
        %v8835 = vadd.f32 %v8729, %v8829
        %s8836 = scalar_lea.vmem %s4, 184
        %v8837 = vld [vmem:[%s8836] sm:$0x3f]
        %v8839 = vsel %vm6408, %v6327, 0
        %v8842 = vsel %vm6408, %v6332, 0
        %v8845 = vsel %vm6408, %v6337, 0
        %v8848 = vsel %vm6408, %v6342, 0
        %v8851 = vsel %vm6421, %v8837, 0
        %8853 = vmatprep.subr.mxu0 0.0
        %8854 = vmatpush1.msra.mxu0 %v8851
        %8855 = vmatprep.subr.mxu0 0.0
        %8856 = vmatpush1.msra.mxu0 0.0
        %8857 = vmatprep.subr.mxu0 0.0
        %8858 = vmatpush1.msra.mxu0 0.0
        %8859 = vmatprep.subr.mxu0 0.0
        %8860 = vmatpush1.msra.mxu0 0.0
        %8861 = vmatprep.subr.mxu0 0.0
        %8862 = vmatpush1.msra.mxu0 0.0
        %8863 = vmatprep.subr.mxu0 0.0
        %8864 = vmatpush1.msra.mxu0 0.0
        %8865 = vmatprep.subr.mxu0 0.0
        %8866 = vmatpush1.msra.mxu0 0.0
        %8867 = vmatprep.subr.mxu0 0.0
        %8868 = vmatpush1.msra.mxu0 0.0
        %8869 = vmatprep.subr.mxu0 0.0
        %8870 = vmatpush1.msra.mxu0 0.0
        %8871 = vmatprep.subr.mxu0 0.0
        %8872 = vmatpush1.msra.mxu0 0.0
        %8873 = vmatprep.subr.mxu0 0.0
        %8874 = vmatpush1.msra.mxu0 0.0
        %8875 = vmatprep.subr.mxu0 0.0
        %8876 = vmatpush1.msra.mxu0 0.0
        %8877 = vmatprep.subr.mxu0 0.0
        %8878 = vmatpush1.msra.mxu0 0.0
        %8879 = vmatprep.subr.mxu0 0.0
        %8880 = vmatpush1.msra.mxu0 0.0
        %8881 = vmatprep.subr.mxu0 0.0
        %8882 = vmatpush1.msra.mxu0 0.0
        %8883 = vmatprep.subr.mxu0 0.0
        %8884 = vmatpush1.msra.mxu0 0.0
        %8885 = vmatprep.subr.mxu0 0.0
        %8886 = vmatpush1.msra.mxu0 0.0
        %8887 = vmatprep.subr.mxu0 0.0
        %8888 = vmatpush1.msra.mxu0 0.0
        %8889 = vmatprep.subr.mxu0 0.0
        %8890 = vmatpush1.msra.mxu0 0.0
        %8891 = vmatprep.subr.mxu0 0.0
        %8892 = vmatpush1.msra.mxu0 0.0
        %8893 = vmatprep.subr.mxu0 0.0
        %8894 = vmatpush1.msra.mxu0 0.0
        %8895 = vmatprep.subr.mxu0 0.0
        %8896 = vmatpush1.msra.mxu0 0.0
        %8897 = vmatprep.subr.mxu0 0.0
        %8898 = vmatpush1.msra.mxu0 0.0
        %8899 = vmatprep.subr.mxu0 0.0
        %8900 = vmatpush1.msra.mxu0 0.0
        %8901 = vmatprep.subr.mxu0 0.0
        %8902 = vmatpush1.msra.mxu0 0.0
        %8903 = vmatprep.subr.mxu0 0.0
        %8904 = vmatpush1.msra.mxu0 0.0
        %8905 = vmatprep.subr.mxu0 0.0
        %8906 = vmatpush1.msra.mxu0 0.0
        %8907 = vmatprep.subr.mxu0 0.0
        %8908 = vmatpush1.msra.mxu0 0.0
        %8909 = vmatprep.subr.mxu0 0.0
        %8910 = vmatpush1.msra.mxu0 0.0
        %8911 = vmatprep.subr.mxu0 0.0
        %8912 = vmatpush1.msra.mxu0 0.0
        %8913 = vmatprep.subr.mxu0 0.0
        %8914 = vmatpush1.msra.mxu0 0.0
        %8915 = vmatprep.subr.mxu0 0.0
        %8916 = vmatpush1.msra.mxu0 0.0
        %8917 = vmatprep.mubr.f32.mxu0 0.0
        %8918 = vmatmul.mubr.f32.gmra.mrb[0].mxu0 %v8839
        %v8919 = vpop.f32.mrb[0].mxu0
        %v8920 = vadd.f32 0.0, %v8919
        %v8921 = vpop.f32.mrb[0].mxu0
        %8922 = vmatprep.mubr.f32.mxu0 0.0
        %8923 = vmatmul.mubr.f32.gmra.mrb[0].mxu0 %v8842
        %v8924 = vpop.f32.mrb[0].mxu0
        %v8925 = vadd.f32 0.0, %v8924
        %v8926 = vpop.f32.mrb[0].mxu0
        %8927 = vmatprep.mubr.f32.mxu0 0.0
        %8928 = vmatmul.mubr.f32.gmra.mrb[0].mxu0 %v8845
        %v8929 = vpop.f32.mrb[0].mxu0
        %v8930 = vadd.f32 0.0, %v8929
        %v8931 = vpop.f32.mrb[0].mxu0
        %8932 = vmatprep.mubr.f32.mxu0 0.0
        %8933 = vmatmul.mubr.f32.gmra.mrb[0].mxu0 %v8848
        %v8934 = vpop.f32.mrb[0].mxu0
        %v8935 = vadd.f32 0.0, %v8934
        %v8936 = vpop.f32.mrb[0].mxu0
        %8937 = vdwg.mxu0
        %v8938 = vadd.f32 %v8832, %v8920
        %v8939 = vadd.f32 %v8833, %v8925
        %v8940 = vadd.f32 %v8834, %v8930
        %v8941 = vadd.f32 %v8835, %v8935
        %s8942 = scalar_lea.vmem %s4, 192
        %v8943 = vld [vmem:[%s8942] sm:$0x3f]
        %v8945 = vsel %vm6408, %v6347, 0
        %v8948 = vsel %vm6408, %v6352, 0
        %v8951 = vsel %vm6408, %v6357, 0
        %v8954 = vsel %vm6408, %v6362, 0
        %v8957 = vsel %vm6421, %v8943, 0
        %8959 = vmatprep.subr.mxu0 0.0
        %8960 = vmatpush1.msra.mxu0 %v8957
        %8961 = vmatprep.subr.mxu0 0.0
        %8962 = vmatpush1.msra.mxu0 0.0
        %8963 = vmatprep.subr.mxu0 0.0
        %8964 = vmatpush1.msra.mxu0 0.0
        %8965 = vmatprep.subr.mxu0 0.0
        %8966 = vmatpush1.msra.mxu0 0.0
        %8967 = vmatprep.subr.mxu0 0.0
        %8968 = vmatpush1.msra.mxu0 0.0
        %8969 = vmatprep.subr.mxu0 0.0
        %8970 = vmatpush1.msra.mxu0 0.0
        %8971 = vmatprep.subr.mxu0 0.0
        %8972 = vmatpush1.msra.mxu0 0.0
        %8973 = vmatprep.subr.mxu0 0.0
        %8974 = vmatpush1.msra.mxu0 0.0
        %8975 = vmatprep.subr.mxu0 0.0
        %8976 = vmatpush1.msra.mxu0 0.0
        %8977 = vmatprep.subr.mxu0 0.0
        %8978 = vmatpush1.msra.mxu0 0.0
        %8979 = vmatprep.subr.mxu0 0.0
        %8980 = vmatpush1.msra.mxu0 0.0
        %8981 = vmatprep.subr.mxu0 0.0
        %8982 = vmatpush1.msra.mxu0 0.0
        %8983 = vmatprep.subr.mxu0 0.0
        %8984 = vmatpush1.msra.mxu0 0.0
        %8985 = vmatprep.subr.mxu0 0.0
        %8986 = vmatpush1.msra.mxu0 0.0
        %8987 = vmatprep.subr.mxu0 0.0
        %8988 = vmatpush1.msra.mxu0 0.0
        %8989 = vmatprep.subr.mxu0 0.0
        %8990 = vmatpush1.msra.mxu0 0.0
        %8991 = vmatprep.subr.mxu0 0.0
        %8992 = vmatpush1.msra.mxu0 0.0
        %8993 = vmatprep.subr.mxu0 0.0
        %8994 = vmatpush1.msra.mxu0 0.0
        %8995 = vmatprep.subr.mxu0 0.0
        %8996 = vmatpush1.msra.mxu0 0.0
        %8997 = vmatprep.subr.mxu0 0.0
        %8998 = vmatpush1.msra.mxu0 0.0
        %8999 = vmatprep.subr.mxu0 0.0
        %9000 = vmatpush1.msra.mxu0 0.0
        %9001 = vmatprep.subr.mxu0 0.0
        %9002 = vmatpush1.msra.mxu0 0.0
        %9003 = vmatprep.subr.mxu0 0.0
        %9004 = vmatpush1.msra.mxu0 0.0
        %9005 = vmatprep.subr.mxu0 0.0
        %9006 = vmatpush1.msra.mxu0 0.0
        %9007 = vmatprep.subr.mxu0 0.0
        %9008 = vmatpush1.msra.mxu0 0.0
        %9009 = vmatprep.subr.mxu0 0.0
        %9010 = vmatpush1.msra.mxu0 0.0
        %9011 = vmatprep.subr.mxu0 0.0
        %9012 = vmatpush1.msra.mxu0 0.0
        %9013 = vmatprep.subr.mxu0 0.0
        %9014 = vmatpush1.msra.mxu0 0.0
        %9015 = vmatprep.subr.mxu0 0.0
        %9016 = vmatpush1.msra.mxu0 0.0
        %9017 = vmatprep.subr.mxu0 0.0
        %9018 = vmatpush1.msra.mxu0 0.0
        %9019 = vmatprep.subr.mxu0 0.0
        %9020 = vmatpush1.msra.mxu0 0.0
        %9021 = vmatprep.subr.mxu0 0.0
        %9022 = vmatpush1.msra.mxu0 0.0
        %9023 = vmatprep.mubr.f32.mxu0 0.0
        %9024 = vmatmul.mubr.f32.gmra.mrb[0].mxu0 %v8945
        %v9025 = vpop.f32.mrb[0].mxu0
        %v9026 = vadd.f32 0.0, %v9025
        %v9027 = vpop.f32.mrb[0].mxu0
        %9028 = vmatprep.mubr.f32.mxu0 0.0
        %9029 = vmatmul.mubr.f32.gmra.mrb[0].mxu0 %v8948
        %v9030 = vpop.f32.mrb[0].mxu0
        %v9031 = vadd.f32 0.0, %v9030
        %v9032 = vpop.f32.mrb[0].mxu0
        %9033 = vmatprep.mubr.f32.mxu0 0.0
        %9034 = vmatmul.mubr.f32.gmra.mrb[0].mxu0 %v8951
        %v9035 = vpop.f32.mrb[0].mxu0
        %v9036 = vadd.f32 0.0, %v9035
        %v9037 = vpop.f32.mrb[0].mxu0
        %9038 = vmatprep.mubr.f32.mxu0 0.0
        %9039 = vmatmul.mubr.f32.gmra.mrb[0].mxu0 %v8954
        %v9040 = vpop.f32.mrb[0].mxu0
        %v9041 = vadd.f32 0.0, %v9040
        %v9042 = vpop.f32.mrb[0].mxu0
        %9043 = vdwg.mxu0
        %v9044 = vadd.f32 %v8938, %v9026
        %v9045 = vadd.f32 %v8939, %v9031
        %v9046 = vadd.f32 %v8940, %v9036
        %v9047 = vadd.f32 %v8941, %v9041
        %s9048 = scalar_lea.vmem %s4, 200
        %v9049 = vld [vmem:[%s9048] sm:$0x3f]
        %v9051 = vsel %vm6408, %v6367, 0
        %v9054 = vsel %vm6408, %v6372, 0
        %v9057 = vsel %vm6408, %v6377, 0
        %v9060 = vsel %vm6408, %v6382, 0
        %v9063 = vsel %vm6421, %v9049, 0
        %9065 = vmatprep.subr.mxu0 0.0
        %9066 = vmatpush1.msra.mxu0 %v9063
        %9067 = vmatprep.subr.mxu0 0.0
        %9068 = vmatpush1.msra.mxu0 0.0
        %9069 = vmatprep.subr.mxu0 0.0
        %9070 = vmatpush1.msra.mxu0 0.0
        %9071 = vmatprep.subr.mxu0 0.0
        %9072 = vmatpush1.msra.mxu0 0.0
        %9073 = vmatprep.subr.mxu0 0.0
        %9074 = vmatpush1.msra.mxu0 0.0
        %9075 = vmatprep.subr.mxu0 0.0
        %9076 = vmatpush1.msra.mxu0 0.0
        %9077 = vmatprep.subr.mxu0 0.0
        %9078 = vmatpush1.msra.mxu0 0.0
        %9079 = vmatprep.subr.mxu0 0.0
        %9080 = vmatpush1.msra.mxu0 0.0
        %9081 = vmatprep.subr.mxu0 0.0
        %9082 = vmatpush1.msra.mxu0 0.0
        %9083 = vmatprep.subr.mxu0 0.0
        %9084 = vmatpush1.msra.mxu0 0.0
        %9085 = vmatprep.subr.mxu0 0.0
        %9086 = vmatpush1.msra.mxu0 0.0
        %9087 = vmatprep.subr.mxu0 0.0
        %9088 = vmatpush1.msra.mxu0 0.0
        %9089 = vmatprep.subr.mxu0 0.0
        %9090 = vmatpush1.msra.mxu0 0.0
        %9091 = vmatprep.subr.mxu0 0.0
        %9092 = vmatpush1.msra.mxu0 0.0
        %9093 = vmatprep.subr.mxu0 0.0
        %9094 = vmatpush1.msra.mxu0 0.0
        %9095 = vmatprep.subr.mxu0 0.0
        %9096 = vmatpush1.msra.mxu0 0.0
        %9097 = vmatprep.subr.mxu0 0.0
        %9098 = vmatpush1.msra.mxu0 0.0
        %9099 = vmatprep.subr.mxu0 0.0
        %9100 = vmatpush1.msra.mxu0 0.0
        %9101 = vmatprep.subr.mxu0 0.0
        %9102 = vmatpush1.msra.mxu0 0.0
        %9103 = vmatprep.subr.mxu0 0.0
        %9104 = vmatpush1.msra.mxu0 0.0
        %9105 = vmatprep.subr.mxu0 0.0
        %9106 = vmatpush1.msra.mxu0 0.0
        %9107 = vmatprep.subr.mxu0 0.0
        %9108 = vmatpush1.msra.mxu0 0.0
        %9109 = vmatprep.subr.mxu0 0.0
        %9110 = vmatpush1.msra.mxu0 0.0
        %9111 = vmatprep.subr.mxu0 0.0
        %9112 = vmatpush1.msra.mxu0 0.0
        %9113 = vmatprep.subr.mxu0 0.0
        %9114 = vmatpush1.msra.mxu0 0.0
        %9115 = vmatprep.subr.mxu0 0.0
        %9116 = vmatpush1.msra.mxu0 0.0
        %9117 = vmatprep.subr.mxu0 0.0
        %9118 = vmatpush1.msra.mxu0 0.0
        %9119 = vmatprep.subr.mxu0 0.0
        %9120 = vmatpush1.msra.mxu0 0.0
        %9121 = vmatprep.subr.mxu0 0.0
        %9122 = vmatpush1.msra.mxu0 0.0
        %9123 = vmatprep.subr.mxu0 0.0
        %9124 = vmatpush1.msra.mxu0 0.0
        %9125 = vmatprep.subr.mxu0 0.0
        %9126 = vmatpush1.msra.mxu0 0.0
        %9127 = vmatprep.subr.mxu0 0.0
        %9128 = vmatpush1.msra.mxu0 0.0
        %9129 = vmatprep.mubr.f32.mxu0 0.0
        %9130 = vmatmul.mubr.f32.gmra.mrb[0].mxu0 %v9051
        %v9131 = vpop.f32.mrb[0].mxu0
        %v9132 = vadd.f32 0.0, %v9131
        %v9133 = vpop.f32.mrb[0].mxu0
        %9134 = vmatprep.mubr.f32.mxu0 0.0
        %9135 = vmatmul.mubr.f32.gmra.mrb[0].mxu0 %v9054
        %v9136 = vpop.f32.mrb[0].mxu0
        %v9137 = vadd.f32 0.0, %v9136
        %v9138 = vpop.f32.mrb[0].mxu0
        %9139 = vmatprep.mubr.f32.mxu0 0.0
        %9140 = vmatmul.mubr.f32.gmra.mrb[0].mxu0 %v9057
        %v9141 = vpop.f32.mrb[0].mxu0
        %v9142 = vadd.f32 0.0, %v9141
        %v9143 = vpop.f32.mrb[0].mxu0
        %9144 = vmatprep.mubr.f32.mxu0 0.0
        %9145 = vmatmul.mubr.f32.gmra.mrb[0].mxu0 %v9060
        %v9146 = vpop.f32.mrb[0].mxu0
        %v9147 = vadd.f32 0.0, %v9146
        %v9148 = vpop.f32.mrb[0].mxu0
        %9149 = vdwg.mxu0
        %v9150 = vadd.f32 %v9044, %v9132
        %v9151 = vadd.f32 %v9045, %v9137
        %v9152 = vadd.f32 %v9046, %v9142
        %v9153 = vadd.f32 %v9047, %v9147
        %s9154 = scalar_lea.vmem %s4, 208
        %v9155 = vld [vmem:[%s9154] sm:$0x3f]
        %v9157 = vsel %vm6408, %v6387, 0
        %v9160 = vsel %vm6408, %v6392, 0
        %v9163 = vsel %vm6408, %v6397, 0
        %v9166 = vsel %vm6408, %v6402, 0
        %v9169 = vsel %vm6421, %v9155, 0
        %9171 = vmatprep.subr.mxu0 0.0
        %9172 = vmatpush1.msra.mxu0 %v9169
        %9173 = vmatprep.subr.mxu0 0.0
        %9174 = vmatpush1.msra.mxu0 0.0
        %9175 = vmatprep.subr.mxu0 0.0
        %9176 = vmatpush1.msra.mxu0 0.0
        %9177 = vmatprep.subr.mxu0 0.0
        %9178 = vmatpush1.msra.mxu0 0.0
        %9179 = vmatprep.subr.mxu0 0.0
        %9180 = vmatpush1.msra.mxu0 0.0
        %9181 = vmatprep.subr.mxu0 0.0
        %9182 = vmatpush1.msra.mxu0 0.0
        %9183 = vmatprep.subr.mxu0 0.0
        %9184 = vmatpush1.msra.mxu0 0.0
        %9185 = vmatprep.subr.mxu0 0.0
        %9186 = vmatpush1.msra.mxu0 0.0
        %9187 = vmatprep.subr.mxu0 0.0
        %9188 = vmatpush1.msra.mxu0 0.0
        %9189 = vmatprep.subr.mxu0 0.0
        %9190 = vmatpush1.msra.mxu0 0.0
        %9191 = vmatprep.subr.mxu0 0.0
        %9192 = vmatpush1.msra.mxu0 0.0
        %9193 = vmatprep.subr.mxu0 0.0
        %9194 = vmatpush1.msra.mxu0 0.0
        %9195 = vmatprep.subr.mxu0 0.0
        %9196 = vmatpush1.msra.mxu0 0.0
        %9197 = vmatprep.subr.mxu0 0.0
        %9198 = vmatpush1.msra.mxu0 0.0
        %9199 = vmatprep.subr.mxu0 0.0
        %9200 = vmatpush1.msra.mxu0 0.0
        %9201 = vmatprep.subr.mxu0 0.0
        %9202 = vmatpush1.msra.mxu0 0.0
        %9203 = vmatprep.subr.mxu0 0.0
        %9204 = vmatpush1.msra.mxu0 0.0
        %9205 = vmatprep.subr.mxu0 0.0
        %9206 = vmatpush1.msra.mxu0 0.0
        %9207 = vmatprep.subr.mxu0 0.0
        %9208 = vmatpush1.msra.mxu0 0.0
        %9209 = vmatprep.subr.mxu0 0.0
        %9210 = vmatpush1.msra.mxu0 0.0
        %9211 = vmatprep.subr.mxu0 0.0
        %9212 = vmatpush1.msra.mxu0 0.0
        %9213 = vmatprep.subr.mxu0 0.0
        %9214 = vmatpush1.msra.mxu0 0.0
        %9215 = vmatprep.subr.mxu0 0.0
        %9216 = vmatpush1.msra.mxu0 0.0
        %9217 = vmatprep.subr.mxu0 0.0
        %9218 = vmatpush1.msra.mxu0 0.0
        %9219 = vmatprep.subr.mxu0 0.0
        %9220 = vmatpush1.msra.mxu0 0.0
        %9221 = vmatprep.subr.mxu0 0.0
        %9222 = vmatpush1.msra.mxu0 0.0
        %9223 = vmatprep.subr.mxu0 0.0
        %9224 = vmatpush1.msra.mxu0 0.0
        %9225 = vmatprep.subr.mxu0 0.0
        %9226 = vmatpush1.msra.mxu0 0.0
        %9227 = vmatprep.subr.mxu0 0.0
        %9228 = vmatpush1.msra.mxu0 0.0
        %9229 = vmatprep.subr.mxu0 0.0
        %9230 = vmatpush1.msra.mxu0 0.0
        %9231 = vmatprep.subr.mxu0 0.0
        %9232 = vmatpush1.msra.mxu0 0.0
        %9233 = vmatprep.subr.mxu0 0.0
        %9234 = vmatpush1.msra.mxu0 0.0
        %9235 = vmatprep.mubr.f32.mxu0 0.0
        %9236 = vmatmul.mubr.f32.gmra.mrb[0].mxu0 %v9157
        %v9237 = vpop.f32.mrb[0].mxu0
        %v9238 = vadd.f32 0.0, %v9237
        %v9239 = vpop.f32.mrb[0].mxu0
        %9240 = vmatprep.mubr.f32.mxu0 0.0
        %9241 = vmatmul.mubr.f32.gmra.mrb[0].mxu0 %v9160
        %v9242 = vpop.f32.mrb[0].mxu0
        %v9243 = vadd.f32 0.0, %v9242
        %v9244 = vpop.f32.mrb[0].mxu0
        %9245 = vmatprep.mubr.f32.mxu0 0.0
        %9246 = vmatmul.mubr.f32.gmra.mrb[0].mxu0 %v9163
        %v9247 = vpop.f32.mrb[0].mxu0
        %v9248 = vadd.f32 0.0, %v9247
        %v9249 = vpop.f32.mrb[0].mxu0
        %9250 = vmatprep.mubr.f32.mxu0 0.0
        %9251 = vmatmul.mubr.f32.gmra.mrb[0].mxu0 %v9166
        %v9252 = vpop.f32.mrb[0].mxu0
        %v9253 = vadd.f32 0.0, %v9252
        %v9254 = vpop.f32.mrb[0].mxu0
        %9255 = vdwg.mxu0
        %v9256 = vadd.f32 %v9150, %v9238
        %v9257 = vadd.f32 %v9151, %v9243
        %v9258 = vadd.f32 %v9152, %v9248
        %v9259 = vadd.f32 %v9153, %v9253
        %v9260 = vld [vmem:[%s5] sm:$0x1]
        %v9262 = vlaneseq
        %v9263 = vshrl.u32 %v9262, 7
        %v9264 = vsub.s32 0, %v9263
        %v9265 = vrot.slane %v9260, %v9264
        %v9267 = vadd.f32 %v9256, %v9265
        %v9268 = vadd.f32 %v9257, %v9265
        %v9269 = vadd.f32 %v9258, %v9265
        %v9270 = vadd.f32 %v9259, %v9265
        %v9271 = vmax.f32 %v9267, 0.0
        %v9272 = vmax.f32 %v9268, 0.0
        %v9273 = vmax.f32 %v9269, 0.0
        %v9274 = vmax.f32 %v9270, 0.0
        %v9275 = vsel %vm6408, %v9271, -inf
        %v9276 = vsel %vm6408, %v9272, -inf
        %v9277 = vsel %vm6408, %v9273, -inf
        %vm9278 = vcmask 43008
        %v9279 = vsel %vm9278, %v9274, -inf
        %v9280 = vmax.f32 %v9275, %v9276
        %v9281 = vmax.f32 %v9277, %v9279
        %v9282 = vmax.f32 %v9280, %v9281
        %v9283 = vrot.slane %v9282, 4
        %v9284 = vmax.f32 %v9282, %v9283
        %v9285 = vrot.slane %v9284, 2
        %v9286 = vmax.f32 %v9284, %v9285
        %v9287 = vrot.slane %v9286, 1
        %v9288 = vmax.f32 %v9286, %v9287
        %vm9289 = vcmask 40960
        %9290 = vst.msk [vmem:[%s436] sm:$0x1] %vm9289, %v9288
        %v9291 = vld [vmem:[%s6] sm:$0x3f]
        %v9292 = vld [vmem:[%s7] sm:$0x1]
        %v9294 = vsel %vm6408, %v9288, 0
        %v9297 = vsel %vm6421, %v9291, 0
        %9299 = vmatprep.subr.mxu0 0.0
        %9300 = vmatpush1.msra.mxu0 %v9297
        %9301 = vmatprep.subr.mxu0 0.0
        %9302 = vmatpush1.msra.mxu0 0.0
        %9303 = vmatprep.subr.mxu0 0.0
        %9304 = vmatpush1.msra.mxu0 0.0
        %9305 = vmatprep.subr.mxu0 0.0
        %9306 = vmatpush1.msra.mxu0 0.0
        %9307 = vmatprep.subr.mxu0 0.0
        %9308 = vmatpush1.msra.mxu0 0.0
        %9309 = vmatprep.subr.mxu0 0.0
        %9310 = vmatpush1.msra.mxu0 0.0
        %9311 = vmatprep.subr.mxu0 0.0
        %9312 = vmatpush1.msra.mxu0 0.0
        %9313 = vmatprep.subr.mxu0 0.0
        %9314 = vmatpush1.msra.mxu0 0.0
        %9315 = vmatprep.subr.mxu0 0.0
        %9316 = vmatpush1.msra.mxu0 0.0
        %9317 = vmatprep.subr.mxu0 0.0
        %9318 = vmatpush1.msra.mxu0 0.0
        %9319 = vmatprep.subr.mxu0 0.0
        %9320 = vmatpush1.msra.mxu0 0.0
        %9321 = vmatprep.subr.mxu0 0.0
        %9322 = vmatpush1.msra.mxu0 0.0
        %9323 = vmatprep.subr.mxu0 0.0
        %9324 = vmatpush1.msra.mxu0 0.0
        %9325 = vmatprep.subr.mxu0 0.0
        %9326 = vmatpush1.msra.mxu0 0.0
        %9327 = vmatprep.subr.mxu0 0.0
        %9328 = vmatpush1.msra.mxu0 0.0
        %9329 = vmatprep.subr.mxu0 0.0
        %9330 = vmatpush1.msra.mxu0 0.0
        %9331 = vmatprep.subr.mxu0 0.0
        %9332 = vmatpush1.msra.mxu0 0.0
        %9333 = vmatprep.subr.mxu0 0.0
        %9334 = vmatpush1.msra.mxu0 0.0
        %9335 = vmatprep.subr.mxu0 0.0
        %9336 = vmatpush1.msra.mxu0 0.0
        %9337 = vmatprep.subr.mxu0 0.0
        %9338 = vmatpush1.msra.mxu0 0.0
        %9339 = vmatprep.subr.mxu0 0.0
        %9340 = vmatpush1.msra.mxu0 0.0
        %9341 = vmatprep.subr.mxu0 0.0
        %9342 = vmatpush1.msra.mxu0 0.0
        %9343 = vmatprep.subr.mxu0 0.0
        %9344 = vmatpush1.msra.mxu0 0.0
        %9345 = vmatprep.subr.mxu0 0.0
        %9346 = vmatpush1.msra.mxu0 0.0
        %9347 = vmatprep.subr.mxu0 0.0
        %9348 = vmatpush1.msra.mxu0 0.0
        %9349 = vmatprep.subr.mxu0 0.0
        %9350 = vmatpush1.msra.mxu0 0.0
        %9351 = vmatprep.subr.mxu0 0.0
        %9352 = vmatpush1.msra.mxu0 0.0
        %9353 = vmatprep.subr.mxu0 0.0
        %9354 = vmatpush1.msra.mxu0 0.0
        %9355 = vmatprep.subr.mxu0 0.0
        %9356 = vmatpush1.msra.mxu0 0.0
        %9357 = vmatprep.subr.mxu0 0.0
        %9358 = vmatpush1.msra.mxu0 0.0
        %9359 = vmatprep.subr.mxu0 0.0
        %9360 = vmatpush1.msra.mxu0 0.0
        %9361 = vmatprep.subr.mxu0 0.0
        %9362 = vmatpush1.msra.mxu0 0.0
        %9363 = vmatprep.mubr.f32.mxu0 0.0
        %9364 = vmatmul.mubr.f32.gmra.mrb[0].mxu0 %v9294
        %v9365 = vpop.f32.mrb[0].mxu0
        %v9366 = vadd.f32 %v9292, %v9365
        %v9367 = vpop.f32.mrb[0].mxu0
        %9368 = vdwg.mxu0
        %v9369 = vmax.f32 %v9366, 0.0
        %v9370 = vld [vmem:[%s8] sm:$0x1]
        %v9371 = vmul.f32 %v9369, %v9370
        %v9372 = vld [vmem:[%s9] sm:$0x1]
        %v9373 = vadd.f32 %v9371, %v9372
        %v9374 = vld [vmem:[%s10] sm:$0x3f]
        %v9375 = vld [vmem:[%s11] sm:$0x1]
        %v9377 = vsel %vm6408, %v9373, 0
        %v9380 = vsel %vm6421, %v9374, 0
        %9382 = vmatprep.subr.mxu0 0.0
        %9383 = vmatpush1.msra.mxu0 %v9380
        %9384 = vmatprep.subr.mxu0 0.0
        %9385 = vmatpush1.msra.mxu0 0.0
        %9386 = vmatprep.subr.mxu0 0.0
        %9387 = vmatpush1.msra.mxu0 0.0
        %9388 = vmatprep.subr.mxu0 0.0
        %9389 = vmatpush1.msra.mxu0 0.0
        %9390 = vmatprep.subr.mxu0 0.0
        %9391 = vmatpush1.msra.mxu0 0.0
        %9392 = vmatprep.subr.mxu0 0.0
        %9393 = vmatpush1.msra.mxu0 0.0
        %9394 = vmatprep.subr.mxu0 0.0
        %9395 = vmatpush1.msra.mxu0 0.0
        %9396 = vmatprep.subr.mxu0 0.0
        %9397 = vmatpush1.msra.mxu0 0.0
        %9398 = vmatprep.subr.mxu0 0.0
        %9399 = vmatpush1.msra.mxu0 0.0
        %9400 = vmatprep.subr.mxu0 0.0
        %9401 = vmatpush1.msra.mxu0 0.0
        %9402 = vmatprep.subr.mxu0 0.0
        %9403 = vmatpush1.msra.mxu0 0.0
        %9404 = vmatprep.subr.mxu0 0.0
        %9405 = vmatpush1.msra.mxu0 0.0
        %9406 = vmatprep.subr.mxu0 0.0
        %9407 = vmatpush1.msra.mxu0 0.0
        %9408 = vmatprep.subr.mxu0 0.0
        %9409 = vmatpush1.msra.mxu0 0.0
        %9410 = vmatprep.subr.mxu0 0.0
        %9411 = vmatpush1.msra.mxu0 0.0
        %9412 = vmatprep.subr.mxu0 0.0
        %9413 = vmatpush1.msra.mxu0 0.0
        %9414 = vmatprep.subr.mxu0 0.0
        %9415 = vmatpush1.msra.mxu0 0.0
        %9416 = vmatprep.subr.mxu0 0.0
        %9417 = vmatpush1.msra.mxu0 0.0
        %9418 = vmatprep.subr.mxu0 0.0
        %9419 = vmatpush1.msra.mxu0 0.0
        %9420 = vmatprep.subr.mxu0 0.0
        %9421 = vmatpush1.msra.mxu0 0.0
        %9422 = vmatprep.subr.mxu0 0.0
        %9423 = vmatpush1.msra.mxu0 0.0
        %9424 = vmatprep.subr.mxu0 0.0
        %9425 = vmatpush1.msra.mxu0 0.0
        %9426 = vmatprep.subr.mxu0 0.0
        %9427 = vmatpush1.msra.mxu0 0.0
        %9428 = vmatprep.subr.mxu0 0.0
        %9429 = vmatpush1.msra.mxu0 0.0
        %9430 = vmatprep.subr.mxu0 0.0
        %9431 = vmatpush1.msra.mxu0 0.0
        %9432 = vmatprep.subr.mxu0 0.0
        %9433 = vmatpush1.msra.mxu0 0.0
        %9434 = vmatprep.subr.mxu0 0.0
        %9435 = vmatpush1.msra.mxu0 0.0
        %9436 = vmatprep.subr.mxu0 0.0
        %9437 = vmatpush1.msra.mxu0 0.0
        %9438 = vmatprep.subr.mxu0 0.0
        %9439 = vmatpush1.msra.mxu0 0.0
        %9440 = vmatprep.subr.mxu0 0.0
        %9441 = vmatpush1.msra.mxu0 0.0
        %9442 = vmatprep.subr.mxu0 0.0
        %9443 = vmatpush1.msra.mxu0 0.0
        %9444 = vmatprep.subr.mxu0 0.0
        %9445 = vmatpush1.msra.mxu0 0.0
        %9446 = vmatprep.mubr.f32.mxu0 0.0
        %9447 = vmatmul.mubr.f32.gmra.mrb[0].mxu0 %v9377
        %v9448 = vpop.f32.mrb[0].mxu0
        %v9449 = vadd.f32 %v9375, %v9448
        %v9450 = vpop.f32.mrb[0].mxu0
        %9451 = vdwg.mxu0
        %vm9452 = vcmask 8192
        %9453 = vst.msk [vmem:[%s442] sm:$0x1] %vm9452, %v9449
        %s9454 = sand.u32 %s296, 1
        %s9455 = scalar_lea.sflag [#allocation3], %s9454
        %s9456 = sand.u32 %s296, 1
        %s9457 = scalar_lea.vmem [#allocation2], %s9456
        %s9458 = sand.u32 %s322, 1
        %s9459 = scalar_lea.sflag [#allocation5], %s9458
        %s9460 = sand.u32 %s322, 1
        %s9461 = scalar_lea.vmem [#allocation4], %s9460
        // Predicated region
        $region69: #{cnn_forward.1} parent=67 // pred_check
          %p9462 = pneg %p306
        $region70: #{cnn_forward.1} parent=67 // pred_check_branch
          %9464 = sbr.rel (%p9462) target = $region72
        $region71: #{cnn_forward.1} parent=67 // pred_region
          %s9466 = ssub.s32 16, 16
          %9467 = vsyncadd %s9455, %s9466
          %s9468 = smul.addr %s31, 16
          %s9469 = scalar_lea.hbm %s12, %s9468
          %s9471 = sshll.u32 %s9457, 4
          %s9472 = int_to_ptr.vmem [resolvable:$true] %s9471
          %9474 = dma.vmem_to_hbm [thread:$0]  %s9472, 16, %s9469, %s9455
        $region72: #{cnn_forward.1} parent=67 // pred_fallthru
          _
        // Predicated region
        $region73: #{cnn_forward.1} parent=67 // pred_check
          %p9475 = pneg %p332
        $region74: #{cnn_forward.1} parent=67 // pred_check_branch
          %9477 = sbr.rel (%p9475) target = $region76
        $region75: #{cnn_forward.1} parent=67 // pred_region
          %s9479 = ssub.s32 16, 16
          %9480 = vsyncadd %s9459, %s9479
          %s9481 = smul.addr %s31, 16
          %s9482 = scalar_lea.hbm %s13, %s9481
          %s9484 = sshll.u32 %s9461, 4
          %s9485 = int_to_ptr.vmem [resolvable:$true] %s9484
          %9487 = dma.vmem_to_hbm [thread:$0]  %s9485, 16, %s9482, %s9459
        $region76: #{cnn_forward.1} parent=67 // pred_fallthru
          _
      $region68: #{cnn_forward.1} parent=5 // pred_fallthru
        _
      %p9488 = scmp.le.s32.totalorder 2, %s26
      // Predicated region
      $region77: #{cnn_forward.1} parent=5 // pred_check
        %p9489 = pneg %p9488
      $region78: #{cnn_forward.1} parent=5 // pred_check_branch
        %9491 = sbr.rel (%p9489) target = $region80
      $region79: #{cnn_forward.1} parent=5 // pred_region
        %s9492 = ssub.s32 %s26, 2
        // Predicated region
        $region81: #{cnn_forward.1} parent=79 // pred_check
          %p9493 = pneg %p312
        $region82: #{cnn_forward.1} parent=79 // pred_check_branch
          %9495 = sbr.rel (%p9493) target = $region84
        $region83: #{cnn_forward.1} parent=79 // pred_region
          %s9496 = sand.u32 %s297, 1
          %s9497 = scalar_lea.sflag [#allocation3], %s9496
          %s9498 = sand.u32 %s297, 1
          %s9499 = scalar_lea.vmem [#allocation2], %s9498
          %9500 = dma.done %s9497, 16
        $region84: #{cnn_forward.1} parent=79 // pred_fallthru
          _
        // Predicated region
        $region85: #{cnn_forward.1} parent=79 // pred_check
          %p9501 = pneg %p338
        $region86: #{cnn_forward.1} parent=79 // pred_check_branch
          %9503 = sbr.rel (%p9501) target = $region88
        $region87: #{cnn_forward.1} parent=79 // pred_region
          %s9504 = sand.u32 %s323, 1
          %s9505 = scalar_lea.sflag [#allocation5], %s9504
          %s9506 = sand.u32 %s323, 1
          %s9507 = scalar_lea.vmem [#allocation4], %s9506
          %9508 = dma.done %s9505, 16
        $region88: #{cnn_forward.1} parent=79 // pred_fallthru
          _
      $region80: #{cnn_forward.1} parent=5 // pred_fallthru
        _
    $region6: #{cnn_forward.1} parent=1 // loop_footer
      %s30 = sadd.s32 1, %s26
    $region7: #{cnn_forward.1} parent=1 // loop_footer_branch
      %25 = sbr.rel target = $region3
    $region8: #{cnn_forward.1} parent=1 // loop_exit
      _
    %9509 = vsyncpa [#allocation3], 1
    %s9510 = scalar_lea.sflag [#allocation3], 1
    %9511 = vsyncpa %s9510, 1
    %9512 = vsyncpa [#allocation5], 1
    %s9513 = scalar_lea.sflag [#allocation5], 1
    %9514 = vsyncpa %s9513, 1

</llo_original>
